<compile_context>
chip_gen: v6e
topology: v6e:2x2x1
jax: 0.10.0
libtpu: 0.0.40
codegen_flags: <defaults>
</compile_context>

<pallas_src>
import jax
import jax.numpy as jnp
from jax import lax
from jax.experimental import pallas as pl
from jax.experimental.pallas import tpu as pltpu

EPS = 1e-5
LANE = 128
ROW_TILE = 256
VMEM_LIMIT = 48 * 1024 * 1024


# ------------------------------ small helpers ------------------------------ #

def _round_up(v, m):
    return (v + m - 1) // m * m


def _pad_channels(x_nhwc, cp):
    c = x_nhwc.shape[-1]
    if cp == c:
        return x_nhwc
    return jnp.pad(x_nhwc, ((0, 0), (0, 0), (0, 0), (0, cp - c)))


def _pad_vec(v, cp):
    return jnp.pad(v.astype(jnp.float32), (0, cp - v.shape[0]))


def _affine_from_stats(mean, var, gamma, beta):
    scale = gamma / jnp.sqrt(var + EPS)
    shift = beta - mean * scale
    return (scale.reshape(1, -1).astype(jnp.float32),
            shift.reshape(1, -1).astype(jnp.float32))


def _prep_w3x3(w, cp, pp):
    # (Cout, Cin, 3, 3) -> (3, 3, Cp, Pp) bf16, zero padded channels.
    co, ci = w.shape[0], w.shape[1]
    wt = jnp.transpose(w, (2, 3, 1, 0))
    wt = jnp.pad(wt, ((0, 0), (0, 0), (0, cp - ci), (0, pp - co)))
    return wt.astype(jnp.bfloat16)


def _prep_w1x1(w, cp, pp):
    co, ci = w.shape[0], w.shape[1]
    wt = jnp.transpose(w[:, :, 0, 0], (1, 0))
    wt = jnp.pad(wt, ((0, cp - ci), (0, pp - co)))
    return wt.astype(jnp.bfloat16)


# ----------------------------- Pallas kernels ------------------------------ #

def _stats_kernel(x_ref, o_ref):
    # Per-row-tile partial sums for batch-norm statistics (f32).
    x = x_ref[...]
    s = jnp.sum(x, axis=0, keepdims=True)
    ss = jnp.sum(x * x, axis=0, keepdims=True)
    row = lax.broadcasted_iota(jnp.int32, (8, x.shape[1]), 0)
    o_ref[0] = jnp.where(row == 0, s, 0.0) + jnp.where(row == 1, ss, 0.0)


def _batch_stats(x2d, n_valid):
    """Training-mode BN statistics (biased variance) over the row axis."""
    m, c = x2d.shape
    mp = _round_up(m, ROW_TILE)
    if mp != m:
        x2d = jnp.pad(x2d, ((0, mp - m), (0, 0)))  # zero rows: no effect on sums
    nt = mp // ROW_TILE
    st = pl.pallas_call(
        _stats_kernel,
        out_shape=jax.ShapeDtypeStruct((nt, 8, c), jnp.float32),
        grid=(nt,),
        in_specs=[pl.BlockSpec((ROW_TILE, c), lambda i: (i, 0))],
        out_specs=pl.BlockSpec((1, 8, c), lambda i: (i, 0, 0)),
        compiler_params=pltpu.CompilerParams(
            dimension_semantics=("parallel",),
            vmem_limit_bytes=VMEM_LIMIT),
    )(x2d)
    mean = st[:, 0, :].sum(axis=0) / n_valid
    msq = st[:, 1, :].sum(axis=0) / n_valid
    return mean, msq - mean * mean


def _mm_bnrelu_kernel(a_ref, sc_ref, sh_ref, w_ref, o_ref):
    # Fused prologue: relu(a * scale + shift) in f32, then bf16 MXU matmul.
    a = jnp.maximum(a_ref[...] * sc_ref[...] + sh_ref[...], 0.0)
    o_ref[...] = jnp.dot(a.astype(jnp.bfloat16), w_ref[...],
                         preferred_element_type=jnp.float32)


def _matmul_bn_relu(a, scale, shift, w):
    """(relu(a*scale+shift)) @ w  with tiled grid; used for the 1x1 shortcut conv."""
    m, k = a.shape
    nc = w.shape[1]
    tn = 256 if nc % 256 == 0 else 128
    mp = _round_up(m, ROW_TILE)
    if mp != m:
        a = jnp.pad(a, ((0, mp - m), (0, 0)))
    out = pl.pallas_call(
        _mm_bnrelu_kernel,
        out_shape=jax.ShapeDtypeStruct((mp, nc), jnp.float32),
        grid=(mp // ROW_TILE, nc // tn),
        in_specs=[pl.BlockSpec((ROW_TILE, k), lambda i, j: (i, 0)),
                  pl.BlockSpec((1, k), lambda i, j: (0, 0)),
                  pl.BlockSpec((1, k), lambda i, j: (0, 0)),
                  pl.BlockSpec((k, tn), lambda i, j: (0, j))],
        out_specs=pl.BlockSpec((ROW_TILE, tn), lambda i, j: (i, j)),
        compiler_params=pltpu.CompilerParams(
            dimension_semantics=("parallel", "parallel"),
            vmem_limit_bytes=VMEM_LIMIT),
    )(a, scale, shift, w)
    return out[:m]


def _make_conv3x3_kernel(H, W, Cp, TN, add_residual, emit_stats):
    """3x3 / pad 1 / stride 1 conv over one image, fused BN-affine+ReLU prologue,
    implicit im2col via 9 tap matmuls, optional residual epilogue / stats output."""
    Hp, Wp = H + 2, W + 2

    def body(x_ref, sc_ref, sh_ref, w_ref, r_ref, o_ref, st_ref, pad_ref, acc_ref):
        j = pl.program_id(1)

        # Build the zero-padded, activated image once per batch element; the
        # VMEM scratch persists while the Cout-tile axis j sweeps ("arbitrary").
        @pl.when(j == 0)
        def _():
            hi = lax.broadcasted_iota(jnp.int32, (Hp, Wp, 1), 0)
            wi = lax.broadcasted_iota(jnp.int32, (Hp, Wp, 1), 1)
            interior = (hi >= 1) & (hi <= H) & (wi >= 1) & (wi <= W)
            act = x_ref[0] * sc_ref[...] + sh_ref[...]           # f32 affine (VPU)
            pad_ref[...] = jnp.where(interior, jnp.maximum(act, 0.0), 0.0)

        # Implicit im2col: 9 tap matmuls, bf16 MXU, f32 VMEM accumulator.
        first = True
        for kh in range(3):
            for kw in range(3):
                a = pad_ref[kh:kh + H, kw:kw + W, :].reshape(H * W, Cp)
                contrib = jnp.dot(a.astype(jnp.bfloat16), w_ref[kh, kw],
                                  preferred_element_type=jnp.float32)
                if first:
                    acc_ref[...] = contrib
                    first = False
                else:
                    acc_ref[...] += contrib

        conv = acc_ref[...]
        if emit_stats:
            csum = jnp.sum(conv, axis=0, keepdims=True)
            csq = jnp.sum(conv * conv, axis=0, keepdims=True)
            row = lax.broadcasted_iota(jnp.int32, (8, TN), 0)
            st_ref[0] = (jnp.where(row == 0, csum, 0.0) +
                         jnp.where(row == 1, csq, 0.0))
        if add_residual:
            conv = conv + r_ref[0].reshape(H * W, TN)
        o_ref[0] = conv.reshape(H, W, TN)

    if add_residual and emit_stats:
        return body
    if add_residual:
        return lambda x, sc, sh, w, r, o, pad, acc: body(x, sc, sh, w, r, o, None, pad, acc)
    if emit_stats:
        return lambda x, sc, sh, w, o, st, pad, acc: body(x, sc, sh, w, None, o, st, pad, acc)
    return lambda x, sc, sh, w, o, pad, acc: body(x, sc, sh, w, None, o, None, pad, acc)


def _conv3x3_fused(x_padded, scale, shift, w, residual=None, emit_stats=False):
    """x_padded: (N, H+2, W+2, Cp) f32 raw input (spatially zero padded).
    Computes conv3x3(relu(x*scale+shift)) with stride 1; the activation zero-pad
    semantics are enforced inside the kernel via a border mask."""
    n, hp, wp, cp = x_padded.shape
    h, wdt = hp - 2, wp - 2
    pp = w.shape[-1]
    tn = 256 if pp % 256 == 0 else 128
    nj = pp // tn

    kernel = _make_conv3x3_kernel(h, wdt, cp, tn,
                                  add_residual=residual is not None,
                                  emit_stats=emit_stats)

    in_specs = [
        pl.BlockSpec((1, hp, wp, cp), lambda i, j: (i, 0, 0, 0)),
        pl.BlockSpec((1, cp), lambda i, j: (0, 0)),
        pl.BlockSpec((1, cp), lambda i, j: (0, 0)),
        pl.BlockSpec((3, 3, cp, tn), lambda i, j: (0, 0, 0, j)),
    ]
    inputs = [x_padded, scale, shift, w]
    if residual is not None:
        in_specs.append(pl.BlockSpec((1, h, wdt, tn), lambda i, j: (i, 0, 0, j)))
        inputs.append(residual)

    out_spec = pl.BlockSpec((1, h, wdt, tn), lambda i, j: (i, 0, 0, j))
    out_sds = jax.ShapeDtypeStruct((n, h, wdt, pp), jnp.float32)
    if emit_stats:
        out_shape = (out_sds, jax.ShapeDtypeStruct((n, 8, pp), jnp.float32))
        out_specs = (out_spec, pl.BlockSpec((1, 8, tn), lambda i, j: (i, 0, j)))
    else:
        out_shape = out_sds
        out_specs = out_spec

    result = pl.pallas_call(
        kernel,
        out_shape=out_shape,
        grid=(n, nj),
        in_specs=in_specs,
        out_specs=out_specs,
        scratch_shapes=[pltpu.VMEM((hp, wp, cp), jnp.float32),      # padded activation
                        pltpu.VMEM((h * wdt, tn), jnp.float32)],    # f32 accumulator
        compiler_params=pltpu.CompilerParams(
            dimension_semantics=("parallel", "arbitrary"),
            vmem_limit_bytes=VMEM_LIMIT),
    )(*inputs)

    if emit_stats:
        return result[0], result[1]
    return result


# ------------------------------ block forward ------------------------------ #

def init_params(key, in_planes, planes, stride):
    k1, k2, k3 = jax.random.split(key, 3)
    params = {
        "gamma1": jnp.ones((in_planes,), jnp.float32),
        "beta1": jnp.zeros((in_planes,), jnp.float32),
        "gamma2": jnp.ones((planes,), jnp.float32),
        "beta2": jnp.zeros((planes,), jnp.float32),
        "w1": 0.1 * jax.random.normal(k1, (planes, in_planes, 3, 3), jnp.float32),
        "w2": 0.1 * jax.random.normal(k2, (planes, planes, 3, 3), jnp.float32),
    }
    if stride != 1 or in_planes != planes:
        params["w_sc"] = 0.1 * jax.random.normal(k3, (planes, in_planes, 1, 1), jnp.float32)
    return params


def preact_block_forward(x_nchw, params, stride):
    n, c, h, w = x_nchw.shape
    planes = params["w1"].shape[0]
    cp = _round_up(c, LANE)
    pp = _round_up(planes, LANE)

    x = jnp.transpose(x_nchw, (0, 2, 3, 1)).astype(jnp.float32)   # NHWC
    x_p = _pad_channels(x, cp)                                     # (N,H,W,Cp)

    g1, b1 = _pad_vec(params["gamma1"], cp), _pad_vec(params["beta1"], cp)
    g2, b2 = _pad_vec(params["gamma2"], pp), _pad_vec(params["beta2"], pp)

    # bn1 statistics (training mode, biased variance).
    mean1, var1 = _batch_stats(x_p.reshape(n * h * w, cp), n * h * w)
    s1, sh1 = _affine_from_stats(mean1, var1, g1, b1)

    has_shortcut = (stride != 1) or (c != planes)
    ho = (h - 1) // stride + 1
    wo = (w - 1) // stride + 1

    # conv1: relu(bn1) prologue fused; also emits sum/sumsq for bn2 (stride==1).
    w1 = _prep_w3x3(params["w1"], cp, pp)
    x_sp = jnp.pad(x_p, ((0, 0), (1, 1), (1, 1), (0, 0)))
    # TODO(synk): stride>1 currently computes the stride-1 conv and subsamples
    # (correct, but does 4x extra MXU work); fold the stride into the tap reads.
    if stride == 1:
        out1, st = _conv3x3_fused(x_sp, s1, sh1, w1, residual=None, emit_stats=True)
        cnt = n * h * w
        mean2 = st[:, 0, :].sum(axis=0) / cnt
        var2 = st[:, 1, :].sum(axis=0) / cnt - mean2 * mean2
    else:
        out1_full = _conv3x3_fused(x_sp, s1, sh1, w1, residual=None, emit_stats=False)
        out1 = out1_full[:, ::stride, ::stride, :]
        mean2, var2 = _batch_stats(out1.reshape(n * ho * wo, pp), n * ho * wo)
    s2, sh2 = _affine_from_stats(mean2, var2, g2, b2)

    # Shortcut branch (1x1 conv on relu(bn1(x)) fused, or identity on x).
    if has_shortcut:
        wsc = _prep_w1x1(params["w_sc"], cp, pp)
        xs = x_p[:, ::stride, ::stride, :].reshape(n * ho * wo, cp)
        sc2d = _matmul_bn_relu(xs, s1, sh1, wsc)
        residual = sc2d.reshape(n, ho, wo, pp)
    else:
        residual = x_p  # identity shortcut uses the original x (cp == pp here)

    # conv2: relu(bn2) prologue + residual-add epilogue fused.
    w2 = _prep_w3x3(params["w2"], pp, pp)
    out1_sp = jnp.pad(out1, ((0, 0), (1, 1), (1, 1), (0, 0)))
    out = _conv3x3_fused(out1_sp, s2, sh2, w2, residual=residual, emit_stats=False)

    out = out[..., :planes]
    return jnp.transpose(out, (0, 3, 1, 2))   # back to NCHW


# --------------------------- pure-JAX references ---------------------------- #

def ref_forward(x, params, stride, matmul_dtype=jnp.float32):
    """Reference. matmul_dtype=bf16 emulates the kernel's mixed precision
    (bf16 MXU operands, f32 accumulation); f32 is the exact PyTorch math."""

    def bn(v, gamma, beta):
        mean = v.mean(axis=(0, 2, 3), keepdims=True)
        var = jnp.var(v, axis=(0, 2, 3), keepdims=True)
        vn = (v - mean) / jnp.sqrt(var + EPS)
        return vn * gamma.reshape(1, -1, 1, 1) + beta.reshape(1, -1, 1, 1)

    def conv(v, wgt, s, pad):
        return lax.conv_general_dilated(
            v.astype(matmul_dtype), wgt.astype(matmul_dtype), (s, s), pad,
            dimension_numbers=("NCHW", "OIHW", "NCHW"),
            preferred_element_type=jnp.float32)

    h = jax.nn.relu(bn(x, params["gamma1"], params["beta1"]))
    if "w_sc" in params:
        shortcut = conv(h, params["w_sc"], stride, "VALID")
    else:
        shortcut = x
    out1 = conv(h, params["w1"], stride, ((1, 1), (1, 1)))
    t = jax.nn.relu(bn(out1, params["gamma2"], params["beta2"]))
    out = conv(t, params["w2"], 1, ((1, 1), (1, 1)))
    return out + shortcut


# --------------------------------- main ------------------------------------ #

if __name__ == "__main__":
    key = jax.random.PRNGKey(0)
    kx, kp = jax.random.split(key)

    N, in_planes, H, W = 2, 4, 16, 16
    planes, stride = 8, 1   # in_planes != planes -> 1x1 conv shortcut path exercised

    x = jax.random.normal(kx, (N, in_planes, H, W), jnp.float32)
    params = init_params(kp, in_planes, planes, stride)

    fwd = jax.jit(preact_block_forward, static_argnums=2)
    out = jax.block_until_ready(fwd(x, params, stride))
    assert out.shape == (N, planes, H, W)

    # Tight check vs a reference that uses the same bf16-operand / f32-accumulate
    # precision as the kernel; loose sanity check vs the pure-f32 reference.
    ref_mixed = jax.block_until_ready(ref_forward(x, params, stride, jnp.bfloat16))
    ref_f32 = jax.block_until_ready(ref_forward(x, params, stride, jnp.float32))
    err_mixed = float(jnp.max(jnp.abs(out - ref_mixed)))
    err_f32 = float(jnp.max(jnp.abs(out - ref_f32)))
    if err_mixed > 1e-3:
        raise AssertionError(f"mismatch vs mixed-precision reference: {err_mixed}")
    if err_f32 > 1e-1:
        raise AssertionError(f"mismatch vs f32 reference: {err_f32}")

    print("KERNEL_OK")
</pallas_src>

<mosaic_0001>
module attributes {stable_mosaic.version = 11 : i64} {
  func.func @_stats_kernel(%arg0: i32, %arg1: memref<256x128xf32, #tpu.memory_space<vmem>>, %arg2: memref<1x8x128xf32, #tpu.memory_space<vmem>>) attributes {dimension_semantics = [#tpu.dimension_semantics<parallel>], iteration_bounds = array<i64: 2>, scalar_prefetch = 0 : i64, scratch_operands = 0 : i64, tpu.core_type = #tpu.core_type<tc>, window_params = [{transform_indices = @transform_0, window_bounds = array<i64: 256, 128>}, {transform_indices = @transform_1, window_bounds = array<i64: 1, 8, 128>}]} {
    %c0 = arith.constant 0 : index
    %c0_0 = arith.constant 0 : index
    %0 = vector.load %arg1[%c0, %c0_0] : memref<256x128xf32, #tpu.memory_space<vmem>>, vector<256x128xf32>
    %cst = arith.constant dense<0.000000e+00> : vector<128xf32>
    %1 = vector.multi_reduction <add>, %0, %cst [0] : vector<256x128xf32> to vector<128xf32>
    %2 = vector.shape_cast %1 : vector<128xf32> to vector<1x128xf32>
    %3 = arith.mulf %0, %0 : vector<256x128xf32>
    %cst_1 = arith.constant dense<0.000000e+00> : vector<128xf32>
    %4 = vector.multi_reduction <add>, %3, %cst_1 [0] : vector<256x128xf32> to vector<128xf32>
    %5 = vector.shape_cast %4 : vector<128xf32> to vector<1x128xf32>
    %6 = tpu.iota {dimensions = array<i32: 0>} : vector<8x128xi32>
    %c0_i32 = arith.constant 0 : i32
    %7 = vector.broadcast %c0_i32 : i32 to vector<8x128xi32>
    %8 = arith.cmpi eq, %6, %7 : vector<8x128xi32>
    %cst_2 = arith.constant 0.000000e+00 : f32
    %9 = vector.shape_cast %2 : vector<1x128xf32> to vector<1x128xf32>
    %10 = vector.broadcast %9 : vector<1x128xf32> to vector<8x128xf32>
    %11 = vector.broadcast %cst_2 : f32 to vector<8x128xf32>
    %12 = arith.select %8, %10, %11 : vector<8x128xi1>, vector<8x128xf32>
    %c1_i32 = arith.constant 1 : i32
    %13 = vector.broadcast %c1_i32 : i32 to vector<8x128xi32>
    %14 = arith.cmpi eq, %6, %13 : vector<8x128xi32>
    %cst_3 = arith.constant 0.000000e+00 : f32
    %15 = vector.shape_cast %5 : vector<1x128xf32> to vector<1x128xf32>
    %16 = vector.broadcast %15 : vector<1x128xf32> to vector<8x128xf32>
    %17 = vector.broadcast %cst_3 : f32 to vector<8x128xf32>
    %18 = arith.select %14, %16, %17 : vector<8x128xi1>, vector<8x128xf32>
    %19 = arith.addf %12, %18 : vector<8x128xf32>
    %c0_4 = arith.constant 0 : index
    %c0_5 = arith.constant 0 : index
    %c0_6 = arith.constant 0 : index
    %20 = vector.load %arg2[%c0_4, %c0_5, %c0_6] : memref<1x8x128xf32, #tpu.memory_space<vmem>>, vector<1x8x128xf32>
    %21 = vector.shape_cast %20 : vector<1x8x128xf32> to vector<8x128xf32>
    %22 = vector.shape_cast %19 : vector<8x128xf32> to vector<1x8x128xf32>
    tpu.vector_store %arg2[%c0_4, %c0_5, %c0_6], %22 {strides = array<i32>} : memref<1x8x128xf32, #tpu.memory_space<vmem>>, vector<1x8x128xf32>,
    return
  }
  func.func @transform_0(%arg0: i32) -> (i32, i32) {
    %c0_i32 = arith.constant 0 : i32
    %c0_i32_0 = arith.constant 0 : i32
    return %arg0, %c0_i32 : i32, i32
  }
  func.func @transform_1(%arg0: i32) -> (i32, i32, i32) {
    %c0_i32 = arith.constant 0 : i32
    %c0_i32_0 = arith.constant 0 : i32
    %c0_i32_1 = arith.constant 0 : i32
    return %arg0, %c0_i32, %c0_i32_0 : i32, i32, i32
  }
}

module attributes {stable_mosaic.version = 11 : i64} {
  func.func @_lambda_(%arg0: i32, %arg1: i32, %arg2: memref<1x18x18x128xf32, #tpu.memory_space<vmem>>, %arg3: memref<1x128xf32, #tpu.memory_space<vmem>>, %arg4: memref<1x128xf32, #tpu.memory_space<vmem>>, %arg5: memref<3x3x128x128xbf16, #tpu.memory_space<vmem>>, %arg6: memref<1x16x16x128xf32, #tpu.memory_space<vmem>>, %arg7: memref<1x8x128xf32, #tpu.memory_space<vmem>>, %arg8: memref<18x18x128xf32, #tpu.memory_space<vmem>>, %arg9: memref<256x128xf32, #tpu.memory_space<vmem>>) attributes {dimension_semantics = [#tpu.dimension_semantics<parallel>, #tpu.dimension_semantics<arbitrary>], iteration_bounds = array<i64: 2, 1>, scalar_prefetch = 0 : i64, scratch_operands = 2 : i64, tpu.core_type = #tpu.core_type<tc>, window_params = [{transform_indices = @transform_0, window_bounds = array<i64: 1, 18, 18, 128>}, {pipeline_mode = #tpu.pipeline_mode<synchronous>, transform_indices = @transform_1, window_bounds = array<i64: 1, 128>}, {pipeline_mode = #tpu.pipeline_mode<synchronous>, transform_indices = @transform_2, window_bounds = array<i64: 1, 128>}, {transform_indices = @transform_3, window_bounds = array<i64: 3, 3, 128, 128>}, {transform_indices = @transform_4, window_bounds = array<i64: 1, 16, 16, 128>}, {transform_indices = @transform_5, window_bounds = array<i64: 1, 8, 128>}]} {
    %c0_i32 = arith.constant 0 : i32
    %0 = arith.cmpi eq, %arg1, %c0_i32 : i32
    %1 = arith.extui %0 : i1 to i32
    %c0_i32_0 = arith.constant 0 : i32
    %2 = arith.cmpi ne, %1, %c0_i32_0 : i32
    scf.if %2 {
      %109 = tpu.iota {dimensions = array<i32: 0>} : vector<18x18x1xi32>
      %110 = tpu.iota {dimensions = array<i32: 1>} : vector<18x18x1xi32>
      %c1_i32_117 = arith.constant 1 : i32
      %111 = vector.broadcast %c1_i32_117 : i32 to vector<18x18x1xi32>
      %112 = arith.cmpi sge, %109, %111 : vector<18x18x1xi32>
      %c16_i32 = arith.constant 16 : i32
      %113 = vector.broadcast %c16_i32 : i32 to vector<18x18x1xi32>
      %114 = arith.cmpi sle, %109, %113 : vector<18x18x1xi32>
      %115 = arith.andi %112, %114 : vector<18x18x1xi1>
      %c1_i32_118 = arith.constant 1 : i32
      %116 = vector.broadcast %c1_i32_118 : i32 to vector<18x18x1xi32>
      %117 = arith.cmpi sge, %110, %116 : vector<18x18x1xi32>
      %118 = arith.andi %115, %117 : vector<18x18x1xi1>
      %c16_i32_119 = arith.constant 16 : i32
      %119 = vector.broadcast %c16_i32_119 : i32 to vector<18x18x1xi32>
      %120 = arith.cmpi sle, %110, %119 : vector<18x18x1xi32>
      %121 = arith.andi %118, %120 : vector<18x18x1xi1>
      %c0_120 = arith.constant 0 : index
      %c0_121 = arith.constant 0 : index
      %c0_122 = arith.constant 0 : index
      %c0_123 = arith.constant 0 : index
      %122 = vector.load %arg2[%c0_120, %c0_121, %c0_122, %c0_123] : memref<1x18x18x128xf32, #tpu.memory_space<vmem>>, vector<1x18x18x128xf32>
      %123 = vector.shape_cast %122 : vector<1x18x18x128xf32> to vector<18x18x128xf32>
      %c0_124 = arith.constant 0 : index
      %c0_125 = arith.constant 0 : index
      %124 = vector.load %arg3[%c0_124, %c0_125] : memref<1x128xf32, #tpu.memory_space<vmem>>, vector<1x128xf32>
      %125 = vector.shape_cast %124 : vector<1x128xf32> to vector<1x1x128xf32>
      %126 = vector.broadcast %125 : vector<1x1x128xf32> to vector<18x18x128xf32>
      %127 = arith.mulf %123, %126 : vector<18x18x128xf32>
      %c0_126 = arith.constant 0 : index
      %c0_127 = arith.constant 0 : index
      %128 = vector.load %arg4[%c0_126, %c0_127] : memref<1x128xf32, #tpu.memory_space<vmem>>, vector<1x128xf32>
      %129 = vector.shape_cast %128 : vector<1x128xf32> to vector<1x1x128xf32>
      %130 = vector.broadcast %129 : vector<1x1x128xf32> to vector<18x18x128xf32>
      %131 = arith.addf %127, %130 : vector<18x18x128xf32>
      %cst_128 = arith.constant 0.000000e+00 : f32
      %132 = vector.broadcast %cst_128 : f32 to vector<18x18x128xf32>
      %133 = arith.maximumf %131, %132 : vector<18x18x128xf32>
      %cst_129 = arith.constant 0.000000e+00 : f32
      %134 = vector.shape_cast %121 : vector<18x18x1xi1> to vector<18x18x1xi1>
      %135 = vector.broadcast %134 : vector<18x18x1xi1> to vector<18x18x128xi1>
      %136 = vector.broadcast %cst_129 : f32 to vector<18x18x128xf32>
      %137 = arith.select %135, %133, %136 : vector<18x18x128xi1>, vector<18x18x128xf32>
      %c0_130 = arith.constant 0 : index
      %c0_131 = arith.constant 0 : index
      %c0_132 = arith.constant 0 : index
      %138 = vector.load %arg8[%c0_130, %c0_131, %c0_132] : memref<18x18x128xf32, #tpu.memory_space<vmem>>, vector<18x18x128xf32>
      tpu.vector_store %arg8[%c0_130, %c0_131, %c0_132], %137 {strides = array<i32>} : memref<18x18x128xf32, #tpu.memory_space<vmem>>, vector<18x18x128xf32>,
    } else {
    }
    %c0 = arith.constant 0 : index
    %c0_1 = arith.constant 0 : index
    %c0_2 = arith.constant 0 : index
    %3 = vector.load %arg8[%c0, %c0_1, %c0_2] : memref<18x18x128xf32, #tpu.memory_space<vmem>>, vector<16x16x128xf32>
    %4 = vector.shape_cast %3 : vector<16x16x128xf32> to vector<256x128xf32>
    %5 = arith.truncf %4 : vector<256x128xf32> to vector<256x128xbf16>
    %c0_3 = arith.constant 0 : index
    %c0_4 = arith.constant 0 : index
    %c0_5 = arith.constant 0 : index
    %c0_6 = arith.constant 0 : index
    %6 = vector.load %arg5[%c0_3, %c0_4, %c0_5, %c0_6] : memref<3x3x128x128xbf16, #tpu.memory_space<vmem>>, vector<1x1x128x128xbf16>
    %7 = vector.shape_cast %6 : vector<1x1x128x128xbf16> to vector<128x128xbf16>
    %cst = arith.constant dense<0.000000e+00> : vector<256x128xf32>
    %8 = tpu.matmul %5, %7, %cst {dimension_numbers = #tpu.dot_dimension_numbers<[1], [0], [0], [1], [0, 0, 1, 1], [], []>} : vector<256x128xbf16>, vector<128x128xbf16>, vector<256x128xf32> -> vector<256x128xf32>
    %c0_7 = arith.constant 0 : index
    %c0_8 = arith.constant 0 : index
    %9 = vector.load %arg9[%c0_7, %c0_8] : memref<256x128xf32, #tpu.memory_space<vmem>>, vector<256x128xf32>
    tpu.vector_store %arg9[%c0_7, %c0_8], %8 {strides = array<i32>} : memref<256x128xf32, #tpu.memory_space<vmem>>, vector<256x128xf32>,
    %c0_9 = arith.constant 0 : index
    %c1 = arith.constant 1 : index
    %c0_10 = arith.constant 0 : index
    %10 = vector.load %arg8[%c0_9, %c1, %c0_10] : memref<18x18x128xf32, #tpu.memory_space<vmem>>, vector<16x16x128xf32>
    %11 = vector.shape_cast %10 : vector<16x16x128xf32> to vector<256x128xf32>
    %12 = arith.truncf %11 : vector<256x128xf32> to vector<256x128xbf16>
    %c0_11 = arith.constant 0 : index
    %c1_12 = arith.constant 1 : index
    %c0_13 = arith.constant 0 : index
    %c0_14 = arith.constant 0 : index
    %13 = vector.load %arg5[%c0_11, %c1_12, %c0_13, %c0_14] : memref<3x3x128x128xbf16, #tpu.memory_space<vmem>>, vector<1x1x128x128xbf16>
    %14 = vector.shape_cast %13 : vector<1x1x128x128xbf16> to vector<128x128xbf16>
    %cst_15 = arith.constant dense<0.000000e+00> : vector<256x128xf32>
    %15 = tpu.matmul %12, %14, %cst_15 {dimension_numbers = #tpu.dot_dimension_numbers<[1], [0], [0], [1], [0, 0, 1, 1], [], []>} : vector<256x128xbf16>, vector<128x128xbf16>, vector<256x128xf32> -> vector<256x128xf32>
    %c0_16 = arith.constant 0 : index
    %c0_17 = arith.constant 0 : index
    %16 = vector.load %arg9[%c0_16, %c0_17] : memref<256x128xf32, #tpu.memory_space<vmem>>, vector<256x128xf32>
    %17 = arith.addf %16, %15 : vector<256x128xf32>
    %c0_18 = arith.constant 0 : index
    %c0_19 = arith.constant 0 : index
    %18 = vector.load %arg9[%c0_18, %c0_19] : memref<256x128xf32, #tpu.memory_space<vmem>>, vector<256x128xf32>
    tpu.vector_store %arg9[%c0_18, %c0_19], %17 {strides = array<i32>} : memref<256x128xf32, #tpu.memory_space<vmem>>, vector<256x128xf32>,
    %c0_20 = arith.constant 0 : index
    %c2 = arith.constant 2 : index
    %c0_21 = arith.constant 0 : index
    %19 = vector.load %arg8[%c0_20, %c2, %c0_21] : memref<18x18x128xf32, #tpu.memory_space<vmem>>, vector<16x16x128xf32>
    %20 = vector.shape_cast %19 : vector<16x16x128xf32> to vector<256x128xf32>
    %21 = arith.truncf %20 : vector<256x128xf32> to vector<256x128xbf16>
    %c0_22 = arith.constant 0 : index
    %c2_23 = arith.constant 2 : index
    %c0_24 = arith.constant 0 : index
    %c0_25 = arith.constant 0 : index
    %22 = vector.load %arg5[%c0_22, %c2_23, %c0_24, %c0_25] : memref<3x3x128x128xbf16, #tpu.memory_space<vmem>>, vector<1x1x128x128xbf16>
    %23 = vector.shape_cast %22 : vector<1x1x128x128xbf16> to vector<128x128xbf16>
    %cst_26 = arith.constant dense<0.000000e+00> : vector<256x128xf32>
    %24 = tpu.matmul %21, %23, %cst_26 {dimension_numbers = #tpu.dot_dimension_numbers<[1], [0], [0], [1], [0, 0, 1, 1], [], []>} : vector<256x128xbf16>, vector<128x128xbf16>, vector<256x128xf32> -> vector<256x128xf32>
    %c0_27 = arith.constant 0 : index
    %c0_28 = arith.constant 0 : index
    %25 = vector.load %arg9[%c0_27, %c0_28] : memref<256x128xf32, #tpu.memory_space<vmem>>, vector<256x128xf32>
    %26 = arith.addf %25, %24 : vector<256x128xf32>
    %c0_29 = arith.constant 0 : index
    %c0_30 = arith.constant 0 : index
    %27 = vector.load %arg9[%c0_29, %c0_30] : memref<256x128xf32, #tpu.memory_space<vmem>>, vector<256x128xf32>
    tpu.vector_store %arg9[%c0_29, %c0_30], %26 {strides = array<i32>} : memref<256x128xf32, #tpu.memory_space<vmem>>, vector<256x128xf32>,
    %c1_31 = arith.constant 1 : index
    %c0_32 = arith.constant 0 : index
    %c0_33 = arith.constant 0 : index
    %28 = vector.load %arg8[%c1_31, %c0_32, %c0_33] : memref<18x18x128xf32, #tpu.memory_space<vmem>>, vector<16x16x128xf32>
    %29 = vector.shape_cast %28 : vector<16x16x128xf32> to vector<256x128xf32>
    %30 = arith.truncf %29 : vector<256x128xf32> to vector<256x128xbf16>
    %c1_34 = arith.constant 1 : index
    %c0_35 = arith.constant 0 : index
    %c0_36 = arith.constant 0 : index
    %c0_37 = arith.constant 0 : index
    %31 = vector.load %arg5[%c1_34, %c0_35, %c0_36, %c0_37] : memref<3x3x128x128xbf16, #tpu.memory_space<vmem>>, vector<1x1x128x128xbf16>
    %32 = vector.shape_cast %31 : vector<1x1x128x128xbf16> to vector<128x128xbf16>
    %cst_38 = arith.constant dense<0.000000e+00> : vector<256x128xf32>
    %33 = tpu.matmul %30, %32, %cst_38 {dimension_numbers = #tpu.dot_dimension_numbers<[1], [0], [0], [1], [0, 0, 1, 1], [], []>} : vector<256x128xbf16>, vector<128x128xbf16>, vector<256x128xf32> -> vector<256x128xf32>
    %c0_39 = arith.constant 0 : index
    %c0_40 = arith.constant 0 : index
    %34 = vector.load %arg9[%c0_39, %c0_40] : memref<256x128xf32, #tpu.memory_space<vmem>>, vector<256x128xf32>
    %35 = arith.addf %34, %33 : vector<256x128xf32>
    %c0_41 = arith.constant 0 : index
    %c0_42 = arith.constant 0 : index
    %36 = vector.load %arg9[%c0_41, %c0_42] : memref<256x128xf32, #tpu.memory_space<vmem>>, vector<256x128xf32>
    tpu.vector_store %arg9[%c0_41, %c0_42], %35 {strides = array<i32>} : memref<256x128xf32, #tpu.memory_space<vmem>>, vector<256x128xf32>,
    %c1_43 = arith.constant 1 : index
    %c1_44 = arith.constant 1 : index
    %c0_45 = arith.constant 0 : index
    %37 = vector.load %arg8[%c1_43, %c1_44, %c0_45] : memref<18x18x128xf32, #tpu.memory_space<vmem>>, vector<16x16x128xf32>
    %38 = vector.shape_cast %37 : vector<16x16x128xf32> to vector<256x128xf32>
    %39 = arith.truncf %38 : vector<256x128xf32> to vector<256x128xbf16>
    %c1_46 = arith.constant 1 : index
    %c1_47 = arith.constant 1 : index
    %c0_48 = arith.constant 0 : index
    %c0_49 = arith.constant 0 : index
    %40 = vector.load %arg5[%c1_46, %c1_47, %c0_48, %c0_49] : memref<3x3x128x128xbf16, #tpu.memory_space<vmem>>, vector<1x1x128x128xbf16>
    %41 = vector.shape_cast %40 : vector<1x1x128x128xbf16> to vector<128x128xbf16>
    %cst_50 = arith.constant dense<0.000000e+00> : vector<256x128xf32>
    %42 = tpu.matmul %39, %41, %cst_50 {dimension_numbers = #tpu.dot_dimension_numbers<[1], [0], [0], [1], [0, 0, 1, 1], [], []>} : vector<256x128xbf16>, vector<128x128xbf16>, vector<256x128xf32> -> vector<256x128xf32>
    %c0_51 = arith.constant 0 : index
    %c0_52 = arith.constant 0 : index
    %43 = vector.load %arg9[%c0_51, %c0_52] : memref<256x128xf32, #tpu.memory_space<vmem>>, vector<256x128xf32>
    %44 = arith.addf %43, %42 : vector<256x128xf32>
    %c0_53 = arith.constant 0 : index
    %c0_54 = arith.constant 0 : index
    %45 = vector.load %arg9[%c0_53, %c0_54] : memref<256x128xf32, #tpu.memory_space<vmem>>, vector<256x128xf32>
    tpu.vector_store %arg9[%c0_53, %c0_54], %44 {strides = array<i32>} : memref<256x128xf32, #tpu.memory_space<vmem>>, vector<256x128xf32>,
    %c1_55 = arith.constant 1 : index
    %c2_56 = arith.constant 2 : index
    %c0_57 = arith.constant 0 : index
    %46 = vector.load %arg8[%c1_55, %c2_56, %c0_57] : memref<18x18x128xf32, #tpu.memory_space<vmem>>, vector<16x16x128xf32>
    %47 = vector.shape_cast %46 : vector<16x16x128xf32> to vector<256x128xf32>
    %48 = arith.truncf %47 : vector<256x128xf32> to vector<256x128xbf16>
    %c1_58 = arith.constant 1 : index
    %c2_59 = arith.constant 2 : index
    %c0_60 = arith.constant 0 : index
    %c0_61 = arith.constant 0 : index
    %49 = vector.load %arg5[%c1_58, %c2_59, %c0_60, %c0_61] : memref<3x3x128x128xbf16, #tpu.memory_space<vmem>>, vector<1x1x128x128xbf16>
    %50 = vector.shape_cast %49 : vector<1x1x128x128xbf16> to vector<128x128xbf16>
    %cst_62 = arith.constant dense<0.000000e+00> : vector<256x128xf32>
    %51 = tpu.matmul %48, %50, %cst_62 {dimension_numbers = #tpu.dot_dimension_numbers<[1], [0], [0], [1], [0, 0, 1, 1], [], []>} : vector<256x128xbf16>, vector<128x128xbf16>, vector<256x128xf32> -> vector<256x128xf32>
    %c0_63 = arith.constant 0 : index
    %c0_64 = arith.constant 0 : index
    %52 = vector.load %arg9[%c0_63, %c0_64] : memref<256x128xf32, #tpu.memory_space<vmem>>, vector<256x128xf32>
    %53 = arith.addf %52, %51 : vector<256x128xf32>
    %c0_65 = arith.constant 0 : index
    %c0_66 = arith.constant 0 : index
    %54 = vector.load %arg9[%c0_65, %c0_66] : memref<256x128xf32, #tpu.memory_space<vmem>>, vector<256x128xf32>
    tpu.vector_store %arg9[%c0_65, %c0_66], %53 {strides = array<i32>} : memref<256x128xf32, #tpu.memory_space<vmem>>, vector<256x128xf32>,
    %c2_67 = arith.constant 2 : index
    %c0_68 = arith.constant 0 : index
    %c0_69 = arith.constant 0 : index
    %55 = vector.load %arg8[%c2_67, %c0_68, %c0_69] : memref<18x18x128xf32, #tpu.memory_space<vmem>>, vector<16x16x128xf32>
    %56 = vector.shape_cast %55 : vector<16x16x128xf32> to vector<256x128xf32>
    %57 = arith.truncf %56 : vector<256x128xf32> to vector<256x128xbf16>
    %c2_70 = arith.constant 2 : index
    %c0_71 = arith.constant 0 : index
    %c0_72 = arith.constant 0 : index
    %c0_73 = arith.constant 0 : index
    %58 = vector.load %arg5[%c2_70, %c0_71, %c0_72, %c0_73] : memref<3x3x128x128xbf16, #tpu.memory_space<vmem>>, vector<1x1x128x128xbf16>
    %59 = vector.shape_cast %58 : vector<1x1x128x128xbf16> to vector<128x128xbf16>
    %cst_74 = arith.constant dense<0.000000e+00> : vector<256x128xf32>
    %60 = tpu.matmul %57, %59, %cst_74 {dimension_numbers = #tpu.dot_dimension_numbers<[1], [0], [0], [1], [0, 0, 1, 1], [], []>} : vector<256x128xbf16>, vector<128x128xbf16>, vector<256x128xf32> -> vector<256x128xf32>
    %c0_75 = arith.constant 0 : index
    %c0_76 = arith.constant 0 : index
    %61 = vector.load %arg9[%c0_75, %c0_76] : memref<256x128xf32, #tpu.memory_space<vmem>>, vector<256x128xf32>
    %62 = arith.addf %61, %60 : vector<256x128xf32>
    %c0_77 = arith.constant 0 : index
    %c0_78 = arith.constant 0 : index
    %63 = vector.load %arg9[%c0_77, %c0_78] : memref<256x128xf32, #tpu.memory_space<vmem>>, vector<256x128xf32>
    tpu.vector_store %arg9[%c0_77, %c0_78], %62 {strides = array<i32>} : memref<256x128xf32, #tpu.memory_space<vmem>>, vector<256x128xf32>,
    %c2_79 = arith.constant 2 : index
    %c1_80 = arith.constant 1 : index
    %c0_81 = arith.constant 0 : index
    %64 = vector.load %arg8[%c2_79, %c1_80, %c0_81] : memref<18x18x128xf32, #tpu.memory_space<vmem>>, vector<16x16x128xf32>
    %65 = vector.shape_cast %64 : vector<16x16x128xf32> to vector<256x128xf32>
    %66 = arith.truncf %65 : vector<256x128xf32> to vector<256x128xbf16>
    %c2_82 = arith.constant 2 : index
    %c1_83 = arith.constant 1 : index
    %c0_84 = arith.constant 0 : index
    %c0_85 = arith.constant 0 : index
    %67 = vector.load %arg5[%c2_82, %c1_83, %c0_84, %c0_85] : memref<3x3x128x128xbf16, #tpu.memory_space<vmem>>, vector<1x1x128x128xbf16>
    %68 = vector.shape_cast %67 : vector<1x1x128x128xbf16> to vector<128x128xbf16>
    %cst_86 = arith.constant dense<0.000000e+00> : vector<256x128xf32>
    %69 = tpu.matmul %66, %68, %cst_86 {dimension_numbers = #tpu.dot_dimension_numbers<[1], [0], [0], [1], [0, 0, 1, 1], [], []>} : vector<256x128xbf16>, vector<128x128xbf16>, vector<256x128xf32> -> vector<256x128xf32>
    %c0_87 = arith.constant 0 : index
    %c0_88 = arith.constant 0 : index
    %70 = vector.load %arg9[%c0_87, %c0_88] : memref<256x128xf32, #tpu.memory_space<vmem>>, vector<256x128xf32>
    %71 = arith.addf %70, %69 : vector<256x128xf32>
    %c0_89 = arith.constant 0 : index
    %c0_90 = arith.constant 0 : index
    %72 = vector.load %arg9[%c0_89, %c0_90] : memref<256x128xf32, #tpu.memory_space<vmem>>, vector<256x128xf32>
    tpu.vector_store %arg9[%c0_89, %c0_90], %71 {strides = array<i32>} : memref<256x128xf32, #tpu.memory_space<vmem>>, vector<256x128xf32>,
    %c2_91 = arith.constant 2 : index
    %c2_92 = arith.constant 2 : index
    %c0_93 = arith.constant 0 : index
    %73 = vector.load %arg8[%c2_91, %c2_92, %c0_93] : memref<18x18x128xf32, #tpu.memory_space<vmem>>, vector<16x16x128xf32>
    %74 = vector.shape_cast %73 : vector<16x16x128xf32> to vector<256x128xf32>
    %75 = arith.truncf %74 : vector<256x128xf32> to vector<256x128xbf16>
    %c2_94 = arith.constant 2 : index
    %c2_95 = arith.constant 2 : index
    %c0_96 = arith.constant 0 : index
    %c0_97 = arith.constant 0 : index
    %76 = vector.load %arg5[%c2_94, %c2_95, %c0_96, %c0_97] : memref<3x3x128x128xbf16, #tpu.memory_space<vmem>>, vector<1x1x128x128xbf16>
    %77 = vector.shape_cast %76 : vector<1x1x128x128xbf16> to vector<128x128xbf16>
    %cst_98 = arith.constant dense<0.000000e+00> : vector<256x128xf32>
    %78 = tpu.matmul %75, %77, %cst_98 {dimension_numbers = #tpu.dot_dimension_numbers<[1], [0], [0], [1], [0, 0, 1, 1], [], []>} : vector<256x128xbf16>, vector<128x128xbf16>, vector<256x128xf32> -> vector<256x128xf32>
    %c0_99 = arith.constant 0 : index
    %c0_100 = arith.constant 0 : index
    %79 = vector.load %arg9[%c0_99, %c0_100] : memref<256x128xf32, #tpu.memory_space<vmem>>, vector<256x128xf32>
    %80 = arith.addf %79, %78 : vector<256x128xf32>
    %c0_101 = arith.constant 0 : index
    %c0_102 = arith.constant 0 : index
    %81 = vector.load %arg9[%c0_101, %c0_102] : memref<256x128xf32, #tpu.memory_space<vmem>>, vector<256x128xf32>
    tpu.vector_store %arg9[%c0_101, %c0_102], %80 {strides = array<i32>} : memref<256x128xf32, #tpu.memory_space<vmem>>, vector<256x128xf32>,
    %c0_103 = arith.constant 0 : index
    %c0_104 = arith.constant 0 : index
    %82 = vector.load %arg9[%c0_103, %c0_104] : memref<256x128xf32, #tpu.memory_space<vmem>>, vector<256x128xf32>
    %cst_105 = arith.constant dense<0.000000e+00> : vector<128xf32>
    %83 = vector.multi_reduction <add>, %82, %cst_105 [0] : vector<256x128xf32> to vector<128xf32>
    %84 = vector.shape_cast %83 : vector<128xf32> to vector<1x128xf32>
    %85 = arith.mulf %82, %82 : vector<256x128xf32>
    %cst_106 = arith.constant dense<0.000000e+00> : vector<128xf32>
    %86 = vector.multi_reduction <add>, %85, %cst_106 [0] : vector<256x128xf32> to vector<128xf32>
    %87 = vector.shape_cast %86 : vector<128xf32> to vector<1x128xf32>
    %88 = tpu.iota {dimensions = array<i32: 0>} : vector<8x128xi32>
    %c0_i32_107 = arith.constant 0 : i32
    %89 = vector.broadcast %c0_i32_107 : i32 to vector<8x128xi32>
    %90 = arith.cmpi eq, %88, %89 : vector<8x128xi32>
    %cst_108 = arith.constant 0.000000e+00 : f32
    %91 = vector.shape_cast %84 : vector<1x128xf32> to vector<1x128xf32>
    %92 = vector.broadcast %91 : vector<1x128xf32> to vector<8x128xf32>
    %93 = vector.broadcast %cst_108 : f32 to vector<8x128xf32>
    %94 = arith.select %90, %92, %93 : vector<8x128xi1>, vector<8x128xf32>
    %c1_i32 = arith.constant 1 : i32
    %95 = vector.broadcast %c1_i32 : i32 to vector<8x128xi32>
    %96 = arith.cmpi eq, %88, %95 : vector<8x128xi32>
    %cst_109 = arith.constant 0.000000e+00 : f32
    %97 = vector.shape_cast %87 : vector<1x128xf32> to vector<1x128xf32>
    %98 = vector.broadcast %97 : vector<1x128xf32> to vector<8x128xf32>
    %99 = vector.broadcast %cst_109 : f32 to vector<8x128xf32>
    %100 = arith.select %96, %98, %99 : vector<8x128xi1>, vector<8x128xf32>
    %101 = arith.addf %94, %100 : vector<8x128xf32>
    %c0_110 = arith.constant 0 : index
    %c0_111 = arith.constant 0 : index
    %c0_112 = arith.constant 0 : index
    %102 = vector.load %arg7[%c0_110, %c0_111, %c0_112] : memref<1x8x128xf32, #tpu.memory_space<vmem>>, vector<1x8x128xf32>
    %103 = vector.shape_cast %102 : vector<1x8x128xf32> to vector<8x128xf32>
    %104 = vector.shape_cast %101 : vector<8x128xf32> to vector<1x8x128xf32>
    tpu.vector_store %arg7[%c0_110, %c0_111, %c0_112], %104 {strides = array<i32>} : memref<1x8x128xf32, #tpu.memory_space<vmem>>, vector<1x8x128xf32>,
    %105 = vector.shape_cast %82 : vector<256x128xf32> to vector<16x16x128xf32>
    %c0_113 = arith.constant 0 : index
    %c0_114 = arith.constant 0 : index
    %c0_115 = arith.constant 0 : index
    %c0_116 = arith.constant 0 : index
    %106 = vector.load %arg6[%c0_113, %c0_114, %c0_115, %c0_116] : memref<1x16x16x128xf32, #tpu.memory_space<vmem>>, vector<1x16x16x128xf32>
    %107 = vector.shape_cast %106 : vector<1x16x16x128xf32> to vector<16x16x128xf32>
    %108 = vector.shape_cast %105 : vector<16x16x128xf32> to vector<1x16x16x128xf32>
    tpu.vector_store %arg6[%c0_113, %c0_114, %c0_115, %c0_116], %108 {strides = array<i32>} : memref<1x16x16x128xf32, #tpu.memory_space<vmem>>, vector<1x16x16x128xf32>,
    return
  }
  func.func @transform_0(%arg0: i32, %arg1: i32) -> (i32, i32, i32, i32) {
    %c0_i32 = arith.constant 0 : i32
    %c0_i32_0 = arith.constant 0 : i32
    %c0_i32_1 = arith.constant 0 : i32
    %c0_i32_2 = arith.constant 0 : i32
    return %arg0, %c0_i32, %c0_i32_0, %c0_i32_1 : i32, i32, i32, i32
  }
  func.func @transform_1(%arg0: i32, %arg1: i32) -> (i32, i32) {
    %c0_i32 = arith.constant 0 : i32
    %c0_i32_0 = arith.constant 0 : i32
    %c0_i32_1 = arith.constant 0 : i32
    return %c0_i32, %c0_i32_0 : i32, i32
  }
  func.func @transform_2(%arg0: i32, %arg1: i32) -> (i32, i32) {
    %c0_i32 = arith.constant 0 : i32
    %c0_i32_0 = arith.constant 0 : i32
    %c0_i32_1 = arith.constant 0 : i32
    return %c0_i32, %c0_i32_0 : i32, i32
  }
  func.func @transform_3(%arg0: i32, %arg1: i32) -> (i32, i32, i32, i32) {
    %c0_i32 = arith.constant 0 : i32
    %c0_i32_0 = arith.constant 0 : i32
    %c0_i32_1 = arith.constant 0 : i32
    %c0_i32_2 = arith.constant 0 : i32
    return %c0_i32, %c0_i32_0, %c0_i32_1, %arg1 : i32, i32, i32, i32
  }
  func.func @transform_4(%arg0: i32, %arg1: i32) -> (i32, i32, i32, i32) {
    %c0_i32 = arith.constant 0 : i32
    %c0_i32_0 = arith.constant 0 : i32
    %c0_i32_1 = arith.constant 0 : i32
    return %arg0, %c0_i32, %c0_i32_0, %arg1 : i32, i32, i32, i32
  }
  func.func @transform_5(%arg0: i32, %arg1: i32) -> (i32, i32, i32) {
    %c0_i32 = arith.constant 0 : i32
    %c0_i32_0 = arith.constant 0 : i32
    return %arg0, %c0_i32, %arg1 : i32, i32, i32
  }
}

module attributes {stable_mosaic.version = 11 : i64} {
  func.func @_mm_bnrelu_kernel(%arg0: i32, %arg1: i32, %arg2: memref<256x128xf32, #tpu.memory_space<vmem>>, %arg3: memref<1x128xf32, #tpu.memory_space<vmem>>, %arg4: memref<1x128xf32, #tpu.memory_space<vmem>>, %arg5: memref<128x128xbf16, #tpu.memory_space<vmem>>, %arg6: memref<256x128xf32, #tpu.memory_space<vmem>>) attributes {dimension_semantics = [#tpu.dimension_semantics<parallel>, #tpu.dimension_semantics<parallel>], iteration_bounds = array<i64: 2, 1>, scalar_prefetch = 0 : i64, scratch_operands = 0 : i64, tpu.core_type = #tpu.core_type<tc>, window_params = [{transform_indices = @transform_0, window_bounds = array<i64: 256, 128>}, {pipeline_mode = #tpu.pipeline_mode<synchronous>, transform_indices = @transform_1, window_bounds = array<i64: 1, 128>}, {pipeline_mode = #tpu.pipeline_mode<synchronous>, transform_indices = @transform_2, window_bounds = array<i64: 1, 128>}, {transform_indices = @transform_3, window_bounds = array<i64: 128, 128>}, {transform_indices = @transform_4, window_bounds = array<i64: 256, 128>}]} {
    %c0 = arith.constant 0 : index
    %c0_0 = arith.constant 0 : index
    %0 = vector.load %arg2[%c0, %c0_0] : memref<256x128xf32, #tpu.memory_space<vmem>>, vector<256x128xf32>
    %c0_1 = arith.constant 0 : index
    %c0_2 = arith.constant 0 : index
    %1 = vector.load %arg3[%c0_1, %c0_2] : memref<1x128xf32, #tpu.memory_space<vmem>>, vector<1x128xf32>
    %2 = vector.broadcast %1 : vector<1x128xf32> to vector<256x128xf32>
    %3 = arith.mulf %0, %2 : vector<256x128xf32>
    %c0_3 = arith.constant 0 : index
    %c0_4 = arith.constant 0 : index
    %4 = vector.load %arg4[%c0_3, %c0_4] : memref<1x128xf32, #tpu.memory_space<vmem>>, vector<1x128xf32>
    %5 = vector.broadcast %4 : vector<1x128xf32> to vector<256x128xf32>
    %6 = arith.addf %3, %5 : vector<256x128xf32>
    %cst = arith.constant 0.000000e+00 : f32
    %7 = vector.broadcast %cst : f32 to vector<256x128xf32>
    %8 = arith.maximumf %6, %7 : vector<256x128xf32>
    %9 = arith.truncf %8 : vector<256x128xf32> to vector<256x128xbf16>
    %c0_5 = arith.constant 0 : index
    %c0_6 = arith.constant 0 : index
    %10 = vector.load %arg5[%c0_5, %c0_6] : memref<128x128xbf16, #tpu.memory_space<vmem>>, vector<128x128xbf16>
    %cst_7 = arith.constant dense<0.000000e+00> : vector<256x128xf32>
    %11 = tpu.matmul %9, %10, %cst_7 {dimension_numbers = #tpu.dot_dimension_numbers<[1], [0], [0], [1], [0, 0, 1, 1], [], []>} : vector<256x128xbf16>, vector<128x128xbf16>, vector<256x128xf32> -> vector<256x128xf32>
    %c0_8 = arith.constant 0 : index
    %c0_9 = arith.constant 0 : index
    %12 = vector.load %arg6[%c0_8, %c0_9] : memref<256x128xf32, #tpu.memory_space<vmem>>, vector<256x128xf32>
    tpu.vector_store %arg6[%c0_8, %c0_9], %11 {strides = array<i32>} : memref<256x128xf32, #tpu.memory_space<vmem>>, vector<256x128xf32>,
    return
  }
  func.func @transform_0(%arg0: i32, %arg1: i32) -> (i32, i32) {
    %c0_i32 = arith.constant 0 : i32
    %c0_i32_0 = arith.constant 0 : i32
    return %arg0, %c0_i32 : i32, i32
  }
  func.func @transform_1(%arg0: i32, %arg1: i32) -> (i32, i32) {
    %c0_i32 = arith.constant 0 : i32
    %c0_i32_0 = arith.constant 0 : i32
    %c0_i32_1 = arith.constant 0 : i32
    return %c0_i32, %c0_i32_0 : i32, i32
  }
  func.func @transform_2(%arg0: i32, %arg1: i32) -> (i32, i32) {
    %c0_i32 = arith.constant 0 : i32
    %c0_i32_0 = arith.constant 0 : i32
    %c0_i32_1 = arith.constant 0 : i32
    return %c0_i32, %c0_i32_0 : i32, i32
  }
  func.func @transform_3(%arg0: i32, %arg1: i32) -> (i32, i32) {
    %c0_i32 = arith.constant 0 : i32
    %c0_i32_0 = arith.constant 0 : i32
    return %c0_i32, %arg1 : i32, i32
  }
  func.func @transform_4(%arg0: i32, %arg1: i32) -> (i32, i32) {
    %c0_i32 = arith.constant 0 : i32
    return %arg0, %arg1 : i32, i32
  }
}

module attributes {stable_mosaic.version = 11 : i64} {
  func.func @_lambda_(%arg0: i32, %arg1: i32, %arg2: memref<1x18x18x128xf32, #tpu.memory_space<vmem>>, %arg3: memref<1x128xf32, #tpu.memory_space<vmem>>, %arg4: memref<1x128xf32, #tpu.memory_space<vmem>>, %arg5: memref<3x3x128x128xbf16, #tpu.memory_space<vmem>>, %arg6: memref<1x16x16x128xf32, #tpu.memory_space<vmem>>, %arg7: memref<1x16x16x128xf32, #tpu.memory_space<vmem>>, %arg8: memref<18x18x128xf32, #tpu.memory_space<vmem>>, %arg9: memref<256x128xf32, #tpu.memory_space<vmem>>) attributes {dimension_semantics = [#tpu.dimension_semantics<parallel>, #tpu.dimension_semantics<arbitrary>], iteration_bounds = array<i64: 2, 1>, scalar_prefetch = 0 : i64, scratch_operands = 2 : i64, tpu.core_type = #tpu.core_type<tc>, window_params = [{transform_indices = @transform_0, window_bounds = array<i64: 1, 18, 18, 128>}, {pipeline_mode = #tpu.pipeline_mode<synchronous>, transform_indices = @transform_1, window_bounds = array<i64: 1, 128>}, {pipeline_mode = #tpu.pipeline_mode<synchronous>, transform_indices = @transform_2, window_bounds = array<i64: 1, 128>}, {transform_indices = @transform_3, window_bounds = array<i64: 3, 3, 128, 128>}, {transform_indices = @transform_4, window_bounds = array<i64: 1, 16, 16, 128>}, {transform_indices = @transform_5, window_bounds = array<i64: 1, 16, 16, 128>}]} {
    %c0_i32 = arith.constant 0 : i32
    %0 = arith.cmpi eq, %arg1, %c0_i32 : i32
    %1 = arith.extui %0 : i1 to i32
    %c0_i32_0 = arith.constant 0 : i32
    %2 = arith.cmpi ne, %1, %c0_i32_0 : i32
    scf.if %2 {
      %91 = tpu.iota {dimensions = array<i32: 0>} : vector<18x18x1xi32>
      %92 = tpu.iota {dimensions = array<i32: 1>} : vector<18x18x1xi32>
      %c1_i32 = arith.constant 1 : i32
      %93 = vector.broadcast %c1_i32 : i32 to vector<18x18x1xi32>
      %94 = arith.cmpi sge, %91, %93 : vector<18x18x1xi32>
      %c16_i32 = arith.constant 16 : i32
      %95 = vector.broadcast %c16_i32 : i32 to vector<18x18x1xi32>
      %96 = arith.cmpi sle, %91, %95 : vector<18x18x1xi32>
      %97 = arith.andi %94, %96 : vector<18x18x1xi1>
      %c1_i32_113 = arith.constant 1 : i32
      %98 = vector.broadcast %c1_i32_113 : i32 to vector<18x18x1xi32>
      %99 = arith.cmpi sge, %92, %98 : vector<18x18x1xi32>
      %100 = arith.andi %97, %99 : vector<18x18x1xi1>
      %c16_i32_114 = arith.constant 16 : i32
      %101 = vector.broadcast %c16_i32_114 : i32 to vector<18x18x1xi32>
      %102 = arith.cmpi sle, %92, %101 : vector<18x18x1xi32>
      %103 = arith.andi %100, %102 : vector<18x18x1xi1>
      %c0_115 = arith.constant 0 : index
      %c0_116 = arith.constant 0 : index
      %c0_117 = arith.constant 0 : index
      %c0_118 = arith.constant 0 : index
      %104 = vector.load %arg2[%c0_115, %c0_116, %c0_117, %c0_118] : memref<1x18x18x128xf32, #tpu.memory_space<vmem>>, vector<1x18x18x128xf32>
      %105 = vector.shape_cast %104 : vector<1x18x18x128xf32> to vector<18x18x128xf32>
      %c0_119 = arith.constant 0 : index
      %c0_120 = arith.constant 0 : index
      %106 = vector.load %arg3[%c0_119, %c0_120] : memref<1x128xf32, #tpu.memory_space<vmem>>, vector<1x128xf32>
      %107 = vector.shape_cast %106 : vector<1x128xf32> to vector<1x1x128xf32>
      %108 = vector.broadcast %107 : vector<1x1x128xf32> to vector<18x18x128xf32>
      %109 = arith.mulf %105, %108 : vector<18x18x128xf32>
      %c0_121 = arith.constant 0 : index
      %c0_122 = arith.constant 0 : index
      %110 = vector.load %arg4[%c0_121, %c0_122] : memref<1x128xf32, #tpu.memory_space<vmem>>, vector<1x128xf32>
      %111 = vector.shape_cast %110 : vector<1x128xf32> to vector<1x1x128xf32>
      %112 = vector.broadcast %111 : vector<1x1x128xf32> to vector<18x18x128xf32>
      %113 = arith.addf %109, %112 : vector<18x18x128xf32>
      %cst_123 = arith.constant 0.000000e+00 : f32
      %114 = vector.broadcast %cst_123 : f32 to vector<18x18x128xf32>
      %115 = arith.maximumf %113, %114 : vector<18x18x128xf32>
      %cst_124 = arith.constant 0.000000e+00 : f32
      %116 = vector.shape_cast %103 : vector<18x18x1xi1> to vector<18x18x1xi1>
      %117 = vector.broadcast %116 : vector<18x18x1xi1> to vector<18x18x128xi1>
      %118 = vector.broadcast %cst_124 : f32 to vector<18x18x128xf32>
      %119 = arith.select %117, %115, %118 : vector<18x18x128xi1>, vector<18x18x128xf32>
      %c0_125 = arith.constant 0 : index
      %c0_126 = arith.constant 0 : index
      %c0_127 = arith.constant 0 : index
      %120 = vector.load %arg8[%c0_125, %c0_126, %c0_127] : memref<18x18x128xf32, #tpu.memory_space<vmem>>, vector<18x18x128xf32>
      tpu.vector_store %arg8[%c0_125, %c0_126, %c0_127], %119 {strides = array<i32>} : memref<18x18x128xf32, #tpu.memory_space<vmem>>, vector<18x18x128xf32>,
    } else {
    }
    %c0 = arith.constant 0 : index
    %c0_1 = arith.constant 0 : index
    %c0_2 = arith.constant 0 : index
    %3 = vector.load %arg8[%c0, %c0_1, %c0_2] : memref<18x18x128xf32, #tpu.memory_space<vmem>>, vector<16x16x128xf32>
    %4 = vector.shape_cast %3 : vector<16x16x128xf32> to vector<256x128xf32>
    %5 = arith.truncf %4 : vector<256x128xf32> to vector<256x128xbf16>
    %c0_3 = arith.constant 0 : index
    %c0_4 = arith.constant 0 : index
    %c0_5 = arith.constant 0 : index
    %c0_6 = arith.constant 0 : index
    %6 = vector.load %arg5[%c0_3, %c0_4, %c0_5, %c0_6] : memref<3x3x128x128xbf16, #tpu.memory_space<vmem>>, vector<1x1x128x128xbf16>
    %7 = vector.shape_cast %6 : vector<1x1x128x128xbf16> to vector<128x128xbf16>
    %cst = arith.constant dense<0.000000e+00> : vector<256x128xf32>
    %8 = tpu.matmul %5, %7, %cst {dimension_numbers = #tpu.dot_dimension_numbers<[1], [0], [0], [1], [0, 0, 1, 1], [], []>} : vector<256x128xbf16>, vector<128x128xbf16>, vector<256x128xf32> -> vector<256x128xf32>
    %c0_7 = arith.constant 0 : index
    %c0_8 = arith.constant 0 : index
    %9 = vector.load %arg9[%c0_7, %c0_8] : memref<256x128xf32, #tpu.memory_space<vmem>>, vector<256x128xf32>
    tpu.vector_store %arg9[%c0_7, %c0_8], %8 {strides = array<i32>} : memref<256x128xf32, #tpu.memory_space<vmem>>, vector<256x128xf32>,
    %c0_9 = arith.constant 0 : index
    %c1 = arith.constant 1 : index
    %c0_10 = arith.constant 0 : index
    %10 = vector.load %arg8[%c0_9, %c1, %c0_10] : memref<18x18x128xf32, #tpu.memory_space<vmem>>, vector<16x16x128xf32>
    %11 = vector.shape_cast %10 : vector<16x16x128xf32> to vector<256x128xf32>
    %12 = arith.truncf %11 : vector<256x128xf32> to vector<256x128xbf16>
    %c0_11 = arith.constant 0 : index
    %c1_12 = arith.constant 1 : index
    %c0_13 = arith.constant 0 : index
    %c0_14 = arith.constant 0 : index
    %13 = vector.load %arg5[%c0_11, %c1_12, %c0_13, %c0_14] : memref<3x3x128x128xbf16, #tpu.memory_space<vmem>>, vector<1x1x128x128xbf16>
    %14 = vector.shape_cast %13 : vector<1x1x128x128xbf16> to vector<128x128xbf16>
    %cst_15 = arith.constant dense<0.000000e+00> : vector<256x128xf32>
    %15 = tpu.matmul %12, %14, %cst_15 {dimension_numbers = #tpu.dot_dimension_numbers<[1], [0], [0], [1], [0, 0, 1, 1], [], []>} : vector<256x128xbf16>, vector<128x128xbf16>, vector<256x128xf32> -> vector<256x128xf32>
    %c0_16 = arith.constant 0 : index
    %c0_17 = arith.constant 0 : index
    %16 = vector.load %arg9[%c0_16, %c0_17] : memref<256x128xf32, #tpu.memory_space<vmem>>, vector<256x128xf32>
    %17 = arith.addf %16, %15 : vector<256x128xf32>
    %c0_18 = arith.constant 0 : index
    %c0_19 = arith.constant 0 : index
    %18 = vector.load %arg9[%c0_18, %c0_19] : memref<256x128xf32, #tpu.memory_space<vmem>>, vector<256x128xf32>
    tpu.vector_store %arg9[%c0_18, %c0_19], %17 {strides = array<i32>} : memref<256x128xf32, #tpu.memory_space<vmem>>, vector<256x128xf32>,
    %c0_20 = arith.constant 0 : index
    %c2 = arith.constant 2 : index
    %c0_21 = arith.constant 0 : index
    %19 = vector.load %arg8[%c0_20, %c2, %c0_21] : memref<18x18x128xf32, #tpu.memory_space<vmem>>, vector<16x16x128xf32>
    %20 = vector.shape_cast %19 : vector<16x16x128xf32> to vector<256x128xf32>
    %21 = arith.truncf %20 : vector<256x128xf32> to vector<256x128xbf16>
    %c0_22 = arith.constant 0 : index
    %c2_23 = arith.constant 2 : index
    %c0_24 = arith.constant 0 : index
    %c0_25 = arith.constant 0 : index
    %22 = vector.load %arg5[%c0_22, %c2_23, %c0_24, %c0_25] : memref<3x3x128x128xbf16, #tpu.memory_space<vmem>>, vector<1x1x128x128xbf16>
    %23 = vector.shape_cast %22 : vector<1x1x128x128xbf16> to vector<128x128xbf16>
    %cst_26 = arith.constant dense<0.000000e+00> : vector<256x128xf32>
    %24 = tpu.matmul %21, %23, %cst_26 {dimension_numbers = #tpu.dot_dimension_numbers<[1], [0], [0], [1], [0, 0, 1, 1], [], []>} : vector<256x128xbf16>, vector<128x128xbf16>, vector<256x128xf32> -> vector<256x128xf32>
    %c0_27 = arith.constant 0 : index
    %c0_28 = arith.constant 0 : index
    %25 = vector.load %arg9[%c0_27, %c0_28] : memref<256x128xf32, #tpu.memory_space<vmem>>, vector<256x128xf32>
    %26 = arith.addf %25, %24 : vector<256x128xf32>
    %c0_29 = arith.constant 0 : index
    %c0_30 = arith.constant 0 : index
    %27 = vector.load %arg9[%c0_29, %c0_30] : memref<256x128xf32, #tpu.memory_space<vmem>>, vector<256x128xf32>
    tpu.vector_store %arg9[%c0_29, %c0_30], %26 {strides = array<i32>} : memref<256x128xf32, #tpu.memory_space<vmem>>, vector<256x128xf32>,
    %c1_31 = arith.constant 1 : index
    %c0_32 = arith.constant 0 : index
    %c0_33 = arith.constant 0 : index
    %28 = vector.load %arg8[%c1_31, %c0_32, %c0_33] : memref<18x18x128xf32, #tpu.memory_space<vmem>>, vector<16x16x128xf32>
    %29 = vector.shape_cast %28 : vector<16x16x128xf32> to vector<256x128xf32>
    %30 = arith.truncf %29 : vector<256x128xf32> to vector<256x128xbf16>
    %c1_34 = arith.constant 1 : index
    %c0_35 = arith.constant 0 : index
    %c0_36 = arith.constant 0 : index
    %c0_37 = arith.constant 0 : index
    %31 = vector.load %arg5[%c1_34, %c0_35, %c0_36, %c0_37] : memref<3x3x128x128xbf16, #tpu.memory_space<vmem>>, vector<1x1x128x128xbf16>
    %32 = vector.shape_cast %31 : vector<1x1x128x128xbf16> to vector<128x128xbf16>
    %cst_38 = arith.constant dense<0.000000e+00> : vector<256x128xf32>
    %33 = tpu.matmul %30, %32, %cst_38 {dimension_numbers = #tpu.dot_dimension_numbers<[1], [0], [0], [1], [0, 0, 1, 1], [], []>} : vector<256x128xbf16>, vector<128x128xbf16>, vector<256x128xf32> -> vector<256x128xf32>
    %c0_39 = arith.constant 0 : index
    %c0_40 = arith.constant 0 : index
    %34 = vector.load %arg9[%c0_39, %c0_40] : memref<256x128xf32, #tpu.memory_space<vmem>>, vector<256x128xf32>
    %35 = arith.addf %34, %33 : vector<256x128xf32>
    %c0_41 = arith.constant 0 : index
    %c0_42 = arith.constant 0 : index
    %36 = vector.load %arg9[%c0_41, %c0_42] : memref<256x128xf32, #tpu.memory_space<vmem>>, vector<256x128xf32>
    tpu.vector_store %arg9[%c0_41, %c0_42], %35 {strides = array<i32>} : memref<256x128xf32, #tpu.memory_space<vmem>>, vector<256x128xf32>,
    %c1_43 = arith.constant 1 : index
    %c1_44 = arith.constant 1 : index
    %c0_45 = arith.constant 0 : index
    %37 = vector.load %arg8[%c1_43, %c1_44, %c0_45] : memref<18x18x128xf32, #tpu.memory_space<vmem>>, vector<16x16x128xf32>
    %38 = vector.shape_cast %37 : vector<16x16x128xf32> to vector<256x128xf32>
    %39 = arith.truncf %38 : vector<256x128xf32> to vector<256x128xbf16>
    %c1_46 = arith.constant 1 : index
    %c1_47 = arith.constant 1 : index
    %c0_48 = arith.constant 0 : index
    %c0_49 = arith.constant 0 : index
    %40 = vector.load %arg5[%c1_46, %c1_47, %c0_48, %c0_49] : memref<3x3x128x128xbf16, #tpu.memory_space<vmem>>, vector<1x1x128x128xbf16>
    %41 = vector.shape_cast %40 : vector<1x1x128x128xbf16> to vector<128x128xbf16>
    %cst_50 = arith.constant dense<0.000000e+00> : vector<256x128xf32>
    %42 = tpu.matmul %39, %41, %cst_50 {dimension_numbers = #tpu.dot_dimension_numbers<[1], [0], [0], [1], [0, 0, 1, 1], [], []>} : vector<256x128xbf16>, vector<128x128xbf16>, vector<256x128xf32> -> vector<256x128xf32>
    %c0_51 = arith.constant 0 : index
    %c0_52 = arith.constant 0 : index
    %43 = vector.load %arg9[%c0_51, %c0_52] : memref<256x128xf32, #tpu.memory_space<vmem>>, vector<256x128xf32>
    %44 = arith.addf %43, %42 : vector<256x128xf32>
    %c0_53 = arith.constant 0 : index
    %c0_54 = arith.constant 0 : index
    %45 = vector.load %arg9[%c0_53, %c0_54] : memref<256x128xf32, #tpu.memory_space<vmem>>, vector<256x128xf32>
    tpu.vector_store %arg9[%c0_53, %c0_54], %44 {strides = array<i32>} : memref<256x128xf32, #tpu.memory_space<vmem>>, vector<256x128xf32>,
    %c1_55 = arith.constant 1 : index
    %c2_56 = arith.constant 2 : index
    %c0_57 = arith.constant 0 : index
    %46 = vector.load %arg8[%c1_55, %c2_56, %c0_57] : memref<18x18x128xf32, #tpu.memory_space<vmem>>, vector<16x16x128xf32>
    %47 = vector.shape_cast %46 : vector<16x16x128xf32> to vector<256x128xf32>
    %48 = arith.truncf %47 : vector<256x128xf32> to vector<256x128xbf16>
    %c1_58 = arith.constant 1 : index
    %c2_59 = arith.constant 2 : index
    %c0_60 = arith.constant 0 : index
    %c0_61 = arith.constant 0 : index
    %49 = vector.load %arg5[%c1_58, %c2_59, %c0_60, %c0_61] : memref<3x3x128x128xbf16, #tpu.memory_space<vmem>>, vector<1x1x128x128xbf16>
    %50 = vector.shape_cast %49 : vector<1x1x128x128xbf16> to vector<128x128xbf16>
    %cst_62 = arith.constant dense<0.000000e+00> : vector<256x128xf32>
    %51 = tpu.matmul %48, %50, %cst_62 {dimension_numbers = #tpu.dot_dimension_numbers<[1], [0], [0], [1], [0, 0, 1, 1], [], []>} : vector<256x128xbf16>, vector<128x128xbf16>, vector<256x128xf32> -> vector<256x128xf32>
    %c0_63 = arith.constant 0 : index
    %c0_64 = arith.constant 0 : index
    %52 = vector.load %arg9[%c0_63, %c0_64] : memref<256x128xf32, #tpu.memory_space<vmem>>, vector<256x128xf32>
    %53 = arith.addf %52, %51 : vector<256x128xf32>
    %c0_65 = arith.constant 0 : index
    %c0_66 = arith.constant 0 : index
    %54 = vector.load %arg9[%c0_65, %c0_66] : memref<256x128xf32, #tpu.memory_space<vmem>>, vector<256x128xf32>
    tpu.vector_store %arg9[%c0_65, %c0_66], %53 {strides = array<i32>} : memref<256x128xf32, #tpu.memory_space<vmem>>, vector<256x128xf32>,
    %c2_67 = arith.constant 2 : index
    %c0_68 = arith.constant 0 : index
    %c0_69 = arith.constant 0 : index
    %55 = vector.load %arg8[%c2_67, %c0_68, %c0_69] : memref<18x18x128xf32, #tpu.memory_space<vmem>>, vector<16x16x128xf32>
    %56 = vector.shape_cast %55 : vector<16x16x128xf32> to vector<256x128xf32>
    %57 = arith.truncf %56 : vector<256x128xf32> to vector<256x128xbf16>
    %c2_70 = arith.constant 2 : index
    %c0_71 = arith.constant 0 : index
    %c0_72 = arith.constant 0 : index
    %c0_73 = arith.constant 0 : index
    %58 = vector.load %arg5[%c2_70, %c0_71, %c0_72, %c0_73] : memref<3x3x128x128xbf16, #tpu.memory_space<vmem>>, vector<1x1x128x128xbf16>
    %59 = vector.shape_cast %58 : vector<1x1x128x128xbf16> to vector<128x128xbf16>
    %cst_74 = arith.constant dense<0.000000e+00> : vector<256x128xf32>
    %60 = tpu.matmul %57, %59, %cst_74 {dimension_numbers = #tpu.dot_dimension_numbers<[1], [0], [0], [1], [0, 0, 1, 1], [], []>} : vector<256x128xbf16>, vector<128x128xbf16>, vector<256x128xf32> -> vector<256x128xf32>
    %c0_75 = arith.constant 0 : index
    %c0_76 = arith.constant 0 : index
    %61 = vector.load %arg9[%c0_75, %c0_76] : memref<256x128xf32, #tpu.memory_space<vmem>>, vector<256x128xf32>
    %62 = arith.addf %61, %60 : vector<256x128xf32>
    %c0_77 = arith.constant 0 : index
    %c0_78 = arith.constant 0 : index
    %63 = vector.load %arg9[%c0_77, %c0_78] : memref<256x128xf32, #tpu.memory_space<vmem>>, vector<256x128xf32>
    tpu.vector_store %arg9[%c0_77, %c0_78], %62 {strides = array<i32>} : memref<256x128xf32, #tpu.memory_space<vmem>>, vector<256x128xf32>,
    %c2_79 = arith.constant 2 : index
    %c1_80 = arith.constant 1 : index
    %c0_81 = arith.constant 0 : index
    %64 = vector.load %arg8[%c2_79, %c1_80, %c0_81] : memref<18x18x128xf32, #tpu.memory_space<vmem>>, vector<16x16x128xf32>
    %65 = vector.shape_cast %64 : vector<16x16x128xf32> to vector<256x128xf32>
    %66 = arith.truncf %65 : vector<256x128xf32> to vector<256x128xbf16>
    %c2_82 = arith.constant 2 : index
    %c1_83 = arith.constant 1 : index
    %c0_84 = arith.constant 0 : index
    %c0_85 = arith.constant 0 : index
    %67 = vector.load %arg5[%c2_82, %c1_83, %c0_84, %c0_85] : memref<3x3x128x128xbf16, #tpu.memory_space<vmem>>, vector<1x1x128x128xbf16>
    %68 = vector.shape_cast %67 : vector<1x1x128x128xbf16> to vector<128x128xbf16>
    %cst_86 = arith.constant dense<0.000000e+00> : vector<256x128xf32>
    %69 = tpu.matmul %66, %68, %cst_86 {dimension_numbers = #tpu.dot_dimension_numbers<[1], [0], [0], [1], [0, 0, 1, 1], [], []>} : vector<256x128xbf16>, vector<128x128xbf16>, vector<256x128xf32> -> vector<256x128xf32>
    %c0_87 = arith.constant 0 : index
    %c0_88 = arith.constant 0 : index
    %70 = vector.load %arg9[%c0_87, %c0_88] : memref<256x128xf32, #tpu.memory_space<vmem>>, vector<256x128xf32>
    %71 = arith.addf %70, %69 : vector<256x128xf32>
    %c0_89 = arith.constant 0 : index
    %c0_90 = arith.constant 0 : index
    %72 = vector.load %arg9[%c0_89, %c0_90] : memref<256x128xf32, #tpu.memory_space<vmem>>, vector<256x128xf32>
    tpu.vector_store %arg9[%c0_89, %c0_90], %71 {strides = array<i32>} : memref<256x128xf32, #tpu.memory_space<vmem>>, vector<256x128xf32>,
    %c2_91 = arith.constant 2 : index
    %c2_92 = arith.constant 2 : index
    %c0_93 = arith.constant 0 : index
    %73 = vector.load %arg8[%c2_91, %c2_92, %c0_93] : memref<18x18x128xf32, #tpu.memory_space<vmem>>, vector<16x16x128xf32>
    %74 = vector.shape_cast %73 : vector<16x16x128xf32> to vector<256x128xf32>
    %75 = arith.truncf %74 : vector<256x128xf32> to vector<256x128xbf16>
    %c2_94 = arith.constant 2 : index
    %c2_95 = arith.constant 2 : index
    %c0_96 = arith.constant 0 : index
    %c0_97 = arith.constant 0 : index
    %76 = vector.load %arg5[%c2_94, %c2_95, %c0_96, %c0_97] : memref<3x3x128x128xbf16, #tpu.memory_space<vmem>>, vector<1x1x128x128xbf16>
    %77 = vector.shape_cast %76 : vector<1x1x128x128xbf16> to vector<128x128xbf16>
    %cst_98 = arith.constant dense<0.000000e+00> : vector<256x128xf32>
    %78 = tpu.matmul %75, %77, %cst_98 {dimension_numbers = #tpu.dot_dimension_numbers<[1], [0], [0], [1], [0, 0, 1, 1], [], []>} : vector<256x128xbf16>, vector<128x128xbf16>, vector<256x128xf32> -> vector<256x128xf32>
    %c0_99 = arith.constant 0 : index
    %c0_100 = arith.constant 0 : index
    %79 = vector.load %arg9[%c0_99, %c0_100] : memref<256x128xf32, #tpu.memory_space<vmem>>, vector<256x128xf32>
    %80 = arith.addf %79, %78 : vector<256x128xf32>
    %c0_101 = arith.constant 0 : index
    %c0_102 = arith.constant 0 : index
    %81 = vector.load %arg9[%c0_101, %c0_102] : memref<256x128xf32, #tpu.memory_space<vmem>>, vector<256x128xf32>
    tpu.vector_store %arg9[%c0_101, %c0_102], %80 {strides = array<i32>} : memref<256x128xf32, #tpu.memory_space<vmem>>, vector<256x128xf32>,
    %c0_103 = arith.constant 0 : index
    %c0_104 = arith.constant 0 : index
    %82 = vector.load %arg9[%c0_103, %c0_104] : memref<256x128xf32, #tpu.memory_space<vmem>>, vector<256x128xf32>
    %c0_105 = arith.constant 0 : index
    %c0_106 = arith.constant 0 : index
    %c0_107 = arith.constant 0 : index
    %c0_108 = arith.constant 0 : index
    %83 = vector.load %arg6[%c0_105, %c0_106, %c0_107, %c0_108] : memref<1x16x16x128xf32, #tpu.memory_space<vmem>>, vector<1x16x16x128xf32>
    %84 = vector.shape_cast %83 : vector<1x16x16x128xf32> to vector<16x16x128xf32>
    %85 = vector.shape_cast %84 : vector<16x16x128xf32> to vector<256x128xf32>
    %86 = arith.addf %82, %85 : vector<256x128xf32>
    %87 = vector.shape_cast %86 : vector<256x128xf32> to vector<16x16x128xf32>
    %c0_109 = arith.constant 0 : index
    %c0_110 = arith.constant 0 : index
    %c0_111 = arith.constant 0 : index
    %c0_112 = arith.constant 0 : index
    %88 = vector.load %arg7[%c0_109, %c0_110, %c0_111, %c0_112] : memref<1x16x16x128xf32, #tpu.memory_space<vmem>>, vector<1x16x16x128xf32>
    %89 = vector.shape_cast %88 : vector<1x16x16x128xf32> to vector<16x16x128xf32>
    %90 = vector.shape_cast %87 : vector<16x16x128xf32> to vector<1x16x16x128xf32>
    tpu.vector_store %arg7[%c0_109, %c0_110, %c0_111, %c0_112], %90 {strides = array<i32>} : memref<1x16x16x128xf32, #tpu.memory_space<vmem>>, vector<1x16x16x128xf32>,
    return
  }
  func.func @transform_0(%arg0: i32, %arg1: i32) -> (i32, i32, i32, i32) {
    %c0_i32 = arith.constant 0 : i32
    %c0_i32_0 = arith.constant 0 : i32
    %c0_i32_1 = arith.constant 0 : i32
    %c0_i32_2 = arith.constant 0 : i32
    return %arg0, %c0_i32, %c0_i32_0, %c0_i32_1 : i32, i32, i32, i32
  }
  func.func @transform_1(%arg0: i32, %arg1: i32) -> (i32, i32) {
    %c0_i32 = arith.constant 0 : i32
    %c0_i32_0 = arith.constant 0 : i32
    %c0_i32_1 = arith.constant 0 : i32
    return %c0_i32, %c0_i32_0 : i32, i32
  }
  func.func @transform_2(%arg0: i32, %arg1: i32) -> (i32, i32) {
    %c0_i32 = arith.constant 0 : i32
    %c0_i32_0 = arith.constant 0 : i32
    %c0_i32_1 = arith.constant 0 : i32
    return %c0_i32, %c0_i32_0 : i32, i32
  }
  func.func @transform_3(%arg0: i32, %arg1: i32) -> (i32, i32, i32, i32) {
    %c0_i32 = arith.constant 0 : i32
    %c0_i32_0 = arith.constant 0 : i32
    %c0_i32_1 = arith.constant 0 : i32
    %c0_i32_2 = arith.constant 0 : i32
    return %c0_i32, %c0_i32_0, %c0_i32_1, %arg1 : i32, i32, i32, i32
  }
  func.func @transform_4(%arg0: i32, %arg1: i32) -> (i32, i32, i32, i32) {
    %c0_i32 = arith.constant 0 : i32
    %c0_i32_0 = arith.constant 0 : i32
    %c0_i32_1 = arith.constant 0 : i32
    return %arg0, %c0_i32, %c0_i32_0, %arg1 : i32, i32, i32, i32
  }
  func.func @transform_5(%arg0: i32, %arg1: i32) -> (i32, i32, i32, i32) {
    %c0_i32 = arith.constant 0 : i32
    %c0_i32_0 = arith.constant 0 : i32
    %c0_i32_1 = arith.constant 0 : i32
    return %arg0, %c0_i32, %c0_i32_0, %arg1 : i32, i32, i32, i32
  }
}

</mosaic_0001>

<llo_original>
// kernel: preact_block_forward.4
$region0: #{preact_block_forward.4}
  #allocation0 [shape = 'u32[]', space=smem, size = 0x4, offset = 0x4, fixed_abs, tag = 'smem constant byte address 0x4 - core index']
  #allocation1 [shape = 'u32[144,128]{1,0:T(1,128)}', space=vmem, size = 0x12000, scoped, tag = 'internal scratch']
  %s0 = inlined_call_operand.vmem [shape: f32[512,128], index: 0, kind: input, shape index: {}]
  %s1 = inlined_call_operand.vmem [shape: f32[2,8,128], index: 1, kind: output, shape index: {}]
  %s2 = sld [smem:[#allocation0]]
  $region37: #{preact_block_forward.4} parent=0
    _
  %s4 = ssub.s32 1, %s2
  %s5 = scalar_select 0, %s4, %s2
  loop: start=0, step=1, limit=4
  $region2: #{preact_block_forward.4} parent=0 // loop_pre_header
    _
  $region3: #{preact_block_forward.4} parent=0 // loop_header
    %s7 = sphi 0, %s11
    %p8 = scmp.ge.s32.totalorder %s7, 4
    %s17 = sphi 0, %s19
    %s20 = sphi 0, %s17
    %s21 = sphi 0, %s20
    %s37 = sphi 0, %s21
    %s43 = sphi 0, %s45
    %s46 = sphi 0, %s43
    %s47 = sphi 0, %s46
    %s63 = sphi 0, %s47
  $region4: #{preact_block_forward.4} parent=0 // loop_header_branch
    %10 = sbr.rel (%p8) target = $region8
  $region5: #{preact_block_forward.4} parent=0 // loop_body
    %s12 = ssub.s32 %s7, 1
    %s13 = ssub.s32 %s7, 2
    %s14 = sadd.s32 %s7, 1
    %s15 = ssub.s32 %s7, %s14
    %p16 = scmp.eq.s32.totalorder %s15, 0
    %s18 = sadd.s32 %s17, 1
    %s19 = scalar_select %p16, %s17, %s18
    %p22 = pneg %p16
    %p23 = scmp.eq.s32.totalorder %s7, 1
    %p24 = por %p22, %p23
    %p25 = scmp.ne.s32.totalorder %s17, %s20
    %p26 = scmp.eq.s32.totalorder %s7, 0
    %p27 = por %p25, %p26
    %p28 = scmp.ne.s32.totalorder %s17, %s20
    %p29 = scmp.eq.s32.totalorder %s12, 1
    %p30 = por %p28, %p29
    %p31 = scmp.ne.s32.totalorder %s20, %s21
    %p32 = scmp.eq.s32.totalorder %s12, 0
    %p33 = por %p31, %p32
    %p34 = scmp.ne.s32.totalorder %s20, %s21
    %p35 = scmp.eq.s32.totalorder %s13, 1
    %p36 = por %p34, %p35
    %p38 = scmp.ne.s32.totalorder %s21, %s37
    %p39 = scmp.eq.s32.totalorder %s13, 0
    %p40 = por %p38, %p39
    %s41 = ssub.s32 %s7, %s14
    %p42 = scmp.eq.s32.totalorder %s41, 0
    %s44 = sadd.s32 %s43, 1
    %s45 = scalar_select %p42, %s43, %s44
    %p48 = pneg %p42
    %p49 = scmp.eq.s32.totalorder %s7, 1
    %p50 = por %p48, %p49
    %p51 = scmp.ne.s32.totalorder %s43, %s46
    %p52 = scmp.eq.s32.totalorder %s7, 0
    %p53 = por %p51, %p52
    %p54 = scmp.ne.s32.totalorder %s43, %s46
    %p55 = scmp.eq.s32.totalorder %s12, 1
    %p56 = por %p54, %p55
    %p57 = scmp.ne.s32.totalorder %s46, %s47
    %p58 = scmp.eq.s32.totalorder %s12, 0
    %p59 = por %p57, %p58
    %p60 = scmp.ne.s32.totalorder %s46, %s47
    %p61 = scmp.eq.s32.totalorder %s13, 1
    %p62 = por %p60, %p61
    %p64 = scmp.ne.s32.totalorder %s47, %s63
    %p65 = scmp.eq.s32.totalorder %s13, 0
    %p66 = por %p64, %p65
    %p67 = scmp.le.s32.totalorder 1, %s7
    %p68 = scmp.lt.s32.totalorder %s7, 3
    %p69 = pnand %p67, %p68
    %p70 = pneg %p69
    // Predicated region
    $region9: #{preact_block_forward.4} parent=5 // pred_check
      _
    $region10: #{preact_block_forward.4} parent=5 // pred_check_branch
      %72 = sbr.rel (%p69) target = $region12
    $region11: #{preact_block_forward.4} parent=5 // pred_region
      %s73 = ssub.s32 %s7, 1
    $region12: #{preact_block_forward.4} parent=5 // pred_fallthru
      _
    %p74 = scmp.lt.s32.totalorder %s7, 2
    // Predicated region
    $region13: #{preact_block_forward.4} parent=5 // pred_check
      %p75 = pneg %p74
    $region14: #{preact_block_forward.4} parent=5 // pred_check_branch
      %77 = sbr.rel (%p75) target = $region16
    $region15: #{preact_block_forward.4} parent=5 // pred_region
      // Predicated region
      $region17: #{preact_block_forward.4} parent=15 // pred_check
        %p78 = pneg %p27
      $region18: #{preact_block_forward.4} parent=15 // pred_check_branch
        %80 = sbr.rel (%p78) target = $region20
      $region19: #{preact_block_forward.4} parent=15 // pred_region
        %s81 = smul.u32 32, %s7
        %p82 = scmp.lt.s32.totalorder %s81, 63
        %s83 = scalar_select %p82, %s81, 63
        %s84 = smul.addr %s83, 8
        %s85 = scalar_lea.vmem %s0, %s84
        %s86 = smul.u32 32, %s7
      $region20: #{preact_block_forward.4} parent=15 // pred_fallthru
        _
    $region16: #{preact_block_forward.4} parent=5 // pred_fallthru
      _
    %p87 = scmp.le.s32.totalorder 1, %s7
    %p88 = scmp.lt.s32.totalorder %s7, 3
    %p89 = pnand %p87, %p88
    %p90 = pneg %p89
    // Predicated region
    $region21: #{preact_block_forward.4} parent=5 // pred_check
      _
    $region22: #{preact_block_forward.4} parent=5 // pred_check_branch
      %92 = sbr.rel (%p89) target = $region24
    $region23: #{preact_block_forward.4} parent=5 // pred_region
      %s93 = ssub.s32 %s7, 1
      %s94 = smul.u32 32, %s12
      %p95 = scmp.lt.s32.totalorder %s94, 63
      %s96 = scalar_select %p95, %s94, 63
      %s97 = smul.addr %s96, 8
      %s98 = scalar_lea.vmem %s0, %s97
      %p99 = pneg %p33
      %p100 = pneg %p30
      %p101 = pneg %p59
      %p102 = pneg %p56
      %p103 = scmp.lt.s32.totalorder %s12, 1
      %s104 = scalar_select %p103, %s12, 1
      %s105 = smul.addr %s104, 8
      %s106 = scalar_lea.vmem %s1, %s105
      %s107 = smul.u32 32, %s12
      %p108 = scmp.lt.s32.totalorder %s107, 63
      %s109 = scalar_select %p108, %s107, 63
      %s110 = smul.addr %s109, 8
      %s111 = scalar_lea.vmem %s0, %s110
      %s112 = smul.u32 32, %s12
      %p113 = scmp.lt.s32.totalorder %s12, 1
      %s114 = scalar_select %p113, %s12, 1
      %s115 = smul.addr %s114, 8
      %s116 = scalar_lea.vmem %s1, %s115
      %v117 = vld [vmem:[%s111] sm:$0xff]
      %v118 = vld [vmem:[%s111 + $0x8] sm:$0xff]
      %v119 = vld [vmem:[%s111 + $0x10] sm:$0xff]
      %v120 = vld [vmem:[%s111 + $0x18] sm:$0xff]
      %v121 = vld [vmem:[%s111 + $0x20] sm:$0xff]
      %v122 = vld [vmem:[%s111 + $0x28] sm:$0xff]
      %v123 = vld [vmem:[%s111 + $0x30] sm:$0xff]
      %v124 = vld [vmem:[%s111 + $0x38] sm:$0xff]
      %v125 = vld [vmem:[%s111 + $0x40] sm:$0xff]
      %v126 = vld [vmem:[%s111 + $0x48] sm:$0xff]
      %v127 = vld [vmem:[%s111 + $0x50] sm:$0xff]
      %v128 = vld [vmem:[%s111 + $0x58] sm:$0xff]
      %v129 = vld [vmem:[%s111 + $0x60] sm:$0xff]
      %v130 = vld [vmem:[%s111 + $0x68] sm:$0xff]
      %v131 = vld [vmem:[%s111 + $0x70] sm:$0xff]
      %v132 = vld [vmem:[%s111 + $0x78] sm:$0xff]
      %v133 = vld [vmem:[%s111 + $0x80] sm:$0xff]
      %v134 = vld [vmem:[%s111 + $0x88] sm:$0xff]
      %v135 = vld [vmem:[%s111 + $0x90] sm:$0xff]
      %v136 = vld [vmem:[%s111 + $0x98] sm:$0xff]
      %v137 = vld [vmem:[%s111 + $0xa0] sm:$0xff]
      %v138 = vld [vmem:[%s111 + $0xa8] sm:$0xff]
      %v139 = vld [vmem:[%s111 + $0xb0] sm:$0xff]
      %v140 = vld [vmem:[%s111 + $0xb8] sm:$0xff]
      %v141 = vld [vmem:[%s111 + $0xc0] sm:$0xff]
      %v142 = vld [vmem:[%s111 + $0xc8] sm:$0xff]
      %v143 = vld [vmem:[%s111 + $0xd0] sm:$0xff]
      %v144 = vld [vmem:[%s111 + $0xd8] sm:$0xff]
      %v145 = vld [vmem:[%s111 + $0xe0] sm:$0xff]
      %v146 = vld [vmem:[%s111 + $0xe8] sm:$0xff]
      %v147 = vld [vmem:[%s111 + $0xf0] sm:$0xff]
      %v148 = vld [vmem:[%s111 + $0xf8] sm:$0xff]
      %v149 = vadd.f32 %v117, %v118
      %v150 = vadd.f32 %v149, %v119
      %v151 = vadd.f32 %v150, %v120
      %v152 = vadd.f32 %v151, %v121
      %v153 = vadd.f32 %v152, %v122
      %v154 = vadd.f32 %v153, %v123
      %v155 = vadd.f32 %v154, %v124
      %v156 = vadd.f32 %v155, %v125
      %v157 = vadd.f32 %v156, %v126
      %v158 = vadd.f32 %v157, %v127
      %v159 = vadd.f32 %v158, %v128
      %v160 = vadd.f32 %v159, %v129
      %v161 = vadd.f32 %v160, %v130
      %v162 = vadd.f32 %v161, %v131
      %v163 = vadd.f32 %v162, %v132
      %v164 = vadd.f32 %v163, %v133
      %v165 = vadd.f32 %v164, %v134
      %v166 = vadd.f32 %v165, %v135
      %v167 = vadd.f32 %v166, %v136
      %v168 = vadd.f32 %v167, %v137
      %v169 = vadd.f32 %v168, %v138
      %v170 = vadd.f32 %v169, %v139
      %v171 = vadd.f32 %v170, %v140
      %v172 = vadd.f32 %v171, %v141
      %v173 = vadd.f32 %v172, %v142
      %v174 = vadd.f32 %v173, %v143
      %v175 = vadd.f32 %v174, %v144
      %v176 = vadd.f32 %v175, %v145
      %v177 = vadd.f32 %v176, %v146
      %v178 = vadd.f32 %v177, %v147
      %v179 = vadd.f32 %v178, %v148
      %v180 = vrot.slane %v179, 4
      %v181 = vadd.f32 %v179, %v180
      %v182 = vrot.slane %v181, 2
      %v183 = vadd.f32 %v181, %v182
      %v184 = vrot.slane %v183, 1
      %v185 = vadd.f32 %v183, %v184
      %v186 = vmul.f32 %v117, %v117
      %v187 = vmul.f32 %v118, %v118
      %v188 = vmul.f32 %v119, %v119
      %v189 = vmul.f32 %v120, %v120
      %v190 = vmul.f32 %v121, %v121
      %v191 = vmul.f32 %v122, %v122
      %v192 = vmul.f32 %v123, %v123
      %v193 = vmul.f32 %v124, %v124
      %v194 = vmul.f32 %v125, %v125
      %v195 = vmul.f32 %v126, %v126
      %v196 = vmul.f32 %v127, %v127
      %v197 = vmul.f32 %v128, %v128
      %v198 = vmul.f32 %v129, %v129
      %v199 = vmul.f32 %v130, %v130
      %v200 = vmul.f32 %v131, %v131
      %v201 = vmul.f32 %v132, %v132
      %v202 = vmul.f32 %v133, %v133
      %v203 = vmul.f32 %v134, %v134
      %v204 = vmul.f32 %v135, %v135
      %v205 = vmul.f32 %v136, %v136
      %v206 = vmul.f32 %v137, %v137
      %v207 = vmul.f32 %v138, %v138
      %v208 = vmul.f32 %v139, %v139
      %v209 = vmul.f32 %v140, %v140
      %v210 = vmul.f32 %v141, %v141
      %v211 = vmul.f32 %v142, %v142
      %v212 = vmul.f32 %v143, %v143
      %v213 = vmul.f32 %v144, %v144
      %v214 = vmul.f32 %v145, %v145
      %v215 = vmul.f32 %v146, %v146
      %v216 = vmul.f32 %v147, %v147
      %v217 = vmul.f32 %v148, %v148
      %v218 = vadd.f32 %v186, %v187
      %v219 = vadd.f32 %v218, %v188
      %v220 = vadd.f32 %v219, %v189
      %v221 = vadd.f32 %v220, %v190
      %v222 = vadd.f32 %v221, %v191
      %v223 = vadd.f32 %v222, %v192
      %v224 = vadd.f32 %v223, %v193
      %v225 = vadd.f32 %v224, %v194
      %v226 = vadd.f32 %v225, %v195
      %v227 = vadd.f32 %v226, %v196
      %v228 = vadd.f32 %v227, %v197
      %v229 = vadd.f32 %v228, %v198
      %v230 = vadd.f32 %v229, %v199
      %v231 = vadd.f32 %v230, %v200
      %v232 = vadd.f32 %v231, %v201
      %v233 = vadd.f32 %v232, %v202
      %v234 = vadd.f32 %v233, %v203
      %v235 = vadd.f32 %v234, %v204
      %v236 = vadd.f32 %v235, %v205
      %v237 = vadd.f32 %v236, %v206
      %v238 = vadd.f32 %v237, %v207
      %v239 = vadd.f32 %v238, %v208
      %v240 = vadd.f32 %v239, %v209
      %v241 = vadd.f32 %v240, %v210
      %v242 = vadd.f32 %v241, %v211
      %v243 = vadd.f32 %v242, %v212
      %v244 = vadd.f32 %v243, %v213
      %v245 = vadd.f32 %v244, %v214
      %v246 = vadd.f32 %v245, %v215
      %v247 = vadd.f32 %v246, %v216
      %v248 = vadd.f32 %v247, %v217
      %v249 = vrot.slane %v248, 4
      %v250 = vadd.f32 %v248, %v249
      %v251 = vrot.slane %v250, 2
      %v252 = vadd.f32 %v250, %v251
      %v253 = vrot.slane %v252, 1
      %v254 = vadd.f32 %v252, %v253
      %v255 = vlaneseq
      %v256 = vshrl.u32 %v255, 7
      %vm257 = vcmp.eq.s32.totalorder %v256, 0
      %v258 = vsel %vm257, %v185, 0.0
      %vm259 = vcmp.eq.s32.totalorder %v256, 1
      %v260 = vsel %vm259, %v254, 0.0
      %v261 = vadd.f32 %v258, %v260
      %262 = vst [vmem:[%s116] sm:$0xff] %v261
      %p263 = scmp.lt.s32.totalorder %s12, 1
      %s264 = scalar_select %p263, %s12, 1
      %s265 = smul.addr %s264, 8
      %s266 = scalar_lea.vmem %s1, %s265
      // Predicated region
      $region25: #{preact_block_forward.4} parent=23 // pred_check
        %p267 = pneg %p56
      $region26: #{preact_block_forward.4} parent=23 // pred_check_branch
        %269 = sbr.rel (%p267) target = $region28
      $region27: #{preact_block_forward.4} parent=23 // pred_region
        _
      $region28: #{preact_block_forward.4} parent=23 // pred_fallthru
        _
    $region24: #{preact_block_forward.4} parent=5 // pred_fallthru
      _
    %p270 = scmp.le.s32.totalorder 2, %s7
    // Predicated region
    $region29: #{preact_block_forward.4} parent=5 // pred_check
      %p271 = pneg %p270
    $region30: #{preact_block_forward.4} parent=5 // pred_check_branch
      %273 = sbr.rel (%p271) target = $region32
    $region31: #{preact_block_forward.4} parent=5 // pred_region
      %s274 = ssub.s32 %s7, 2
      // Predicated region
      $region33: #{preact_block_forward.4} parent=31 // pred_check
        %p275 = pneg %p62
      $region34: #{preact_block_forward.4} parent=31 // pred_check_branch
        %277 = sbr.rel (%p275) target = $region36
      $region35: #{preact_block_forward.4} parent=31 // pred_region
        %p278 = scmp.lt.s32.totalorder %s13, 1
        %s279 = scalar_select %p278, %s13, 1
        %s280 = smul.addr %s279, 8
        %s281 = scalar_lea.vmem %s1, %s280
      $region36: #{preact_block_forward.4} parent=31 // pred_fallthru
        _
    $region32: #{preact_block_forward.4} parent=5 // pred_fallthru
      _
  $region6: #{preact_block_forward.4} parent=0 // loop_footer
    %s11 = sadd.s32 1, %s7
  $region7: #{preact_block_forward.4} parent=0 // loop_footer_branch
    %6 = sbr.rel target = $region3
  $region8: #{preact_block_forward.4} parent=0 // loop_exit
    _

// kernel: preact_block_forward.6
$region0: #{preact_block_forward.6}
  #allocation0 [shape = 'u32[]', space=smem, size = 0x4, offset = 0x4, fixed_abs, tag = 'smem constant byte address 0x4 - core index']
  #allocation1 [shape = 'u32[144,128]{1,0:T(1,128)}', space=vmem, size = 0x12000, scoped, tag = 'internal scratch']
  %s0 = inlined_call_operand.vmem [shape: f32[512,128], index: 0, kind: input, shape index: {}]
  %s1 = inlined_call_operand.vmem [shape: f32[1,128], index: 1, kind: input, shape index: {}]
  %s2 = inlined_call_operand.vmem [shape: f32[1,128], index: 2, kind: input, shape index: {}]
  %s3 = inlined_call_operand.vmem [shape: bf16[128,128], index: 3, kind: input, shape index: {}]
  %s4 = inlined_call_operand.vmem [shape: f32[512,128], index: 4, kind: output, shape index: {}]
  %s5 = sld [smem:[#allocation0]]
  $region49: #{preact_block_forward.6} parent=0
    _
  %s7 = ssub.s32 1, %s5
  %s8 = scalar_select 0, %s7, %s5
  loop: start=0, step=1, limit=4
  $region2: #{preact_block_forward.6} parent=0 // loop_pre_header
    _
  $region3: #{preact_block_forward.6} parent=0 // loop_header
    %s10 = sphi 0, %s14
    %p11 = scmp.ge.s32.totalorder %s10, 4
    %s17 = sphi 0, %s29
    %s18 = sphi 0, %s25
    %s19 = sphi 0, %s17
    %s20 = sphi 0, %s18
    %s21 = sphi 0, %s19
    %s22 = sphi 0, %s20
    %s32 = sphi 0, %s34
    %s35 = sphi 0, %s32
    %s36 = sphi 0, %s35
    %s52 = sphi 0, %s36
    %s56 = sphi 0, %s56
    %s58 = sphi 0, %s56
    %s59 = sphi 0, %s58
    %s73 = sphi 0, %s59
    %s77 = sphi 0, %s77
    %s79 = sphi 0, %s77
    %s80 = sphi 0, %s79
    %s94 = sphi 0, %s80
    %s100 = sphi 0, %s102
    %s103 = sphi 0, %s100
    %s104 = sphi 0, %s103
    %s120 = sphi 0, %s104
    %s128 = sphi 0, %s130
    %s131 = sphi 0, %s128
    %s132 = sphi 0, %s131
    %s148 = sphi 0, %s132
  $region4: #{preact_block_forward.6} parent=0 // loop_header_branch
    %13 = sbr.rel (%p11) target = $region8
  $region5: #{preact_block_forward.6} parent=0 // loop_body
    %s15 = ssub.s32 %s10, 1
    %s16 = ssub.s32 %s10, 2
    %s23 = sadd.s32 1, %s18
    %p24 = scmp.ge.s32.totalorder %s23, 1
    %s25 = scalar_select %p24, 0, %s23
    %s26 = sadd.s32 1, %s17
    %s27 = scalar_select %p24, %s26, %s17
    %p28 = scmp.ge.s32.totalorder %s27, 2
    %s29 = scalar_select %p28, 0, %s27
    %s30 = ssub.s32 %s17, %s29
    %p31 = scmp.eq.s32.totalorder %s30, 0
    %s33 = sadd.s32 %s32, 1
    %s34 = scalar_select %p31, %s32, %s33
    %p37 = pneg %p31
    %p38 = scmp.eq.s32.totalorder %s10, 1
    %p39 = por %p37, %p38
    %p40 = scmp.ne.s32.totalorder %s32, %s35
    %p41 = scmp.eq.s32.totalorder %s10, 0
    %p42 = por %p40, %p41
    %p43 = scmp.ne.s32.totalorder %s32, %s35
    %p44 = scmp.eq.s32.totalorder %s15, 1
    %p45 = por %p43, %p44
    %p46 = scmp.ne.s32.totalorder %s35, %s36
    %p47 = scmp.eq.s32.totalorder %s15, 0
    %p48 = por %p46, %p47
    %p49 = scmp.ne.s32.totalorder %s35, %s36
    %p50 = scmp.eq.s32.totalorder %s16, 1
    %p51 = por %p49, %p50
    %p53 = scmp.ne.s32.totalorder %s36, %s52
    %p54 = scmp.eq.s32.totalorder %s16, 0
    %p55 = por %p53, %p54
    %s57 = sadd.s32 %s56, 1
    %p60 = scmp.eq.s32.totalorder %s10, 1
    %p61 = scmp.ne.s32.totalorder %s56, %s58
    %p62 = scmp.eq.s32.totalorder %s10, 0
    %p63 = por %p61, %p62
    %p64 = scmp.ne.s32.totalorder %s56, %s58
    %p65 = scmp.eq.s32.totalorder %s15, 1
    %p66 = por %p64, %p65
    %p67 = scmp.ne.s32.totalorder %s58, %s59
    %p68 = scmp.eq.s32.totalorder %s15, 0
    %p69 = por %p67, %p68
    %p70 = scmp.ne.s32.totalorder %s58, %s59
    %p71 = scmp.eq.s32.totalorder %s16, 1
    %p72 = por %p70, %p71
    %p74 = scmp.ne.s32.totalorder %s59, %s73
    %p75 = scmp.eq.s32.totalorder %s16, 0
    %p76 = por %p74, %p75
    %s78 = sadd.s32 %s77, 1
    %p81 = scmp.eq.s32.totalorder %s10, 1
    %p82 = scmp.ne.s32.totalorder %s77, %s79
    %p83 = scmp.eq.s32.totalorder %s10, 0
    %p84 = por %p82, %p83
    %p85 = scmp.ne.s32.totalorder %s77, %s79
    %p86 = scmp.eq.s32.totalorder %s15, 1
    %p87 = por %p85, %p86
    %p88 = scmp.ne.s32.totalorder %s79, %s80
    %p89 = scmp.eq.s32.totalorder %s15, 0
    %p90 = por %p88, %p89
    %p91 = scmp.ne.s32.totalorder %s79, %s80
    %p92 = scmp.eq.s32.totalorder %s16, 1
    %p93 = por %p91, %p92
    %p95 = scmp.ne.s32.totalorder %s80, %s94
    %p96 = scmp.eq.s32.totalorder %s16, 0
    %p97 = por %p95, %p96
    %s98 = ssub.s32 %s18, %s25
    %p99 = scmp.eq.s32.totalorder %s98, 0
    %s101 = sadd.s32 %s100, 1
    %s102 = scalar_select %p99, %s100, %s101
    %p105 = pneg %p99
    %p106 = scmp.eq.s32.totalorder %s10, 1
    %p107 = por %p105, %p106
    %p108 = scmp.ne.s32.totalorder %s100, %s103
    %p109 = scmp.eq.s32.totalorder %s10, 0
    %p110 = por %p108, %p109
    %p111 = scmp.ne.s32.totalorder %s100, %s103
    %p112 = scmp.eq.s32.totalorder %s15, 1
    %p113 = por %p111, %p112
    %p114 = scmp.ne.s32.totalorder %s103, %s104
    %p115 = scmp.eq.s32.totalorder %s15, 0
    %p116 = por %p114, %p115
    %p117 = scmp.ne.s32.totalorder %s103, %s104
    %p118 = scmp.eq.s32.totalorder %s16, 1
    %p119 = por %p117, %p118
    %p121 = scmp.ne.s32.totalorder %s104, %s120
    %p122 = scmp.eq.s32.totalorder %s16, 0
    %p123 = por %p121, %p122
    %s124 = ssub.s32 %s17, %s29
    %s125 = ssub.s32 %s18, %s25
    %s126 = sor.u32 %s124, %s125
    %p127 = scmp.eq.s32.totalorder %s126, 0
    %s129 = sadd.s32 %s128, 1
    %s130 = scalar_select %p127, %s128, %s129
    %p133 = pneg %p127
    %p134 = scmp.eq.s32.totalorder %s10, 1
    %p135 = por %p133, %p134
    %p136 = scmp.ne.s32.totalorder %s128, %s131
    %p137 = scmp.eq.s32.totalorder %s10, 0
    %p138 = por %p136, %p137
    %p139 = scmp.ne.s32.totalorder %s128, %s131
    %p140 = scmp.eq.s32.totalorder %s15, 1
    %p141 = por %p139, %p140
    %p142 = scmp.ne.s32.totalorder %s131, %s132
    %p143 = scmp.eq.s32.totalorder %s15, 0
    %p144 = por %p142, %p143
    %p145 = scmp.ne.s32.totalorder %s131, %s132
    %p146 = scmp.eq.s32.totalorder %s16, 1
    %p147 = por %p145, %p146
    %p149 = scmp.ne.s32.totalorder %s132, %s148
    %p150 = scmp.eq.s32.totalorder %s16, 0
    %p151 = por %p149, %p150
    %p152 = scmp.le.s32.totalorder 1, %s10
    %p153 = scmp.lt.s32.totalorder %s10, 3
    %p154 = pnand %p152, %p153
    %p155 = pneg %p154
    // Predicated region
    $region9: #{preact_block_forward.6} parent=5 // pred_check
      _
    $region10: #{preact_block_forward.6} parent=5 // pred_check_branch
      %157 = sbr.rel (%p154) target = $region12
    $region11: #{preact_block_forward.6} parent=5 // pred_region
      %s158 = ssub.s32 %s10, 1
      // Predicated region
      $region13: #{preact_block_forward.6} parent=11 // pred_check
        %p159 = pneg %p69
      $region14: #{preact_block_forward.6} parent=11 // pred_check_branch
        %161 = sbr.rel (%p159) target = $region16
      $region15: #{preact_block_forward.6} parent=11 // pred_region
        _
      $region16: #{preact_block_forward.6} parent=11 // pred_fallthru
        _
      // Predicated region
      $region17: #{preact_block_forward.6} parent=11 // pred_check
        %p162 = pneg %p90
      $region18: #{preact_block_forward.6} parent=11 // pred_check_branch
        %164 = sbr.rel (%p162) target = $region20
      $region19: #{preact_block_forward.6} parent=11 // pred_region
        _
      $region20: #{preact_block_forward.6} parent=11 // pred_fallthru
        _
      // Predicated region
      $region21: #{preact_block_forward.6} parent=11 // pred_check
        %p165 = pneg %p116
      $region22: #{preact_block_forward.6} parent=11 // pred_check_branch
        %167 = sbr.rel (%p165) target = $region24
      $region23: #{preact_block_forward.6} parent=11 // pred_region
        %p168 = scmp.lt.s32.totalorder %s20, 0
        %s169 = scalar_select %p168, %s20, 0
        %s170 = smul.addr %s169, 4
        %s171 = scalar_lea.vmem %s3, %s170
      $region24: #{preact_block_forward.6} parent=11 // pred_fallthru
        _
    $region12: #{preact_block_forward.6} parent=5 // pred_fallthru
      _
    %p172 = scmp.lt.s32.totalorder %s10, 2
    // Predicated region
    $region25: #{preact_block_forward.6} parent=5 // pred_check
      %p173 = pneg %p172
    $region26: #{preact_block_forward.6} parent=5 // pred_check_branch
      %175 = sbr.rel (%p173) target = $region28
    $region27: #{preact_block_forward.6} parent=5 // pred_region
      // Predicated region
      $region29: #{preact_block_forward.6} parent=27 // pred_check
        %p176 = pneg %p42
      $region30: #{preact_block_forward.6} parent=27 // pred_check_branch
        %178 = sbr.rel (%p176) target = $region32
      $region31: #{preact_block_forward.6} parent=27 // pred_region
        %s179 = smul.u32 32, %s17
        %p180 = scmp.lt.s32.totalorder %s179, 63
        %s181 = scalar_select %p180, %s179, 63
        %s182 = smul.addr %s181, 8
        %s183 = scalar_lea.vmem %s0, %s182
        %s184 = smul.u32 32, %s17
      $region32: #{preact_block_forward.6} parent=27 // pred_fallthru
        _
    $region28: #{preact_block_forward.6} parent=5 // pred_fallthru
      _
    %p185 = scmp.le.s32.totalorder 1, %s10
    %p186 = scmp.lt.s32.totalorder %s10, 3
    %p187 = pnand %p185, %p186
    %p188 = pneg %p187
    // Predicated region
    $region33: #{preact_block_forward.6} parent=5 // pred_check
      _
    $region34: #{preact_block_forward.6} parent=5 // pred_check_branch
      %190 = sbr.rel (%p187) target = $region36
    $region35: #{preact_block_forward.6} parent=5 // pred_region
      %s191 = ssub.s32 %s10, 1
      %s192 = smul.u32 32, %s19
      %p193 = scmp.lt.s32.totalorder %s192, 63
      %s194 = scalar_select %p193, %s192, 63
      %s195 = smul.addr %s194, 8
      %s196 = scalar_lea.vmem %s0, %s195
      %p197 = pneg %p48
      %p198 = pneg %p45
      %p199 = pneg %p69
      %p200 = pneg %p66
      %p201 = pneg %p90
      %p202 = pneg %p87
      %p203 = scmp.lt.s32.totalorder %s20, 0
      %s204 = scalar_select %p203, %s20, 0
      %s205 = smul.addr %s204, 4
      %s206 = scalar_lea.vmem %s3, %s205
      %p207 = pneg %p116
      %p208 = pneg %p113
      %p209 = pneg %p144
      %p210 = pneg %p141
      %s211 = smul.u32 32, %s19
      %p212 = scmp.lt.s32.totalorder %s211, 63
      %s213 = scalar_select %p212, %s211, 63
      %p214 = scmp.lt.s32.totalorder %s20, 0
      %s215 = scalar_select %p214, %s20, 0
      %s216 = sadd.s32 %s215, %s213
      %s217 = smul.addr %s216, 8
      %s218 = scalar_lea.vmem %s4, %s217
      %s219 = smul.u32 32, %s19
      %p220 = scmp.lt.s32.totalorder %s219, 63
      %s221 = scalar_select %p220, %s219, 63
      %s222 = smul.addr %s221, 8
      %s223 = scalar_lea.vmem %s0, %s222
      %s224 = smul.u32 32, %s19
      %p225 = scmp.lt.s32.totalorder %s20, 0
      %s226 = scalar_select %p225, %s20, 0
      %s227 = smul.addr %s226, 4
      %s228 = scalar_lea.vmem %s3, %s227
      %s229 = smul.u32 32, %s19
      %p230 = scmp.lt.s32.totalorder %s229, 63
      %s231 = scalar_select %p230, %s229, 63
      %p232 = scmp.lt.s32.totalorder %s20, 0
      %s233 = scalar_select %p232, %s20, 0
      %s234 = sadd.s32 %s233, %s231
      %s235 = smul.addr %s234, 8
      %s236 = scalar_lea.vmem %s4, %s235
      %s237 = smul.u32 32, %s19
      %v239 = vld [vmem:[%s223] sm:$0xff]
      %v240 = vld [vmem:[%s223 + $0x8] sm:$0xff]
      %v241 = vld [vmem:[%s223 + $0x10] sm:$0xff]
      %v242 = vld [vmem:[%s223 + $0x18] sm:$0xff]
      %v243 = vld [vmem:[%s223 + $0x20] sm:$0xff]
      %v244 = vld [vmem:[%s223 + $0x28] sm:$0xff]
      %v245 = vld [vmem:[%s223 + $0x30] sm:$0xff]
      %v246 = vld [vmem:[%s223 + $0x38] sm:$0xff]
      %v247 = vld [vmem:[%s223 + $0x40] sm:$0xff]
      %v248 = vld [vmem:[%s223 + $0x48] sm:$0xff]
      %v249 = vld [vmem:[%s223 + $0x50] sm:$0xff]
      %v250 = vld [vmem:[%s223 + $0x58] sm:$0xff]
      %v251 = vld [vmem:[%s223 + $0x60] sm:$0xff]
      %v252 = vld [vmem:[%s223 + $0x68] sm:$0xff]
      %v253 = vld [vmem:[%s223 + $0x70] sm:$0xff]
      %v254 = vld [vmem:[%s223 + $0x78] sm:$0xff]
      %v255 = vld [vmem:[%s223 + $0x80] sm:$0xff]
      %v256 = vld [vmem:[%s223 + $0x88] sm:$0xff]
      %v257 = vld [vmem:[%s223 + $0x90] sm:$0xff]
      %v258 = vld [vmem:[%s223 + $0x98] sm:$0xff]
      %v259 = vld [vmem:[%s223 + $0xa0] sm:$0xff]
      %v260 = vld [vmem:[%s223 + $0xa8] sm:$0xff]
      %v261 = vld [vmem:[%s223 + $0xb0] sm:$0xff]
      %v262 = vld [vmem:[%s223 + $0xb8] sm:$0xff]
      %v263 = vld [vmem:[%s223 + $0xc0] sm:$0xff]
      %v264 = vld [vmem:[%s223 + $0xc8] sm:$0xff]
      %v265 = vld [vmem:[%s223 + $0xd0] sm:$0xff]
      %v266 = vld [vmem:[%s223 + $0xd8] sm:$0xff]
      %v267 = vld [vmem:[%s223 + $0xe0] sm:$0xff]
      %v268 = vld [vmem:[%s223 + $0xe8] sm:$0xff]
      %v269 = vld [vmem:[%s223 + $0xf0] sm:$0xff]
      %v270 = vld [vmem:[%s223 + $0xf8] sm:$0xff]
      %v271 = vld [vmem:[%s1] sm:$0x1]
      %v273 = vlaneseq
      %v274 = vshrl.u32 %v273, 7
      %v275 = vsub.s32 0, %v274
      %v276 = vrot.slane %v271, %v275
      %v278 = vmul.f32 %v239, %v276
      %v279 = vmul.f32 %v240, %v276
      %v280 = vmul.f32 %v241, %v276
      %v281 = vmul.f32 %v242, %v276
      %v282 = vmul.f32 %v243, %v276
      %v283 = vmul.f32 %v244, %v276
      %v284 = vmul.f32 %v245, %v276
      %v285 = vmul.f32 %v246, %v276
      %v286 = vmul.f32 %v247, %v276
      %v287 = vmul.f32 %v248, %v276
      %v288 = vmul.f32 %v249, %v276
      %v289 = vmul.f32 %v250, %v276
      %v290 = vmul.f32 %v251, %v276
      %v291 = vmul.f32 %v252, %v276
      %v292 = vmul.f32 %v253, %v276
      %v293 = vmul.f32 %v254, %v276
      %v294 = vmul.f32 %v255, %v276
      %v295 = vmul.f32 %v256, %v276
      %v296 = vmul.f32 %v257, %v276
      %v297 = vmul.f32 %v258, %v276
      %v298 = vmul.f32 %v259, %v276
      %v299 = vmul.f32 %v260, %v276
      %v300 = vmul.f32 %v261, %v276
      %v301 = vmul.f32 %v262, %v276
      %v302 = vmul.f32 %v263, %v276
      %v303 = vmul.f32 %v264, %v276
      %v304 = vmul.f32 %v265, %v276
      %v305 = vmul.f32 %v266, %v276
      %v306 = vmul.f32 %v267, %v276
      %v307 = vmul.f32 %v268, %v276
      %v308 = vmul.f32 %v269, %v276
      %v309 = vmul.f32 %v270, %v276
      %v310 = vld [vmem:[%s2] sm:$0x1]
      %v312 = vlaneseq
      %v313 = vshrl.u32 %v312, 7
      %v314 = vsub.s32 0, %v313
      %v315 = vrot.slane %v310, %v314
      %v317 = vadd.f32 %v278, %v315
      %v318 = vadd.f32 %v279, %v315
      %v319 = vadd.f32 %v280, %v315
      %v320 = vadd.f32 %v281, %v315
      %v321 = vadd.f32 %v282, %v315
      %v322 = vadd.f32 %v283, %v315
      %v323 = vadd.f32 %v284, %v315
      %v324 = vadd.f32 %v285, %v315
      %v325 = vadd.f32 %v286, %v315
      %v326 = vadd.f32 %v287, %v315
      %v327 = vadd.f32 %v288, %v315
      %v328 = vadd.f32 %v289, %v315
      %v329 = vadd.f32 %v290, %v315
      %v330 = vadd.f32 %v291, %v315
      %v331 = vadd.f32 %v292, %v315
      %v332 = vadd.f32 %v293, %v315
      %v333 = vadd.f32 %v294, %v315
      %v334 = vadd.f32 %v295, %v315
      %v335 = vadd.f32 %v296, %v315
      %v336 = vadd.f32 %v297, %v315
      %v337 = vadd.f32 %v298, %v315
      %v338 = vadd.f32 %v299, %v315
      %v339 = vadd.f32 %v300, %v315
      %v340 = vadd.f32 %v301, %v315
      %v341 = vadd.f32 %v302, %v315
      %v342 = vadd.f32 %v303, %v315
      %v343 = vadd.f32 %v304, %v315
      %v344 = vadd.f32 %v305, %v315
      %v345 = vadd.f32 %v306, %v315
      %v346 = vadd.f32 %v307, %v315
      %v347 = vadd.f32 %v308, %v315
      %v348 = vadd.f32 %v309, %v315
      %v349 = vmax.f32 %v317, 0.0
      %v350 = vmax.f32 %v318, 0.0
      %v351 = vmax.f32 %v319, 0.0
      %v352 = vmax.f32 %v320, 0.0
      %v353 = vmax.f32 %v321, 0.0
      %v354 = vmax.f32 %v322, 0.0
      %v355 = vmax.f32 %v323, 0.0
      %v356 = vmax.f32 %v324, 0.0
      %v357 = vmax.f32 %v325, 0.0
      %v358 = vmax.f32 %v326, 0.0
      %v359 = vmax.f32 %v327, 0.0
      %v360 = vmax.f32 %v328, 0.0
      %v361 = vmax.f32 %v329, 0.0
      %v362 = vmax.f32 %v330, 0.0
      %v363 = vmax.f32 %v331, 0.0
      %v364 = vmax.f32 %v332, 0.0
      %v365 = vmax.f32 %v333, 0.0
      %v366 = vmax.f32 %v334, 0.0
      %v367 = vmax.f32 %v335, 0.0
      %v368 = vmax.f32 %v336, 0.0
      %v369 = vmax.f32 %v337, 0.0
      %v370 = vmax.f32 %v338, 0.0
      %v371 = vmax.f32 %v339, 0.0
      %v372 = vmax.f32 %v340, 0.0
      %v373 = vmax.f32 %v341, 0.0
      %v374 = vmax.f32 %v342, 0.0
      %v375 = vmax.f32 %v343, 0.0
      %v376 = vmax.f32 %v344, 0.0
      %v377 = vmax.f32 %v345, 0.0
      %v378 = vmax.f32 %v346, 0.0
      %v379 = vmax.f32 %v347, 0.0
      %v380 = vmax.f32 %v348, 0.0
      %v381 = vpack.c.bf16 %v350, %v349
      %v382 = vpack.c.bf16 %v352, %v351
      %v383 = vpack.c.bf16 %v354, %v353
      %v384 = vpack.c.bf16 %v356, %v355
      %v385 = vpack.c.bf16 %v358, %v357
      %v386 = vpack.c.bf16 %v360, %v359
      %v387 = vpack.c.bf16 %v362, %v361
      %v388 = vpack.c.bf16 %v364, %v363
      %v389 = vpack.c.bf16 %v366, %v365
      %v390 = vpack.c.bf16 %v368, %v367
      %v391 = vpack.c.bf16 %v370, %v369
      %v392 = vpack.c.bf16 %v372, %v371
      %v393 = vpack.c.bf16 %v374, %v373
      %v394 = vpack.c.bf16 %v376, %v375
      %v395 = vpack.c.bf16 %v378, %v377
      %v396 = vpack.c.bf16 %v380, %v379
      %v397 = vld [vmem:[%s228] sm:$0xf]
      %v398 = vld [vmem:[%s228 + $0x4] sm:$0xf]
      %v399 = vld [vmem:[%s228 + $0x8] sm:$0xf]
      %v400 = vld [vmem:[%s228 + $0xc] sm:$0xf]
      %v401 = vld [vmem:[%s228 + $0x10] sm:$0xf]
      %v402 = vld [vmem:[%s228 + $0x14] sm:$0xf]
      %v403 = vld [vmem:[%s228 + $0x18] sm:$0xf]
      %v404 = vld [vmem:[%s228 + $0x1c] sm:$0xf]
      %v405 = vld [vmem:[%s228 + $0x20] sm:$0xf]
      %v406 = vld [vmem:[%s228 + $0x24] sm:$0xf]
      %v407 = vld [vmem:[%s228 + $0x28] sm:$0xf]
      %v408 = vld [vmem:[%s228 + $0x2c] sm:$0xf]
      %v409 = vld [vmem:[%s228 + $0x30] sm:$0xf]
      %v410 = vld [vmem:[%s228 + $0x34] sm:$0xf]
      %v411 = vld [vmem:[%s228 + $0x38] sm:$0xf]
      %v412 = vld [vmem:[%s228 + $0x3c] sm:$0xf]
      %v429 = vunpack.c.l.b16 %v397
      %v430 = vunpack.c.l.b16 %v398
      %v431 = vunpack.c.l.b16 %v399
      %v432 = vunpack.c.l.b16 %v400
      %v433 = vunpack.c.l.b16 %v401
      %v434 = vunpack.c.l.b16 %v402
      %v435 = vunpack.c.l.b16 %v403
      %v436 = vunpack.c.l.b16 %v404
      %v437 = vunpack.c.l.b16 %v405
      %v438 = vunpack.c.l.b16 %v406
      %v439 = vunpack.c.l.b16 %v407
      %v440 = vunpack.c.l.b16 %v408
      %v441 = vunpack.c.l.b16 %v409
      %v442 = vunpack.c.l.b16 %v410
      %v443 = vunpack.c.l.b16 %v411
      %v444 = vunpack.c.l.b16 %v412
      %v445 = vpack.c.b16 %v430, %v429
      %v446 = vpack.c.b16 %v432, %v431
      %v447 = vpack.c.b16 %v434, %v433
      %v448 = vpack.c.b16 %v436, %v435
      %v449 = vpack.c.b16 %v438, %v437
      %v450 = vpack.c.b16 %v440, %v439
      %v451 = vpack.c.b16 %v442, %v441
      %v452 = vpack.c.b16 %v444, %v443
      %461 = vmatprep.subr.bf16.mxu0 0
      %462 = vmatpush1.bf16.msra.mxu0 %v452
      %463 = vmatprep.subr.bf16.mxu0 0
      %464 = vmatpush1.bf16.msra.mxu0 %v451
      %465 = vmatprep.subr.bf16.mxu0 0
      %466 = vmatpush1.bf16.msra.mxu0 %v450
      %467 = vmatprep.subr.bf16.mxu0 0
      %468 = vmatpush1.bf16.msra.mxu0 %v449
      %469 = vmatprep.subr.bf16.mxu0 0
      %470 = vmatpush1.bf16.msra.mxu0 %v448
      %471 = vmatprep.subr.bf16.mxu0 0
      %472 = vmatpush1.bf16.msra.mxu0 %v447
      %473 = vmatprep.subr.bf16.mxu0 0
      %474 = vmatpush1.bf16.msra.mxu0 %v446
      %475 = vmatprep.subr.bf16.mxu0 0
      %476 = vmatpush1.bf16.msra.mxu0 %v445
      %477 = vmatprep.subr.bf16.mxu0 0
      %478 = vmatpush2.bf16.msra.mxu0 0
      %479 = vmatprep.subr.bf16.mxu0 0
      %480 = vmatpush2.bf16.msra.mxu0 0
      %481 = vmatprep.subr.bf16.mxu0 0
      %482 = vmatpush2.bf16.msra.mxu0 0
      %483 = vmatprep.subr.bf16.mxu0 0
      %484 = vmatpush2.bf16.msra.mxu0 0
      %485 = vmatprep.subr.bf16.mxu0 0
      %486 = vmatpush2.bf16.msra.mxu0 0
      %487 = vmatprep.subr.bf16.mxu0 0
      %488 = vmatpush2.bf16.msra.mxu0 0
      %489 = vmatprep.subr.bf16.mxu0 0
      %490 = vmatpush2.bf16.msra.mxu0 0
      %491 = vmatprep.subr.bf16.mxu0 0
      %492 = vmatpush2.bf16.msra.mxu0 0
      %493 = vmatprep.mubr.bf16.mxu0 0
      %494 = vmatmul.mubr.bf16.gmra.mxu0 %v381
      %v495 = vpop.f32.mrf.mxu0
      %v496 = vadd.f32 0.0, %v495
      %v497 = vpop.f32.mrf.mxu0
      %v498 = vpop.f32.mrf.mxu0
      %v499 = vadd.f32 0.0, %v498
      %v500 = vpop.f32.mrf.mxu0
      %501 = vmatprep.mubr.bf16.mxu0 0
      %502 = vmatmul.mubr.bf16.gmra.mxu0 %v382
      %v503 = vpop.f32.mrf.mxu0
      %v504 = vadd.f32 0.0, %v503
      %v505 = vpop.f32.mrf.mxu0
      %v506 = vpop.f32.mrf.mxu0
      %v507 = vadd.f32 0.0, %v506
      %v508 = vpop.f32.mrf.mxu0
      %509 = vmatprep.mubr.bf16.mxu0 0
      %510 = vmatmul.mubr.bf16.gmra.mxu0 %v383
      %v511 = vpop.f32.mrf.mxu0
      %v512 = vadd.f32 0.0, %v511
      %v513 = vpop.f32.mrf.mxu0
      %v514 = vpop.f32.mrf.mxu0
      %v515 = vadd.f32 0.0, %v514
      %v516 = vpop.f32.mrf.mxu0
      %517 = vmatprep.mubr.bf16.mxu0 0
      %518 = vmatmul.mubr.bf16.gmra.mxu0 %v384
      %v519 = vpop.f32.mrf.mxu0
      %v520 = vadd.f32 0.0, %v519
      %v521 = vpop.f32.mrf.mxu0
      %v522 = vpop.f32.mrf.mxu0
      %v523 = vadd.f32 0.0, %v522
      %v524 = vpop.f32.mrf.mxu0
      %525 = vmatprep.mubr.bf16.mxu0 0
      %526 = vmatmul.mubr.bf16.gmra.mxu0 %v385
      %v527 = vpop.f32.mrf.mxu0
      %v528 = vadd.f32 0.0, %v527
      %v529 = vpop.f32.mrf.mxu0
      %v530 = vpop.f32.mrf.mxu0
      %v531 = vadd.f32 0.0, %v530
      %v532 = vpop.f32.mrf.mxu0
      %533 = vmatprep.mubr.bf16.mxu0 0
      %534 = vmatmul.mubr.bf16.gmra.mxu0 %v386
      %v535 = vpop.f32.mrf.mxu0
      %v536 = vadd.f32 0.0, %v535
      %v537 = vpop.f32.mrf.mxu0
      %v538 = vpop.f32.mrf.mxu0
      %v539 = vadd.f32 0.0, %v538
      %v540 = vpop.f32.mrf.mxu0
      %541 = vmatprep.mubr.bf16.mxu0 0
      %542 = vmatmul.mubr.bf16.gmra.mxu0 %v387
      %v543 = vpop.f32.mrf.mxu0
      %v544 = vadd.f32 0.0, %v543
      %v545 = vpop.f32.mrf.mxu0
      %v546 = vpop.f32.mrf.mxu0
      %v547 = vadd.f32 0.0, %v546
      %v548 = vpop.f32.mrf.mxu0
      %549 = vmatprep.mubr.bf16.mxu0 0
      %550 = vmatmul.mubr.bf16.gmra.mxu0 %v388
      %v551 = vpop.f32.mrf.mxu0
      %v552 = vadd.f32 0.0, %v551
      %v553 = vpop.f32.mrf.mxu0
      %v554 = vpop.f32.mrf.mxu0
      %v555 = vadd.f32 0.0, %v554
      %v556 = vpop.f32.mrf.mxu0
      %557 = vmatprep.mubr.bf16.mxu0 0
      %558 = vmatmul.mubr.bf16.gmra.mxu0 %v389
      %v559 = vpop.f32.mrf.mxu0
      %v560 = vadd.f32 0.0, %v559
      %v561 = vpop.f32.mrf.mxu0
      %v562 = vpop.f32.mrf.mxu0
      %v563 = vadd.f32 0.0, %v562
      %v564 = vpop.f32.mrf.mxu0
      %565 = vmatprep.mubr.bf16.mxu0 0
      %566 = vmatmul.mubr.bf16.gmra.mxu0 %v390
      %v567 = vpop.f32.mrf.mxu0
      %v568 = vadd.f32 0.0, %v567
      %v569 = vpop.f32.mrf.mxu0
      %v570 = vpop.f32.mrf.mxu0
      %v571 = vadd.f32 0.0, %v570
      %v572 = vpop.f32.mrf.mxu0
      %573 = vmatprep.mubr.bf16.mxu0 0
      %574 = vmatmul.mubr.bf16.gmra.mxu0 %v391
      %v575 = vpop.f32.mrf.mxu0
      %v576 = vadd.f32 0.0, %v575
      %v577 = vpop.f32.mrf.mxu0
      %v578 = vpop.f32.mrf.mxu0
      %v579 = vadd.f32 0.0, %v578
      %v580 = vpop.f32.mrf.mxu0
      %581 = vmatprep.mubr.bf16.mxu0 0
      %582 = vmatmul.mubr.bf16.gmra.mxu0 %v392
      %v583 = vpop.f32.mrf.mxu0
      %v584 = vadd.f32 0.0, %v583
      %v585 = vpop.f32.mrf.mxu0
      %v586 = vpop.f32.mrf.mxu0
      %v587 = vadd.f32 0.0, %v586
      %v588 = vpop.f32.mrf.mxu0
      %589 = vmatprep.mubr.bf16.mxu0 0
      %590 = vmatmul.mubr.bf16.gmra.mxu0 %v393
      %v591 = vpop.f32.mrf.mxu0
      %v592 = vadd.f32 0.0, %v591
      %v593 = vpop.f32.mrf.mxu0
      %v594 = vpop.f32.mrf.mxu0
      %v595 = vadd.f32 0.0, %v594
      %v596 = vpop.f32.mrf.mxu0
      %597 = vmatprep.mubr.bf16.mxu0 0
      %598 = vmatmul.mubr.bf16.gmra.mxu0 %v394
      %v599 = vpop.f32.mrf.mxu0
      %v600 = vadd.f32 0.0, %v599
      %v601 = vpop.f32.mrf.mxu0
      %v602 = vpop.f32.mrf.mxu0
      %v603 = vadd.f32 0.0, %v602
      %v604 = vpop.f32.mrf.mxu0
      %605 = vmatprep.mubr.bf16.mxu0 0
      %606 = vmatmul.mubr.bf16.gmra.mxu0 %v395
      %v607 = vpop.f32.mrf.mxu0
      %v608 = vadd.f32 0.0, %v607
      %v609 = vpop.f32.mrf.mxu0
      %v610 = vpop.f32.mrf.mxu0
      %v611 = vadd.f32 0.0, %v610
      %v612 = vpop.f32.mrf.mxu0
      %613 = vmatprep.mubr.bf16.mxu0 0
      %614 = vmatmul.mubr.bf16.gmra.mxu0 %v396
      %v615 = vpop.f32.mrf.mxu0
      %v616 = vadd.f32 0.0, %v615
      %v617 = vpop.f32.mrf.mxu0
      %v618 = vpop.f32.mrf.mxu0
      %v619 = vadd.f32 0.0, %v618
      %v620 = vpop.f32.mrf.mxu0
      %621 = vdwg.mxu0
      %622 = vst [vmem:[%s236] sm:$0xff] %v496
      %623 = vst [vmem:[%s236 + $0x8] sm:$0xff] %v499
      %624 = vst [vmem:[%s236 + $0x10] sm:$0xff] %v504
      %625 = vst [vmem:[%s236 + $0x18] sm:$0xff] %v507
      %626 = vst [vmem:[%s236 + $0x20] sm:$0xff] %v512
      %627 = vst [vmem:[%s236 + $0x28] sm:$0xff] %v515
      %628 = vst [vmem:[%s236 + $0x30] sm:$0xff] %v520
      %629 = vst [vmem:[%s236 + $0x38] sm:$0xff] %v523
      %630 = vst [vmem:[%s236 + $0x40] sm:$0xff] %v528
      %631 = vst [vmem:[%s236 + $0x48] sm:$0xff] %v531
      %632 = vst [vmem:[%s236 + $0x50] sm:$0xff] %v536
      %633 = vst [vmem:[%s236 + $0x58] sm:$0xff] %v539
      %634 = vst [vmem:[%s236 + $0x60] sm:$0xff] %v544
      %635 = vst [vmem:[%s236 + $0x68] sm:$0xff] %v547
      %636 = vst [vmem:[%s236 + $0x70] sm:$0xff] %v552
      %637 = vst [vmem:[%s236 + $0x78] sm:$0xff] %v555
      %638 = vst [vmem:[%s236 + $0x80] sm:$0xff] %v560
      %639 = vst [vmem:[%s236 + $0x88] sm:$0xff] %v563
      %640 = vst [vmem:[%s236 + $0x90] sm:$0xff] %v568
      %641 = vst [vmem:[%s236 + $0x98] sm:$0xff] %v571
      %642 = vst [vmem:[%s236 + $0xa0] sm:$0xff] %v576
      %643 = vst [vmem:[%s236 + $0xa8] sm:$0xff] %v579
      %644 = vst [vmem:[%s236 + $0xb0] sm:$0xff] %v584
      %645 = vst [vmem:[%s236 + $0xb8] sm:$0xff] %v587
      %646 = vst [vmem:[%s236 + $0xc0] sm:$0xff] %v592
      %647 = vst [vmem:[%s236 + $0xc8] sm:$0xff] %v595
      %648 = vst [vmem:[%s236 + $0xd0] sm:$0xff] %v600
      %649 = vst [vmem:[%s236 + $0xd8] sm:$0xff] %v603
      %650 = vst [vmem:[%s236 + $0xe0] sm:$0xff] %v608
      %651 = vst [vmem:[%s236 + $0xe8] sm:$0xff] %v611
      %652 = vst [vmem:[%s236 + $0xf0] sm:$0xff] %v616
      %653 = vst [vmem:[%s236 + $0xf8] sm:$0xff] %v619
      %s654 = smul.u32 32, %s19
      %p655 = scmp.lt.s32.totalorder %s654, 63
      %s656 = scalar_select %p655, %s654, 63
      %p657 = scmp.lt.s32.totalorder %s20, 0
      %s658 = scalar_select %p657, %s20, 0
      %s659 = sadd.s32 %s658, %s656
      %s660 = smul.addr %s659, 8
      %s661 = scalar_lea.vmem %s4, %s660
      // Predicated region
      $region37: #{preact_block_forward.6} parent=35 // pred_check
        %p662 = pneg %p141
      $region38: #{preact_block_forward.6} parent=35 // pred_check_branch
        %664 = sbr.rel (%p662) target = $region40
      $region39: #{preact_block_forward.6} parent=35 // pred_region
        %s665 = smul.u32 32, %s19
      $region40: #{preact_block_forward.6} parent=35 // pred_fallthru
        _
    $region36: #{preact_block_forward.6} parent=5 // pred_fallthru
      _
    %p666 = scmp.le.s32.totalorder 2, %s10
    // Predicated region
    $region41: #{preact_block_forward.6} parent=5 // pred_check
      %p667 = pneg %p666
    $region42: #{preact_block_forward.6} parent=5 // pred_check_branch
      %669 = sbr.rel (%p667) target = $region44
    $region43: #{preact_block_forward.6} parent=5 // pred_region
      %s670 = ssub.s32 %s10, 2
      // Predicated region
      $region45: #{preact_block_forward.6} parent=43 // pred_check
        %p671 = pneg %p147
      $region46: #{preact_block_forward.6} parent=43 // pred_check_branch
        %673 = sbr.rel (%p671) target = $region48
      $region47: #{preact_block_forward.6} parent=43 // pred_region
        %s674 = smul.u32 32, %s21
        %p675 = scmp.lt.s32.totalorder %s674, 63
        %s676 = scalar_select %p675, %s674, 63
        %p677 = scmp.lt.s32.totalorder %s22, 0
        %s678 = scalar_select %p677, %s22, 0
        %s679 = sadd.s32 %s678, %s676
        %s680 = smul.addr %s679, 8
        %s681 = scalar_lea.vmem %s4, %s680
      $region48: #{preact_block_forward.6} parent=43 // pred_fallthru
        _
    $region44: #{preact_block_forward.6} parent=5 // pred_fallthru
      _
  $region6: #{preact_block_forward.6} parent=0 // loop_footer
    %s14 = sadd.s32 1, %s10
  $region7: #{preact_block_forward.6} parent=0 // loop_footer_branch
    %9 = sbr.rel target = $region3
  $region8: #{preact_block_forward.6} parent=0 // loop_exit
    _

// kernel: preact_block_forward.5
$region0: #{preact_block_forward.5}
  #allocation0 [shape = 'u32[]', space=smem, size = 0x4, offset = 0x4, fixed_abs, tag = 'smem constant byte address 0x4 - core index']
  #allocation1 [shape = 'u32[144,128]{1,0:T(1,128)}', space=vmem, size = 0x12000, scoped, tag = 'internal scratch']
  #allocation2 [shape = 'f32[18,18,128]{2,1,0:T(8,128)}', space=vmem, size = 0x36000, scoped, tag = 'scratch operand']
  #allocation3 [shape = 'f32[256,128]{1,0:T(8,128)}', space=vmem, size = 0x20000, scoped, tag = 'scratch operand']
  %s0 = inlined_call_operand.vmem [shape: f32[2,18,18,128], index: 0, kind: input, shape index: {}]
  %s1 = inlined_call_operand.vmem [shape: f32[1,128], index: 1, kind: input, shape index: {}]
  %s2 = inlined_call_operand.vmem [shape: f32[1,128], index: 2, kind: input, shape index: {}]
  %s3 = inlined_call_operand.vmem [shape: bf16[3,3,128,128], index: 3, kind: input, shape index: {}]
  %s4 = inlined_call_operand.vmem [shape: f32[2,16,16,128], index: 4, kind: output, shape index: {0}]
  %s5 = inlined_call_operand.vmem [shape: f32[2,8,128], index: 5, kind: output, shape index: {1}]
  %6 = xla_tuple %s4, %s5
  %s7 = sld [smem:[#allocation0]]
  $region61: #{preact_block_forward.5} parent=0
    _
  %s9 = ssub.s32 1, %s7
  %s10 = scalar_select 0, %s9, %s7
  loop: start=0, step=1, limit=4
  $region2: #{preact_block_forward.5} parent=0 // loop_pre_header
    _
  $region3: #{preact_block_forward.5} parent=0 // loop_header
    %s12 = sphi 0, %s16
    %p13 = scmp.ge.s32.totalorder %s12, 4
    %s19 = sphi 0, %s31
    %s20 = sphi 0, %s27
    %s21 = sphi 0, %s19
    %s22 = sphi 0, %s20
    %s23 = sphi 0, %s21
    %s24 = sphi 0, %s22
    %s34 = sphi 0, %s36
    %s37 = sphi 0, %s34
    %s38 = sphi 0, %s37
    %s54 = sphi 0, %s38
    %s58 = sphi 0, %s58
    %s60 = sphi 0, %s58
    %s61 = sphi 0, %s60
    %s75 = sphi 0, %s61
    %s79 = sphi 0, %s79
    %s81 = sphi 0, %s79
    %s82 = sphi 0, %s81
    %s96 = sphi 0, %s82
    %s102 = sphi 0, %s104
    %s105 = sphi 0, %s102
    %s106 = sphi 0, %s105
    %s122 = sphi 0, %s106
    %s130 = sphi 0, %s132
    %s133 = sphi 0, %s130
    %s134 = sphi 0, %s133
    %s150 = sphi 0, %s134
    %s158 = sphi 0, %s160
    %s161 = sphi 0, %s158
    %s162 = sphi 0, %s161
    %s178 = sphi 0, %s162
  $region4: #{preact_block_forward.5} parent=0 // loop_header_branch
    %15 = sbr.rel (%p13) target = $region8
  $region5: #{preact_block_forward.5} parent=0 // loop_body
    %s17 = ssub.s32 %s12, 1
    %s18 = ssub.s32 %s12, 2
    %s25 = sadd.s32 1, %s20
    %p26 = scmp.ge.s32.totalorder %s25, 1
    %s27 = scalar_select %p26, 0, %s25
    %s28 = sadd.s32 1, %s19
    %s29 = scalar_select %p26, %s28, %s19
    %p30 = scmp.ge.s32.totalorder %s29, 2
    %s31 = scalar_select %p30, 0, %s29
    %s32 = ssub.s32 %s19, %s31
    %p33 = scmp.eq.s32.totalorder %s32, 0
    %s35 = sadd.s32 %s34, 1
    %s36 = scalar_select %p33, %s34, %s35
    %p39 = pneg %p33
    %p40 = scmp.eq.s32.totalorder %s12, 1
    %p41 = por %p39, %p40
    %p42 = scmp.ne.s32.totalorder %s34, %s37
    %p43 = scmp.eq.s32.totalorder %s12, 0
    %p44 = por %p42, %p43
    %p45 = scmp.ne.s32.totalorder %s34, %s37
    %p46 = scmp.eq.s32.totalorder %s17, 1
    %p47 = por %p45, %p46
    %p48 = scmp.ne.s32.totalorder %s37, %s38
    %p49 = scmp.eq.s32.totalorder %s17, 0
    %p50 = por %p48, %p49
    %p51 = scmp.ne.s32.totalorder %s37, %s38
    %p52 = scmp.eq.s32.totalorder %s18, 1
    %p53 = por %p51, %p52
    %p55 = scmp.ne.s32.totalorder %s38, %s54
    %p56 = scmp.eq.s32.totalorder %s18, 0
    %p57 = por %p55, %p56
    %s59 = sadd.s32 %s58, 1
    %p62 = scmp.eq.s32.totalorder %s12, 1
    %p63 = scmp.ne.s32.totalorder %s58, %s60
    %p64 = scmp.eq.s32.totalorder %s12, 0
    %p65 = por %p63, %p64
    %p66 = scmp.ne.s32.totalorder %s58, %s60
    %p67 = scmp.eq.s32.totalorder %s17, 1
    %p68 = por %p66, %p67
    %p69 = scmp.ne.s32.totalorder %s60, %s61
    %p70 = scmp.eq.s32.totalorder %s17, 0
    %p71 = por %p69, %p70
    %p72 = scmp.ne.s32.totalorder %s60, %s61
    %p73 = scmp.eq.s32.totalorder %s18, 1
    %p74 = por %p72, %p73
    %p76 = scmp.ne.s32.totalorder %s61, %s75
    %p77 = scmp.eq.s32.totalorder %s18, 0
    %p78 = por %p76, %p77
    %s80 = sadd.s32 %s79, 1
    %p83 = scmp.eq.s32.totalorder %s12, 1
    %p84 = scmp.ne.s32.totalorder %s79, %s81
    %p85 = scmp.eq.s32.totalorder %s12, 0
    %p86 = por %p84, %p85
    %p87 = scmp.ne.s32.totalorder %s79, %s81
    %p88 = scmp.eq.s32.totalorder %s17, 1
    %p89 = por %p87, %p88
    %p90 = scmp.ne.s32.totalorder %s81, %s82
    %p91 = scmp.eq.s32.totalorder %s17, 0
    %p92 = por %p90, %p91
    %p93 = scmp.ne.s32.totalorder %s81, %s82
    %p94 = scmp.eq.s32.totalorder %s18, 1
    %p95 = por %p93, %p94
    %p97 = scmp.ne.s32.totalorder %s82, %s96
    %p98 = scmp.eq.s32.totalorder %s18, 0
    %p99 = por %p97, %p98
    %s100 = ssub.s32 %s20, %s27
    %p101 = scmp.eq.s32.totalorder %s100, 0
    %s103 = sadd.s32 %s102, 1
    %s104 = scalar_select %p101, %s102, %s103
    %p107 = pneg %p101
    %p108 = scmp.eq.s32.totalorder %s12, 1
    %p109 = por %p107, %p108
    %p110 = scmp.ne.s32.totalorder %s102, %s105
    %p111 = scmp.eq.s32.totalorder %s12, 0
    %p112 = por %p110, %p111
    %p113 = scmp.ne.s32.totalorder %s102, %s105
    %p114 = scmp.eq.s32.totalorder %s17, 1
    %p115 = por %p113, %p114
    %p116 = scmp.ne.s32.totalorder %s105, %s106
    %p117 = scmp.eq.s32.totalorder %s17, 0
    %p118 = por %p116, %p117
    %p119 = scmp.ne.s32.totalorder %s105, %s106
    %p120 = scmp.eq.s32.totalorder %s18, 1
    %p121 = por %p119, %p120
    %p123 = scmp.ne.s32.totalorder %s106, %s122
    %p124 = scmp.eq.s32.totalorder %s18, 0
    %p125 = por %p123, %p124
    %s126 = ssub.s32 %s19, %s31
    %s127 = ssub.s32 %s20, %s27
    %s128 = sor.u32 %s126, %s127
    %p129 = scmp.eq.s32.totalorder %s128, 0
    %s131 = sadd.s32 %s130, 1
    %s132 = scalar_select %p129, %s130, %s131
    %p135 = pneg %p129
    %p136 = scmp.eq.s32.totalorder %s12, 1
    %p137 = por %p135, %p136
    %p138 = scmp.ne.s32.totalorder %s130, %s133
    %p139 = scmp.eq.s32.totalorder %s12, 0
    %p140 = por %p138, %p139
    %p141 = scmp.ne.s32.totalorder %s130, %s133
    %p142 = scmp.eq.s32.totalorder %s17, 1
    %p143 = por %p141, %p142
    %p144 = scmp.ne.s32.totalorder %s133, %s134
    %p145 = scmp.eq.s32.totalorder %s17, 0
    %p146 = por %p144, %p145
    %p147 = scmp.ne.s32.totalorder %s133, %s134
    %p148 = scmp.eq.s32.totalorder %s18, 1
    %p149 = por %p147, %p148
    %p151 = scmp.ne.s32.totalorder %s134, %s150
    %p152 = scmp.eq.s32.totalorder %s18, 0
    %p153 = por %p151, %p152
    %s154 = ssub.s32 %s19, %s31
    %s155 = ssub.s32 %s20, %s27
    %s156 = sor.u32 %s154, %s155
    %p157 = scmp.eq.s32.totalorder %s156, 0
    %s159 = sadd.s32 %s158, 1
    %s160 = scalar_select %p157, %s158, %s159
    %p163 = pneg %p157
    %p164 = scmp.eq.s32.totalorder %s12, 1
    %p165 = por %p163, %p164
    %p166 = scmp.ne.s32.totalorder %s158, %s161
    %p167 = scmp.eq.s32.totalorder %s12, 0
    %p168 = por %p166, %p167
    %p169 = scmp.ne.s32.totalorder %s158, %s161
    %p170 = scmp.eq.s32.totalorder %s17, 1
    %p171 = por %p169, %p170
    %p172 = scmp.ne.s32.totalorder %s161, %s162
    %p173 = scmp.eq.s32.totalorder %s17, 0
    %p174 = por %p172, %p173
    %p175 = scmp.ne.s32.totalorder %s161, %s162
    %p176 = scmp.eq.s32.totalorder %s18, 1
    %p177 = por %p175, %p176
    %p179 = scmp.ne.s32.totalorder %s162, %s178
    %p180 = scmp.eq.s32.totalorder %s18, 0
    %p181 = por %p179, %p180
    %p182 = scmp.le.s32.totalorder 1, %s12
    %p183 = scmp.lt.s32.totalorder %s12, 3
    %p184 = pnand %p182, %p183
    %p185 = pneg %p184
    // Predicated region
    $region9: #{preact_block_forward.5} parent=5 // pred_check
      _
    $region10: #{preact_block_forward.5} parent=5 // pred_check_branch
      %187 = sbr.rel (%p184) target = $region12
    $region11: #{preact_block_forward.5} parent=5 // pred_region
      %s188 = ssub.s32 %s12, 1
      // Predicated region
      $region13: #{preact_block_forward.5} parent=11 // pred_check
        %p189 = pneg %p71
      $region14: #{preact_block_forward.5} parent=11 // pred_check_branch
        %191 = sbr.rel (%p189) target = $region16
      $region15: #{preact_block_forward.5} parent=11 // pred_region
        _
      $region16: #{preact_block_forward.5} parent=11 // pred_fallthru
        _
      // Predicated region
      $region17: #{preact_block_forward.5} parent=11 // pred_check
        %p192 = pneg %p92
      $region18: #{preact_block_forward.5} parent=11 // pred_check_branch
        %194 = sbr.rel (%p192) target = $region20
      $region19: #{preact_block_forward.5} parent=11 // pred_region
        _
      $region20: #{preact_block_forward.5} parent=11 // pred_fallthru
        _
      // Predicated region
      $region21: #{preact_block_forward.5} parent=11 // pred_check
        %p195 = pneg %p118
      $region22: #{preact_block_forward.5} parent=11 // pred_check_branch
        %197 = sbr.rel (%p195) target = $region24
      $region23: #{preact_block_forward.5} parent=11 // pred_region
        %p198 = scmp.lt.s32.totalorder %s22, 0
        %s199 = scalar_select %p198, %s22, 0
        %s200 = smul.addr %s199, 4
        %s201 = scalar_lea.vmem %s3, %s200
      $region24: #{preact_block_forward.5} parent=11 // pred_fallthru
        _
    $region12: #{preact_block_forward.5} parent=5 // pred_fallthru
      _
    %p202 = scmp.lt.s32.totalorder %s12, 2
    // Predicated region
    $region25: #{preact_block_forward.5} parent=5 // pred_check
      %p203 = pneg %p202
    $region26: #{preact_block_forward.5} parent=5 // pred_check_branch
      %205 = sbr.rel (%p203) target = $region28
    $region27: #{preact_block_forward.5} parent=5 // pred_region
      // Predicated region
      $region29: #{preact_block_forward.5} parent=27 // pred_check
        %p206 = pneg %p44
      $region30: #{preact_block_forward.5} parent=27 // pred_check_branch
        %208 = sbr.rel (%p206) target = $region32
      $region31: #{preact_block_forward.5} parent=27 // pred_region
        %p209 = scmp.lt.s32.totalorder %s19, 1
        %s210 = scalar_select %p209, %s19, 1
        %s211 = smul.addr %s210, 54
        %s212 = smul.addr %s211, 8
        %s213 = scalar_lea.vmem %s0, %s212
      $region32: #{preact_block_forward.5} parent=27 // pred_fallthru
        _
    $region28: #{preact_block_forward.5} parent=5 // pred_fallthru
      _
    %p214 = scmp.le.s32.totalorder 1, %s12
    %p215 = scmp.lt.s32.totalorder %s12, 3
    %p216 = pnand %p214, %p215
    %p217 = pneg %p216
    // Predicated region
    $region33: #{preact_block_forward.5} parent=5 // pred_check
      _
    $region34: #{preact_block_forward.5} parent=5 // pred_check_branch
      %219 = sbr.rel (%p216) target = $region36
    $region35: #{preact_block_forward.5} parent=5 // pred_region
      %s220 = ssub.s32 %s12, 1
      %p221 = scmp.lt.s32.totalorder %s21, 1
      %s222 = scalar_select %p221, %s21, 1
      %s223 = smul.addr %s222, 54
      %s224 = smul.addr %s223, 8
      %s225 = scalar_lea.vmem %s0, %s224
      %p226 = pneg %p50
      %p227 = pneg %p47
      %p228 = pneg %p71
      %p229 = pneg %p68
      %p230 = pneg %p92
      %p231 = pneg %p89
      %p232 = scmp.lt.s32.totalorder %s22, 0
      %s233 = scalar_select %p232, %s22, 0
      %s234 = smul.addr %s233, 4
      %s235 = scalar_lea.vmem %s3, %s234
      %p236 = pneg %p118
      %p237 = pneg %p115
      %p238 = pneg %p146
      %p239 = pneg %p143
      %p240 = scmp.lt.s32.totalorder %s21, 1
      %s241 = scalar_select %p240, %s21, 1
      %p242 = scmp.lt.s32.totalorder %s22, 0
      %s243 = scalar_select %p242, %s22, 0
      %s244 = smul.addr %s241, 32
      %s245 = sadd.s32 %s243, %s244
      %s246 = smul.addr %s245, 8
      %s247 = scalar_lea.vmem %s4, %s246
      %p248 = pneg %p174
      %p249 = pneg %p171
      %p250 = scmp.lt.s32.totalorder %s21, 1
      %s251 = scalar_select %p250, %s21, 1
      %p252 = scmp.lt.s32.totalorder %s22, 0
      %s253 = scalar_select %p252, %s22, 0
      %s254 = sadd.s32 %s253, %s251
      %s255 = smul.addr %s254, 8
      %s256 = scalar_lea.vmem %s5, %s255
      %p257 = scmp.lt.s32.totalorder %s21, 1
      %s258 = scalar_select %p257, %s21, 1
      %s259 = smul.addr %s258, 54
      %s260 = smul.addr %s259, 8
      %s261 = scalar_lea.vmem %s0, %s260
      %p262 = scmp.lt.s32.totalorder %s22, 0
      %s263 = scalar_select %p262, %s22, 0
      %s264 = smul.addr %s263, 4
      %s265 = scalar_lea.vmem %s3, %s264
      %p266 = scmp.lt.s32.totalorder %s21, 1
      %s267 = scalar_select %p266, %s21, 1
      %p268 = scmp.lt.s32.totalorder %s22, 0
      %s269 = scalar_select %p268, %s22, 0
      %s270 = smul.addr %s267, 32
      %s271 = sadd.s32 %s269, %s270
      %s272 = smul.addr %s271, 8
      %s273 = scalar_lea.vmem %s4, %s272
      %p274 = scmp.lt.s32.totalorder %s21, 1
      %s275 = scalar_select %p274, %s21, 1
      %p276 = scmp.lt.s32.totalorder %s22, 0
      %s277 = scalar_select %p276, %s22, 0
      %s278 = sadd.s32 %s277, %s275
      %s279 = smul.addr %s278, 8
      %s280 = scalar_lea.vmem %s5, %s279
      %p282 = scmp.eq.s32.totalorder %s22, 0
      // Predicated region
      $region37: #{preact_block_forward.5} parent=35 // pred_check
        %p283 = pneg %p282
      $region38: #{preact_block_forward.5} parent=35 // pred_check_branch
        %285 = sbr.rel (%p283) target = $region40
      $region39: #{preact_block_forward.5} parent=35 // pred_region
        %v286 = vlaneseq
        %v287 = vshrl.u32 %v286, 7
        %v288 = vadd.s32 %v287, 8
        %v289 = vadd.s32 %v287, 16
        %vm290 = vcmp.ge.s32.totalorder %v287, 1
        %vm291 = vcmp.ge.s32.totalorder %v288, 1
        %vm292 = vcmp.ge.s32.totalorder %v289, 1
        %vm293 = vmand 0, %vm290
        %vm294 = vmand 0, %vm291
        %vm295 = vmand 0, %vm292
        %vm296 = vmand 1, %vm290
        %vm297 = vmand 1, %vm291
        %vm298 = vmand 1, %vm292
        %vm299 = vcmp.le.s32.totalorder %v287, 16
        %vm300 = vcmp.le.s32.totalorder %v288, 16
        %vm301 = vcmp.le.s32.totalorder %v289, 16
        %vm302 = vmand %vm293, %vm299
        %vm303 = vmand %vm294, %vm300
        %vm304 = vmand %vm295, %vm301
        %vm305 = vmand %vm296, %vm299
        %vm306 = vmand %vm297, %vm300
        %vm307 = vmand %vm298, %vm301
        %v308 = vld [vmem:[%s261] sm:$0xff]
        %v309 = vld [vmem:[%s261 + $0x8] sm:$0xff]
        %v310 = vld [vmem:[%s261 + $0x10] sm:$0x3]
        %v311 = vld [vmem:[%s261 + $0x18] sm:$0xff]
        %v312 = vld [vmem:[%s261 + $0x20] sm:$0xff]
        %v313 = vld [vmem:[%s261 + $0x28] sm:$0x3]
        %v314 = vld [vmem:[%s261 + $0x30] sm:$0xff]
        %v315 = vld [vmem:[%s261 + $0x38] sm:$0xff]
        %v316 = vld [vmem:[%s261 + $0x40] sm:$0x3]
        %v317 = vld [vmem:[%s261 + $0x48] sm:$0xff]
        %v318 = vld [vmem:[%s261 + $0x50] sm:$0xff]
        %v319 = vld [vmem:[%s261 + $0x58] sm:$0x3]
        %v320 = vld [vmem:[%s261 + $0x60] sm:$0xff]
        %v321 = vld [vmem:[%s261 + $0x68] sm:$0xff]
        %v322 = vld [vmem:[%s261 + $0x70] sm:$0x3]
        %v323 = vld [vmem:[%s261 + $0x78] sm:$0xff]
        %v324 = vld [vmem:[%s261 + $0x80] sm:$0xff]
        %v325 = vld [vmem:[%s261 + $0x88] sm:$0x3]
        %v326 = vld [vmem:[%s261 + $0x90] sm:$0xff]
        %v327 = vld [vmem:[%s261 + $0x98] sm:$0xff]
        %v328 = vld [vmem:[%s261 + $0xa0] sm:$0x3]
        %v329 = vld [vmem:[%s261 + $0xa8] sm:$0xff]
        %v330 = vld [vmem:[%s261 + $0xb0] sm:$0xff]
        %v331 = vld [vmem:[%s261 + $0xb8] sm:$0x3]
        %v332 = vld [vmem:[%s261 + $0xc0] sm:$0xff]
        %v333 = vld [vmem:[%s261 + $0xc8] sm:$0xff]
        %v334 = vld [vmem:[%s261 + $0xd0] sm:$0x3]
        %v335 = vld [vmem:[%s261 + $0xd8] sm:$0xff]
        %v336 = vld [vmem:[%s261 + $0xe0] sm:$0xff]
        %v337 = vld [vmem:[%s261 + $0xe8] sm:$0x3]
        %v338 = vld [vmem:[%s261 + $0xf0] sm:$0xff]
        %v339 = vld [vmem:[%s261 + $0xf8] sm:$0xff]
        %v340 = vld [vmem:[%s261 + $0x100] sm:$0x3]
        %v341 = vld [vmem:[%s261 + $0x108] sm:$0xff]
        %v342 = vld [vmem:[%s261 + $0x110] sm:$0xff]
        %v343 = vld [vmem:[%s261 + $0x118] sm:$0x3]
        %v344 = vld [vmem:[%s261 + $0x120] sm:$0xff]
        %v345 = vld [vmem:[%s261 + $0x128] sm:$0xff]
        %v346 = vld [vmem:[%s261 + $0x130] sm:$0x3]
        %v347 = vld [vmem:[%s261 + $0x138] sm:$0xff]
        %v348 = vld [vmem:[%s261 + $0x140] sm:$0xff]
        %v349 = vld [vmem:[%s261 + $0x148] sm:$0x3]
        %v350 = vld [vmem:[%s261 + $0x150] sm:$0xff]
        %v351 = vld [vmem:[%s261 + $0x158] sm:$0xff]
        %v352 = vld [vmem:[%s261 + $0x160] sm:$0x3]
        %v353 = vld [vmem:[%s261 + $0x168] sm:$0xff]
        %v354 = vld [vmem:[%s261 + $0x170] sm:$0xff]
        %v355 = vld [vmem:[%s261 + $0x178] sm:$0x3]
        %v356 = vld [vmem:[%s261 + $0x180] sm:$0xff]
        %v357 = vld [vmem:[%s261 + $0x188] sm:$0xff]
        %v358 = vld [vmem:[%s261 + $0x190] sm:$0x3]
        %v359 = vld [vmem:[%s261 + $0x198] sm:$0xff]
        %v360 = vld [vmem:[%s261 + $0x1a0] sm:$0xff]
        %v361 = vld [vmem:[%s261 + $0x1a8] sm:$0x3]
        %v362 = vld [vmem:[%s1] sm:$0x1]
        %v364 = vlaneseq
        %v365 = vshrl.u32 %v364, 7
        %v366 = vsub.s32 0, %v365
        %v367 = vrot.slane %v362, %v366
        %v369 = vmul.f32 %v308, %v367
        %v370 = vmul.f32 %v309, %v367
        %v371 = vmul.f32 %v310, %v367
        %v372 = vmul.f32 %v311, %v367
        %v373 = vmul.f32 %v312, %v367
        %v374 = vmul.f32 %v313, %v367
        %v375 = vmul.f32 %v314, %v367
        %v376 = vmul.f32 %v315, %v367
        %v377 = vmul.f32 %v316, %v367
        %v378 = vmul.f32 %v317, %v367
        %v379 = vmul.f32 %v318, %v367
        %v380 = vmul.f32 %v319, %v367
        %v381 = vmul.f32 %v320, %v367
        %v382 = vmul.f32 %v321, %v367
        %v383 = vmul.f32 %v322, %v367
        %v384 = vmul.f32 %v323, %v367
        %v385 = vmul.f32 %v324, %v367
        %v386 = vmul.f32 %v325, %v367
        %v387 = vmul.f32 %v326, %v367
        %v388 = vmul.f32 %v327, %v367
        %v389 = vmul.f32 %v328, %v367
        %v390 = vmul.f32 %v329, %v367
        %v391 = vmul.f32 %v330, %v367
        %v392 = vmul.f32 %v331, %v367
        %v393 = vmul.f32 %v332, %v367
        %v394 = vmul.f32 %v333, %v367
        %v395 = vmul.f32 %v334, %v367
        %v396 = vmul.f32 %v335, %v367
        %v397 = vmul.f32 %v336, %v367
        %v398 = vmul.f32 %v337, %v367
        %v399 = vmul.f32 %v338, %v367
        %v400 = vmul.f32 %v339, %v367
        %v401 = vmul.f32 %v340, %v367
        %v402 = vmul.f32 %v341, %v367
        %v403 = vmul.f32 %v342, %v367
        %v404 = vmul.f32 %v343, %v367
        %v405 = vmul.f32 %v344, %v367
        %v406 = vmul.f32 %v345, %v367
        %v407 = vmul.f32 %v346, %v367
        %v408 = vmul.f32 %v347, %v367
        %v409 = vmul.f32 %v348, %v367
        %v410 = vmul.f32 %v349, %v367
        %v411 = vmul.f32 %v350, %v367
        %v412 = vmul.f32 %v351, %v367
        %v413 = vmul.f32 %v352, %v367
        %v414 = vmul.f32 %v353, %v367
        %v415 = vmul.f32 %v354, %v367
        %v416 = vmul.f32 %v355, %v367
        %v417 = vmul.f32 %v356, %v367
        %v418 = vmul.f32 %v357, %v367
        %v419 = vmul.f32 %v358, %v367
        %v420 = vmul.f32 %v359, %v367
        %v421 = vmul.f32 %v360, %v367
        %v422 = vmul.f32 %v361, %v367
        %v423 = vld [vmem:[%s2] sm:$0x1]
        %v425 = vlaneseq
        %v426 = vshrl.u32 %v425, 7
        %v427 = vsub.s32 0, %v426
        %v428 = vrot.slane %v423, %v427
        %v430 = vadd.f32 %v369, %v428
        %v431 = vadd.f32 %v370, %v428
        %v432 = vadd.f32 %v371, %v428
        %v433 = vadd.f32 %v372, %v428
        %v434 = vadd.f32 %v373, %v428
        %v435 = vadd.f32 %v374, %v428
        %v436 = vadd.f32 %v375, %v428
        %v437 = vadd.f32 %v376, %v428
        %v438 = vadd.f32 %v377, %v428
        %v439 = vadd.f32 %v378, %v428
        %v440 = vadd.f32 %v379, %v428
        %v441 = vadd.f32 %v380, %v428
        %v442 = vadd.f32 %v381, %v428
        %v443 = vadd.f32 %v382, %v428
        %v444 = vadd.f32 %v383, %v428
        %v445 = vadd.f32 %v384, %v428
        %v446 = vadd.f32 %v385, %v428
        %v447 = vadd.f32 %v386, %v428
        %v448 = vadd.f32 %v387, %v428
        %v449 = vadd.f32 %v388, %v428
        %v450 = vadd.f32 %v389, %v428
        %v451 = vadd.f32 %v390, %v428
        %v452 = vadd.f32 %v391, %v428
        %v453 = vadd.f32 %v392, %v428
        %v454 = vadd.f32 %v393, %v428
        %v455 = vadd.f32 %v394, %v428
        %v456 = vadd.f32 %v395, %v428
        %v457 = vadd.f32 %v396, %v428
        %v458 = vadd.f32 %v397, %v428
        %v459 = vadd.f32 %v398, %v428
        %v460 = vadd.f32 %v399, %v428
        %v461 = vadd.f32 %v400, %v428
        %v462 = vadd.f32 %v401, %v428
        %v463 = vadd.f32 %v402, %v428
        %v464 = vadd.f32 %v403, %v428
        %v465 = vadd.f32 %v404, %v428
        %v466 = vadd.f32 %v405, %v428
        %v467 = vadd.f32 %v406, %v428
        %v468 = vadd.f32 %v407, %v428
        %v469 = vadd.f32 %v408, %v428
        %v470 = vadd.f32 %v409, %v428
        %v471 = vadd.f32 %v410, %v428
        %v472 = vadd.f32 %v411, %v428
        %v473 = vadd.f32 %v412, %v428
        %v474 = vadd.f32 %v413, %v428
        %v475 = vadd.f32 %v414, %v428
        %v476 = vadd.f32 %v415, %v428
        %v477 = vadd.f32 %v416, %v428
        %v478 = vadd.f32 %v417, %v428
        %v479 = vadd.f32 %v418, %v428
        %v480 = vadd.f32 %v419, %v428
        %v481 = vadd.f32 %v420, %v428
        %v482 = vadd.f32 %v421, %v428
        %v483 = vadd.f32 %v422, %v428
        %v484 = vmax.f32 %v430, 0.0
        %v485 = vmax.f32 %v431, 0.0
        %v486 = vmax.f32 %v432, 0.0
        %v487 = vmax.f32 %v433, 0.0
        %v488 = vmax.f32 %v434, 0.0
        %v489 = vmax.f32 %v435, 0.0
        %v490 = vmax.f32 %v436, 0.0
        %v491 = vmax.f32 %v437, 0.0
        %v492 = vmax.f32 %v438, 0.0
        %v493 = vmax.f32 %v439, 0.0
        %v494 = vmax.f32 %v440, 0.0
        %v495 = vmax.f32 %v441, 0.0
        %v496 = vmax.f32 %v442, 0.0
        %v497 = vmax.f32 %v443, 0.0
        %v498 = vmax.f32 %v444, 0.0
        %v499 = vmax.f32 %v445, 0.0
        %v500 = vmax.f32 %v446, 0.0
        %v501 = vmax.f32 %v447, 0.0
        %v502 = vmax.f32 %v448, 0.0
        %v503 = vmax.f32 %v449, 0.0
        %v504 = vmax.f32 %v450, 0.0
        %v505 = vmax.f32 %v451, 0.0
        %v506 = vmax.f32 %v452, 0.0
        %v507 = vmax.f32 %v453, 0.0
        %v508 = vmax.f32 %v454, 0.0
        %v509 = vmax.f32 %v455, 0.0
        %v510 = vmax.f32 %v456, 0.0
        %v511 = vmax.f32 %v457, 0.0
        %v512 = vmax.f32 %v458, 0.0
        %v513 = vmax.f32 %v459, 0.0
        %v514 = vmax.f32 %v460, 0.0
        %v515 = vmax.f32 %v461, 0.0
        %v516 = vmax.f32 %v462, 0.0
        %v517 = vmax.f32 %v463, 0.0
        %v518 = vmax.f32 %v464, 0.0
        %v519 = vmax.f32 %v465, 0.0
        %v520 = vmax.f32 %v466, 0.0
        %v521 = vmax.f32 %v467, 0.0
        %v522 = vmax.f32 %v468, 0.0
        %v523 = vmax.f32 %v469, 0.0
        %v524 = vmax.f32 %v470, 0.0
        %v525 = vmax.f32 %v471, 0.0
        %v526 = vmax.f32 %v472, 0.0
        %v527 = vmax.f32 %v473, 0.0
        %v528 = vmax.f32 %v474, 0.0
        %v529 = vmax.f32 %v475, 0.0
        %v530 = vmax.f32 %v476, 0.0
        %v531 = vmax.f32 %v477, 0.0
        %v532 = vmax.f32 %v478, 0.0
        %v533 = vmax.f32 %v479, 0.0
        %v534 = vmax.f32 %v480, 0.0
        %v535 = vmax.f32 %v481, 0.0
        %v536 = vmax.f32 %v482, 0.0
        %v537 = vmax.f32 %v483, 0.0
        %v538 = vsel %vm302, 1, 0
        %v539 = vsel %vm303, 1, 0
        %v540 = vsel %vm304, 1, 0
        %v541 = vsel %vm305, 1, 0
        %v542 = vsel %vm306, 1, 0
        %v543 = vsel %vm307, 1, 0
        %vm544 = vcmp.eq.s32.totalorder %v538, 1
        %vm545 = vcmp.eq.s32.totalorder %v539, 1
        %vm546 = vcmp.eq.s32.totalorder %v540, 1
        %vm547 = vcmp.eq.s32.totalorder %v541, 1
        %vm548 = vcmp.eq.s32.totalorder %v542, 1
        %vm549 = vcmp.eq.s32.totalorder %v543, 1
        %v550 = vsel %vm544, %v484, 0.0
        %v551 = vsel %vm545, %v485, 0.0
        %v552 = vsel %vm546, %v486, 0.0
        %v553 = vsel %vm547, %v487, 0.0
        %v554 = vsel %vm548, %v488, 0.0
        %v555 = vsel %vm549, %v489, 0.0
        %v556 = vsel %vm547, %v490, 0.0
        %v557 = vsel %vm548, %v491, 0.0
        %v558 = vsel %vm549, %v492, 0.0
        %v559 = vsel %vm547, %v493, 0.0
        %v560 = vsel %vm548, %v494, 0.0
        %v561 = vsel %vm549, %v495, 0.0
        %v562 = vsel %vm547, %v496, 0.0
        %v563 = vsel %vm548, %v497, 0.0
        %v564 = vsel %vm549, %v498, 0.0
        %v565 = vsel %vm547, %v499, 0.0
        %v566 = vsel %vm548, %v500, 0.0
        %v567 = vsel %vm549, %v501, 0.0
        %v568 = vsel %vm547, %v502, 0.0
        %v569 = vsel %vm548, %v503, 0.0
        %v570 = vsel %vm549, %v504, 0.0
        %v571 = vsel %vm547, %v505, 0.0
        %v572 = vsel %vm548, %v506, 0.0
        %v573 = vsel %vm549, %v507, 0.0
        %v574 = vsel %vm547, %v508, 0.0
        %v575 = vsel %vm548, %v509, 0.0
        %v576 = vsel %vm549, %v510, 0.0
        %v577 = vsel %vm547, %v511, 0.0
        %v578 = vsel %vm548, %v512, 0.0
        %v579 = vsel %vm549, %v513, 0.0
        %v580 = vsel %vm547, %v514, 0.0
        %v581 = vsel %vm548, %v515, 0.0
        %v582 = vsel %vm549, %v516, 0.0
        %v583 = vsel %vm547, %v517, 0.0
        %v584 = vsel %vm548, %v518, 0.0
        %v585 = vsel %vm549, %v519, 0.0
        %v586 = vsel %vm547, %v520, 0.0
        %v587 = vsel %vm548, %v521, 0.0
        %v588 = vsel %vm549, %v522, 0.0
        %v589 = vsel %vm547, %v523, 0.0
        %v590 = vsel %vm548, %v524, 0.0
        %v591 = vsel %vm549, %v525, 0.0
        %v592 = vsel %vm547, %v526, 0.0
        %v593 = vsel %vm548, %v527, 0.0
        %v594 = vsel %vm549, %v528, 0.0
        %v595 = vsel %vm547, %v529, 0.0
        %v596 = vsel %vm548, %v530, 0.0
        %v597 = vsel %vm549, %v531, 0.0
        %v598 = vsel %vm547, %v532, 0.0
        %v599 = vsel %vm548, %v533, 0.0
        %v600 = vsel %vm549, %v534, 0.0
        %v601 = vsel %vm544, %v535, 0.0
        %v602 = vsel %vm545, %v536, 0.0
        %v603 = vsel %vm546, %v537, 0.0
        %604 = vst [vmem:[#allocation2] sm:$0xff] %v550
        %605 = vst [vmem:[#allocation2 + $0x8] sm:$0xff] %v551
        %606 = vst [vmem:[#allocation2 + $0x10] sm:$0x3] %v552
        %607 = vst [vmem:[#allocation2 + $0x18] sm:$0xff] %v553
        %608 = vst [vmem:[#allocation2 + $0x20] sm:$0xff] %v554
        %609 = vst [vmem:[#allocation2 + $0x28] sm:$0x3] %v555
        %610 = vst [vmem:[#allocation2 + $0x30] sm:$0xff] %v556
        %611 = vst [vmem:[#allocation2 + $0x38] sm:$0xff] %v557
        %612 = vst [vmem:[#allocation2 + $0x40] sm:$0x3] %v558
        %613 = vst [vmem:[#allocation2 + $0x48] sm:$0xff] %v559
        %614 = vst [vmem:[#allocation2 + $0x50] sm:$0xff] %v560
        %615 = vst [vmem:[#allocation2 + $0x58] sm:$0x3] %v561
        %616 = vst [vmem:[#allocation2 + $0x60] sm:$0xff] %v562
        %617 = vst [vmem:[#allocation2 + $0x68] sm:$0xff] %v563
        %618 = vst [vmem:[#allocation2 + $0x70] sm:$0x3] %v564
        %619 = vst [vmem:[#allocation2 + $0x78] sm:$0xff] %v565
        %620 = vst [vmem:[#allocation2 + $0x80] sm:$0xff] %v566
        %621 = vst [vmem:[#allocation2 + $0x88] sm:$0x3] %v567
        %622 = vst [vmem:[#allocation2 + $0x90] sm:$0xff] %v568
        %623 = vst [vmem:[#allocation2 + $0x98] sm:$0xff] %v569
        %624 = vst [vmem:[#allocation2 + $0xa0] sm:$0x3] %v570
        %625 = vst [vmem:[#allocation2 + $0xa8] sm:$0xff] %v571
        %626 = vst [vmem:[#allocation2 + $0xb0] sm:$0xff] %v572
        %627 = vst [vmem:[#allocation2 + $0xb8] sm:$0x3] %v573
        %628 = vst [vmem:[#allocation2 + $0xc0] sm:$0xff] %v574
        %629 = vst [vmem:[#allocation2 + $0xc8] sm:$0xff] %v575
        %630 = vst [vmem:[#allocation2 + $0xd0] sm:$0x3] %v576
        %631 = vst [vmem:[#allocation2 + $0xd8] sm:$0xff] %v577
        %632 = vst [vmem:[#allocation2 + $0xe0] sm:$0xff] %v578
        %633 = vst [vmem:[#allocation2 + $0xe8] sm:$0x3] %v579
        %634 = vst [vmem:[#allocation2 + $0xf0] sm:$0xff] %v580
        %635 = vst [vmem:[#allocation2 + $0xf8] sm:$0xff] %v581
        %636 = vst [vmem:[#allocation2 + $0x100] sm:$0x3] %v582
        %637 = vst [vmem:[#allocation2 + $0x108] sm:$0xff] %v583
        %638 = vst [vmem:[#allocation2 + $0x110] sm:$0xff] %v584
        %639 = vst [vmem:[#allocation2 + $0x118] sm:$0x3] %v585
        %640 = vst [vmem:[#allocation2 + $0x120] sm:$0xff] %v586
        %641 = vst [vmem:[#allocation2 + $0x128] sm:$0xff] %v587
        %642 = vst [vmem:[#allocation2 + $0x130] sm:$0x3] %v588
        %643 = vst [vmem:[#allocation2 + $0x138] sm:$0xff] %v589
        %644 = vst [vmem:[#allocation2 + $0x140] sm:$0xff] %v590
        %645 = vst [vmem:[#allocation2 + $0x148] sm:$0x3] %v591
        %646 = vst [vmem:[#allocation2 + $0x150] sm:$0xff] %v592
        %647 = vst [vmem:[#allocation2 + $0x158] sm:$0xff] %v593
        %648 = vst [vmem:[#allocation2 + $0x160] sm:$0x3] %v594
        %649 = vst [vmem:[#allocation2 + $0x168] sm:$0xff] %v595
        %650 = vst [vmem:[#allocation2 + $0x170] sm:$0xff] %v596
        %651 = vst [vmem:[#allocation2 + $0x178] sm:$0x3] %v597
        %652 = vst [vmem:[#allocation2 + $0x180] sm:$0xff] %v598
        %653 = vst [vmem:[#allocation2 + $0x188] sm:$0xff] %v599
        %654 = vst [vmem:[#allocation2 + $0x190] sm:$0x3] %v600
        %655 = vst [vmem:[#allocation2 + $0x198] sm:$0xff] %v601
        %656 = vst [vmem:[#allocation2 + $0x1a0] sm:$0xff] %v602
        %657 = vst [vmem:[#allocation2 + $0x1a8] sm:$0x3] %v603
      $region40: #{preact_block_forward.5} parent=35 // pred_fallthru
        _
      %v658 = vld [vmem:[#allocation2] sm:$0xff]
      %v659 = vld [vmem:[#allocation2 + $0x8] sm:$0xff]
      %v660 = vld [vmem:[#allocation2 + $0x18] sm:$0xff]
      %v661 = vld [vmem:[#allocation2 + $0x20] sm:$0xff]
      %v662 = vld [vmem:[#allocation2 + $0x30] sm:$0xff]
      %v663 = vld [vmem:[#allocation2 + $0x38] sm:$0xff]
      %v664 = vld [vmem:[#allocation2 + $0x48] sm:$0xff]
      %v665 = vld [vmem:[#allocation2 + $0x50] sm:$0xff]
      %v666 = vld [vmem:[#allocation2 + $0x60] sm:$0xff]
      %v667 = vld [vmem:[#allocation2 + $0x68] sm:$0xff]
      %v668 = vld [vmem:[#allocation2 + $0x78] sm:$0xff]
      %v669 = vld [vmem:[#allocation2 + $0x80] sm:$0xff]
      %v670 = vld [vmem:[#allocation2 + $0x90] sm:$0xff]
      %v671 = vld [vmem:[#allocation2 + $0x98] sm:$0xff]
      %v672 = vld [vmem:[#allocation2 + $0xa8] sm:$0xff]
      %v673 = vld [vmem:[#allocation2 + $0xb0] sm:$0xff]
      %v674 = vld [vmem:[#allocation2 + $0xc0] sm:$0xff]
      %v675 = vld [vmem:[#allocation2 + $0xc8] sm:$0xff]
      %v676 = vld [vmem:[#allocation2 + $0xd8] sm:$0xff]
      %v677 = vld [vmem:[#allocation2 + $0xe0] sm:$0xff]
      %v678 = vld [vmem:[#allocation2 + $0xf0] sm:$0xff]
      %v679 = vld [vmem:[#allocation2 + $0xf8] sm:$0xff]
      %v680 = vld [vmem:[#allocation2 + $0x108] sm:$0xff]
      %v681 = vld [vmem:[#allocation2 + $0x110] sm:$0xff]
      %v682 = vld [vmem:[#allocation2 + $0x120] sm:$0xff]
      %v683 = vld [vmem:[#allocation2 + $0x128] sm:$0xff]
      %v684 = vld [vmem:[#allocation2 + $0x138] sm:$0xff]
      %v685 = vld [vmem:[#allocation2 + $0x140] sm:$0xff]
      %v686 = vld [vmem:[#allocation2 + $0x150] sm:$0xff]
      %v687 = vld [vmem:[#allocation2 + $0x158] sm:$0xff]
      %v688 = vld [vmem:[#allocation2 + $0x168] sm:$0xff]
      %v689 = vld [vmem:[#allocation2 + $0x170] sm:$0xff]
      %v690 = vpack.c.bf16 %v659, %v658
      %v691 = vpack.c.bf16 %v661, %v660
      %v692 = vpack.c.bf16 %v663, %v662
      %v693 = vpack.c.bf16 %v665, %v664
      %v694 = vpack.c.bf16 %v667, %v666
      %v695 = vpack.c.bf16 %v669, %v668
      %v696 = vpack.c.bf16 %v671, %v670
      %v697 = vpack.c.bf16 %v673, %v672
      %v698 = vpack.c.bf16 %v675, %v674
      %v699 = vpack.c.bf16 %v677, %v676
      %v700 = vpack.c.bf16 %v679, %v678
      %v701 = vpack.c.bf16 %v681, %v680
      %v702 = vpack.c.bf16 %v683, %v682
      %v703 = vpack.c.bf16 %v685, %v684
      %v704 = vpack.c.bf16 %v687, %v686
      %v705 = vpack.c.bf16 %v689, %v688
      %v706 = vld [vmem:[%s265] sm:$0xf]
      %v707 = vld [vmem:[%s265 + $0x4] sm:$0xf]
      %v708 = vld [vmem:[%s265 + $0x8] sm:$0xf]
      %v709 = vld [vmem:[%s265 + $0xc] sm:$0xf]
      %v710 = vld [vmem:[%s265 + $0x10] sm:$0xf]
      %v711 = vld [vmem:[%s265 + $0x14] sm:$0xf]
      %v712 = vld [vmem:[%s265 + $0x18] sm:$0xf]
      %v713 = vld [vmem:[%s265 + $0x1c] sm:$0xf]
      %v714 = vld [vmem:[%s265 + $0x20] sm:$0xf]
      %v715 = vld [vmem:[%s265 + $0x24] sm:$0xf]
      %v716 = vld [vmem:[%s265 + $0x28] sm:$0xf]
      %v717 = vld [vmem:[%s265 + $0x2c] sm:$0xf]
      %v718 = vld [vmem:[%s265 + $0x30] sm:$0xf]
      %v719 = vld [vmem:[%s265 + $0x34] sm:$0xf]
      %v720 = vld [vmem:[%s265 + $0x38] sm:$0xf]
      %v721 = vld [vmem:[%s265 + $0x3c] sm:$0xf]
      %v738 = vunpack.c.l.b16 %v706
      %v739 = vunpack.c.l.b16 %v707
      %v740 = vunpack.c.l.b16 %v708
      %v741 = vunpack.c.l.b16 %v709
      %v742 = vunpack.c.l.b16 %v710
      %v743 = vunpack.c.l.b16 %v711
      %v744 = vunpack.c.l.b16 %v712
      %v745 = vunpack.c.l.b16 %v713
      %v746 = vunpack.c.l.b16 %v714
      %v747 = vunpack.c.l.b16 %v715
      %v748 = vunpack.c.l.b16 %v716
      %v749 = vunpack.c.l.b16 %v717
      %v750 = vunpack.c.l.b16 %v718
      %v751 = vunpack.c.l.b16 %v719
      %v752 = vunpack.c.l.b16 %v720
      %v753 = vunpack.c.l.b16 %v721
      %v754 = vpack.c.b16 %v739, %v738
      %v755 = vpack.c.b16 %v741, %v740
      %v756 = vpack.c.b16 %v743, %v742
      %v757 = vpack.c.b16 %v745, %v744
      %v758 = vpack.c.b16 %v747, %v746
      %v759 = vpack.c.b16 %v749, %v748
      %v760 = vpack.c.b16 %v751, %v750
      %v761 = vpack.c.b16 %v753, %v752
      %770 = vmatprep.subr.bf16.mxu0 0
      %771 = vmatpush1.bf16.msra.mxu0 %v761
      %772 = vmatprep.subr.bf16.mxu0 0
      %773 = vmatpush1.bf16.msra.mxu0 %v760
      %774 = vmatprep.subr.bf16.mxu0 0
      %775 = vmatpush1.bf16.msra.mxu0 %v759
      %776 = vmatprep.subr.bf16.mxu0 0
      %777 = vmatpush1.bf16.msra.mxu0 %v758
      %778 = vmatprep.subr.bf16.mxu0 0
      %779 = vmatpush1.bf16.msra.mxu0 %v757
      %780 = vmatprep.subr.bf16.mxu0 0
      %781 = vmatpush1.bf16.msra.mxu0 %v756
      %782 = vmatprep.subr.bf16.mxu0 0
      %783 = vmatpush1.bf16.msra.mxu0 %v755
      %784 = vmatprep.subr.bf16.mxu0 0
      %785 = vmatpush1.bf16.msra.mxu0 %v754
      %786 = vmatprep.subr.bf16.mxu0 0
      %787 = vmatpush2.bf16.msra.mxu0 0
      %788 = vmatprep.subr.bf16.mxu0 0
      %789 = vmatpush2.bf16.msra.mxu0 0
      %790 = vmatprep.subr.bf16.mxu0 0
      %791 = vmatpush2.bf16.msra.mxu0 0
      %792 = vmatprep.subr.bf16.mxu0 0
      %793 = vmatpush2.bf16.msra.mxu0 0
      %794 = vmatprep.subr.bf16.mxu0 0
      %795 = vmatpush2.bf16.msra.mxu0 0
      %796 = vmatprep.subr.bf16.mxu0 0
      %797 = vmatpush2.bf16.msra.mxu0 0
      %798 = vmatprep.subr.bf16.mxu0 0
      %799 = vmatpush2.bf16.msra.mxu0 0
      %800 = vmatprep.subr.bf16.mxu0 0
      %801 = vmatpush2.bf16.msra.mxu0 0
      %802 = vmatprep.mubr.bf16.mxu0 0
      %803 = vmatmul.mubr.bf16.gmra.mxu0 %v690
      %v804 = vpop.f32.mrf.mxu0
      %v805 = vadd.f32 0.0, %v804
      %v806 = vpop.f32.mrf.mxu0
      %v807 = vpop.f32.mrf.mxu0
      %v808 = vadd.f32 0.0, %v807
      %v809 = vpop.f32.mrf.mxu0
      %810 = vmatprep.mubr.bf16.mxu0 0
      %811 = vmatmul.mubr.bf16.gmra.mxu0 %v691
      %v812 = vpop.f32.mrf.mxu0
      %v813 = vadd.f32 0.0, %v812
      %v814 = vpop.f32.mrf.mxu0
      %v815 = vpop.f32.mrf.mxu0
      %v816 = vadd.f32 0.0, %v815
      %v817 = vpop.f32.mrf.mxu0
      %818 = vmatprep.mubr.bf16.mxu0 0
      %819 = vmatmul.mubr.bf16.gmra.mxu0 %v692
      %v820 = vpop.f32.mrf.mxu0
      %v821 = vadd.f32 0.0, %v820
      %v822 = vpop.f32.mrf.mxu0
      %v823 = vpop.f32.mrf.mxu0
      %v824 = vadd.f32 0.0, %v823
      %v825 = vpop.f32.mrf.mxu0
      %826 = vmatprep.mubr.bf16.mxu0 0
      %827 = vmatmul.mubr.bf16.gmra.mxu0 %v693
      %v828 = vpop.f32.mrf.mxu0
      %v829 = vadd.f32 0.0, %v828
      %v830 = vpop.f32.mrf.mxu0
      %v831 = vpop.f32.mrf.mxu0
      %v832 = vadd.f32 0.0, %v831
      %v833 = vpop.f32.mrf.mxu0
      %834 = vmatprep.mubr.bf16.mxu0 0
      %835 = vmatmul.mubr.bf16.gmra.mxu0 %v694
      %v836 = vpop.f32.mrf.mxu0
      %v837 = vadd.f32 0.0, %v836
      %v838 = vpop.f32.mrf.mxu0
      %v839 = vpop.f32.mrf.mxu0
      %v840 = vadd.f32 0.0, %v839
      %v841 = vpop.f32.mrf.mxu0
      %842 = vmatprep.mubr.bf16.mxu0 0
      %843 = vmatmul.mubr.bf16.gmra.mxu0 %v695
      %v844 = vpop.f32.mrf.mxu0
      %v845 = vadd.f32 0.0, %v844
      %v846 = vpop.f32.mrf.mxu0
      %v847 = vpop.f32.mrf.mxu0
      %v848 = vadd.f32 0.0, %v847
      %v849 = vpop.f32.mrf.mxu0
      %850 = vmatprep.mubr.bf16.mxu0 0
      %851 = vmatmul.mubr.bf16.gmra.mxu0 %v696
      %v852 = vpop.f32.mrf.mxu0
      %v853 = vadd.f32 0.0, %v852
      %v854 = vpop.f32.mrf.mxu0
      %v855 = vpop.f32.mrf.mxu0
      %v856 = vadd.f32 0.0, %v855
      %v857 = vpop.f32.mrf.mxu0
      %858 = vmatprep.mubr.bf16.mxu0 0
      %859 = vmatmul.mubr.bf16.gmra.mxu0 %v697
      %v860 = vpop.f32.mrf.mxu0
      %v861 = vadd.f32 0.0, %v860
      %v862 = vpop.f32.mrf.mxu0
      %v863 = vpop.f32.mrf.mxu0
      %v864 = vadd.f32 0.0, %v863
      %v865 = vpop.f32.mrf.mxu0
      %866 = vmatprep.mubr.bf16.mxu0 0
      %867 = vmatmul.mubr.bf16.gmra.mxu0 %v698
      %v868 = vpop.f32.mrf.mxu0
      %v869 = vadd.f32 0.0, %v868
      %v870 = vpop.f32.mrf.mxu0
      %v871 = vpop.f32.mrf.mxu0
      %v872 = vadd.f32 0.0, %v871
      %v873 = vpop.f32.mrf.mxu0
      %874 = vmatprep.mubr.bf16.mxu0 0
      %875 = vmatmul.mubr.bf16.gmra.mxu0 %v699
      %v876 = vpop.f32.mrf.mxu0
      %v877 = vadd.f32 0.0, %v876
      %v878 = vpop.f32.mrf.mxu0
      %v879 = vpop.f32.mrf.mxu0
      %v880 = vadd.f32 0.0, %v879
      %v881 = vpop.f32.mrf.mxu0
      %882 = vmatprep.mubr.bf16.mxu0 0
      %883 = vmatmul.mubr.bf16.gmra.mxu0 %v700
      %v884 = vpop.f32.mrf.mxu0
      %v885 = vadd.f32 0.0, %v884
      %v886 = vpop.f32.mrf.mxu0
      %v887 = vpop.f32.mrf.mxu0
      %v888 = vadd.f32 0.0, %v887
      %v889 = vpop.f32.mrf.mxu0
      %890 = vmatprep.mubr.bf16.mxu0 0
      %891 = vmatmul.mubr.bf16.gmra.mxu0 %v701
      %v892 = vpop.f32.mrf.mxu0
      %v893 = vadd.f32 0.0, %v892
      %v894 = vpop.f32.mrf.mxu0
      %v895 = vpop.f32.mrf.mxu0
      %v896 = vadd.f32 0.0, %v895
      %v897 = vpop.f32.mrf.mxu0
      %898 = vmatprep.mubr.bf16.mxu0 0
      %899 = vmatmul.mubr.bf16.gmra.mxu0 %v702
      %v900 = vpop.f32.mrf.mxu0
      %v901 = vadd.f32 0.0, %v900
      %v902 = vpop.f32.mrf.mxu0
      %v903 = vpop.f32.mrf.mxu0
      %v904 = vadd.f32 0.0, %v903
      %v905 = vpop.f32.mrf.mxu0
      %906 = vmatprep.mubr.bf16.mxu0 0
      %907 = vmatmul.mubr.bf16.gmra.mxu0 %v703
      %v908 = vpop.f32.mrf.mxu0
      %v909 = vadd.f32 0.0, %v908
      %v910 = vpop.f32.mrf.mxu0
      %v911 = vpop.f32.mrf.mxu0
      %v912 = vadd.f32 0.0, %v911
      %v913 = vpop.f32.mrf.mxu0
      %914 = vmatprep.mubr.bf16.mxu0 0
      %915 = vmatmul.mubr.bf16.gmra.mxu0 %v704
      %v916 = vpop.f32.mrf.mxu0
      %v917 = vadd.f32 0.0, %v916
      %v918 = vpop.f32.mrf.mxu0
      %v919 = vpop.f32.mrf.mxu0
      %v920 = vadd.f32 0.0, %v919
      %v921 = vpop.f32.mrf.mxu0
      %922 = vmatprep.mubr.bf16.mxu0 0
      %923 = vmatmul.mubr.bf16.gmra.mxu0 %v705
      %v924 = vpop.f32.mrf.mxu0
      %v925 = vadd.f32 0.0, %v924
      %v926 = vpop.f32.mrf.mxu0
      %v927 = vpop.f32.mrf.mxu0
      %v928 = vadd.f32 0.0, %v927
      %v929 = vpop.f32.mrf.mxu0
      %930 = vdwg.mxu0
      %931 = vst [vmem:[#allocation3] sm:$0xff] %v805
      %932 = vst [vmem:[#allocation3 + $0x8] sm:$0xff] %v808
      %933 = vst [vmem:[#allocation3 + $0x10] sm:$0xff] %v813
      %934 = vst [vmem:[#allocation3 + $0x18] sm:$0xff] %v816
      %935 = vst [vmem:[#allocation3 + $0x20] sm:$0xff] %v821
      %936 = vst [vmem:[#allocation3 + $0x28] sm:$0xff] %v824
      %937 = vst [vmem:[#allocation3 + $0x30] sm:$0xff] %v829
      %938 = vst [vmem:[#allocation3 + $0x38] sm:$0xff] %v832
      %939 = vst [vmem:[#allocation3 + $0x40] sm:$0xff] %v837
      %940 = vst [vmem:[#allocation3 + $0x48] sm:$0xff] %v840
      %941 = vst [vmem:[#allocation3 + $0x50] sm:$0xff] %v845
      %942 = vst [vmem:[#allocation3 + $0x58] sm:$0xff] %v848
      %943 = vst [vmem:[#allocation3 + $0x60] sm:$0xff] %v853
      %944 = vst [vmem:[#allocation3 + $0x68] sm:$0xff] %v856
      %945 = vst [vmem:[#allocation3 + $0x70] sm:$0xff] %v861
      %946 = vst [vmem:[#allocation3 + $0x78] sm:$0xff] %v864
      %947 = vst [vmem:[#allocation3 + $0x80] sm:$0xff] %v869
      %948 = vst [vmem:[#allocation3 + $0x88] sm:$0xff] %v872
      %949 = vst [vmem:[#allocation3 + $0x90] sm:$0xff] %v877
      %950 = vst [vmem:[#allocation3 + $0x98] sm:$0xff] %v880
      %951 = vst [vmem:[#allocation3 + $0xa0] sm:$0xff] %v885
      %952 = vst [vmem:[#allocation3 + $0xa8] sm:$0xff] %v888
      %953 = vst [vmem:[#allocation3 + $0xb0] sm:$0xff] %v893
      %954 = vst [vmem:[#allocation3 + $0xb8] sm:$0xff] %v896
      %955 = vst [vmem:[#allocation3 + $0xc0] sm:$0xff] %v901
      %956 = vst [vmem:[#allocation3 + $0xc8] sm:$0xff] %v904
      %957 = vst [vmem:[#allocation3 + $0xd0] sm:$0xff] %v909
      %958 = vst [vmem:[#allocation3 + $0xd8] sm:$0xff] %v912
      %959 = vst [vmem:[#allocation3 + $0xe0] sm:$0xff] %v917
      %960 = vst [vmem:[#allocation3 + $0xe8] sm:$0xff] %v920
      %961 = vst [vmem:[#allocation3 + $0xf0] sm:$0xff] %v925
      %962 = vst [vmem:[#allocation3 + $0xf8] sm:$0xff] %v928
      %v963 = vld [vmem:[#allocation2 + $0x1] sm:$0xff]
      %v964 = vld [vmem:[#allocation2 + $0x9] sm:$0xff]
      %v965 = vld [vmem:[#allocation2 + $0x19] sm:$0xff]
      %v966 = vld [vmem:[#allocation2 + $0x21] sm:$0xff]
      %v967 = vld [vmem:[#allocation2 + $0x31] sm:$0xff]
      %v968 = vld [vmem:[#allocation2 + $0x39] sm:$0xff]
      %v969 = vld [vmem:[#allocation2 + $0x49] sm:$0xff]
      %v970 = vld [vmem:[#allocation2 + $0x51] sm:$0xff]
      %v971 = vld [vmem:[#allocation2 + $0x61] sm:$0xff]
      %v972 = vld [vmem:[#allocation2 + $0x69] sm:$0xff]
      %v973 = vld [vmem:[#allocation2 + $0x79] sm:$0xff]
      %v974 = vld [vmem:[#allocation2 + $0x81] sm:$0xff]
      %v975 = vld [vmem:[#allocation2 + $0x91] sm:$0xff]
      %v976 = vld [vmem:[#allocation2 + $0x99] sm:$0xff]
      %v977 = vld [vmem:[#allocation2 + $0xa9] sm:$0xff]
      %v978 = vld [vmem:[#allocation2 + $0xb1] sm:$0xff]
      %v979 = vld [vmem:[#allocation2 + $0xc1] sm:$0xff]
      %v980 = vld [vmem:[#allocation2 + $0xc9] sm:$0xff]
      %v981 = vld [vmem:[#allocation2 + $0xd9] sm:$0xff]
      %v982 = vld [vmem:[#allocation2 + $0xe1] sm:$0xff]
      %v983 = vld [vmem:[#allocation2 + $0xf1] sm:$0xff]
      %v984 = vld [vmem:[#allocation2 + $0xf9] sm:$0xff]
      %v985 = vld [vmem:[#allocation2 + $0x109] sm:$0xff]
      %v986 = vld [vmem:[#allocation2 + $0x111] sm:$0xff]
      %v987 = vld [vmem:[#allocation2 + $0x121] sm:$0xff]
      %v988 = vld [vmem:[#allocation2 + $0x129] sm:$0xff]
      %v989 = vld [vmem:[#allocation2 + $0x139] sm:$0xff]
      %v990 = vld [vmem:[#allocation2 + $0x141] sm:$0xff]
      %v991 = vld [vmem:[#allocation2 + $0x151] sm:$0xff]
      %v992 = vld [vmem:[#allocation2 + $0x159] sm:$0xff]
      %v993 = vld [vmem:[#allocation2 + $0x169] sm:$0xff]
      %v994 = vld [vmem:[#allocation2 + $0x171] sm:$0xff]
      %v995 = vpack.c.bf16 %v964, %v963
      %v996 = vpack.c.bf16 %v966, %v965
      %v997 = vpack.c.bf16 %v968, %v967
      %v998 = vpack.c.bf16 %v970, %v969
      %v999 = vpack.c.bf16 %v972, %v971
      %v1000 = vpack.c.bf16 %v974, %v973
      %v1001 = vpack.c.bf16 %v976, %v975
      %v1002 = vpack.c.bf16 %v978, %v977
      %v1003 = vpack.c.bf16 %v980, %v979
      %v1004 = vpack.c.bf16 %v982, %v981
      %v1005 = vpack.c.bf16 %v984, %v983
      %v1006 = vpack.c.bf16 %v986, %v985
      %v1007 = vpack.c.bf16 %v988, %v987
      %v1008 = vpack.c.bf16 %v990, %v989
      %v1009 = vpack.c.bf16 %v992, %v991
      %v1010 = vpack.c.bf16 %v994, %v993
      %s1011 = scalar_lea.vmem %s265, 64
      %v1012 = vld [vmem:[%s1011] sm:$0xf]
      %v1013 = vld [vmem:[%s1011 + $0x4] sm:$0xf]
      %v1014 = vld [vmem:[%s1011 + $0x8] sm:$0xf]
      %v1015 = vld [vmem:[%s1011 + $0xc] sm:$0xf]
      %v1016 = vld [vmem:[%s1011 + $0x10] sm:$0xf]
      %v1017 = vld [vmem:[%s1011 + $0x14] sm:$0xf]
      %v1018 = vld [vmem:[%s1011 + $0x18] sm:$0xf]
      %v1019 = vld [vmem:[%s1011 + $0x1c] sm:$0xf]
      %v1020 = vld [vmem:[%s1011 + $0x20] sm:$0xf]
      %v1021 = vld [vmem:[%s1011 + $0x24] sm:$0xf]
      %v1022 = vld [vmem:[%s1011 + $0x28] sm:$0xf]
      %v1023 = vld [vmem:[%s1011 + $0x2c] sm:$0xf]
      %v1024 = vld [vmem:[%s1011 + $0x30] sm:$0xf]
      %v1025 = vld [vmem:[%s1011 + $0x34] sm:$0xf]
      %v1026 = vld [vmem:[%s1011 + $0x38] sm:$0xf]
      %v1027 = vld [vmem:[%s1011 + $0x3c] sm:$0xf]
      %v1044 = vunpack.c.l.b16 %v1012
      %v1045 = vunpack.c.l.b16 %v1013
      %v1046 = vunpack.c.l.b16 %v1014
      %v1047 = vunpack.c.l.b16 %v1015
      %v1048 = vunpack.c.l.b16 %v1016
      %v1049 = vunpack.c.l.b16 %v1017
      %v1050 = vunpack.c.l.b16 %v1018
      %v1051 = vunpack.c.l.b16 %v1019
      %v1052 = vunpack.c.l.b16 %v1020
      %v1053 = vunpack.c.l.b16 %v1021
      %v1054 = vunpack.c.l.b16 %v1022
      %v1055 = vunpack.c.l.b16 %v1023
      %v1056 = vunpack.c.l.b16 %v1024
      %v1057 = vunpack.c.l.b16 %v1025
      %v1058 = vunpack.c.l.b16 %v1026
      %v1059 = vunpack.c.l.b16 %v1027
      %v1060 = vpack.c.b16 %v1045, %v1044
      %v1061 = vpack.c.b16 %v1047, %v1046
      %v1062 = vpack.c.b16 %v1049, %v1048
      %v1063 = vpack.c.b16 %v1051, %v1050
      %v1064 = vpack.c.b16 %v1053, %v1052
      %v1065 = vpack.c.b16 %v1055, %v1054
      %v1066 = vpack.c.b16 %v1057, %v1056
      %v1067 = vpack.c.b16 %v1059, %v1058
      %1076 = vmatprep.subr.bf16.mxu0 0
      %1077 = vmatpush1.bf16.msra.mxu0 %v1067
      %1078 = vmatprep.subr.bf16.mxu0 0
      %1079 = vmatpush1.bf16.msra.mxu0 %v1066
      %1080 = vmatprep.subr.bf16.mxu0 0
      %1081 = vmatpush1.bf16.msra.mxu0 %v1065
      %1082 = vmatprep.subr.bf16.mxu0 0
      %1083 = vmatpush1.bf16.msra.mxu0 %v1064
      %1084 = vmatprep.subr.bf16.mxu0 0
      %1085 = vmatpush1.bf16.msra.mxu0 %v1063
      %1086 = vmatprep.subr.bf16.mxu0 0
      %1087 = vmatpush1.bf16.msra.mxu0 %v1062
      %1088 = vmatprep.subr.bf16.mxu0 0
      %1089 = vmatpush1.bf16.msra.mxu0 %v1061
      %1090 = vmatprep.subr.bf16.mxu0 0
      %1091 = vmatpush1.bf16.msra.mxu0 %v1060
      %1092 = vmatprep.subr.bf16.mxu0 0
      %1093 = vmatpush2.bf16.msra.mxu0 0
      %1094 = vmatprep.subr.bf16.mxu0 0
      %1095 = vmatpush2.bf16.msra.mxu0 0
      %1096 = vmatprep.subr.bf16.mxu0 0
      %1097 = vmatpush2.bf16.msra.mxu0 0
      %1098 = vmatprep.subr.bf16.mxu0 0
      %1099 = vmatpush2.bf16.msra.mxu0 0
      %1100 = vmatprep.subr.bf16.mxu0 0
      %1101 = vmatpush2.bf16.msra.mxu0 0
      %1102 = vmatprep.subr.bf16.mxu0 0
      %1103 = vmatpush2.bf16.msra.mxu0 0
      %1104 = vmatprep.subr.bf16.mxu0 0
      %1105 = vmatpush2.bf16.msra.mxu0 0
      %1106 = vmatprep.subr.bf16.mxu0 0
      %1107 = vmatpush2.bf16.msra.mxu0 0
      %1108 = vmatprep.mubr.bf16.mxu0 0
      %1109 = vmatmul.mubr.bf16.gmra.mxu0 %v995
      %v1110 = vpop.f32.mrf.mxu0
      %v1111 = vadd.f32 0.0, %v1110
      %v1112 = vpop.f32.mrf.mxu0
      %v1113 = vpop.f32.mrf.mxu0
      %v1114 = vadd.f32 0.0, %v1113
      %v1115 = vpop.f32.mrf.mxu0
      %1116 = vmatprep.mubr.bf16.mxu0 0
      %1117 = vmatmul.mubr.bf16.gmra.mxu0 %v996
      %v1118 = vpop.f32.mrf.mxu0
      %v1119 = vadd.f32 0.0, %v1118
      %v1120 = vpop.f32.mrf.mxu0
      %v1121 = vpop.f32.mrf.mxu0
      %v1122 = vadd.f32 0.0, %v1121
      %v1123 = vpop.f32.mrf.mxu0
      %1124 = vmatprep.mubr.bf16.mxu0 0
      %1125 = vmatmul.mubr.bf16.gmra.mxu0 %v997
      %v1126 = vpop.f32.mrf.mxu0
      %v1127 = vadd.f32 0.0, %v1126
      %v1128 = vpop.f32.mrf.mxu0
      %v1129 = vpop.f32.mrf.mxu0
      %v1130 = vadd.f32 0.0, %v1129
      %v1131 = vpop.f32.mrf.mxu0
      %1132 = vmatprep.mubr.bf16.mxu0 0
      %1133 = vmatmul.mubr.bf16.gmra.mxu0 %v998
      %v1134 = vpop.f32.mrf.mxu0
      %v1135 = vadd.f32 0.0, %v1134
      %v1136 = vpop.f32.mrf.mxu0
      %v1137 = vpop.f32.mrf.mxu0
      %v1138 = vadd.f32 0.0, %v1137
      %v1139 = vpop.f32.mrf.mxu0
      %1140 = vmatprep.mubr.bf16.mxu0 0
      %1141 = vmatmul.mubr.bf16.gmra.mxu0 %v999
      %v1142 = vpop.f32.mrf.mxu0
      %v1143 = vadd.f32 0.0, %v1142
      %v1144 = vpop.f32.mrf.mxu0
      %v1145 = vpop.f32.mrf.mxu0
      %v1146 = vadd.f32 0.0, %v1145
      %v1147 = vpop.f32.mrf.mxu0
      %1148 = vmatprep.mubr.bf16.mxu0 0
      %1149 = vmatmul.mubr.bf16.gmra.mxu0 %v1000
      %v1150 = vpop.f32.mrf.mxu0
      %v1151 = vadd.f32 0.0, %v1150
      %v1152 = vpop.f32.mrf.mxu0
      %v1153 = vpop.f32.mrf.mxu0
      %v1154 = vadd.f32 0.0, %v1153
      %v1155 = vpop.f32.mrf.mxu0
      %1156 = vmatprep.mubr.bf16.mxu0 0
      %1157 = vmatmul.mubr.bf16.gmra.mxu0 %v1001
      %v1158 = vpop.f32.mrf.mxu0
      %v1159 = vadd.f32 0.0, %v1158
      %v1160 = vpop.f32.mrf.mxu0
      %v1161 = vpop.f32.mrf.mxu0
      %v1162 = vadd.f32 0.0, %v1161
      %v1163 = vpop.f32.mrf.mxu0
      %1164 = vmatprep.mubr.bf16.mxu0 0
      %1165 = vmatmul.mubr.bf16.gmra.mxu0 %v1002
      %v1166 = vpop.f32.mrf.mxu0
      %v1167 = vadd.f32 0.0, %v1166
      %v1168 = vpop.f32.mrf.mxu0
      %v1169 = vpop.f32.mrf.mxu0
      %v1170 = vadd.f32 0.0, %v1169
      %v1171 = vpop.f32.mrf.mxu0
      %1172 = vmatprep.mubr.bf16.mxu0 0
      %1173 = vmatmul.mubr.bf16.gmra.mxu0 %v1003
      %v1174 = vpop.f32.mrf.mxu0
      %v1175 = vadd.f32 0.0, %v1174
      %v1176 = vpop.f32.mrf.mxu0
      %v1177 = vpop.f32.mrf.mxu0
      %v1178 = vadd.f32 0.0, %v1177
      %v1179 = vpop.f32.mrf.mxu0
      %1180 = vmatprep.mubr.bf16.mxu0 0
      %1181 = vmatmul.mubr.bf16.gmra.mxu0 %v1004
      %v1182 = vpop.f32.mrf.mxu0
      %v1183 = vadd.f32 0.0, %v1182
      %v1184 = vpop.f32.mrf.mxu0
      %v1185 = vpop.f32.mrf.mxu0
      %v1186 = vadd.f32 0.0, %v1185
      %v1187 = vpop.f32.mrf.mxu0
      %1188 = vmatprep.mubr.bf16.mxu0 0
      %1189 = vmatmul.mubr.bf16.gmra.mxu0 %v1005
      %v1190 = vpop.f32.mrf.mxu0
      %v1191 = vadd.f32 0.0, %v1190
      %v1192 = vpop.f32.mrf.mxu0
      %v1193 = vpop.f32.mrf.mxu0
      %v1194 = vadd.f32 0.0, %v1193
      %v1195 = vpop.f32.mrf.mxu0
      %1196 = vmatprep.mubr.bf16.mxu0 0
      %1197 = vmatmul.mubr.bf16.gmra.mxu0 %v1006
      %v1198 = vpop.f32.mrf.mxu0
      %v1199 = vadd.f32 0.0, %v1198
      %v1200 = vpop.f32.mrf.mxu0
      %v1201 = vpop.f32.mrf.mxu0
      %v1202 = vadd.f32 0.0, %v1201
      %v1203 = vpop.f32.mrf.mxu0
      %1204 = vmatprep.mubr.bf16.mxu0 0
      %1205 = vmatmul.mubr.bf16.gmra.mxu0 %v1007
      %v1206 = vpop.f32.mrf.mxu0
      %v1207 = vadd.f32 0.0, %v1206
      %v1208 = vpop.f32.mrf.mxu0
      %v1209 = vpop.f32.mrf.mxu0
      %v1210 = vadd.f32 0.0, %v1209
      %v1211 = vpop.f32.mrf.mxu0
      %1212 = vmatprep.mubr.bf16.mxu0 0
      %1213 = vmatmul.mubr.bf16.gmra.mxu0 %v1008
      %v1214 = vpop.f32.mrf.mxu0
      %v1215 = vadd.f32 0.0, %v1214
      %v1216 = vpop.f32.mrf.mxu0
      %v1217 = vpop.f32.mrf.mxu0
      %v1218 = vadd.f32 0.0, %v1217
      %v1219 = vpop.f32.mrf.mxu0
      %1220 = vmatprep.mubr.bf16.mxu0 0
      %1221 = vmatmul.mubr.bf16.gmra.mxu0 %v1009
      %v1222 = vpop.f32.mrf.mxu0
      %v1223 = vadd.f32 0.0, %v1222
      %v1224 = vpop.f32.mrf.mxu0
      %v1225 = vpop.f32.mrf.mxu0
      %v1226 = vadd.f32 0.0, %v1225
      %v1227 = vpop.f32.mrf.mxu0
      %1228 = vmatprep.mubr.bf16.mxu0 0
      %1229 = vmatmul.mubr.bf16.gmra.mxu0 %v1010
      %v1230 = vpop.f32.mrf.mxu0
      %v1231 = vadd.f32 0.0, %v1230
      %v1232 = vpop.f32.mrf.mxu0
      %v1233 = vpop.f32.mrf.mxu0
      %v1234 = vadd.f32 0.0, %v1233
      %v1235 = vpop.f32.mrf.mxu0
      %1236 = vdwg.mxu0
      %v1237 = vld [vmem:[#allocation3] sm:$0xff]
      %v1238 = vld [vmem:[#allocation3 + $0x8] sm:$0xff]
      %v1239 = vld [vmem:[#allocation3 + $0x10] sm:$0xff]
      %v1240 = vld [vmem:[#allocation3 + $0x18] sm:$0xff]
      %v1241 = vld [vmem:[#allocation3 + $0x20] sm:$0xff]
      %v1242 = vld [vmem:[#allocation3 + $0x28] sm:$0xff]
      %v1243 = vld [vmem:[#allocation3 + $0x30] sm:$0xff]
      %v1244 = vld [vmem:[#allocation3 + $0x38] sm:$0xff]
      %v1245 = vld [vmem:[#allocation3 + $0x40] sm:$0xff]
      %v1246 = vld [vmem:[#allocation3 + $0x48] sm:$0xff]
      %v1247 = vld [vmem:[#allocation3 + $0x50] sm:$0xff]
      %v1248 = vld [vmem:[#allocation3 + $0x58] sm:$0xff]
      %v1249 = vld [vmem:[#allocation3 + $0x60] sm:$0xff]
      %v1250 = vld [vmem:[#allocation3 + $0x68] sm:$0xff]
      %v1251 = vld [vmem:[#allocation3 + $0x70] sm:$0xff]
      %v1252 = vld [vmem:[#allocation3 + $0x78] sm:$0xff]
      %v1253 = vld [vmem:[#allocation3 + $0x80] sm:$0xff]
      %v1254 = vld [vmem:[#allocation3 + $0x88] sm:$0xff]
      %v1255 = vld [vmem:[#allocation3 + $0x90] sm:$0xff]
      %v1256 = vld [vmem:[#allocation3 + $0x98] sm:$0xff]
      %v1257 = vld [vmem:[#allocation3 + $0xa0] sm:$0xff]
      %v1258 = vld [vmem:[#allocation3 + $0xa8] sm:$0xff]
      %v1259 = vld [vmem:[#allocation3 + $0xb0] sm:$0xff]
      %v1260 = vld [vmem:[#allocation3 + $0xb8] sm:$0xff]
      %v1261 = vld [vmem:[#allocation3 + $0xc0] sm:$0xff]
      %v1262 = vld [vmem:[#allocation3 + $0xc8] sm:$0xff]
      %v1263 = vld [vmem:[#allocation3 + $0xd0] sm:$0xff]
      %v1264 = vld [vmem:[#allocation3 + $0xd8] sm:$0xff]
      %v1265 = vld [vmem:[#allocation3 + $0xe0] sm:$0xff]
      %v1266 = vld [vmem:[#allocation3 + $0xe8] sm:$0xff]
      %v1267 = vld [vmem:[#allocation3 + $0xf0] sm:$0xff]
      %v1268 = vld [vmem:[#allocation3 + $0xf8] sm:$0xff]
      %v1269 = vadd.f32 %v1237, %v1111
      %v1270 = vadd.f32 %v1238, %v1114
      %v1271 = vadd.f32 %v1239, %v1119
      %v1272 = vadd.f32 %v1240, %v1122
      %v1273 = vadd.f32 %v1241, %v1127
      %v1274 = vadd.f32 %v1242, %v1130
      %v1275 = vadd.f32 %v1243, %v1135
      %v1276 = vadd.f32 %v1244, %v1138
      %v1277 = vadd.f32 %v1245, %v1143
      %v1278 = vadd.f32 %v1246, %v1146
      %v1279 = vadd.f32 %v1247, %v1151
      %v1280 = vadd.f32 %v1248, %v1154
      %v1281 = vadd.f32 %v1249, %v1159
      %v1282 = vadd.f32 %v1250, %v1162
      %v1283 = vadd.f32 %v1251, %v1167
      %v1284 = vadd.f32 %v1252, %v1170
      %v1285 = vadd.f32 %v1253, %v1175
      %v1286 = vadd.f32 %v1254, %v1178
      %v1287 = vadd.f32 %v1255, %v1183
      %v1288 = vadd.f32 %v1256, %v1186
      %v1289 = vadd.f32 %v1257, %v1191
      %v1290 = vadd.f32 %v1258, %v1194
      %v1291 = vadd.f32 %v1259, %v1199
      %v1292 = vadd.f32 %v1260, %v1202
      %v1293 = vadd.f32 %v1261, %v1207
      %v1294 = vadd.f32 %v1262, %v1210
      %v1295 = vadd.f32 %v1263, %v1215
      %v1296 = vadd.f32 %v1264, %v1218
      %v1297 = vadd.f32 %v1265, %v1223
      %v1298 = vadd.f32 %v1266, %v1226
      %v1299 = vadd.f32 %v1267, %v1231
      %v1300 = vadd.f32 %v1268, %v1234
      %1301 = vst [vmem:[#allocation3] sm:$0xff] %v1269
      %1302 = vst [vmem:[#allocation3 + $0x8] sm:$0xff] %v1270
      %1303 = vst [vmem:[#allocation3 + $0x10] sm:$0xff] %v1271
      %1304 = vst [vmem:[#allocation3 + $0x18] sm:$0xff] %v1272
      %1305 = vst [vmem:[#allocation3 + $0x20] sm:$0xff] %v1273
      %1306 = vst [vmem:[#allocation3 + $0x28] sm:$0xff] %v1274
      %1307 = vst [vmem:[#allocation3 + $0x30] sm:$0xff] %v1275
      %1308 = vst [vmem:[#allocation3 + $0x38] sm:$0xff] %v1276
      %1309 = vst [vmem:[#allocation3 + $0x40] sm:$0xff] %v1277
      %1310 = vst [vmem:[#allocation3 + $0x48] sm:$0xff] %v1278
      %1311 = vst [vmem:[#allocation3 + $0x50] sm:$0xff] %v1279
      %1312 = vst [vmem:[#allocation3 + $0x58] sm:$0xff] %v1280
      %1313 = vst [vmem:[#allocation3 + $0x60] sm:$0xff] %v1281
      %1314 = vst [vmem:[#allocation3 + $0x68] sm:$0xff] %v1282
      %1315 = vst [vmem:[#allocation3 + $0x70] sm:$0xff] %v1283
      %1316 = vst [vmem:[#allocation3 + $0x78] sm:$0xff] %v1284
      %1317 = vst [vmem:[#allocation3 + $0x80] sm:$0xff] %v1285
      %1318 = vst [vmem:[#allocation3 + $0x88] sm:$0xff] %v1286
      %1319 = vst [vmem:[#allocation3 + $0x90] sm:$0xff] %v1287
      %1320 = vst [vmem:[#allocation3 + $0x98] sm:$0xff] %v1288
      %1321 = vst [vmem:[#allocation3 + $0xa0] sm:$0xff] %v1289
      %1322 = vst [vmem:[#allocation3 + $0xa8] sm:$0xff] %v1290
      %1323 = vst [vmem:[#allocation3 + $0xb0] sm:$0xff] %v1291
      %1324 = vst [vmem:[#allocation3 + $0xb8] sm:$0xff] %v1292
      %1325 = vst [vmem:[#allocation3 + $0xc0] sm:$0xff] %v1293
      %1326 = vst [vmem:[#allocation3 + $0xc8] sm:$0xff] %v1294
      %1327 = vst [vmem:[#allocation3 + $0xd0] sm:$0xff] %v1295
      %1328 = vst [vmem:[#allocation3 + $0xd8] sm:$0xff] %v1296
      %1329 = vst [vmem:[#allocation3 + $0xe0] sm:$0xff] %v1297
      %1330 = vst [vmem:[#allocation3 + $0xe8] sm:$0xff] %v1298
      %1331 = vst [vmem:[#allocation3 + $0xf0] sm:$0xff] %v1299
      %1332 = vst [vmem:[#allocation3 + $0xf8] sm:$0xff] %v1300
      %v1333 = vld [vmem:[#allocation2 + $0x2] sm:$0xff]
      %v1334 = vld [vmem:[#allocation2 + $0xa] sm:$0xff]
      %v1335 = vld [vmem:[#allocation2 + $0x1a] sm:$0xff]
      %v1336 = vld [vmem:[#allocation2 + $0x22] sm:$0xff]
      %v1337 = vld [vmem:[#allocation2 + $0x32] sm:$0xff]
      %v1338 = vld [vmem:[#allocation2 + $0x3a] sm:$0xff]
      %v1339 = vld [vmem:[#allocation2 + $0x4a] sm:$0xff]
      %v1340 = vld [vmem:[#allocation2 + $0x52] sm:$0xff]
      %v1341 = vld [vmem:[#allocation2 + $0x62] sm:$0xff]
      %v1342 = vld [vmem:[#allocation2 + $0x6a] sm:$0xff]
      %v1343 = vld [vmem:[#allocation2 + $0x7a] sm:$0xff]
      %v1344 = vld [vmem:[#allocation2 + $0x82] sm:$0xff]
      %v1345 = vld [vmem:[#allocation2 + $0x92] sm:$0xff]
      %v1346 = vld [vmem:[#allocation2 + $0x9a] sm:$0xff]
      %v1347 = vld [vmem:[#allocation2 + $0xaa] sm:$0xff]
      %v1348 = vld [vmem:[#allocation2 + $0xb2] sm:$0xff]
      %v1349 = vld [vmem:[#allocation2 + $0xc2] sm:$0xff]
      %v1350 = vld [vmem:[#allocation2 + $0xca] sm:$0xff]
      %v1351 = vld [vmem:[#allocation2 + $0xda] sm:$0xff]
      %v1352 = vld [vmem:[#allocation2 + $0xe2] sm:$0xff]
      %v1353 = vld [vmem:[#allocation2 + $0xf2] sm:$0xff]
      %v1354 = vld [vmem:[#allocation2 + $0xfa] sm:$0xff]
      %v1355 = vld [vmem:[#allocation2 + $0x10a] sm:$0xff]
      %v1356 = vld [vmem:[#allocation2 + $0x112] sm:$0xff]
      %v1357 = vld [vmem:[#allocation2 + $0x122] sm:$0xff]
      %v1358 = vld [vmem:[#allocation2 + $0x12a] sm:$0xff]
      %v1359 = vld [vmem:[#allocation2 + $0x13a] sm:$0xff]
      %v1360 = vld [vmem:[#allocation2 + $0x142] sm:$0xff]
      %v1361 = vld [vmem:[#allocation2 + $0x152] sm:$0xff]
      %v1362 = vld [vmem:[#allocation2 + $0x15a] sm:$0xff]
      %v1363 = vld [vmem:[#allocation2 + $0x16a] sm:$0xff]
      %v1364 = vld [vmem:[#allocation2 + $0x172] sm:$0xff]
      %v1365 = vpack.c.bf16 %v1334, %v1333
      %v1366 = vpack.c.bf16 %v1336, %v1335
      %v1367 = vpack.c.bf16 %v1338, %v1337
      %v1368 = vpack.c.bf16 %v1340, %v1339
      %v1369 = vpack.c.bf16 %v1342, %v1341
      %v1370 = vpack.c.bf16 %v1344, %v1343
      %v1371 = vpack.c.bf16 %v1346, %v1345
      %v1372 = vpack.c.bf16 %v1348, %v1347
      %v1373 = vpack.c.bf16 %v1350, %v1349
      %v1374 = vpack.c.bf16 %v1352, %v1351
      %v1375 = vpack.c.bf16 %v1354, %v1353
      %v1376 = vpack.c.bf16 %v1356, %v1355
      %v1377 = vpack.c.bf16 %v1358, %v1357
      %v1378 = vpack.c.bf16 %v1360, %v1359
      %v1379 = vpack.c.bf16 %v1362, %v1361
      %v1380 = vpack.c.bf16 %v1364, %v1363
      %s1381 = scalar_lea.vmem %s265, 128
      %v1382 = vld [vmem:[%s1381] sm:$0xf]
      %v1383 = vld [vmem:[%s1381 + $0x4] sm:$0xf]
      %v1384 = vld [vmem:[%s1381 + $0x8] sm:$0xf]
      %v1385 = vld [vmem:[%s1381 + $0xc] sm:$0xf]
      %v1386 = vld [vmem:[%s1381 + $0x10] sm:$0xf]
      %v1387 = vld [vmem:[%s1381 + $0x14] sm:$0xf]
      %v1388 = vld [vmem:[%s1381 + $0x18] sm:$0xf]
      %v1389 = vld [vmem:[%s1381 + $0x1c] sm:$0xf]
      %v1390 = vld [vmem:[%s1381 + $0x20] sm:$0xf]
      %v1391 = vld [vmem:[%s1381 + $0x24] sm:$0xf]
      %v1392 = vld [vmem:[%s1381 + $0x28] sm:$0xf]
      %v1393 = vld [vmem:[%s1381 + $0x2c] sm:$0xf]
      %v1394 = vld [vmem:[%s1381 + $0x30] sm:$0xf]
      %v1395 = vld [vmem:[%s1381 + $0x34] sm:$0xf]
      %v1396 = vld [vmem:[%s1381 + $0x38] sm:$0xf]
      %v1397 = vld [vmem:[%s1381 + $0x3c] sm:$0xf]
      %v1414 = vunpack.c.l.b16 %v1382
      %v1415 = vunpack.c.l.b16 %v1383
      %v1416 = vunpack.c.l.b16 %v1384
      %v1417 = vunpack.c.l.b16 %v1385
      %v1418 = vunpack.c.l.b16 %v1386
      %v1419 = vunpack.c.l.b16 %v1387
      %v1420 = vunpack.c.l.b16 %v1388
      %v1421 = vunpack.c.l.b16 %v1389
      %v1422 = vunpack.c.l.b16 %v1390
      %v1423 = vunpack.c.l.b16 %v1391
      %v1424 = vunpack.c.l.b16 %v1392
      %v1425 = vunpack.c.l.b16 %v1393
      %v1426 = vunpack.c.l.b16 %v1394
      %v1427 = vunpack.c.l.b16 %v1395
      %v1428 = vunpack.c.l.b16 %v1396
      %v1429 = vunpack.c.l.b16 %v1397
      %v1430 = vpack.c.b16 %v1415, %v1414
      %v1431 = vpack.c.b16 %v1417, %v1416
      %v1432 = vpack.c.b16 %v1419, %v1418
      %v1433 = vpack.c.b16 %v1421, %v1420
      %v1434 = vpack.c.b16 %v1423, %v1422
      %v1435 = vpack.c.b16 %v1425, %v1424
      %v1436 = vpack.c.b16 %v1427, %v1426
      %v1437 = vpack.c.b16 %v1429, %v1428
      %1446 = vmatprep.subr.bf16.mxu0 0
      %1447 = vmatpush1.bf16.msra.mxu0 %v1437
      %1448 = vmatprep.subr.bf16.mxu0 0
      %1449 = vmatpush1.bf16.msra.mxu0 %v1436
      %1450 = vmatprep.subr.bf16.mxu0 0
      %1451 = vmatpush1.bf16.msra.mxu0 %v1435
      %1452 = vmatprep.subr.bf16.mxu0 0
      %1453 = vmatpush1.bf16.msra.mxu0 %v1434
      %1454 = vmatprep.subr.bf16.mxu0 0
      %1455 = vmatpush1.bf16.msra.mxu0 %v1433
      %1456 = vmatprep.subr.bf16.mxu0 0
      %1457 = vmatpush1.bf16.msra.mxu0 %v1432
      %1458 = vmatprep.subr.bf16.mxu0 0
      %1459 = vmatpush1.bf16.msra.mxu0 %v1431
      %1460 = vmatprep.subr.bf16.mxu0 0
      %1461 = vmatpush1.bf16.msra.mxu0 %v1430
      %1462 = vmatprep.subr.bf16.mxu0 0
      %1463 = vmatpush2.bf16.msra.mxu0 0
      %1464 = vmatprep.subr.bf16.mxu0 0
      %1465 = vmatpush2.bf16.msra.mxu0 0
      %1466 = vmatprep.subr.bf16.mxu0 0
      %1467 = vmatpush2.bf16.msra.mxu0 0
      %1468 = vmatprep.subr.bf16.mxu0 0
      %1469 = vmatpush2.bf16.msra.mxu0 0
      %1470 = vmatprep.subr.bf16.mxu0 0
      %1471 = vmatpush2.bf16.msra.mxu0 0
      %1472 = vmatprep.subr.bf16.mxu0 0
      %1473 = vmatpush2.bf16.msra.mxu0 0
      %1474 = vmatprep.subr.bf16.mxu0 0
      %1475 = vmatpush2.bf16.msra.mxu0 0
      %1476 = vmatprep.subr.bf16.mxu0 0
      %1477 = vmatpush2.bf16.msra.mxu0 0
      %1478 = vmatprep.mubr.bf16.mxu0 0
      %1479 = vmatmul.mubr.bf16.gmra.mxu0 %v1365
      %v1480 = vpop.f32.mrf.mxu0
      %v1481 = vadd.f32 0.0, %v1480
      %v1482 = vpop.f32.mrf.mxu0
      %v1483 = vpop.f32.mrf.mxu0
      %v1484 = vadd.f32 0.0, %v1483
      %v1485 = vpop.f32.mrf.mxu0
      %1486 = vmatprep.mubr.bf16.mxu0 0
      %1487 = vmatmul.mubr.bf16.gmra.mxu0 %v1366
      %v1488 = vpop.f32.mrf.mxu0
      %v1489 = vadd.f32 0.0, %v1488
      %v1490 = vpop.f32.mrf.mxu0
      %v1491 = vpop.f32.mrf.mxu0
      %v1492 = vadd.f32 0.0, %v1491
      %v1493 = vpop.f32.mrf.mxu0
      %1494 = vmatprep.mubr.bf16.mxu0 0
      %1495 = vmatmul.mubr.bf16.gmra.mxu0 %v1367
      %v1496 = vpop.f32.mrf.mxu0
      %v1497 = vadd.f32 0.0, %v1496
      %v1498 = vpop.f32.mrf.mxu0
      %v1499 = vpop.f32.mrf.mxu0
      %v1500 = vadd.f32 0.0, %v1499
      %v1501 = vpop.f32.mrf.mxu0
      %1502 = vmatprep.mubr.bf16.mxu0 0
      %1503 = vmatmul.mubr.bf16.gmra.mxu0 %v1368
      %v1504 = vpop.f32.mrf.mxu0
      %v1505 = vadd.f32 0.0, %v1504
      %v1506 = vpop.f32.mrf.mxu0
      %v1507 = vpop.f32.mrf.mxu0
      %v1508 = vadd.f32 0.0, %v1507
      %v1509 = vpop.f32.mrf.mxu0
      %1510 = vmatprep.mubr.bf16.mxu0 0
      %1511 = vmatmul.mubr.bf16.gmra.mxu0 %v1369
      %v1512 = vpop.f32.mrf.mxu0
      %v1513 = vadd.f32 0.0, %v1512
      %v1514 = vpop.f32.mrf.mxu0
      %v1515 = vpop.f32.mrf.mxu0
      %v1516 = vadd.f32 0.0, %v1515
      %v1517 = vpop.f32.mrf.mxu0
      %1518 = vmatprep.mubr.bf16.mxu0 0
      %1519 = vmatmul.mubr.bf16.gmra.mxu0 %v1370
      %v1520 = vpop.f32.mrf.mxu0
      %v1521 = vadd.f32 0.0, %v1520
      %v1522 = vpop.f32.mrf.mxu0
      %v1523 = vpop.f32.mrf.mxu0
      %v1524 = vadd.f32 0.0, %v1523
      %v1525 = vpop.f32.mrf.mxu0
      %1526 = vmatprep.mubr.bf16.mxu0 0
      %1527 = vmatmul.mubr.bf16.gmra.mxu0 %v1371
      %v1528 = vpop.f32.mrf.mxu0
      %v1529 = vadd.f32 0.0, %v1528
      %v1530 = vpop.f32.mrf.mxu0
      %v1531 = vpop.f32.mrf.mxu0
      %v1532 = vadd.f32 0.0, %v1531
      %v1533 = vpop.f32.mrf.mxu0
      %1534 = vmatprep.mubr.bf16.mxu0 0
      %1535 = vmatmul.mubr.bf16.gmra.mxu0 %v1372
      %v1536 = vpop.f32.mrf.mxu0
      %v1537 = vadd.f32 0.0, %v1536
      %v1538 = vpop.f32.mrf.mxu0
      %v1539 = vpop.f32.mrf.mxu0
      %v1540 = vadd.f32 0.0, %v1539
      %v1541 = vpop.f32.mrf.mxu0
      %1542 = vmatprep.mubr.bf16.mxu0 0
      %1543 = vmatmul.mubr.bf16.gmra.mxu0 %v1373
      %v1544 = vpop.f32.mrf.mxu0
      %v1545 = vadd.f32 0.0, %v1544
      %v1546 = vpop.f32.mrf.mxu0
      %v1547 = vpop.f32.mrf.mxu0
      %v1548 = vadd.f32 0.0, %v1547
      %v1549 = vpop.f32.mrf.mxu0
      %1550 = vmatprep.mubr.bf16.mxu0 0
      %1551 = vmatmul.mubr.bf16.gmra.mxu0 %v1374
      %v1552 = vpop.f32.mrf.mxu0
      %v1553 = vadd.f32 0.0, %v1552
      %v1554 = vpop.f32.mrf.mxu0
      %v1555 = vpop.f32.mrf.mxu0
      %v1556 = vadd.f32 0.0, %v1555
      %v1557 = vpop.f32.mrf.mxu0
      %1558 = vmatprep.mubr.bf16.mxu0 0
      %1559 = vmatmul.mubr.bf16.gmra.mxu0 %v1375
      %v1560 = vpop.f32.mrf.mxu0
      %v1561 = vadd.f32 0.0, %v1560
      %v1562 = vpop.f32.mrf.mxu0
      %v1563 = vpop.f32.mrf.mxu0
      %v1564 = vadd.f32 0.0, %v1563
      %v1565 = vpop.f32.mrf.mxu0
      %1566 = vmatprep.mubr.bf16.mxu0 0
      %1567 = vmatmul.mubr.bf16.gmra.mxu0 %v1376
      %v1568 = vpop.f32.mrf.mxu0
      %v1569 = vadd.f32 0.0, %v1568
      %v1570 = vpop.f32.mrf.mxu0
      %v1571 = vpop.f32.mrf.mxu0
      %v1572 = vadd.f32 0.0, %v1571
      %v1573 = vpop.f32.mrf.mxu0
      %1574 = vmatprep.mubr.bf16.mxu0 0
      %1575 = vmatmul.mubr.bf16.gmra.mxu0 %v1377
      %v1576 = vpop.f32.mrf.mxu0
      %v1577 = vadd.f32 0.0, %v1576
      %v1578 = vpop.f32.mrf.mxu0
      %v1579 = vpop.f32.mrf.mxu0
      %v1580 = vadd.f32 0.0, %v1579
      %v1581 = vpop.f32.mrf.mxu0
      %1582 = vmatprep.mubr.bf16.mxu0 0
      %1583 = vmatmul.mubr.bf16.gmra.mxu0 %v1378
      %v1584 = vpop.f32.mrf.mxu0
      %v1585 = vadd.f32 0.0, %v1584
      %v1586 = vpop.f32.mrf.mxu0
      %v1587 = vpop.f32.mrf.mxu0
      %v1588 = vadd.f32 0.0, %v1587
      %v1589 = vpop.f32.mrf.mxu0
      %1590 = vmatprep.mubr.bf16.mxu0 0
      %1591 = vmatmul.mubr.bf16.gmra.mxu0 %v1379
      %v1592 = vpop.f32.mrf.mxu0
      %v1593 = vadd.f32 0.0, %v1592
      %v1594 = vpop.f32.mrf.mxu0
      %v1595 = vpop.f32.mrf.mxu0
      %v1596 = vadd.f32 0.0, %v1595
      %v1597 = vpop.f32.mrf.mxu0
      %1598 = vmatprep.mubr.bf16.mxu0 0
      %1599 = vmatmul.mubr.bf16.gmra.mxu0 %v1380
      %v1600 = vpop.f32.mrf.mxu0
      %v1601 = vadd.f32 0.0, %v1600
      %v1602 = vpop.f32.mrf.mxu0
      %v1603 = vpop.f32.mrf.mxu0
      %v1604 = vadd.f32 0.0, %v1603
      %v1605 = vpop.f32.mrf.mxu0
      %1606 = vdwg.mxu0
      %v1607 = vld [vmem:[#allocation3] sm:$0xff]
      %v1608 = vld [vmem:[#allocation3 + $0x8] sm:$0xff]
      %v1609 = vld [vmem:[#allocation3 + $0x10] sm:$0xff]
      %v1610 = vld [vmem:[#allocation3 + $0x18] sm:$0xff]
      %v1611 = vld [vmem:[#allocation3 + $0x20] sm:$0xff]
      %v1612 = vld [vmem:[#allocation3 + $0x28] sm:$0xff]
      %v1613 = vld [vmem:[#allocation3 + $0x30] sm:$0xff]
      %v1614 = vld [vmem:[#allocation3 + $0x38] sm:$0xff]
      %v1615 = vld [vmem:[#allocation3 + $0x40] sm:$0xff]
      %v1616 = vld [vmem:[#allocation3 + $0x48] sm:$0xff]
      %v1617 = vld [vmem:[#allocation3 + $0x50] sm:$0xff]
      %v1618 = vld [vmem:[#allocation3 + $0x58] sm:$0xff]
      %v1619 = vld [vmem:[#allocation3 + $0x60] sm:$0xff]
      %v1620 = vld [vmem:[#allocation3 + $0x68] sm:$0xff]
      %v1621 = vld [vmem:[#allocation3 + $0x70] sm:$0xff]
      %v1622 = vld [vmem:[#allocation3 + $0x78] sm:$0xff]
      %v1623 = vld [vmem:[#allocation3 + $0x80] sm:$0xff]
      %v1624 = vld [vmem:[#allocation3 + $0x88] sm:$0xff]
      %v1625 = vld [vmem:[#allocation3 + $0x90] sm:$0xff]
      %v1626 = vld [vmem:[#allocation3 + $0x98] sm:$0xff]
      %v1627 = vld [vmem:[#allocation3 + $0xa0] sm:$0xff]
      %v1628 = vld [vmem:[#allocation3 + $0xa8] sm:$0xff]
      %v1629 = vld [vmem:[#allocation3 + $0xb0] sm:$0xff]
      %v1630 = vld [vmem:[#allocation3 + $0xb8] sm:$0xff]
      %v1631 = vld [vmem:[#allocation3 + $0xc0] sm:$0xff]
      %v1632 = vld [vmem:[#allocation3 + $0xc8] sm:$0xff]
      %v1633 = vld [vmem:[#allocation3 + $0xd0] sm:$0xff]
      %v1634 = vld [vmem:[#allocation3 + $0xd8] sm:$0xff]
      %v1635 = vld [vmem:[#allocation3 + $0xe0] sm:$0xff]
      %v1636 = vld [vmem:[#allocation3 + $0xe8] sm:$0xff]
      %v1637 = vld [vmem:[#allocation3 + $0xf0] sm:$0xff]
      %v1638 = vld [vmem:[#allocation3 + $0xf8] sm:$0xff]
      %v1639 = vadd.f32 %v1607, %v1481
      %v1640 = vadd.f32 %v1608, %v1484
      %v1641 = vadd.f32 %v1609, %v1489
      %v1642 = vadd.f32 %v1610, %v1492
      %v1643 = vadd.f32 %v1611, %v1497
      %v1644 = vadd.f32 %v1612, %v1500
      %v1645 = vadd.f32 %v1613, %v1505
      %v1646 = vadd.f32 %v1614, %v1508
      %v1647 = vadd.f32 %v1615, %v1513
      %v1648 = vadd.f32 %v1616, %v1516
      %v1649 = vadd.f32 %v1617, %v1521
      %v1650 = vadd.f32 %v1618, %v1524
      %v1651 = vadd.f32 %v1619, %v1529
      %v1652 = vadd.f32 %v1620, %v1532
      %v1653 = vadd.f32 %v1621, %v1537
      %v1654 = vadd.f32 %v1622, %v1540
      %v1655 = vadd.f32 %v1623, %v1545
      %v1656 = vadd.f32 %v1624, %v1548
      %v1657 = vadd.f32 %v1625, %v1553
      %v1658 = vadd.f32 %v1626, %v1556
      %v1659 = vadd.f32 %v1627, %v1561
      %v1660 = vadd.f32 %v1628, %v1564
      %v1661 = vadd.f32 %v1629, %v1569
      %v1662 = vadd.f32 %v1630, %v1572
      %v1663 = vadd.f32 %v1631, %v1577
      %v1664 = vadd.f32 %v1632, %v1580
      %v1665 = vadd.f32 %v1633, %v1585
      %v1666 = vadd.f32 %v1634, %v1588
      %v1667 = vadd.f32 %v1635, %v1593
      %v1668 = vadd.f32 %v1636, %v1596
      %v1669 = vadd.f32 %v1637, %v1601
      %v1670 = vadd.f32 %v1638, %v1604
      %1671 = vst [vmem:[#allocation3] sm:$0xff] %v1639
      %1672 = vst [vmem:[#allocation3 + $0x8] sm:$0xff] %v1640
      %1673 = vst [vmem:[#allocation3 + $0x10] sm:$0xff] %v1641
      %1674 = vst [vmem:[#allocation3 + $0x18] sm:$0xff] %v1642
      %1675 = vst [vmem:[#allocation3 + $0x20] sm:$0xff] %v1643
      %1676 = vst [vmem:[#allocation3 + $0x28] sm:$0xff] %v1644
      %1677 = vst [vmem:[#allocation3 + $0x30] sm:$0xff] %v1645
      %1678 = vst [vmem:[#allocation3 + $0x38] sm:$0xff] %v1646
      %1679 = vst [vmem:[#allocation3 + $0x40] sm:$0xff] %v1647
      %1680 = vst [vmem:[#allocation3 + $0x48] sm:$0xff] %v1648
      %1681 = vst [vmem:[#allocation3 + $0x50] sm:$0xff] %v1649
      %1682 = vst [vmem:[#allocation3 + $0x58] sm:$0xff] %v1650
      %1683 = vst [vmem:[#allocation3 + $0x60] sm:$0xff] %v1651
      %1684 = vst [vmem:[#allocation3 + $0x68] sm:$0xff] %v1652
      %1685 = vst [vmem:[#allocation3 + $0x70] sm:$0xff] %v1653
      %1686 = vst [vmem:[#allocation3 + $0x78] sm:$0xff] %v1654
      %1687 = vst [vmem:[#allocation3 + $0x80] sm:$0xff] %v1655
      %1688 = vst [vmem:[#allocation3 + $0x88] sm:$0xff] %v1656
      %1689 = vst [vmem:[#allocation3 + $0x90] sm:$0xff] %v1657
      %1690 = vst [vmem:[#allocation3 + $0x98] sm:$0xff] %v1658
      %1691 = vst [vmem:[#allocation3 + $0xa0] sm:$0xff] %v1659
      %1692 = vst [vmem:[#allocation3 + $0xa8] sm:$0xff] %v1660
      %1693 = vst [vmem:[#allocation3 + $0xb0] sm:$0xff] %v1661
      %1694 = vst [vmem:[#allocation3 + $0xb8] sm:$0xff] %v1662
      %1695 = vst [vmem:[#allocation3 + $0xc0] sm:$0xff] %v1663
      %1696 = vst [vmem:[#allocation3 + $0xc8] sm:$0xff] %v1664
      %1697 = vst [vmem:[#allocation3 + $0xd0] sm:$0xff] %v1665
      %1698 = vst [vmem:[#allocation3 + $0xd8] sm:$0xff] %v1666
      %1699 = vst [vmem:[#allocation3 + $0xe0] sm:$0xff] %v1667
      %1700 = vst [vmem:[#allocation3 + $0xe8] sm:$0xff] %v1668
      %1701 = vst [vmem:[#allocation3 + $0xf0] sm:$0xff] %v1669
      %1702 = vst [vmem:[#allocation3 + $0xf8] sm:$0xff] %v1670
      %s1703 = scalar_lea.vmem [#allocation2], 24
      %v1704 = vld [vmem:[%s1703] sm:$0xff]
      %v1705 = vld [vmem:[%s1703 + $0x8] sm:$0xff]
      %v1706 = vld [vmem:[%s1703 + $0x18] sm:$0xff]
      %v1707 = vld [vmem:[%s1703 + $0x20] sm:$0xff]
      %v1708 = vld [vmem:[%s1703 + $0x30] sm:$0xff]
      %v1709 = vld [vmem:[%s1703 + $0x38] sm:$0xff]
      %v1710 = vld [vmem:[%s1703 + $0x48] sm:$0xff]
      %v1711 = vld [vmem:[%s1703 + $0x50] sm:$0xff]
      %v1712 = vld [vmem:[%s1703 + $0x60] sm:$0xff]
      %v1713 = vld [vmem:[%s1703 + $0x68] sm:$0xff]
      %v1714 = vld [vmem:[%s1703 + $0x78] sm:$0xff]
      %v1715 = vld [vmem:[%s1703 + $0x80] sm:$0xff]
      %v1716 = vld [vmem:[%s1703 + $0x90] sm:$0xff]
      %v1717 = vld [vmem:[%s1703 + $0x98] sm:$0xff]
      %v1718 = vld [vmem:[%s1703 + $0xa8] sm:$0xff]
      %v1719 = vld [vmem:[%s1703 + $0xb0] sm:$0xff]
      %v1720 = vld [vmem:[%s1703 + $0xc0] sm:$0xff]
      %v1721 = vld [vmem:[%s1703 + $0xc8] sm:$0xff]
      %v1722 = vld [vmem:[%s1703 + $0xd8] sm:$0xff]
      %v1723 = vld [vmem:[%s1703 + $0xe0] sm:$0xff]
      %v1724 = vld [vmem:[%s1703 + $0xf0] sm:$0xff]
      %v1725 = vld [vmem:[%s1703 + $0xf8] sm:$0xff]
      %v1726 = vld [vmem:[%s1703 + $0x108] sm:$0xff]
      %v1727 = vld [vmem:[%s1703 + $0x110] sm:$0xff]
      %v1728 = vld [vmem:[%s1703 + $0x120] sm:$0xff]
      %v1729 = vld [vmem:[%s1703 + $0x128] sm:$0xff]
      %v1730 = vld [vmem:[%s1703 + $0x138] sm:$0xff]
      %v1731 = vld [vmem:[%s1703 + $0x140] sm:$0xff]
      %v1732 = vld [vmem:[%s1703 + $0x150] sm:$0xff]
      %v1733 = vld [vmem:[%s1703 + $0x158] sm:$0xff]
      %v1734 = vld [vmem:[%s1703 + $0x168] sm:$0xff]
      %v1735 = vld [vmem:[%s1703 + $0x170] sm:$0xff]
      %v1736 = vpack.c.bf16 %v1705, %v1704
      %v1737 = vpack.c.bf16 %v1707, %v1706
      %v1738 = vpack.c.bf16 %v1709, %v1708
      %v1739 = vpack.c.bf16 %v1711, %v1710
      %v1740 = vpack.c.bf16 %v1713, %v1712
      %v1741 = vpack.c.bf16 %v1715, %v1714
      %v1742 = vpack.c.bf16 %v1717, %v1716
      %v1743 = vpack.c.bf16 %v1719, %v1718
      %v1744 = vpack.c.bf16 %v1721, %v1720
      %v1745 = vpack.c.bf16 %v1723, %v1722
      %v1746 = vpack.c.bf16 %v1725, %v1724
      %v1747 = vpack.c.bf16 %v1727, %v1726
      %v1748 = vpack.c.bf16 %v1729, %v1728
      %v1749 = vpack.c.bf16 %v1731, %v1730
      %v1750 = vpack.c.bf16 %v1733, %v1732
      %v1751 = vpack.c.bf16 %v1735, %v1734
      %s1752 = scalar_lea.vmem %s265, 192
      %v1753 = vld [vmem:[%s1752] sm:$0xf]
      %v1754 = vld [vmem:[%s1752 + $0x4] sm:$0xf]
      %v1755 = vld [vmem:[%s1752 + $0x8] sm:$0xf]
      %v1756 = vld [vmem:[%s1752 + $0xc] sm:$0xf]
      %v1757 = vld [vmem:[%s1752 + $0x10] sm:$0xf]
      %v1758 = vld [vmem:[%s1752 + $0x14] sm:$0xf]
      %v1759 = vld [vmem:[%s1752 + $0x18] sm:$0xf]
      %v1760 = vld [vmem:[%s1752 + $0x1c] sm:$0xf]
      %v1761 = vld [vmem:[%s1752 + $0x20] sm:$0xf]
      %v1762 = vld [vmem:[%s1752 + $0x24] sm:$0xf]
      %v1763 = vld [vmem:[%s1752 + $0x28] sm:$0xf]
      %v1764 = vld [vmem:[%s1752 + $0x2c] sm:$0xf]
      %v1765 = vld [vmem:[%s1752 + $0x30] sm:$0xf]
      %v1766 = vld [vmem:[%s1752 + $0x34] sm:$0xf]
      %v1767 = vld [vmem:[%s1752 + $0x38] sm:$0xf]
      %v1768 = vld [vmem:[%s1752 + $0x3c] sm:$0xf]
      %v1785 = vunpack.c.l.b16 %v1753
      %v1786 = vunpack.c.l.b16 %v1754
      %v1787 = vunpack.c.l.b16 %v1755
      %v1788 = vunpack.c.l.b16 %v1756
      %v1789 = vunpack.c.l.b16 %v1757
      %v1790 = vunpack.c.l.b16 %v1758
      %v1791 = vunpack.c.l.b16 %v1759
      %v1792 = vunpack.c.l.b16 %v1760
      %v1793 = vunpack.c.l.b16 %v1761
      %v1794 = vunpack.c.l.b16 %v1762
      %v1795 = vunpack.c.l.b16 %v1763
      %v1796 = vunpack.c.l.b16 %v1764
      %v1797 = vunpack.c.l.b16 %v1765
      %v1798 = vunpack.c.l.b16 %v1766
      %v1799 = vunpack.c.l.b16 %v1767
      %v1800 = vunpack.c.l.b16 %v1768
      %v1801 = vpack.c.b16 %v1786, %v1785
      %v1802 = vpack.c.b16 %v1788, %v1787
      %v1803 = vpack.c.b16 %v1790, %v1789
      %v1804 = vpack.c.b16 %v1792, %v1791
      %v1805 = vpack.c.b16 %v1794, %v1793
      %v1806 = vpack.c.b16 %v1796, %v1795
      %v1807 = vpack.c.b16 %v1798, %v1797
      %v1808 = vpack.c.b16 %v1800, %v1799
      %1817 = vmatprep.subr.bf16.mxu0 0
      %1818 = vmatpush1.bf16.msra.mxu0 %v1808
      %1819 = vmatprep.subr.bf16.mxu0 0
      %1820 = vmatpush1.bf16.msra.mxu0 %v1807
      %1821 = vmatprep.subr.bf16.mxu0 0
      %1822 = vmatpush1.bf16.msra.mxu0 %v1806
      %1823 = vmatprep.subr.bf16.mxu0 0
      %1824 = vmatpush1.bf16.msra.mxu0 %v1805
      %1825 = vmatprep.subr.bf16.mxu0 0
      %1826 = vmatpush1.bf16.msra.mxu0 %v1804
      %1827 = vmatprep.subr.bf16.mxu0 0
      %1828 = vmatpush1.bf16.msra.mxu0 %v1803
      %1829 = vmatprep.subr.bf16.mxu0 0
      %1830 = vmatpush1.bf16.msra.mxu0 %v1802
      %1831 = vmatprep.subr.bf16.mxu0 0
      %1832 = vmatpush1.bf16.msra.mxu0 %v1801
      %1833 = vmatprep.subr.bf16.mxu0 0
      %1834 = vmatpush2.bf16.msra.mxu0 0
      %1835 = vmatprep.subr.bf16.mxu0 0
      %1836 = vmatpush2.bf16.msra.mxu0 0
      %1837 = vmatprep.subr.bf16.mxu0 0
      %1838 = vmatpush2.bf16.msra.mxu0 0
      %1839 = vmatprep.subr.bf16.mxu0 0
      %1840 = vmatpush2.bf16.msra.mxu0 0
      %1841 = vmatprep.subr.bf16.mxu0 0
      %1842 = vmatpush2.bf16.msra.mxu0 0
      %1843 = vmatprep.subr.bf16.mxu0 0
      %1844 = vmatpush2.bf16.msra.mxu0 0
      %1845 = vmatprep.subr.bf16.mxu0 0
      %1846 = vmatpush2.bf16.msra.mxu0 0
      %1847 = vmatprep.subr.bf16.mxu0 0
      %1848 = vmatpush2.bf16.msra.mxu0 0
      %1849 = vmatprep.mubr.bf16.mxu0 0
      %1850 = vmatmul.mubr.bf16.gmra.mxu0 %v1736
      %v1851 = vpop.f32.mrf.mxu0
      %v1852 = vadd.f32 0.0, %v1851
      %v1853 = vpop.f32.mrf.mxu0
      %v1854 = vpop.f32.mrf.mxu0
      %v1855 = vadd.f32 0.0, %v1854
      %v1856 = vpop.f32.mrf.mxu0
      %1857 = vmatprep.mubr.bf16.mxu0 0
      %1858 = vmatmul.mubr.bf16.gmra.mxu0 %v1737
      %v1859 = vpop.f32.mrf.mxu0
      %v1860 = vadd.f32 0.0, %v1859
      %v1861 = vpop.f32.mrf.mxu0
      %v1862 = vpop.f32.mrf.mxu0
      %v1863 = vadd.f32 0.0, %v1862
      %v1864 = vpop.f32.mrf.mxu0
      %1865 = vmatprep.mubr.bf16.mxu0 0
      %1866 = vmatmul.mubr.bf16.gmra.mxu0 %v1738
      %v1867 = vpop.f32.mrf.mxu0
      %v1868 = vadd.f32 0.0, %v1867
      %v1869 = vpop.f32.mrf.mxu0
      %v1870 = vpop.f32.mrf.mxu0
      %v1871 = vadd.f32 0.0, %v1870
      %v1872 = vpop.f32.mrf.mxu0
      %1873 = vmatprep.mubr.bf16.mxu0 0
      %1874 = vmatmul.mubr.bf16.gmra.mxu0 %v1739
      %v1875 = vpop.f32.mrf.mxu0
      %v1876 = vadd.f32 0.0, %v1875
      %v1877 = vpop.f32.mrf.mxu0
      %v1878 = vpop.f32.mrf.mxu0
      %v1879 = vadd.f32 0.0, %v1878
      %v1880 = vpop.f32.mrf.mxu0
      %1881 = vmatprep.mubr.bf16.mxu0 0
      %1882 = vmatmul.mubr.bf16.gmra.mxu0 %v1740
      %v1883 = vpop.f32.mrf.mxu0
      %v1884 = vadd.f32 0.0, %v1883
      %v1885 = vpop.f32.mrf.mxu0
      %v1886 = vpop.f32.mrf.mxu0
      %v1887 = vadd.f32 0.0, %v1886
      %v1888 = vpop.f32.mrf.mxu0
      %1889 = vmatprep.mubr.bf16.mxu0 0
      %1890 = vmatmul.mubr.bf16.gmra.mxu0 %v1741
      %v1891 = vpop.f32.mrf.mxu0
      %v1892 = vadd.f32 0.0, %v1891
      %v1893 = vpop.f32.mrf.mxu0
      %v1894 = vpop.f32.mrf.mxu0
      %v1895 = vadd.f32 0.0, %v1894
      %v1896 = vpop.f32.mrf.mxu0
      %1897 = vmatprep.mubr.bf16.mxu0 0
      %1898 = vmatmul.mubr.bf16.gmra.mxu0 %v1742
      %v1899 = vpop.f32.mrf.mxu0
      %v1900 = vadd.f32 0.0, %v1899
      %v1901 = vpop.f32.mrf.mxu0
      %v1902 = vpop.f32.mrf.mxu0
      %v1903 = vadd.f32 0.0, %v1902
      %v1904 = vpop.f32.mrf.mxu0
      %1905 = vmatprep.mubr.bf16.mxu0 0
      %1906 = vmatmul.mubr.bf16.gmra.mxu0 %v1743
      %v1907 = vpop.f32.mrf.mxu0
      %v1908 = vadd.f32 0.0, %v1907
      %v1909 = vpop.f32.mrf.mxu0
      %v1910 = vpop.f32.mrf.mxu0
      %v1911 = vadd.f32 0.0, %v1910
      %v1912 = vpop.f32.mrf.mxu0
      %1913 = vmatprep.mubr.bf16.mxu0 0
      %1914 = vmatmul.mubr.bf16.gmra.mxu0 %v1744
      %v1915 = vpop.f32.mrf.mxu0
      %v1916 = vadd.f32 0.0, %v1915
      %v1917 = vpop.f32.mrf.mxu0
      %v1918 = vpop.f32.mrf.mxu0
      %v1919 = vadd.f32 0.0, %v1918
      %v1920 = vpop.f32.mrf.mxu0
      %1921 = vmatprep.mubr.bf16.mxu0 0
      %1922 = vmatmul.mubr.bf16.gmra.mxu0 %v1745
      %v1923 = vpop.f32.mrf.mxu0
      %v1924 = vadd.f32 0.0, %v1923
      %v1925 = vpop.f32.mrf.mxu0
      %v1926 = vpop.f32.mrf.mxu0
      %v1927 = vadd.f32 0.0, %v1926
      %v1928 = vpop.f32.mrf.mxu0
      %1929 = vmatprep.mubr.bf16.mxu0 0
      %1930 = vmatmul.mubr.bf16.gmra.mxu0 %v1746
      %v1931 = vpop.f32.mrf.mxu0
      %v1932 = vadd.f32 0.0, %v1931
      %v1933 = vpop.f32.mrf.mxu0
      %v1934 = vpop.f32.mrf.mxu0
      %v1935 = vadd.f32 0.0, %v1934
      %v1936 = vpop.f32.mrf.mxu0
      %1937 = vmatprep.mubr.bf16.mxu0 0
      %1938 = vmatmul.mubr.bf16.gmra.mxu0 %v1747
      %v1939 = vpop.f32.mrf.mxu0
      %v1940 = vadd.f32 0.0, %v1939
      %v1941 = vpop.f32.mrf.mxu0
      %v1942 = vpop.f32.mrf.mxu0
      %v1943 = vadd.f32 0.0, %v1942
      %v1944 = vpop.f32.mrf.mxu0
      %1945 = vmatprep.mubr.bf16.mxu0 0
      %1946 = vmatmul.mubr.bf16.gmra.mxu0 %v1748
      %v1947 = vpop.f32.mrf.mxu0
      %v1948 = vadd.f32 0.0, %v1947
      %v1949 = vpop.f32.mrf.mxu0
      %v1950 = vpop.f32.mrf.mxu0
      %v1951 = vadd.f32 0.0, %v1950
      %v1952 = vpop.f32.mrf.mxu0
      %1953 = vmatprep.mubr.bf16.mxu0 0
      %1954 = vmatmul.mubr.bf16.gmra.mxu0 %v1749
      %v1955 = vpop.f32.mrf.mxu0
      %v1956 = vadd.f32 0.0, %v1955
      %v1957 = vpop.f32.mrf.mxu0
      %v1958 = vpop.f32.mrf.mxu0
      %v1959 = vadd.f32 0.0, %v1958
      %v1960 = vpop.f32.mrf.mxu0
      %1961 = vmatprep.mubr.bf16.mxu0 0
      %1962 = vmatmul.mubr.bf16.gmra.mxu0 %v1750
      %v1963 = vpop.f32.mrf.mxu0
      %v1964 = vadd.f32 0.0, %v1963
      %v1965 = vpop.f32.mrf.mxu0
      %v1966 = vpop.f32.mrf.mxu0
      %v1967 = vadd.f32 0.0, %v1966
      %v1968 = vpop.f32.mrf.mxu0
      %1969 = vmatprep.mubr.bf16.mxu0 0
      %1970 = vmatmul.mubr.bf16.gmra.mxu0 %v1751
      %v1971 = vpop.f32.mrf.mxu0
      %v1972 = vadd.f32 0.0, %v1971
      %v1973 = vpop.f32.mrf.mxu0
      %v1974 = vpop.f32.mrf.mxu0
      %v1975 = vadd.f32 0.0, %v1974
      %v1976 = vpop.f32.mrf.mxu0
      %1977 = vdwg.mxu0
      %v1978 = vld [vmem:[#allocation3] sm:$0xff]
      %v1979 = vld [vmem:[#allocation3 + $0x8] sm:$0xff]
      %v1980 = vld [vmem:[#allocation3 + $0x10] sm:$0xff]
      %v1981 = vld [vmem:[#allocation3 + $0x18] sm:$0xff]
      %v1982 = vld [vmem:[#allocation3 + $0x20] sm:$0xff]
      %v1983 = vld [vmem:[#allocation3 + $0x28] sm:$0xff]
      %v1984 = vld [vmem:[#allocation3 + $0x30] sm:$0xff]
      %v1985 = vld [vmem:[#allocation3 + $0x38] sm:$0xff]
      %v1986 = vld [vmem:[#allocation3 + $0x40] sm:$0xff]
      %v1987 = vld [vmem:[#allocation3 + $0x48] sm:$0xff]
      %v1988 = vld [vmem:[#allocation3 + $0x50] sm:$0xff]
      %v1989 = vld [vmem:[#allocation3 + $0x58] sm:$0xff]
      %v1990 = vld [vmem:[#allocation3 + $0x60] sm:$0xff]
      %v1991 = vld [vmem:[#allocation3 + $0x68] sm:$0xff]
      %v1992 = vld [vmem:[#allocation3 + $0x70] sm:$0xff]
      %v1993 = vld [vmem:[#allocation3 + $0x78] sm:$0xff]
      %v1994 = vld [vmem:[#allocation3 + $0x80] sm:$0xff]
      %v1995 = vld [vmem:[#allocation3 + $0x88] sm:$0xff]
      %v1996 = vld [vmem:[#allocation3 + $0x90] sm:$0xff]
      %v1997 = vld [vmem:[#allocation3 + $0x98] sm:$0xff]
      %v1998 = vld [vmem:[#allocation3 + $0xa0] sm:$0xff]
      %v1999 = vld [vmem:[#allocation3 + $0xa8] sm:$0xff]
      %v2000 = vld [vmem:[#allocation3 + $0xb0] sm:$0xff]
      %v2001 = vld [vmem:[#allocation3 + $0xb8] sm:$0xff]
      %v2002 = vld [vmem:[#allocation3 + $0xc0] sm:$0xff]
      %v2003 = vld [vmem:[#allocation3 + $0xc8] sm:$0xff]
      %v2004 = vld [vmem:[#allocation3 + $0xd0] sm:$0xff]
      %v2005 = vld [vmem:[#allocation3 + $0xd8] sm:$0xff]
      %v2006 = vld [vmem:[#allocation3 + $0xe0] sm:$0xff]
      %v2007 = vld [vmem:[#allocation3 + $0xe8] sm:$0xff]
      %v2008 = vld [vmem:[#allocation3 + $0xf0] sm:$0xff]
      %v2009 = vld [vmem:[#allocation3 + $0xf8] sm:$0xff]
      %v2010 = vadd.f32 %v1978, %v1852
      %v2011 = vadd.f32 %v1979, %v1855
      %v2012 = vadd.f32 %v1980, %v1860
      %v2013 = vadd.f32 %v1981, %v1863
      %v2014 = vadd.f32 %v1982, %v1868
      %v2015 = vadd.f32 %v1983, %v1871
      %v2016 = vadd.f32 %v1984, %v1876
      %v2017 = vadd.f32 %v1985, %v1879
      %v2018 = vadd.f32 %v1986, %v1884
      %v2019 = vadd.f32 %v1987, %v1887
      %v2020 = vadd.f32 %v1988, %v1892
      %v2021 = vadd.f32 %v1989, %v1895
      %v2022 = vadd.f32 %v1990, %v1900
      %v2023 = vadd.f32 %v1991, %v1903
      %v2024 = vadd.f32 %v1992, %v1908
      %v2025 = vadd.f32 %v1993, %v1911
      %v2026 = vadd.f32 %v1994, %v1916
      %v2027 = vadd.f32 %v1995, %v1919
      %v2028 = vadd.f32 %v1996, %v1924
      %v2029 = vadd.f32 %v1997, %v1927
      %v2030 = vadd.f32 %v1998, %v1932
      %v2031 = vadd.f32 %v1999, %v1935
      %v2032 = vadd.f32 %v2000, %v1940
      %v2033 = vadd.f32 %v2001, %v1943
      %v2034 = vadd.f32 %v2002, %v1948
      %v2035 = vadd.f32 %v2003, %v1951
      %v2036 = vadd.f32 %v2004, %v1956
      %v2037 = vadd.f32 %v2005, %v1959
      %v2038 = vadd.f32 %v2006, %v1964
      %v2039 = vadd.f32 %v2007, %v1967
      %v2040 = vadd.f32 %v2008, %v1972
      %v2041 = vadd.f32 %v2009, %v1975
      %2042 = vst [vmem:[#allocation3] sm:$0xff] %v2010
      %2043 = vst [vmem:[#allocation3 + $0x8] sm:$0xff] %v2011
      %2044 = vst [vmem:[#allocation3 + $0x10] sm:$0xff] %v2012
      %2045 = vst [vmem:[#allocation3 + $0x18] sm:$0xff] %v2013
      %2046 = vst [vmem:[#allocation3 + $0x20] sm:$0xff] %v2014
      %2047 = vst [vmem:[#allocation3 + $0x28] sm:$0xff] %v2015
      %2048 = vst [vmem:[#allocation3 + $0x30] sm:$0xff] %v2016
      %2049 = vst [vmem:[#allocation3 + $0x38] sm:$0xff] %v2017
      %2050 = vst [vmem:[#allocation3 + $0x40] sm:$0xff] %v2018
      %2051 = vst [vmem:[#allocation3 + $0x48] sm:$0xff] %v2019
      %2052 = vst [vmem:[#allocation3 + $0x50] sm:$0xff] %v2020
      %2053 = vst [vmem:[#allocation3 + $0x58] sm:$0xff] %v2021
      %2054 = vst [vmem:[#allocation3 + $0x60] sm:$0xff] %v2022
      %2055 = vst [vmem:[#allocation3 + $0x68] sm:$0xff] %v2023
      %2056 = vst [vmem:[#allocation3 + $0x70] sm:$0xff] %v2024
      %2057 = vst [vmem:[#allocation3 + $0x78] sm:$0xff] %v2025
      %2058 = vst [vmem:[#allocation3 + $0x80] sm:$0xff] %v2026
      %2059 = vst [vmem:[#allocation3 + $0x88] sm:$0xff] %v2027
      %2060 = vst [vmem:[#allocation3 + $0x90] sm:$0xff] %v2028
      %2061 = vst [vmem:[#allocation3 + $0x98] sm:$0xff] %v2029
      %2062 = vst [vmem:[#allocation3 + $0xa0] sm:$0xff] %v2030
      %2063 = vst [vmem:[#allocation3 + $0xa8] sm:$0xff] %v2031
      %2064 = vst [vmem:[#allocation3 + $0xb0] sm:$0xff] %v2032
      %2065 = vst [vmem:[#allocation3 + $0xb8] sm:$0xff] %v2033
      %2066 = vst [vmem:[#allocation3 + $0xc0] sm:$0xff] %v2034
      %2067 = vst [vmem:[#allocation3 + $0xc8] sm:$0xff] %v2035
      %2068 = vst [vmem:[#allocation3 + $0xd0] sm:$0xff] %v2036
      %2069 = vst [vmem:[#allocation3 + $0xd8] sm:$0xff] %v2037
      %2070 = vst [vmem:[#allocation3 + $0xe0] sm:$0xff] %v2038
      %2071 = vst [vmem:[#allocation3 + $0xe8] sm:$0xff] %v2039
      %2072 = vst [vmem:[#allocation3 + $0xf0] sm:$0xff] %v2040
      %2073 = vst [vmem:[#allocation3 + $0xf8] sm:$0xff] %v2041
      %v2074 = vld [vmem:[%s1703 + $0x1] sm:$0xff]
      %v2075 = vld [vmem:[%s1703 + $0x9] sm:$0xff]
      %v2076 = vld [vmem:[%s1703 + $0x19] sm:$0xff]
      %v2077 = vld [vmem:[%s1703 + $0x21] sm:$0xff]
      %v2078 = vld [vmem:[%s1703 + $0x31] sm:$0xff]
      %v2079 = vld [vmem:[%s1703 + $0x39] sm:$0xff]
      %v2080 = vld [vmem:[%s1703 + $0x49] sm:$0xff]
      %v2081 = vld [vmem:[%s1703 + $0x51] sm:$0xff]
      %v2082 = vld [vmem:[%s1703 + $0x61] sm:$0xff]
      %v2083 = vld [vmem:[%s1703 + $0x69] sm:$0xff]
      %v2084 = vld [vmem:[%s1703 + $0x79] sm:$0xff]
      %v2085 = vld [vmem:[%s1703 + $0x81] sm:$0xff]
      %v2086 = vld [vmem:[%s1703 + $0x91] sm:$0xff]
      %v2087 = vld [vmem:[%s1703 + $0x99] sm:$0xff]
      %v2088 = vld [vmem:[%s1703 + $0xa9] sm:$0xff]
      %v2089 = vld [vmem:[%s1703 + $0xb1] sm:$0xff]
      %v2090 = vld [vmem:[%s1703 + $0xc1] sm:$0xff]
      %v2091 = vld [vmem:[%s1703 + $0xc9] sm:$0xff]
      %v2092 = vld [vmem:[%s1703 + $0xd9] sm:$0xff]
      %v2093 = vld [vmem:[%s1703 + $0xe1] sm:$0xff]
      %v2094 = vld [vmem:[%s1703 + $0xf1] sm:$0xff]
      %v2095 = vld [vmem:[%s1703 + $0xf9] sm:$0xff]
      %v2096 = vld [vmem:[%s1703 + $0x109] sm:$0xff]
      %v2097 = vld [vmem:[%s1703 + $0x111] sm:$0xff]
      %v2098 = vld [vmem:[%s1703 + $0x121] sm:$0xff]
      %v2099 = vld [vmem:[%s1703 + $0x129] sm:$0xff]
      %v2100 = vld [vmem:[%s1703 + $0x139] sm:$0xff]
      %v2101 = vld [vmem:[%s1703 + $0x141] sm:$0xff]
      %v2102 = vld [vmem:[%s1703 + $0x151] sm:$0xff]
      %v2103 = vld [vmem:[%s1703 + $0x159] sm:$0xff]
      %v2104 = vld [vmem:[%s1703 + $0x169] sm:$0xff]
      %v2105 = vld [vmem:[%s1703 + $0x171] sm:$0xff]
      %v2106 = vpack.c.bf16 %v2075, %v2074
      %v2107 = vpack.c.bf16 %v2077, %v2076
      %v2108 = vpack.c.bf16 %v2079, %v2078
      %v2109 = vpack.c.bf16 %v2081, %v2080
      %v2110 = vpack.c.bf16 %v2083, %v2082
      %v2111 = vpack.c.bf16 %v2085, %v2084
      %v2112 = vpack.c.bf16 %v2087, %v2086
      %v2113 = vpack.c.bf16 %v2089, %v2088
      %v2114 = vpack.c.bf16 %v2091, %v2090
      %v2115 = vpack.c.bf16 %v2093, %v2092
      %v2116 = vpack.c.bf16 %v2095, %v2094
      %v2117 = vpack.c.bf16 %v2097, %v2096
      %v2118 = vpack.c.bf16 %v2099, %v2098
      %v2119 = vpack.c.bf16 %v2101, %v2100
      %v2120 = vpack.c.bf16 %v2103, %v2102
      %v2121 = vpack.c.bf16 %v2105, %v2104
      %s2122 = scalar_lea.vmem %s265, 256
      %v2123 = vld [vmem:[%s2122] sm:$0xf]
      %v2124 = vld [vmem:[%s2122 + $0x4] sm:$0xf]
      %v2125 = vld [vmem:[%s2122 + $0x8] sm:$0xf]
      %v2126 = vld [vmem:[%s2122 + $0xc] sm:$0xf]
      %v2127 = vld [vmem:[%s2122 + $0x10] sm:$0xf]
      %v2128 = vld [vmem:[%s2122 + $0x14] sm:$0xf]
      %v2129 = vld [vmem:[%s2122 + $0x18] sm:$0xf]
      %v2130 = vld [vmem:[%s2122 + $0x1c] sm:$0xf]
      %v2131 = vld [vmem:[%s2122 + $0x20] sm:$0xf]
      %v2132 = vld [vmem:[%s2122 + $0x24] sm:$0xf]
      %v2133 = vld [vmem:[%s2122 + $0x28] sm:$0xf]
      %v2134 = vld [vmem:[%s2122 + $0x2c] sm:$0xf]
      %v2135 = vld [vmem:[%s2122 + $0x30] sm:$0xf]
      %v2136 = vld [vmem:[%s2122 + $0x34] sm:$0xf]
      %v2137 = vld [vmem:[%s2122 + $0x38] sm:$0xf]
      %v2138 = vld [vmem:[%s2122 + $0x3c] sm:$0xf]
      %v2155 = vunpack.c.l.b16 %v2123
      %v2156 = vunpack.c.l.b16 %v2124
      %v2157 = vunpack.c.l.b16 %v2125
      %v2158 = vunpack.c.l.b16 %v2126
      %v2159 = vunpack.c.l.b16 %v2127
      %v2160 = vunpack.c.l.b16 %v2128
      %v2161 = vunpack.c.l.b16 %v2129
      %v2162 = vunpack.c.l.b16 %v2130
      %v2163 = vunpack.c.l.b16 %v2131
      %v2164 = vunpack.c.l.b16 %v2132
      %v2165 = vunpack.c.l.b16 %v2133
      %v2166 = vunpack.c.l.b16 %v2134
      %v2167 = vunpack.c.l.b16 %v2135
      %v2168 = vunpack.c.l.b16 %v2136
      %v2169 = vunpack.c.l.b16 %v2137
      %v2170 = vunpack.c.l.b16 %v2138
      %v2171 = vpack.c.b16 %v2156, %v2155
      %v2172 = vpack.c.b16 %v2158, %v2157
      %v2173 = vpack.c.b16 %v2160, %v2159
      %v2174 = vpack.c.b16 %v2162, %v2161
      %v2175 = vpack.c.b16 %v2164, %v2163
      %v2176 = vpack.c.b16 %v2166, %v2165
      %v2177 = vpack.c.b16 %v2168, %v2167
      %v2178 = vpack.c.b16 %v2170, %v2169
      %2187 = vmatprep.subr.bf16.mxu0 0
      %2188 = vmatpush1.bf16.msra.mxu0 %v2178
      %2189 = vmatprep.subr.bf16.mxu0 0
      %2190 = vmatpush1.bf16.msra.mxu0 %v2177
      %2191 = vmatprep.subr.bf16.mxu0 0
      %2192 = vmatpush1.bf16.msra.mxu0 %v2176
      %2193 = vmatprep.subr.bf16.mxu0 0
      %2194 = vmatpush1.bf16.msra.mxu0 %v2175
      %2195 = vmatprep.subr.bf16.mxu0 0
      %2196 = vmatpush1.bf16.msra.mxu0 %v2174
      %2197 = vmatprep.subr.bf16.mxu0 0
      %2198 = vmatpush1.bf16.msra.mxu0 %v2173
      %2199 = vmatprep.subr.bf16.mxu0 0
      %2200 = vmatpush1.bf16.msra.mxu0 %v2172
      %2201 = vmatprep.subr.bf16.mxu0 0
      %2202 = vmatpush1.bf16.msra.mxu0 %v2171
      %2203 = vmatprep.subr.bf16.mxu0 0
      %2204 = vmatpush2.bf16.msra.mxu0 0
      %2205 = vmatprep.subr.bf16.mxu0 0
      %2206 = vmatpush2.bf16.msra.mxu0 0
      %2207 = vmatprep.subr.bf16.mxu0 0
      %2208 = vmatpush2.bf16.msra.mxu0 0
      %2209 = vmatprep.subr.bf16.mxu0 0
      %2210 = vmatpush2.bf16.msra.mxu0 0
      %2211 = vmatprep.subr.bf16.mxu0 0
      %2212 = vmatpush2.bf16.msra.mxu0 0
      %2213 = vmatprep.subr.bf16.mxu0 0
      %2214 = vmatpush2.bf16.msra.mxu0 0
      %2215 = vmatprep.subr.bf16.mxu0 0
      %2216 = vmatpush2.bf16.msra.mxu0 0
      %2217 = vmatprep.subr.bf16.mxu0 0
      %2218 = vmatpush2.bf16.msra.mxu0 0
      %2219 = vmatprep.mubr.bf16.mxu0 0
      %2220 = vmatmul.mubr.bf16.gmra.mxu0 %v2106
      %v2221 = vpop.f32.mrf.mxu0
      %v2222 = vadd.f32 0.0, %v2221
      %v2223 = vpop.f32.mrf.mxu0
      %v2224 = vpop.f32.mrf.mxu0
      %v2225 = vadd.f32 0.0, %v2224
      %v2226 = vpop.f32.mrf.mxu0
      %2227 = vmatprep.mubr.bf16.mxu0 0
      %2228 = vmatmul.mubr.bf16.gmra.mxu0 %v2107
      %v2229 = vpop.f32.mrf.mxu0
      %v2230 = vadd.f32 0.0, %v2229
      %v2231 = vpop.f32.mrf.mxu0
      %v2232 = vpop.f32.mrf.mxu0
      %v2233 = vadd.f32 0.0, %v2232
      %v2234 = vpop.f32.mrf.mxu0
      %2235 = vmatprep.mubr.bf16.mxu0 0
      %2236 = vmatmul.mubr.bf16.gmra.mxu0 %v2108
      %v2237 = vpop.f32.mrf.mxu0
      %v2238 = vadd.f32 0.0, %v2237
      %v2239 = vpop.f32.mrf.mxu0
      %v2240 = vpop.f32.mrf.mxu0
      %v2241 = vadd.f32 0.0, %v2240
      %v2242 = vpop.f32.mrf.mxu0
      %2243 = vmatprep.mubr.bf16.mxu0 0
      %2244 = vmatmul.mubr.bf16.gmra.mxu0 %v2109
      %v2245 = vpop.f32.mrf.mxu0
      %v2246 = vadd.f32 0.0, %v2245
      %v2247 = vpop.f32.mrf.mxu0
      %v2248 = vpop.f32.mrf.mxu0
      %v2249 = vadd.f32 0.0, %v2248
      %v2250 = vpop.f32.mrf.mxu0
      %2251 = vmatprep.mubr.bf16.mxu0 0
      %2252 = vmatmul.mubr.bf16.gmra.mxu0 %v2110
      %v2253 = vpop.f32.mrf.mxu0
      %v2254 = vadd.f32 0.0, %v2253
      %v2255 = vpop.f32.mrf.mxu0
      %v2256 = vpop.f32.mrf.mxu0
      %v2257 = vadd.f32 0.0, %v2256
      %v2258 = vpop.f32.mrf.mxu0
      %2259 = vmatprep.mubr.bf16.mxu0 0
      %2260 = vmatmul.mubr.bf16.gmra.mxu0 %v2111
      %v2261 = vpop.f32.mrf.mxu0
      %v2262 = vadd.f32 0.0, %v2261
      %v2263 = vpop.f32.mrf.mxu0
      %v2264 = vpop.f32.mrf.mxu0
      %v2265 = vadd.f32 0.0, %v2264
      %v2266 = vpop.f32.mrf.mxu0
      %2267 = vmatprep.mubr.bf16.mxu0 0
      %2268 = vmatmul.mubr.bf16.gmra.mxu0 %v2112
      %v2269 = vpop.f32.mrf.mxu0
      %v2270 = vadd.f32 0.0, %v2269
      %v2271 = vpop.f32.mrf.mxu0
      %v2272 = vpop.f32.mrf.mxu0
      %v2273 = vadd.f32 0.0, %v2272
      %v2274 = vpop.f32.mrf.mxu0
      %2275 = vmatprep.mubr.bf16.mxu0 0
      %2276 = vmatmul.mubr.bf16.gmra.mxu0 %v2113
      %v2277 = vpop.f32.mrf.mxu0
      %v2278 = vadd.f32 0.0, %v2277
      %v2279 = vpop.f32.mrf.mxu0
      %v2280 = vpop.f32.mrf.mxu0
      %v2281 = vadd.f32 0.0, %v2280
      %v2282 = vpop.f32.mrf.mxu0
      %2283 = vmatprep.mubr.bf16.mxu0 0
      %2284 = vmatmul.mubr.bf16.gmra.mxu0 %v2114
      %v2285 = vpop.f32.mrf.mxu0
      %v2286 = vadd.f32 0.0, %v2285
      %v2287 = vpop.f32.mrf.mxu0
      %v2288 = vpop.f32.mrf.mxu0
      %v2289 = vadd.f32 0.0, %v2288
      %v2290 = vpop.f32.mrf.mxu0
      %2291 = vmatprep.mubr.bf16.mxu0 0
      %2292 = vmatmul.mubr.bf16.gmra.mxu0 %v2115
      %v2293 = vpop.f32.mrf.mxu0
      %v2294 = vadd.f32 0.0, %v2293
      %v2295 = vpop.f32.mrf.mxu0
      %v2296 = vpop.f32.mrf.mxu0
      %v2297 = vadd.f32 0.0, %v2296
      %v2298 = vpop.f32.mrf.mxu0
      %2299 = vmatprep.mubr.bf16.mxu0 0
      %2300 = vmatmul.mubr.bf16.gmra.mxu0 %v2116
      %v2301 = vpop.f32.mrf.mxu0
      %v2302 = vadd.f32 0.0, %v2301
      %v2303 = vpop.f32.mrf.mxu0
      %v2304 = vpop.f32.mrf.mxu0
      %v2305 = vadd.f32 0.0, %v2304
      %v2306 = vpop.f32.mrf.mxu0
      %2307 = vmatprep.mubr.bf16.mxu0 0
      %2308 = vmatmul.mubr.bf16.gmra.mxu0 %v2117
      %v2309 = vpop.f32.mrf.mxu0
      %v2310 = vadd.f32 0.0, %v2309
      %v2311 = vpop.f32.mrf.mxu0
      %v2312 = vpop.f32.mrf.mxu0
      %v2313 = vadd.f32 0.0, %v2312
      %v2314 = vpop.f32.mrf.mxu0
      %2315 = vmatprep.mubr.bf16.mxu0 0
      %2316 = vmatmul.mubr.bf16.gmra.mxu0 %v2118
      %v2317 = vpop.f32.mrf.mxu0
      %v2318 = vadd.f32 0.0, %v2317
      %v2319 = vpop.f32.mrf.mxu0
      %v2320 = vpop.f32.mrf.mxu0
      %v2321 = vadd.f32 0.0, %v2320
      %v2322 = vpop.f32.mrf.mxu0
      %2323 = vmatprep.mubr.bf16.mxu0 0
      %2324 = vmatmul.mubr.bf16.gmra.mxu0 %v2119
      %v2325 = vpop.f32.mrf.mxu0
      %v2326 = vadd.f32 0.0, %v2325
      %v2327 = vpop.f32.mrf.mxu0
      %v2328 = vpop.f32.mrf.mxu0
      %v2329 = vadd.f32 0.0, %v2328
      %v2330 = vpop.f32.mrf.mxu0
      %2331 = vmatprep.mubr.bf16.mxu0 0
      %2332 = vmatmul.mubr.bf16.gmra.mxu0 %v2120
      %v2333 = vpop.f32.mrf.mxu0
      %v2334 = vadd.f32 0.0, %v2333
      %v2335 = vpop.f32.mrf.mxu0
      %v2336 = vpop.f32.mrf.mxu0
      %v2337 = vadd.f32 0.0, %v2336
      %v2338 = vpop.f32.mrf.mxu0
      %2339 = vmatprep.mubr.bf16.mxu0 0
      %2340 = vmatmul.mubr.bf16.gmra.mxu0 %v2121
      %v2341 = vpop.f32.mrf.mxu0
      %v2342 = vadd.f32 0.0, %v2341
      %v2343 = vpop.f32.mrf.mxu0
      %v2344 = vpop.f32.mrf.mxu0
      %v2345 = vadd.f32 0.0, %v2344
      %v2346 = vpop.f32.mrf.mxu0
      %2347 = vdwg.mxu0
      %v2348 = vld [vmem:[#allocation3] sm:$0xff]
      %v2349 = vld [vmem:[#allocation3 + $0x8] sm:$0xff]
      %v2350 = vld [vmem:[#allocation3 + $0x10] sm:$0xff]
      %v2351 = vld [vmem:[#allocation3 + $0x18] sm:$0xff]
      %v2352 = vld [vmem:[#allocation3 + $0x20] sm:$0xff]
      %v2353 = vld [vmem:[#allocation3 + $0x28] sm:$0xff]
      %v2354 = vld [vmem:[#allocation3 + $0x30] sm:$0xff]
      %v2355 = vld [vmem:[#allocation3 + $0x38] sm:$0xff]
      %v2356 = vld [vmem:[#allocation3 + $0x40] sm:$0xff]
      %v2357 = vld [vmem:[#allocation3 + $0x48] sm:$0xff]
      %v2358 = vld [vmem:[#allocation3 + $0x50] sm:$0xff]
      %v2359 = vld [vmem:[#allocation3 + $0x58] sm:$0xff]
      %v2360 = vld [vmem:[#allocation3 + $0x60] sm:$0xff]
      %v2361 = vld [vmem:[#allocation3 + $0x68] sm:$0xff]
      %v2362 = vld [vmem:[#allocation3 + $0x70] sm:$0xff]
      %v2363 = vld [vmem:[#allocation3 + $0x78] sm:$0xff]
      %v2364 = vld [vmem:[#allocation3 + $0x80] sm:$0xff]
      %v2365 = vld [vmem:[#allocation3 + $0x88] sm:$0xff]
      %v2366 = vld [vmem:[#allocation3 + $0x90] sm:$0xff]
      %v2367 = vld [vmem:[#allocation3 + $0x98] sm:$0xff]
      %v2368 = vld [vmem:[#allocation3 + $0xa0] sm:$0xff]
      %v2369 = vld [vmem:[#allocation3 + $0xa8] sm:$0xff]
      %v2370 = vld [vmem:[#allocation3 + $0xb0] sm:$0xff]
      %v2371 = vld [vmem:[#allocation3 + $0xb8] sm:$0xff]
      %v2372 = vld [vmem:[#allocation3 + $0xc0] sm:$0xff]
      %v2373 = vld [vmem:[#allocation3 + $0xc8] sm:$0xff]
      %v2374 = vld [vmem:[#allocation3 + $0xd0] sm:$0xff]
      %v2375 = vld [vmem:[#allocation3 + $0xd8] sm:$0xff]
      %v2376 = vld [vmem:[#allocation3 + $0xe0] sm:$0xff]
      %v2377 = vld [vmem:[#allocation3 + $0xe8] sm:$0xff]
      %v2378 = vld [vmem:[#allocation3 + $0xf0] sm:$0xff]
      %v2379 = vld [vmem:[#allocation3 + $0xf8] sm:$0xff]
      %v2380 = vadd.f32 %v2348, %v2222
      %v2381 = vadd.f32 %v2349, %v2225
      %v2382 = vadd.f32 %v2350, %v2230
      %v2383 = vadd.f32 %v2351, %v2233
      %v2384 = vadd.f32 %v2352, %v2238
      %v2385 = vadd.f32 %v2353, %v2241
      %v2386 = vadd.f32 %v2354, %v2246
      %v2387 = vadd.f32 %v2355, %v2249
      %v2388 = vadd.f32 %v2356, %v2254
      %v2389 = vadd.f32 %v2357, %v2257
      %v2390 = vadd.f32 %v2358, %v2262
      %v2391 = vadd.f32 %v2359, %v2265
      %v2392 = vadd.f32 %v2360, %v2270
      %v2393 = vadd.f32 %v2361, %v2273
      %v2394 = vadd.f32 %v2362, %v2278
      %v2395 = vadd.f32 %v2363, %v2281
      %v2396 = vadd.f32 %v2364, %v2286
      %v2397 = vadd.f32 %v2365, %v2289
      %v2398 = vadd.f32 %v2366, %v2294
      %v2399 = vadd.f32 %v2367, %v2297
      %v2400 = vadd.f32 %v2368, %v2302
      %v2401 = vadd.f32 %v2369, %v2305
      %v2402 = vadd.f32 %v2370, %v2310
      %v2403 = vadd.f32 %v2371, %v2313
      %v2404 = vadd.f32 %v2372, %v2318
      %v2405 = vadd.f32 %v2373, %v2321
      %v2406 = vadd.f32 %v2374, %v2326
      %v2407 = vadd.f32 %v2375, %v2329
      %v2408 = vadd.f32 %v2376, %v2334
      %v2409 = vadd.f32 %v2377, %v2337
      %v2410 = vadd.f32 %v2378, %v2342
      %v2411 = vadd.f32 %v2379, %v2345
      %2412 = vst [vmem:[#allocation3] sm:$0xff] %v2380
      %2413 = vst [vmem:[#allocation3 + $0x8] sm:$0xff] %v2381
      %2414 = vst [vmem:[#allocation3 + $0x10] sm:$0xff] %v2382
      %2415 = vst [vmem:[#allocation3 + $0x18] sm:$0xff] %v2383
      %2416 = vst [vmem:[#allocation3 + $0x20] sm:$0xff] %v2384
      %2417 = vst [vmem:[#allocation3 + $0x28] sm:$0xff] %v2385
      %2418 = vst [vmem:[#allocation3 + $0x30] sm:$0xff] %v2386
      %2419 = vst [vmem:[#allocation3 + $0x38] sm:$0xff] %v2387
      %2420 = vst [vmem:[#allocation3 + $0x40] sm:$0xff] %v2388
      %2421 = vst [vmem:[#allocation3 + $0x48] sm:$0xff] %v2389
      %2422 = vst [vmem:[#allocation3 + $0x50] sm:$0xff] %v2390
      %2423 = vst [vmem:[#allocation3 + $0x58] sm:$0xff] %v2391
      %2424 = vst [vmem:[#allocation3 + $0x60] sm:$0xff] %v2392
      %2425 = vst [vmem:[#allocation3 + $0x68] sm:$0xff] %v2393
      %2426 = vst [vmem:[#allocation3 + $0x70] sm:$0xff] %v2394
      %2427 = vst [vmem:[#allocation3 + $0x78] sm:$0xff] %v2395
      %2428 = vst [vmem:[#allocation3 + $0x80] sm:$0xff] %v2396
      %2429 = vst [vmem:[#allocation3 + $0x88] sm:$0xff] %v2397
      %2430 = vst [vmem:[#allocation3 + $0x90] sm:$0xff] %v2398
      %2431 = vst [vmem:[#allocation3 + $0x98] sm:$0xff] %v2399
      %2432 = vst [vmem:[#allocation3 + $0xa0] sm:$0xff] %v2400
      %2433 = vst [vmem:[#allocation3 + $0xa8] sm:$0xff] %v2401
      %2434 = vst [vmem:[#allocation3 + $0xb0] sm:$0xff] %v2402
      %2435 = vst [vmem:[#allocation3 + $0xb8] sm:$0xff] %v2403
      %2436 = vst [vmem:[#allocation3 + $0xc0] sm:$0xff] %v2404
      %2437 = vst [vmem:[#allocation3 + $0xc8] sm:$0xff] %v2405
      %2438 = vst [vmem:[#allocation3 + $0xd0] sm:$0xff] %v2406
      %2439 = vst [vmem:[#allocation3 + $0xd8] sm:$0xff] %v2407
      %2440 = vst [vmem:[#allocation3 + $0xe0] sm:$0xff] %v2408
      %2441 = vst [vmem:[#allocation3 + $0xe8] sm:$0xff] %v2409
      %2442 = vst [vmem:[#allocation3 + $0xf0] sm:$0xff] %v2410
      %2443 = vst [vmem:[#allocation3 + $0xf8] sm:$0xff] %v2411
      %v2444 = vld [vmem:[%s1703 + $0x2] sm:$0xff]
      %v2445 = vld [vmem:[%s1703 + $0xa] sm:$0xff]
      %v2446 = vld [vmem:[%s1703 + $0x1a] sm:$0xff]
      %v2447 = vld [vmem:[%s1703 + $0x22] sm:$0xff]
      %v2448 = vld [vmem:[%s1703 + $0x32] sm:$0xff]
      %v2449 = vld [vmem:[%s1703 + $0x3a] sm:$0xff]
      %v2450 = vld [vmem:[%s1703 + $0x4a] sm:$0xff]
      %v2451 = vld [vmem:[%s1703 + $0x52] sm:$0xff]
      %v2452 = vld [vmem:[%s1703 + $0x62] sm:$0xff]
      %v2453 = vld [vmem:[%s1703 + $0x6a] sm:$0xff]
      %v2454 = vld [vmem:[%s1703 + $0x7a] sm:$0xff]
      %v2455 = vld [vmem:[%s1703 + $0x82] sm:$0xff]
      %v2456 = vld [vmem:[%s1703 + $0x92] sm:$0xff]
      %v2457 = vld [vmem:[%s1703 + $0x9a] sm:$0xff]
      %v2458 = vld [vmem:[%s1703 + $0xaa] sm:$0xff]
      %v2459 = vld [vmem:[%s1703 + $0xb2] sm:$0xff]
      %v2460 = vld [vmem:[%s1703 + $0xc2] sm:$0xff]
      %v2461 = vld [vmem:[%s1703 + $0xca] sm:$0xff]
      %v2462 = vld [vmem:[%s1703 + $0xda] sm:$0xff]
      %v2463 = vld [vmem:[%s1703 + $0xe2] sm:$0xff]
      %v2464 = vld [vmem:[%s1703 + $0xf2] sm:$0xff]
      %v2465 = vld [vmem:[%s1703 + $0xfa] sm:$0xff]
      %v2466 = vld [vmem:[%s1703 + $0x10a] sm:$0xff]
      %v2467 = vld [vmem:[%s1703 + $0x112] sm:$0xff]
      %v2468 = vld [vmem:[%s1703 + $0x122] sm:$0xff]
      %v2469 = vld [vmem:[%s1703 + $0x12a] sm:$0xff]
      %v2470 = vld [vmem:[%s1703 + $0x13a] sm:$0xff]
      %v2471 = vld [vmem:[%s1703 + $0x142] sm:$0xff]
      %v2472 = vld [vmem:[%s1703 + $0x152] sm:$0xff]
      %v2473 = vld [vmem:[%s1703 + $0x15a] sm:$0xff]
      %v2474 = vld [vmem:[%s1703 + $0x16a] sm:$0xff]
      %v2475 = vld [vmem:[%s1703 + $0x172] sm:$0xff]
      %v2476 = vpack.c.bf16 %v2445, %v2444
      %v2477 = vpack.c.bf16 %v2447, %v2446
      %v2478 = vpack.c.bf16 %v2449, %v2448
      %v2479 = vpack.c.bf16 %v2451, %v2450
      %v2480 = vpack.c.bf16 %v2453, %v2452
      %v2481 = vpack.c.bf16 %v2455, %v2454
      %v2482 = vpack.c.bf16 %v2457, %v2456
      %v2483 = vpack.c.bf16 %v2459, %v2458
      %v2484 = vpack.c.bf16 %v2461, %v2460
      %v2485 = vpack.c.bf16 %v2463, %v2462
      %v2486 = vpack.c.bf16 %v2465, %v2464
      %v2487 = vpack.c.bf16 %v2467, %v2466
      %v2488 = vpack.c.bf16 %v2469, %v2468
      %v2489 = vpack.c.bf16 %v2471, %v2470
      %v2490 = vpack.c.bf16 %v2473, %v2472
      %v2491 = vpack.c.bf16 %v2475, %v2474
      %s2492 = scalar_lea.vmem %s265, 320
      %v2493 = vld [vmem:[%s2492] sm:$0xf]
      %v2494 = vld [vmem:[%s2492 + $0x4] sm:$0xf]
      %v2495 = vld [vmem:[%s2492 + $0x8] sm:$0xf]
      %v2496 = vld [vmem:[%s2492 + $0xc] sm:$0xf]
      %v2497 = vld [vmem:[%s2492 + $0x10] sm:$0xf]
      %v2498 = vld [vmem:[%s2492 + $0x14] sm:$0xf]
      %v2499 = vld [vmem:[%s2492 + $0x18] sm:$0xf]
      %v2500 = vld [vmem:[%s2492 + $0x1c] sm:$0xf]
      %v2501 = vld [vmem:[%s2492 + $0x20] sm:$0xf]
      %v2502 = vld [vmem:[%s2492 + $0x24] sm:$0xf]
      %v2503 = vld [vmem:[%s2492 + $0x28] sm:$0xf]
      %v2504 = vld [vmem:[%s2492 + $0x2c] sm:$0xf]
      %v2505 = vld [vmem:[%s2492 + $0x30] sm:$0xf]
      %v2506 = vld [vmem:[%s2492 + $0x34] sm:$0xf]
      %v2507 = vld [vmem:[%s2492 + $0x38] sm:$0xf]
      %v2508 = vld [vmem:[%s2492 + $0x3c] sm:$0xf]
      %v2525 = vunpack.c.l.b16 %v2493
      %v2526 = vunpack.c.l.b16 %v2494
      %v2527 = vunpack.c.l.b16 %v2495
      %v2528 = vunpack.c.l.b16 %v2496
      %v2529 = vunpack.c.l.b16 %v2497
      %v2530 = vunpack.c.l.b16 %v2498
      %v2531 = vunpack.c.l.b16 %v2499
      %v2532 = vunpack.c.l.b16 %v2500
      %v2533 = vunpack.c.l.b16 %v2501
      %v2534 = vunpack.c.l.b16 %v2502
      %v2535 = vunpack.c.l.b16 %v2503
      %v2536 = vunpack.c.l.b16 %v2504
      %v2537 = vunpack.c.l.b16 %v2505
      %v2538 = vunpack.c.l.b16 %v2506
      %v2539 = vunpack.c.l.b16 %v2507
      %v2540 = vunpack.c.l.b16 %v2508
      %v2541 = vpack.c.b16 %v2526, %v2525
      %v2542 = vpack.c.b16 %v2528, %v2527
      %v2543 = vpack.c.b16 %v2530, %v2529
      %v2544 = vpack.c.b16 %v2532, %v2531
      %v2545 = vpack.c.b16 %v2534, %v2533
      %v2546 = vpack.c.b16 %v2536, %v2535
      %v2547 = vpack.c.b16 %v2538, %v2537
      %v2548 = vpack.c.b16 %v2540, %v2539
      %2557 = vmatprep.subr.bf16.mxu0 0
      %2558 = vmatpush1.bf16.msra.mxu0 %v2548
      %2559 = vmatprep.subr.bf16.mxu0 0
      %2560 = vmatpush1.bf16.msra.mxu0 %v2547
      %2561 = vmatprep.subr.bf16.mxu0 0
      %2562 = vmatpush1.bf16.msra.mxu0 %v2546
      %2563 = vmatprep.subr.bf16.mxu0 0
      %2564 = vmatpush1.bf16.msra.mxu0 %v2545
      %2565 = vmatprep.subr.bf16.mxu0 0
      %2566 = vmatpush1.bf16.msra.mxu0 %v2544
      %2567 = vmatprep.subr.bf16.mxu0 0
      %2568 = vmatpush1.bf16.msra.mxu0 %v2543
      %2569 = vmatprep.subr.bf16.mxu0 0
      %2570 = vmatpush1.bf16.msra.mxu0 %v2542
      %2571 = vmatprep.subr.bf16.mxu0 0
      %2572 = vmatpush1.bf16.msra.mxu0 %v2541
      %2573 = vmatprep.subr.bf16.mxu0 0
      %2574 = vmatpush2.bf16.msra.mxu0 0
      %2575 = vmatprep.subr.bf16.mxu0 0
      %2576 = vmatpush2.bf16.msra.mxu0 0
      %2577 = vmatprep.subr.bf16.mxu0 0
      %2578 = vmatpush2.bf16.msra.mxu0 0
      %2579 = vmatprep.subr.bf16.mxu0 0
      %2580 = vmatpush2.bf16.msra.mxu0 0
      %2581 = vmatprep.subr.bf16.mxu0 0
      %2582 = vmatpush2.bf16.msra.mxu0 0
      %2583 = vmatprep.subr.bf16.mxu0 0
      %2584 = vmatpush2.bf16.msra.mxu0 0
      %2585 = vmatprep.subr.bf16.mxu0 0
      %2586 = vmatpush2.bf16.msra.mxu0 0
      %2587 = vmatprep.subr.bf16.mxu0 0
      %2588 = vmatpush2.bf16.msra.mxu0 0
      %2589 = vmatprep.mubr.bf16.mxu0 0
      %2590 = vmatmul.mubr.bf16.gmra.mxu0 %v2476
      %v2591 = vpop.f32.mrf.mxu0
      %v2592 = vadd.f32 0.0, %v2591
      %v2593 = vpop.f32.mrf.mxu0
      %v2594 = vpop.f32.mrf.mxu0
      %v2595 = vadd.f32 0.0, %v2594
      %v2596 = vpop.f32.mrf.mxu0
      %2597 = vmatprep.mubr.bf16.mxu0 0
      %2598 = vmatmul.mubr.bf16.gmra.mxu0 %v2477
      %v2599 = vpop.f32.mrf.mxu0
      %v2600 = vadd.f32 0.0, %v2599
      %v2601 = vpop.f32.mrf.mxu0
      %v2602 = vpop.f32.mrf.mxu0
      %v2603 = vadd.f32 0.0, %v2602
      %v2604 = vpop.f32.mrf.mxu0
      %2605 = vmatprep.mubr.bf16.mxu0 0
      %2606 = vmatmul.mubr.bf16.gmra.mxu0 %v2478
      %v2607 = vpop.f32.mrf.mxu0
      %v2608 = vadd.f32 0.0, %v2607
      %v2609 = vpop.f32.mrf.mxu0
      %v2610 = vpop.f32.mrf.mxu0
      %v2611 = vadd.f32 0.0, %v2610
      %v2612 = vpop.f32.mrf.mxu0
      %2613 = vmatprep.mubr.bf16.mxu0 0
      %2614 = vmatmul.mubr.bf16.gmra.mxu0 %v2479
      %v2615 = vpop.f32.mrf.mxu0
      %v2616 = vadd.f32 0.0, %v2615
      %v2617 = vpop.f32.mrf.mxu0
      %v2618 = vpop.f32.mrf.mxu0
      %v2619 = vadd.f32 0.0, %v2618
      %v2620 = vpop.f32.mrf.mxu0
      %2621 = vmatprep.mubr.bf16.mxu0 0
      %2622 = vmatmul.mubr.bf16.gmra.mxu0 %v2480
      %v2623 = vpop.f32.mrf.mxu0
      %v2624 = vadd.f32 0.0, %v2623
      %v2625 = vpop.f32.mrf.mxu0
      %v2626 = vpop.f32.mrf.mxu0
      %v2627 = vadd.f32 0.0, %v2626
      %v2628 = vpop.f32.mrf.mxu0
      %2629 = vmatprep.mubr.bf16.mxu0 0
      %2630 = vmatmul.mubr.bf16.gmra.mxu0 %v2481
      %v2631 = vpop.f32.mrf.mxu0
      %v2632 = vadd.f32 0.0, %v2631
      %v2633 = vpop.f32.mrf.mxu0
      %v2634 = vpop.f32.mrf.mxu0
      %v2635 = vadd.f32 0.0, %v2634
      %v2636 = vpop.f32.mrf.mxu0
      %2637 = vmatprep.mubr.bf16.mxu0 0
      %2638 = vmatmul.mubr.bf16.gmra.mxu0 %v2482
      %v2639 = vpop.f32.mrf.mxu0
      %v2640 = vadd.f32 0.0, %v2639
      %v2641 = vpop.f32.mrf.mxu0
      %v2642 = vpop.f32.mrf.mxu0
      %v2643 = vadd.f32 0.0, %v2642
      %v2644 = vpop.f32.mrf.mxu0
      %2645 = vmatprep.mubr.bf16.mxu0 0
      %2646 = vmatmul.mubr.bf16.gmra.mxu0 %v2483
      %v2647 = vpop.f32.mrf.mxu0
      %v2648 = vadd.f32 0.0, %v2647
      %v2649 = vpop.f32.mrf.mxu0
      %v2650 = vpop.f32.mrf.mxu0
      %v2651 = vadd.f32 0.0, %v2650
      %v2652 = vpop.f32.mrf.mxu0
      %2653 = vmatprep.mubr.bf16.mxu0 0
      %2654 = vmatmul.mubr.bf16.gmra.mxu0 %v2484
      %v2655 = vpop.f32.mrf.mxu0
      %v2656 = vadd.f32 0.0, %v2655
      %v2657 = vpop.f32.mrf.mxu0
      %v2658 = vpop.f32.mrf.mxu0
      %v2659 = vadd.f32 0.0, %v2658
      %v2660 = vpop.f32.mrf.mxu0
      %2661 = vmatprep.mubr.bf16.mxu0 0
      %2662 = vmatmul.mubr.bf16.gmra.mxu0 %v2485
      %v2663 = vpop.f32.mrf.mxu0
      %v2664 = vadd.f32 0.0, %v2663
      %v2665 = vpop.f32.mrf.mxu0
      %v2666 = vpop.f32.mrf.mxu0
      %v2667 = vadd.f32 0.0, %v2666
      %v2668 = vpop.f32.mrf.mxu0
      %2669 = vmatprep.mubr.bf16.mxu0 0
      %2670 = vmatmul.mubr.bf16.gmra.mxu0 %v2486
      %v2671 = vpop.f32.mrf.mxu0
      %v2672 = vadd.f32 0.0, %v2671
      %v2673 = vpop.f32.mrf.mxu0
      %v2674 = vpop.f32.mrf.mxu0
      %v2675 = vadd.f32 0.0, %v2674
      %v2676 = vpop.f32.mrf.mxu0
      %2677 = vmatprep.mubr.bf16.mxu0 0
      %2678 = vmatmul.mubr.bf16.gmra.mxu0 %v2487
      %v2679 = vpop.f32.mrf.mxu0
      %v2680 = vadd.f32 0.0, %v2679
      %v2681 = vpop.f32.mrf.mxu0
      %v2682 = vpop.f32.mrf.mxu0
      %v2683 = vadd.f32 0.0, %v2682
      %v2684 = vpop.f32.mrf.mxu0
      %2685 = vmatprep.mubr.bf16.mxu0 0
      %2686 = vmatmul.mubr.bf16.gmra.mxu0 %v2488
      %v2687 = vpop.f32.mrf.mxu0
      %v2688 = vadd.f32 0.0, %v2687
      %v2689 = vpop.f32.mrf.mxu0
      %v2690 = vpop.f32.mrf.mxu0
      %v2691 = vadd.f32 0.0, %v2690
      %v2692 = vpop.f32.mrf.mxu0
      %2693 = vmatprep.mubr.bf16.mxu0 0
      %2694 = vmatmul.mubr.bf16.gmra.mxu0 %v2489
      %v2695 = vpop.f32.mrf.mxu0
      %v2696 = vadd.f32 0.0, %v2695
      %v2697 = vpop.f32.mrf.mxu0
      %v2698 = vpop.f32.mrf.mxu0
      %v2699 = vadd.f32 0.0, %v2698
      %v2700 = vpop.f32.mrf.mxu0
      %2701 = vmatprep.mubr.bf16.mxu0 0
      %2702 = vmatmul.mubr.bf16.gmra.mxu0 %v2490
      %v2703 = vpop.f32.mrf.mxu0
      %v2704 = vadd.f32 0.0, %v2703
      %v2705 = vpop.f32.mrf.mxu0
      %v2706 = vpop.f32.mrf.mxu0
      %v2707 = vadd.f32 0.0, %v2706
      %v2708 = vpop.f32.mrf.mxu0
      %2709 = vmatprep.mubr.bf16.mxu0 0
      %2710 = vmatmul.mubr.bf16.gmra.mxu0 %v2491
      %v2711 = vpop.f32.mrf.mxu0
      %v2712 = vadd.f32 0.0, %v2711
      %v2713 = vpop.f32.mrf.mxu0
      %v2714 = vpop.f32.mrf.mxu0
      %v2715 = vadd.f32 0.0, %v2714
      %v2716 = vpop.f32.mrf.mxu0
      %2717 = vdwg.mxu0
      %v2718 = vld [vmem:[#allocation3] sm:$0xff]
      %v2719 = vld [vmem:[#allocation3 + $0x8] sm:$0xff]
      %v2720 = vld [vmem:[#allocation3 + $0x10] sm:$0xff]
      %v2721 = vld [vmem:[#allocation3 + $0x18] sm:$0xff]
      %v2722 = vld [vmem:[#allocation3 + $0x20] sm:$0xff]
      %v2723 = vld [vmem:[#allocation3 + $0x28] sm:$0xff]
      %v2724 = vld [vmem:[#allocation3 + $0x30] sm:$0xff]
      %v2725 = vld [vmem:[#allocation3 + $0x38] sm:$0xff]
      %v2726 = vld [vmem:[#allocation3 + $0x40] sm:$0xff]
      %v2727 = vld [vmem:[#allocation3 + $0x48] sm:$0xff]
      %v2728 = vld [vmem:[#allocation3 + $0x50] sm:$0xff]
      %v2729 = vld [vmem:[#allocation3 + $0x58] sm:$0xff]
      %v2730 = vld [vmem:[#allocation3 + $0x60] sm:$0xff]
      %v2731 = vld [vmem:[#allocation3 + $0x68] sm:$0xff]
      %v2732 = vld [vmem:[#allocation3 + $0x70] sm:$0xff]
      %v2733 = vld [vmem:[#allocation3 + $0x78] sm:$0xff]
      %v2734 = vld [vmem:[#allocation3 + $0x80] sm:$0xff]
      %v2735 = vld [vmem:[#allocation3 + $0x88] sm:$0xff]
      %v2736 = vld [vmem:[#allocation3 + $0x90] sm:$0xff]
      %v2737 = vld [vmem:[#allocation3 + $0x98] sm:$0xff]
      %v2738 = vld [vmem:[#allocation3 + $0xa0] sm:$0xff]
      %v2739 = vld [vmem:[#allocation3 + $0xa8] sm:$0xff]
      %v2740 = vld [vmem:[#allocation3 + $0xb0] sm:$0xff]
      %v2741 = vld [vmem:[#allocation3 + $0xb8] sm:$0xff]
      %v2742 = vld [vmem:[#allocation3 + $0xc0] sm:$0xff]
      %v2743 = vld [vmem:[#allocation3 + $0xc8] sm:$0xff]
      %v2744 = vld [vmem:[#allocation3 + $0xd0] sm:$0xff]
      %v2745 = vld [vmem:[#allocation3 + $0xd8] sm:$0xff]
      %v2746 = vld [vmem:[#allocation3 + $0xe0] sm:$0xff]
      %v2747 = vld [vmem:[#allocation3 + $0xe8] sm:$0xff]
      %v2748 = vld [vmem:[#allocation3 + $0xf0] sm:$0xff]
      %v2749 = vld [vmem:[#allocation3 + $0xf8] sm:$0xff]
      %v2750 = vadd.f32 %v2718, %v2592
      %v2751 = vadd.f32 %v2719, %v2595
      %v2752 = vadd.f32 %v2720, %v2600
      %v2753 = vadd.f32 %v2721, %v2603
      %v2754 = vadd.f32 %v2722, %v2608
      %v2755 = vadd.f32 %v2723, %v2611
      %v2756 = vadd.f32 %v2724, %v2616
      %v2757 = vadd.f32 %v2725, %v2619
      %v2758 = vadd.f32 %v2726, %v2624
      %v2759 = vadd.f32 %v2727, %v2627
      %v2760 = vadd.f32 %v2728, %v2632
      %v2761 = vadd.f32 %v2729, %v2635
      %v2762 = vadd.f32 %v2730, %v2640
      %v2763 = vadd.f32 %v2731, %v2643
      %v2764 = vadd.f32 %v2732, %v2648
      %v2765 = vadd.f32 %v2733, %v2651
      %v2766 = vadd.f32 %v2734, %v2656
      %v2767 = vadd.f32 %v2735, %v2659
      %v2768 = vadd.f32 %v2736, %v2664
      %v2769 = vadd.f32 %v2737, %v2667
      %v2770 = vadd.f32 %v2738, %v2672
      %v2771 = vadd.f32 %v2739, %v2675
      %v2772 = vadd.f32 %v2740, %v2680
      %v2773 = vadd.f32 %v2741, %v2683
      %v2774 = vadd.f32 %v2742, %v2688
      %v2775 = vadd.f32 %v2743, %v2691
      %v2776 = vadd.f32 %v2744, %v2696
      %v2777 = vadd.f32 %v2745, %v2699
      %v2778 = vadd.f32 %v2746, %v2704
      %v2779 = vadd.f32 %v2747, %v2707
      %v2780 = vadd.f32 %v2748, %v2712
      %v2781 = vadd.f32 %v2749, %v2715
      %2782 = vst [vmem:[#allocation3] sm:$0xff] %v2750
      %2783 = vst [vmem:[#allocation3 + $0x8] sm:$0xff] %v2751
      %2784 = vst [vmem:[#allocation3 + $0x10] sm:$0xff] %v2752
      %2785 = vst [vmem:[#allocation3 + $0x18] sm:$0xff] %v2753
      %2786 = vst [vmem:[#allocation3 + $0x20] sm:$0xff] %v2754
      %2787 = vst [vmem:[#allocation3 + $0x28] sm:$0xff] %v2755
      %2788 = vst [vmem:[#allocation3 + $0x30] sm:$0xff] %v2756
      %2789 = vst [vmem:[#allocation3 + $0x38] sm:$0xff] %v2757
      %2790 = vst [vmem:[#allocation3 + $0x40] sm:$0xff] %v2758
      %2791 = vst [vmem:[#allocation3 + $0x48] sm:$0xff] %v2759
      %2792 = vst [vmem:[#allocation3 + $0x50] sm:$0xff] %v2760
      %2793 = vst [vmem:[#allocation3 + $0x58] sm:$0xff] %v2761
      %2794 = vst [vmem:[#allocation3 + $0x60] sm:$0xff] %v2762
      %2795 = vst [vmem:[#allocation3 + $0x68] sm:$0xff] %v2763
      %2796 = vst [vmem:[#allocation3 + $0x70] sm:$0xff] %v2764
      %2797 = vst [vmem:[#allocation3 + $0x78] sm:$0xff] %v2765
      %2798 = vst [vmem:[#allocation3 + $0x80] sm:$0xff] %v2766
      %2799 = vst [vmem:[#allocation3 + $0x88] sm:$0xff] %v2767
      %2800 = vst [vmem:[#allocation3 + $0x90] sm:$0xff] %v2768
      %2801 = vst [vmem:[#allocation3 + $0x98] sm:$0xff] %v2769
      %2802 = vst [vmem:[#allocation3 + $0xa0] sm:$0xff] %v2770
      %2803 = vst [vmem:[#allocation3 + $0xa8] sm:$0xff] %v2771
      %2804 = vst [vmem:[#allocation3 + $0xb0] sm:$0xff] %v2772
      %2805 = vst [vmem:[#allocation3 + $0xb8] sm:$0xff] %v2773
      %2806 = vst [vmem:[#allocation3 + $0xc0] sm:$0xff] %v2774
      %2807 = vst [vmem:[#allocation3 + $0xc8] sm:$0xff] %v2775
      %2808 = vst [vmem:[#allocation3 + $0xd0] sm:$0xff] %v2776
      %2809 = vst [vmem:[#allocation3 + $0xd8] sm:$0xff] %v2777
      %2810 = vst [vmem:[#allocation3 + $0xe0] sm:$0xff] %v2778
      %2811 = vst [vmem:[#allocation3 + $0xe8] sm:$0xff] %v2779
      %2812 = vst [vmem:[#allocation3 + $0xf0] sm:$0xff] %v2780
      %2813 = vst [vmem:[#allocation3 + $0xf8] sm:$0xff] %v2781
      %s2814 = scalar_lea.vmem [#allocation2], 48
      %v2815 = vld [vmem:[%s2814] sm:$0xff]
      %v2816 = vld [vmem:[%s2814 + $0x8] sm:$0xff]
      %v2817 = vld [vmem:[%s2814 + $0x18] sm:$0xff]
      %v2818 = vld [vmem:[%s2814 + $0x20] sm:$0xff]
      %v2819 = vld [vmem:[%s2814 + $0x30] sm:$0xff]
      %v2820 = vld [vmem:[%s2814 + $0x38] sm:$0xff]
      %v2821 = vld [vmem:[%s2814 + $0x48] sm:$0xff]
      %v2822 = vld [vmem:[%s2814 + $0x50] sm:$0xff]
      %v2823 = vld [vmem:[%s2814 + $0x60] sm:$0xff]
      %v2824 = vld [vmem:[%s2814 + $0x68] sm:$0xff]
      %v2825 = vld [vmem:[%s2814 + $0x78] sm:$0xff]
      %v2826 = vld [vmem:[%s2814 + $0x80] sm:$0xff]
      %v2827 = vld [vmem:[%s2814 + $0x90] sm:$0xff]
      %v2828 = vld [vmem:[%s2814 + $0x98] sm:$0xff]
      %v2829 = vld [vmem:[%s2814 + $0xa8] sm:$0xff]
      %v2830 = vld [vmem:[%s2814 + $0xb0] sm:$0xff]
      %v2831 = vld [vmem:[%s2814 + $0xc0] sm:$0xff]
      %v2832 = vld [vmem:[%s2814 + $0xc8] sm:$0xff]
      %v2833 = vld [vmem:[%s2814 + $0xd8] sm:$0xff]
      %v2834 = vld [vmem:[%s2814 + $0xe0] sm:$0xff]
      %v2835 = vld [vmem:[%s2814 + $0xf0] sm:$0xff]
      %v2836 = vld [vmem:[%s2814 + $0xf8] sm:$0xff]
      %v2837 = vld [vmem:[%s2814 + $0x108] sm:$0xff]
      %v2838 = vld [vmem:[%s2814 + $0x110] sm:$0xff]
      %v2839 = vld [vmem:[%s2814 + $0x120] sm:$0xff]
      %v2840 = vld [vmem:[%s2814 + $0x128] sm:$0xff]
      %v2841 = vld [vmem:[%s2814 + $0x138] sm:$0xff]
      %v2842 = vld [vmem:[%s2814 + $0x140] sm:$0xff]
      %v2843 = vld [vmem:[%s2814 + $0x150] sm:$0xff]
      %v2844 = vld [vmem:[%s2814 + $0x158] sm:$0xff]
      %v2845 = vld [vmem:[%s2814 + $0x168] sm:$0xff]
      %v2846 = vld [vmem:[%s2814 + $0x170] sm:$0xff]
      %v2847 = vpack.c.bf16 %v2816, %v2815
      %v2848 = vpack.c.bf16 %v2818, %v2817
      %v2849 = vpack.c.bf16 %v2820, %v2819
      %v2850 = vpack.c.bf16 %v2822, %v2821
      %v2851 = vpack.c.bf16 %v2824, %v2823
      %v2852 = vpack.c.bf16 %v2826, %v2825
      %v2853 = vpack.c.bf16 %v2828, %v2827
      %v2854 = vpack.c.bf16 %v2830, %v2829
      %v2855 = vpack.c.bf16 %v2832, %v2831
      %v2856 = vpack.c.bf16 %v2834, %v2833
      %v2857 = vpack.c.bf16 %v2836, %v2835
      %v2858 = vpack.c.bf16 %v2838, %v2837
      %v2859 = vpack.c.bf16 %v2840, %v2839
      %v2860 = vpack.c.bf16 %v2842, %v2841
      %v2861 = vpack.c.bf16 %v2844, %v2843
      %v2862 = vpack.c.bf16 %v2846, %v2845
      %s2863 = scalar_lea.vmem %s265, 384
      %v2864 = vld [vmem:[%s2863] sm:$0xf]
      %v2865 = vld [vmem:[%s2863 + $0x4] sm:$0xf]
      %v2866 = vld [vmem:[%s2863 + $0x8] sm:$0xf]
      %v2867 = vld [vmem:[%s2863 + $0xc] sm:$0xf]
      %v2868 = vld [vmem:[%s2863 + $0x10] sm:$0xf]
      %v2869 = vld [vmem:[%s2863 + $0x14] sm:$0xf]
      %v2870 = vld [vmem:[%s2863 + $0x18] sm:$0xf]
      %v2871 = vld [vmem:[%s2863 + $0x1c] sm:$0xf]
      %v2872 = vld [vmem:[%s2863 + $0x20] sm:$0xf]
      %v2873 = vld [vmem:[%s2863 + $0x24] sm:$0xf]
      %v2874 = vld [vmem:[%s2863 + $0x28] sm:$0xf]
      %v2875 = vld [vmem:[%s2863 + $0x2c] sm:$0xf]
      %v2876 = vld [vmem:[%s2863 + $0x30] sm:$0xf]
      %v2877 = vld [vmem:[%s2863 + $0x34] sm:$0xf]
      %v2878 = vld [vmem:[%s2863 + $0x38] sm:$0xf]
      %v2879 = vld [vmem:[%s2863 + $0x3c] sm:$0xf]
      %v2896 = vunpack.c.l.b16 %v2864
      %v2897 = vunpack.c.l.b16 %v2865
      %v2898 = vunpack.c.l.b16 %v2866
      %v2899 = vunpack.c.l.b16 %v2867
      %v2900 = vunpack.c.l.b16 %v2868
      %v2901 = vunpack.c.l.b16 %v2869
      %v2902 = vunpack.c.l.b16 %v2870
      %v2903 = vunpack.c.l.b16 %v2871
      %v2904 = vunpack.c.l.b16 %v2872
      %v2905 = vunpack.c.l.b16 %v2873
      %v2906 = vunpack.c.l.b16 %v2874
      %v2907 = vunpack.c.l.b16 %v2875
      %v2908 = vunpack.c.l.b16 %v2876
      %v2909 = vunpack.c.l.b16 %v2877
      %v2910 = vunpack.c.l.b16 %v2878
      %v2911 = vunpack.c.l.b16 %v2879
      %v2912 = vpack.c.b16 %v2897, %v2896
      %v2913 = vpack.c.b16 %v2899, %v2898
      %v2914 = vpack.c.b16 %v2901, %v2900
      %v2915 = vpack.c.b16 %v2903, %v2902
      %v2916 = vpack.c.b16 %v2905, %v2904
      %v2917 = vpack.c.b16 %v2907, %v2906
      %v2918 = vpack.c.b16 %v2909, %v2908
      %v2919 = vpack.c.b16 %v2911, %v2910
      %2928 = vmatprep.subr.bf16.mxu0 0
      %2929 = vmatpush1.bf16.msra.mxu0 %v2919
      %2930 = vmatprep.subr.bf16.mxu0 0
      %2931 = vmatpush1.bf16.msra.mxu0 %v2918
      %2932 = vmatprep.subr.bf16.mxu0 0
      %2933 = vmatpush1.bf16.msra.mxu0 %v2917
      %2934 = vmatprep.subr.bf16.mxu0 0
      %2935 = vmatpush1.bf16.msra.mxu0 %v2916
      %2936 = vmatprep.subr.bf16.mxu0 0
      %2937 = vmatpush1.bf16.msra.mxu0 %v2915
      %2938 = vmatprep.subr.bf16.mxu0 0
      %2939 = vmatpush1.bf16.msra.mxu0 %v2914
      %2940 = vmatprep.subr.bf16.mxu0 0
      %2941 = vmatpush1.bf16.msra.mxu0 %v2913
      %2942 = vmatprep.subr.bf16.mxu0 0
      %2943 = vmatpush1.bf16.msra.mxu0 %v2912
      %2944 = vmatprep.subr.bf16.mxu0 0
      %2945 = vmatpush2.bf16.msra.mxu0 0
      %2946 = vmatprep.subr.bf16.mxu0 0
      %2947 = vmatpush2.bf16.msra.mxu0 0
      %2948 = vmatprep.subr.bf16.mxu0 0
      %2949 = vmatpush2.bf16.msra.mxu0 0
      %2950 = vmatprep.subr.bf16.mxu0 0
      %2951 = vmatpush2.bf16.msra.mxu0 0
      %2952 = vmatprep.subr.bf16.mxu0 0
      %2953 = vmatpush2.bf16.msra.mxu0 0
      %2954 = vmatprep.subr.bf16.mxu0 0
      %2955 = vmatpush2.bf16.msra.mxu0 0
      %2956 = vmatprep.subr.bf16.mxu0 0
      %2957 = vmatpush2.bf16.msra.mxu0 0
      %2958 = vmatprep.subr.bf16.mxu0 0
      %2959 = vmatpush2.bf16.msra.mxu0 0
      %2960 = vmatprep.mubr.bf16.mxu0 0
      %2961 = vmatmul.mubr.bf16.gmra.mxu0 %v2847
      %v2962 = vpop.f32.mrf.mxu0
      %v2963 = vadd.f32 0.0, %v2962
      %v2964 = vpop.f32.mrf.mxu0
      %v2965 = vpop.f32.mrf.mxu0
      %v2966 = vadd.f32 0.0, %v2965
      %v2967 = vpop.f32.mrf.mxu0
      %2968 = vmatprep.mubr.bf16.mxu0 0
      %2969 = vmatmul.mubr.bf16.gmra.mxu0 %v2848
      %v2970 = vpop.f32.mrf.mxu0
      %v2971 = vadd.f32 0.0, %v2970
      %v2972 = vpop.f32.mrf.mxu0
      %v2973 = vpop.f32.mrf.mxu0
      %v2974 = vadd.f32 0.0, %v2973
      %v2975 = vpop.f32.mrf.mxu0
      %2976 = vmatprep.mubr.bf16.mxu0 0
      %2977 = vmatmul.mubr.bf16.gmra.mxu0 %v2849
      %v2978 = vpop.f32.mrf.mxu0
      %v2979 = vadd.f32 0.0, %v2978
      %v2980 = vpop.f32.mrf.mxu0
      %v2981 = vpop.f32.mrf.mxu0
      %v2982 = vadd.f32 0.0, %v2981
      %v2983 = vpop.f32.mrf.mxu0
      %2984 = vmatprep.mubr.bf16.mxu0 0
      %2985 = vmatmul.mubr.bf16.gmra.mxu0 %v2850
      %v2986 = vpop.f32.mrf.mxu0
      %v2987 = vadd.f32 0.0, %v2986
      %v2988 = vpop.f32.mrf.mxu0
      %v2989 = vpop.f32.mrf.mxu0
      %v2990 = vadd.f32 0.0, %v2989
      %v2991 = vpop.f32.mrf.mxu0
      %2992 = vmatprep.mubr.bf16.mxu0 0
      %2993 = vmatmul.mubr.bf16.gmra.mxu0 %v2851
      %v2994 = vpop.f32.mrf.mxu0
      %v2995 = vadd.f32 0.0, %v2994
      %v2996 = vpop.f32.mrf.mxu0
      %v2997 = vpop.f32.mrf.mxu0
      %v2998 = vadd.f32 0.0, %v2997
      %v2999 = vpop.f32.mrf.mxu0
      %3000 = vmatprep.mubr.bf16.mxu0 0
      %3001 = vmatmul.mubr.bf16.gmra.mxu0 %v2852
      %v3002 = vpop.f32.mrf.mxu0
      %v3003 = vadd.f32 0.0, %v3002
      %v3004 = vpop.f32.mrf.mxu0
      %v3005 = vpop.f32.mrf.mxu0
      %v3006 = vadd.f32 0.0, %v3005
      %v3007 = vpop.f32.mrf.mxu0
      %3008 = vmatprep.mubr.bf16.mxu0 0
      %3009 = vmatmul.mubr.bf16.gmra.mxu0 %v2853
      %v3010 = vpop.f32.mrf.mxu0
      %v3011 = vadd.f32 0.0, %v3010
      %v3012 = vpop.f32.mrf.mxu0
      %v3013 = vpop.f32.mrf.mxu0
      %v3014 = vadd.f32 0.0, %v3013
      %v3015 = vpop.f32.mrf.mxu0
      %3016 = vmatprep.mubr.bf16.mxu0 0
      %3017 = vmatmul.mubr.bf16.gmra.mxu0 %v2854
      %v3018 = vpop.f32.mrf.mxu0
      %v3019 = vadd.f32 0.0, %v3018
      %v3020 = vpop.f32.mrf.mxu0
      %v3021 = vpop.f32.mrf.mxu0
      %v3022 = vadd.f32 0.0, %v3021
      %v3023 = vpop.f32.mrf.mxu0
      %3024 = vmatprep.mubr.bf16.mxu0 0
      %3025 = vmatmul.mubr.bf16.gmra.mxu0 %v2855
      %v3026 = vpop.f32.mrf.mxu0
      %v3027 = vadd.f32 0.0, %v3026
      %v3028 = vpop.f32.mrf.mxu0
      %v3029 = vpop.f32.mrf.mxu0
      %v3030 = vadd.f32 0.0, %v3029
      %v3031 = vpop.f32.mrf.mxu0
      %3032 = vmatprep.mubr.bf16.mxu0 0
      %3033 = vmatmul.mubr.bf16.gmra.mxu0 %v2856
      %v3034 = vpop.f32.mrf.mxu0
      %v3035 = vadd.f32 0.0, %v3034
      %v3036 = vpop.f32.mrf.mxu0
      %v3037 = vpop.f32.mrf.mxu0
      %v3038 = vadd.f32 0.0, %v3037
      %v3039 = vpop.f32.mrf.mxu0
      %3040 = vmatprep.mubr.bf16.mxu0 0
      %3041 = vmatmul.mubr.bf16.gmra.mxu0 %v2857
      %v3042 = vpop.f32.mrf.mxu0
      %v3043 = vadd.f32 0.0, %v3042
      %v3044 = vpop.f32.mrf.mxu0
      %v3045 = vpop.f32.mrf.mxu0
      %v3046 = vadd.f32 0.0, %v3045
      %v3047 = vpop.f32.mrf.mxu0
      %3048 = vmatprep.mubr.bf16.mxu0 0
      %3049 = vmatmul.mubr.bf16.gmra.mxu0 %v2858
      %v3050 = vpop.f32.mrf.mxu0
      %v3051 = vadd.f32 0.0, %v3050
      %v3052 = vpop.f32.mrf.mxu0
      %v3053 = vpop.f32.mrf.mxu0
      %v3054 = vadd.f32 0.0, %v3053
      %v3055 = vpop.f32.mrf.mxu0
      %3056 = vmatprep.mubr.bf16.mxu0 0
      %3057 = vmatmul.mubr.bf16.gmra.mxu0 %v2859
      %v3058 = vpop.f32.mrf.mxu0
      %v3059 = vadd.f32 0.0, %v3058
      %v3060 = vpop.f32.mrf.mxu0
      %v3061 = vpop.f32.mrf.mxu0
      %v3062 = vadd.f32 0.0, %v3061
      %v3063 = vpop.f32.mrf.mxu0
      %3064 = vmatprep.mubr.bf16.mxu0 0
      %3065 = vmatmul.mubr.bf16.gmra.mxu0 %v2860
      %v3066 = vpop.f32.mrf.mxu0
      %v3067 = vadd.f32 0.0, %v3066
      %v3068 = vpop.f32.mrf.mxu0
      %v3069 = vpop.f32.mrf.mxu0
      %v3070 = vadd.f32 0.0, %v3069
      %v3071 = vpop.f32.mrf.mxu0
      %3072 = vmatprep.mubr.bf16.mxu0 0
      %3073 = vmatmul.mubr.bf16.gmra.mxu0 %v2861
      %v3074 = vpop.f32.mrf.mxu0
      %v3075 = vadd.f32 0.0, %v3074
      %v3076 = vpop.f32.mrf.mxu0
      %v3077 = vpop.f32.mrf.mxu0
      %v3078 = vadd.f32 0.0, %v3077
      %v3079 = vpop.f32.mrf.mxu0
      %3080 = vmatprep.mubr.bf16.mxu0 0
      %3081 = vmatmul.mubr.bf16.gmra.mxu0 %v2862
      %v3082 = vpop.f32.mrf.mxu0
      %v3083 = vadd.f32 0.0, %v3082
      %v3084 = vpop.f32.mrf.mxu0
      %v3085 = vpop.f32.mrf.mxu0
      %v3086 = vadd.f32 0.0, %v3085
      %v3087 = vpop.f32.mrf.mxu0
      %3088 = vdwg.mxu0
      %v3089 = vld [vmem:[#allocation3] sm:$0xff]
      %v3090 = vld [vmem:[#allocation3 + $0x8] sm:$0xff]
      %v3091 = vld [vmem:[#allocation3 + $0x10] sm:$0xff]
      %v3092 = vld [vmem:[#allocation3 + $0x18] sm:$0xff]
      %v3093 = vld [vmem:[#allocation3 + $0x20] sm:$0xff]
      %v3094 = vld [vmem:[#allocation3 + $0x28] sm:$0xff]
      %v3095 = vld [vmem:[#allocation3 + $0x30] sm:$0xff]
      %v3096 = vld [vmem:[#allocation3 + $0x38] sm:$0xff]
      %v3097 = vld [vmem:[#allocation3 + $0x40] sm:$0xff]
      %v3098 = vld [vmem:[#allocation3 + $0x48] sm:$0xff]
      %v3099 = vld [vmem:[#allocation3 + $0x50] sm:$0xff]
      %v3100 = vld [vmem:[#allocation3 + $0x58] sm:$0xff]
      %v3101 = vld [vmem:[#allocation3 + $0x60] sm:$0xff]
      %v3102 = vld [vmem:[#allocation3 + $0x68] sm:$0xff]
      %v3103 = vld [vmem:[#allocation3 + $0x70] sm:$0xff]
      %v3104 = vld [vmem:[#allocation3 + $0x78] sm:$0xff]
      %v3105 = vld [vmem:[#allocation3 + $0x80] sm:$0xff]
      %v3106 = vld [vmem:[#allocation3 + $0x88] sm:$0xff]
      %v3107 = vld [vmem:[#allocation3 + $0x90] sm:$0xff]
      %v3108 = vld [vmem:[#allocation3 + $0x98] sm:$0xff]
      %v3109 = vld [vmem:[#allocation3 + $0xa0] sm:$0xff]
      %v3110 = vld [vmem:[#allocation3 + $0xa8] sm:$0xff]
      %v3111 = vld [vmem:[#allocation3 + $0xb0] sm:$0xff]
      %v3112 = vld [vmem:[#allocation3 + $0xb8] sm:$0xff]
      %v3113 = vld [vmem:[#allocation3 + $0xc0] sm:$0xff]
      %v3114 = vld [vmem:[#allocation3 + $0xc8] sm:$0xff]
      %v3115 = vld [vmem:[#allocation3 + $0xd0] sm:$0xff]
      %v3116 = vld [vmem:[#allocation3 + $0xd8] sm:$0xff]
      %v3117 = vld [vmem:[#allocation3 + $0xe0] sm:$0xff]
      %v3118 = vld [vmem:[#allocation3 + $0xe8] sm:$0xff]
      %v3119 = vld [vmem:[#allocation3 + $0xf0] sm:$0xff]
      %v3120 = vld [vmem:[#allocation3 + $0xf8] sm:$0xff]
      %v3121 = vadd.f32 %v3089, %v2963
      %v3122 = vadd.f32 %v3090, %v2966
      %v3123 = vadd.f32 %v3091, %v2971
      %v3124 = vadd.f32 %v3092, %v2974
      %v3125 = vadd.f32 %v3093, %v2979
      %v3126 = vadd.f32 %v3094, %v2982
      %v3127 = vadd.f32 %v3095, %v2987
      %v3128 = vadd.f32 %v3096, %v2990
      %v3129 = vadd.f32 %v3097, %v2995
      %v3130 = vadd.f32 %v3098, %v2998
      %v3131 = vadd.f32 %v3099, %v3003
      %v3132 = vadd.f32 %v3100, %v3006
      %v3133 = vadd.f32 %v3101, %v3011
      %v3134 = vadd.f32 %v3102, %v3014
      %v3135 = vadd.f32 %v3103, %v3019
      %v3136 = vadd.f32 %v3104, %v3022
      %v3137 = vadd.f32 %v3105, %v3027
      %v3138 = vadd.f32 %v3106, %v3030
      %v3139 = vadd.f32 %v3107, %v3035
      %v3140 = vadd.f32 %v3108, %v3038
      %v3141 = vadd.f32 %v3109, %v3043
      %v3142 = vadd.f32 %v3110, %v3046
      %v3143 = vadd.f32 %v3111, %v3051
      %v3144 = vadd.f32 %v3112, %v3054
      %v3145 = vadd.f32 %v3113, %v3059
      %v3146 = vadd.f32 %v3114, %v3062
      %v3147 = vadd.f32 %v3115, %v3067
      %v3148 = vadd.f32 %v3116, %v3070
      %v3149 = vadd.f32 %v3117, %v3075
      %v3150 = vadd.f32 %v3118, %v3078
      %v3151 = vadd.f32 %v3119, %v3083
      %v3152 = vadd.f32 %v3120, %v3086
      %3153 = vst [vmem:[#allocation3] sm:$0xff] %v3121
      %3154 = vst [vmem:[#allocation3 + $0x8] sm:$0xff] %v3122
      %3155 = vst [vmem:[#allocation3 + $0x10] sm:$0xff] %v3123
      %3156 = vst [vmem:[#allocation3 + $0x18] sm:$0xff] %v3124
      %3157 = vst [vmem:[#allocation3 + $0x20] sm:$0xff] %v3125
      %3158 = vst [vmem:[#allocation3 + $0x28] sm:$0xff] %v3126
      %3159 = vst [vmem:[#allocation3 + $0x30] sm:$0xff] %v3127
      %3160 = vst [vmem:[#allocation3 + $0x38] sm:$0xff] %v3128
      %3161 = vst [vmem:[#allocation3 + $0x40] sm:$0xff] %v3129
      %3162 = vst [vmem:[#allocation3 + $0x48] sm:$0xff] %v3130
      %3163 = vst [vmem:[#allocation3 + $0x50] sm:$0xff] %v3131
      %3164 = vst [vmem:[#allocation3 + $0x58] sm:$0xff] %v3132
      %3165 = vst [vmem:[#allocation3 + $0x60] sm:$0xff] %v3133
      %3166 = vst [vmem:[#allocation3 + $0x68] sm:$0xff] %v3134
      %3167 = vst [vmem:[#allocation3 + $0x70] sm:$0xff] %v3135
      %3168 = vst [vmem:[#allocation3 + $0x78] sm:$0xff] %v3136
      %3169 = vst [vmem:[#allocation3 + $0x80] sm:$0xff] %v3137
      %3170 = vst [vmem:[#allocation3 + $0x88] sm:$0xff] %v3138
      %3171 = vst [vmem:[#allocation3 + $0x90] sm:$0xff] %v3139
      %3172 = vst [vmem:[#allocation3 + $0x98] sm:$0xff] %v3140
      %3173 = vst [vmem:[#allocation3 + $0xa0] sm:$0xff] %v3141
      %3174 = vst [vmem:[#allocation3 + $0xa8] sm:$0xff] %v3142
      %3175 = vst [vmem:[#allocation3 + $0xb0] sm:$0xff] %v3143
      %3176 = vst [vmem:[#allocation3 + $0xb8] sm:$0xff] %v3144
      %3177 = vst [vmem:[#allocation3 + $0xc0] sm:$0xff] %v3145
      %3178 = vst [vmem:[#allocation3 + $0xc8] sm:$0xff] %v3146
      %3179 = vst [vmem:[#allocation3 + $0xd0] sm:$0xff] %v3147
      %3180 = vst [vmem:[#allocation3 + $0xd8] sm:$0xff] %v3148
      %3181 = vst [vmem:[#allocation3 + $0xe0] sm:$0xff] %v3149
      %3182 = vst [vmem:[#allocation3 + $0xe8] sm:$0xff] %v3150
      %3183 = vst [vmem:[#allocation3 + $0xf0] sm:$0xff] %v3151
      %3184 = vst [vmem:[#allocation3 + $0xf8] sm:$0xff] %v3152
      %v3185 = vld [vmem:[%s2814 + $0x1] sm:$0xff]
      %v3186 = vld [vmem:[%s2814 + $0x9] sm:$0xff]
      %v3187 = vld [vmem:[%s2814 + $0x19] sm:$0xff]
      %v3188 = vld [vmem:[%s2814 + $0x21] sm:$0xff]
      %v3189 = vld [vmem:[%s2814 + $0x31] sm:$0xff]
      %v3190 = vld [vmem:[%s2814 + $0x39] sm:$0xff]
      %v3191 = vld [vmem:[%s2814 + $0x49] sm:$0xff]
      %v3192 = vld [vmem:[%s2814 + $0x51] sm:$0xff]
      %v3193 = vld [vmem:[%s2814 + $0x61] sm:$0xff]
      %v3194 = vld [vmem:[%s2814 + $0x69] sm:$0xff]
      %v3195 = vld [vmem:[%s2814 + $0x79] sm:$0xff]
      %v3196 = vld [vmem:[%s2814 + $0x81] sm:$0xff]
      %v3197 = vld [vmem:[%s2814 + $0x91] sm:$0xff]
      %v3198 = vld [vmem:[%s2814 + $0x99] sm:$0xff]
      %v3199 = vld [vmem:[%s2814 + $0xa9] sm:$0xff]
      %v3200 = vld [vmem:[%s2814 + $0xb1] sm:$0xff]
      %v3201 = vld [vmem:[%s2814 + $0xc1] sm:$0xff]
      %v3202 = vld [vmem:[%s2814 + $0xc9] sm:$0xff]
      %v3203 = vld [vmem:[%s2814 + $0xd9] sm:$0xff]
      %v3204 = vld [vmem:[%s2814 + $0xe1] sm:$0xff]
      %v3205 = vld [vmem:[%s2814 + $0xf1] sm:$0xff]
      %v3206 = vld [vmem:[%s2814 + $0xf9] sm:$0xff]
      %v3207 = vld [vmem:[%s2814 + $0x109] sm:$0xff]
      %v3208 = vld [vmem:[%s2814 + $0x111] sm:$0xff]
      %v3209 = vld [vmem:[%s2814 + $0x121] sm:$0xff]
      %v3210 = vld [vmem:[%s2814 + $0x129] sm:$0xff]
      %v3211 = vld [vmem:[%s2814 + $0x139] sm:$0xff]
      %v3212 = vld [vmem:[%s2814 + $0x141] sm:$0xff]
      %v3213 = vld [vmem:[%s2814 + $0x151] sm:$0xff]
      %v3214 = vld [vmem:[%s2814 + $0x159] sm:$0xff]
      %v3215 = vld [vmem:[%s2814 + $0x169] sm:$0xff]
      %v3216 = vld [vmem:[%s2814 + $0x171] sm:$0xff]
      %v3217 = vpack.c.bf16 %v3186, %v3185
      %v3218 = vpack.c.bf16 %v3188, %v3187
      %v3219 = vpack.c.bf16 %v3190, %v3189
      %v3220 = vpack.c.bf16 %v3192, %v3191
      %v3221 = vpack.c.bf16 %v3194, %v3193
      %v3222 = vpack.c.bf16 %v3196, %v3195
      %v3223 = vpack.c.bf16 %v3198, %v3197
      %v3224 = vpack.c.bf16 %v3200, %v3199
      %v3225 = vpack.c.bf16 %v3202, %v3201
      %v3226 = vpack.c.bf16 %v3204, %v3203
      %v3227 = vpack.c.bf16 %v3206, %v3205
      %v3228 = vpack.c.bf16 %v3208, %v3207
      %v3229 = vpack.c.bf16 %v3210, %v3209
      %v3230 = vpack.c.bf16 %v3212, %v3211
      %v3231 = vpack.c.bf16 %v3214, %v3213
      %v3232 = vpack.c.bf16 %v3216, %v3215
      %s3233 = scalar_lea.vmem %s265, 448
      %v3234 = vld [vmem:[%s3233] sm:$0xf]
      %v3235 = vld [vmem:[%s3233 + $0x4] sm:$0xf]
      %v3236 = vld [vmem:[%s3233 + $0x8] sm:$0xf]
      %v3237 = vld [vmem:[%s3233 + $0xc] sm:$0xf]
      %v3238 = vld [vmem:[%s3233 + $0x10] sm:$0xf]
      %v3239 = vld [vmem:[%s3233 + $0x14] sm:$0xf]
      %v3240 = vld [vmem:[%s3233 + $0x18] sm:$0xf]
      %v3241 = vld [vmem:[%s3233 + $0x1c] sm:$0xf]
      %v3242 = vld [vmem:[%s3233 + $0x20] sm:$0xf]
      %v3243 = vld [vmem:[%s3233 + $0x24] sm:$0xf]
      %v3244 = vld [vmem:[%s3233 + $0x28] sm:$0xf]
      %v3245 = vld [vmem:[%s3233 + $0x2c] sm:$0xf]
      %v3246 = vld [vmem:[%s3233 + $0x30] sm:$0xf]
      %v3247 = vld [vmem:[%s3233 + $0x34] sm:$0xf]
      %v3248 = vld [vmem:[%s3233 + $0x38] sm:$0xf]
      %v3249 = vld [vmem:[%s3233 + $0x3c] sm:$0xf]
      %v3266 = vunpack.c.l.b16 %v3234
      %v3267 = vunpack.c.l.b16 %v3235
      %v3268 = vunpack.c.l.b16 %v3236
      %v3269 = vunpack.c.l.b16 %v3237
      %v3270 = vunpack.c.l.b16 %v3238
      %v3271 = vunpack.c.l.b16 %v3239
      %v3272 = vunpack.c.l.b16 %v3240
      %v3273 = vunpack.c.l.b16 %v3241
      %v3274 = vunpack.c.l.b16 %v3242
      %v3275 = vunpack.c.l.b16 %v3243
      %v3276 = vunpack.c.l.b16 %v3244
      %v3277 = vunpack.c.l.b16 %v3245
      %v3278 = vunpack.c.l.b16 %v3246
      %v3279 = vunpack.c.l.b16 %v3247
      %v3280 = vunpack.c.l.b16 %v3248
      %v3281 = vunpack.c.l.b16 %v3249
      %v3282 = vpack.c.b16 %v3267, %v3266
      %v3283 = vpack.c.b16 %v3269, %v3268
      %v3284 = vpack.c.b16 %v3271, %v3270
      %v3285 = vpack.c.b16 %v3273, %v3272
      %v3286 = vpack.c.b16 %v3275, %v3274
      %v3287 = vpack.c.b16 %v3277, %v3276
      %v3288 = vpack.c.b16 %v3279, %v3278
      %v3289 = vpack.c.b16 %v3281, %v3280
      %3298 = vmatprep.subr.bf16.mxu0 0
      %3299 = vmatpush1.bf16.msra.mxu0 %v3289
      %3300 = vmatprep.subr.bf16.mxu0 0
      %3301 = vmatpush1.bf16.msra.mxu0 %v3288
      %3302 = vmatprep.subr.bf16.mxu0 0
      %3303 = vmatpush1.bf16.msra.mxu0 %v3287
      %3304 = vmatprep.subr.bf16.mxu0 0
      %3305 = vmatpush1.bf16.msra.mxu0 %v3286
      %3306 = vmatprep.subr.bf16.mxu0 0
      %3307 = vmatpush1.bf16.msra.mxu0 %v3285
      %3308 = vmatprep.subr.bf16.mxu0 0
      %3309 = vmatpush1.bf16.msra.mxu0 %v3284
      %3310 = vmatprep.subr.bf16.mxu0 0
      %3311 = vmatpush1.bf16.msra.mxu0 %v3283
      %3312 = vmatprep.subr.bf16.mxu0 0
      %3313 = vmatpush1.bf16.msra.mxu0 %v3282
      %3314 = vmatprep.subr.bf16.mxu0 0
      %3315 = vmatpush2.bf16.msra.mxu0 0
      %3316 = vmatprep.subr.bf16.mxu0 0
      %3317 = vmatpush2.bf16.msra.mxu0 0
      %3318 = vmatprep.subr.bf16.mxu0 0
      %3319 = vmatpush2.bf16.msra.mxu0 0
      %3320 = vmatprep.subr.bf16.mxu0 0
      %3321 = vmatpush2.bf16.msra.mxu0 0
      %3322 = vmatprep.subr.bf16.mxu0 0
      %3323 = vmatpush2.bf16.msra.mxu0 0
      %3324 = vmatprep.subr.bf16.mxu0 0
      %3325 = vmatpush2.bf16.msra.mxu0 0
      %3326 = vmatprep.subr.bf16.mxu0 0
      %3327 = vmatpush2.bf16.msra.mxu0 0
      %3328 = vmatprep.subr.bf16.mxu0 0
      %3329 = vmatpush2.bf16.msra.mxu0 0
      %3330 = vmatprep.mubr.bf16.mxu0 0
      %3331 = vmatmul.mubr.bf16.gmra.mxu0 %v3217
      %v3332 = vpop.f32.mrf.mxu0
      %v3333 = vadd.f32 0.0, %v3332
      %v3334 = vpop.f32.mrf.mxu0
      %v3335 = vpop.f32.mrf.mxu0
      %v3336 = vadd.f32 0.0, %v3335
      %v3337 = vpop.f32.mrf.mxu0
      %3338 = vmatprep.mubr.bf16.mxu0 0
      %3339 = vmatmul.mubr.bf16.gmra.mxu0 %v3218
      %v3340 = vpop.f32.mrf.mxu0
      %v3341 = vadd.f32 0.0, %v3340
      %v3342 = vpop.f32.mrf.mxu0
      %v3343 = vpop.f32.mrf.mxu0
      %v3344 = vadd.f32 0.0, %v3343
      %v3345 = vpop.f32.mrf.mxu0
      %3346 = vmatprep.mubr.bf16.mxu0 0
      %3347 = vmatmul.mubr.bf16.gmra.mxu0 %v3219
      %v3348 = vpop.f32.mrf.mxu0
      %v3349 = vadd.f32 0.0, %v3348
      %v3350 = vpop.f32.mrf.mxu0
      %v3351 = vpop.f32.mrf.mxu0
      %v3352 = vadd.f32 0.0, %v3351
      %v3353 = vpop.f32.mrf.mxu0
      %3354 = vmatprep.mubr.bf16.mxu0 0
      %3355 = vmatmul.mubr.bf16.gmra.mxu0 %v3220
      %v3356 = vpop.f32.mrf.mxu0
      %v3357 = vadd.f32 0.0, %v3356
      %v3358 = vpop.f32.mrf.mxu0
      %v3359 = vpop.f32.mrf.mxu0
      %v3360 = vadd.f32 0.0, %v3359
      %v3361 = vpop.f32.mrf.mxu0
      %3362 = vmatprep.mubr.bf16.mxu0 0
      %3363 = vmatmul.mubr.bf16.gmra.mxu0 %v3221
      %v3364 = vpop.f32.mrf.mxu0
      %v3365 = vadd.f32 0.0, %v3364
      %v3366 = vpop.f32.mrf.mxu0
      %v3367 = vpop.f32.mrf.mxu0
      %v3368 = vadd.f32 0.0, %v3367
      %v3369 = vpop.f32.mrf.mxu0
      %3370 = vmatprep.mubr.bf16.mxu0 0
      %3371 = vmatmul.mubr.bf16.gmra.mxu0 %v3222
      %v3372 = vpop.f32.mrf.mxu0
      %v3373 = vadd.f32 0.0, %v3372
      %v3374 = vpop.f32.mrf.mxu0
      %v3375 = vpop.f32.mrf.mxu0
      %v3376 = vadd.f32 0.0, %v3375
      %v3377 = vpop.f32.mrf.mxu0
      %3378 = vmatprep.mubr.bf16.mxu0 0
      %3379 = vmatmul.mubr.bf16.gmra.mxu0 %v3223
      %v3380 = vpop.f32.mrf.mxu0
      %v3381 = vadd.f32 0.0, %v3380
      %v3382 = vpop.f32.mrf.mxu0
      %v3383 = vpop.f32.mrf.mxu0
      %v3384 = vadd.f32 0.0, %v3383
      %v3385 = vpop.f32.mrf.mxu0
      %3386 = vmatprep.mubr.bf16.mxu0 0
      %3387 = vmatmul.mubr.bf16.gmra.mxu0 %v3224
      %v3388 = vpop.f32.mrf.mxu0
      %v3389 = vadd.f32 0.0, %v3388
      %v3390 = vpop.f32.mrf.mxu0
      %v3391 = vpop.f32.mrf.mxu0
      %v3392 = vadd.f32 0.0, %v3391
      %v3393 = vpop.f32.mrf.mxu0
      %3394 = vmatprep.mubr.bf16.mxu0 0
      %3395 = vmatmul.mubr.bf16.gmra.mxu0 %v3225
      %v3396 = vpop.f32.mrf.mxu0
      %v3397 = vadd.f32 0.0, %v3396
      %v3398 = vpop.f32.mrf.mxu0
      %v3399 = vpop.f32.mrf.mxu0
      %v3400 = vadd.f32 0.0, %v3399
      %v3401 = vpop.f32.mrf.mxu0
      %3402 = vmatprep.mubr.bf16.mxu0 0
      %3403 = vmatmul.mubr.bf16.gmra.mxu0 %v3226
      %v3404 = vpop.f32.mrf.mxu0
      %v3405 = vadd.f32 0.0, %v3404
      %v3406 = vpop.f32.mrf.mxu0
      %v3407 = vpop.f32.mrf.mxu0
      %v3408 = vadd.f32 0.0, %v3407
      %v3409 = vpop.f32.mrf.mxu0
      %3410 = vmatprep.mubr.bf16.mxu0 0
      %3411 = vmatmul.mubr.bf16.gmra.mxu0 %v3227
      %v3412 = vpop.f32.mrf.mxu0
      %v3413 = vadd.f32 0.0, %v3412
      %v3414 = vpop.f32.mrf.mxu0
      %v3415 = vpop.f32.mrf.mxu0
      %v3416 = vadd.f32 0.0, %v3415
      %v3417 = vpop.f32.mrf.mxu0
      %3418 = vmatprep.mubr.bf16.mxu0 0
      %3419 = vmatmul.mubr.bf16.gmra.mxu0 %v3228
      %v3420 = vpop.f32.mrf.mxu0
      %v3421 = vadd.f32 0.0, %v3420
      %v3422 = vpop.f32.mrf.mxu0
      %v3423 = vpop.f32.mrf.mxu0
      %v3424 = vadd.f32 0.0, %v3423
      %v3425 = vpop.f32.mrf.mxu0
      %3426 = vmatprep.mubr.bf16.mxu0 0
      %3427 = vmatmul.mubr.bf16.gmra.mxu0 %v3229
      %v3428 = vpop.f32.mrf.mxu0
      %v3429 = vadd.f32 0.0, %v3428
      %v3430 = vpop.f32.mrf.mxu0
      %v3431 = vpop.f32.mrf.mxu0
      %v3432 = vadd.f32 0.0, %v3431
      %v3433 = vpop.f32.mrf.mxu0
      %3434 = vmatprep.mubr.bf16.mxu0 0
      %3435 = vmatmul.mubr.bf16.gmra.mxu0 %v3230
      %v3436 = vpop.f32.mrf.mxu0
      %v3437 = vadd.f32 0.0, %v3436
      %v3438 = vpop.f32.mrf.mxu0
      %v3439 = vpop.f32.mrf.mxu0
      %v3440 = vadd.f32 0.0, %v3439
      %v3441 = vpop.f32.mrf.mxu0
      %3442 = vmatprep.mubr.bf16.mxu0 0
      %3443 = vmatmul.mubr.bf16.gmra.mxu0 %v3231
      %v3444 = vpop.f32.mrf.mxu0
      %v3445 = vadd.f32 0.0, %v3444
      %v3446 = vpop.f32.mrf.mxu0
      %v3447 = vpop.f32.mrf.mxu0
      %v3448 = vadd.f32 0.0, %v3447
      %v3449 = vpop.f32.mrf.mxu0
      %3450 = vmatprep.mubr.bf16.mxu0 0
      %3451 = vmatmul.mubr.bf16.gmra.mxu0 %v3232
      %v3452 = vpop.f32.mrf.mxu0
      %v3453 = vadd.f32 0.0, %v3452
      %v3454 = vpop.f32.mrf.mxu0
      %v3455 = vpop.f32.mrf.mxu0
      %v3456 = vadd.f32 0.0, %v3455
      %v3457 = vpop.f32.mrf.mxu0
      %3458 = vdwg.mxu0
      %v3459 = vld [vmem:[#allocation3] sm:$0xff]
      %v3460 = vld [vmem:[#allocation3 + $0x8] sm:$0xff]
      %v3461 = vld [vmem:[#allocation3 + $0x10] sm:$0xff]
      %v3462 = vld [vmem:[#allocation3 + $0x18] sm:$0xff]
      %v3463 = vld [vmem:[#allocation3 + $0x20] sm:$0xff]
      %v3464 = vld [vmem:[#allocation3 + $0x28] sm:$0xff]
      %v3465 = vld [vmem:[#allocation3 + $0x30] sm:$0xff]
      %v3466 = vld [vmem:[#allocation3 + $0x38] sm:$0xff]
      %v3467 = vld [vmem:[#allocation3 + $0x40] sm:$0xff]
      %v3468 = vld [vmem:[#allocation3 + $0x48] sm:$0xff]
      %v3469 = vld [vmem:[#allocation3 + $0x50] sm:$0xff]
      %v3470 = vld [vmem:[#allocation3 + $0x58] sm:$0xff]
      %v3471 = vld [vmem:[#allocation3 + $0x60] sm:$0xff]
      %v3472 = vld [vmem:[#allocation3 + $0x68] sm:$0xff]
      %v3473 = vld [vmem:[#allocation3 + $0x70] sm:$0xff]
      %v3474 = vld [vmem:[#allocation3 + $0x78] sm:$0xff]
      %v3475 = vld [vmem:[#allocation3 + $0x80] sm:$0xff]
      %v3476 = vld [vmem:[#allocation3 + $0x88] sm:$0xff]
      %v3477 = vld [vmem:[#allocation3 + $0x90] sm:$0xff]
      %v3478 = vld [vmem:[#allocation3 + $0x98] sm:$0xff]
      %v3479 = vld [vmem:[#allocation3 + $0xa0] sm:$0xff]
      %v3480 = vld [vmem:[#allocation3 + $0xa8] sm:$0xff]
      %v3481 = vld [vmem:[#allocation3 + $0xb0] sm:$0xff]
      %v3482 = vld [vmem:[#allocation3 + $0xb8] sm:$0xff]
      %v3483 = vld [vmem:[#allocation3 + $0xc0] sm:$0xff]
      %v3484 = vld [vmem:[#allocation3 + $0xc8] sm:$0xff]
      %v3485 = vld [vmem:[#allocation3 + $0xd0] sm:$0xff]
      %v3486 = vld [vmem:[#allocation3 + $0xd8] sm:$0xff]
      %v3487 = vld [vmem:[#allocation3 + $0xe0] sm:$0xff]
      %v3488 = vld [vmem:[#allocation3 + $0xe8] sm:$0xff]
      %v3489 = vld [vmem:[#allocation3 + $0xf0] sm:$0xff]
      %v3490 = vld [vmem:[#allocation3 + $0xf8] sm:$0xff]
      %v3491 = vadd.f32 %v3459, %v3333
      %v3492 = vadd.f32 %v3460, %v3336
      %v3493 = vadd.f32 %v3461, %v3341
      %v3494 = vadd.f32 %v3462, %v3344
      %v3495 = vadd.f32 %v3463, %v3349
      %v3496 = vadd.f32 %v3464, %v3352
      %v3497 = vadd.f32 %v3465, %v3357
      %v3498 = vadd.f32 %v3466, %v3360
      %v3499 = vadd.f32 %v3467, %v3365
      %v3500 = vadd.f32 %v3468, %v3368
      %v3501 = vadd.f32 %v3469, %v3373
      %v3502 = vadd.f32 %v3470, %v3376
      %v3503 = vadd.f32 %v3471, %v3381
      %v3504 = vadd.f32 %v3472, %v3384
      %v3505 = vadd.f32 %v3473, %v3389
      %v3506 = vadd.f32 %v3474, %v3392
      %v3507 = vadd.f32 %v3475, %v3397
      %v3508 = vadd.f32 %v3476, %v3400
      %v3509 = vadd.f32 %v3477, %v3405
      %v3510 = vadd.f32 %v3478, %v3408
      %v3511 = vadd.f32 %v3479, %v3413
      %v3512 = vadd.f32 %v3480, %v3416
      %v3513 = vadd.f32 %v3481, %v3421
      %v3514 = vadd.f32 %v3482, %v3424
      %v3515 = vadd.f32 %v3483, %v3429
      %v3516 = vadd.f32 %v3484, %v3432
      %v3517 = vadd.f32 %v3485, %v3437
      %v3518 = vadd.f32 %v3486, %v3440
      %v3519 = vadd.f32 %v3487, %v3445
      %v3520 = vadd.f32 %v3488, %v3448
      %v3521 = vadd.f32 %v3489, %v3453
      %v3522 = vadd.f32 %v3490, %v3456
      %3523 = vst [vmem:[#allocation3] sm:$0xff] %v3491
      %3524 = vst [vmem:[#allocation3 + $0x8] sm:$0xff] %v3492
      %3525 = vst [vmem:[#allocation3 + $0x10] sm:$0xff] %v3493
      %3526 = vst [vmem:[#allocation3 + $0x18] sm:$0xff] %v3494
      %3527 = vst [vmem:[#allocation3 + $0x20] sm:$0xff] %v3495
      %3528 = vst [vmem:[#allocation3 + $0x28] sm:$0xff] %v3496
      %3529 = vst [vmem:[#allocation3 + $0x30] sm:$0xff] %v3497
      %3530 = vst [vmem:[#allocation3 + $0x38] sm:$0xff] %v3498
      %3531 = vst [vmem:[#allocation3 + $0x40] sm:$0xff] %v3499
      %3532 = vst [vmem:[#allocation3 + $0x48] sm:$0xff] %v3500
      %3533 = vst [vmem:[#allocation3 + $0x50] sm:$0xff] %v3501
      %3534 = vst [vmem:[#allocation3 + $0x58] sm:$0xff] %v3502
      %3535 = vst [vmem:[#allocation3 + $0x60] sm:$0xff] %v3503
      %3536 = vst [vmem:[#allocation3 + $0x68] sm:$0xff] %v3504
      %3537 = vst [vmem:[#allocation3 + $0x70] sm:$0xff] %v3505
      %3538 = vst [vmem:[#allocation3 + $0x78] sm:$0xff] %v3506
      %3539 = vst [vmem:[#allocation3 + $0x80] sm:$0xff] %v3507
      %3540 = vst [vmem:[#allocation3 + $0x88] sm:$0xff] %v3508
      %3541 = vst [vmem:[#allocation3 + $0x90] sm:$0xff] %v3509
      %3542 = vst [vmem:[#allocation3 + $0x98] sm:$0xff] %v3510
      %3543 = vst [vmem:[#allocation3 + $0xa0] sm:$0xff] %v3511
      %3544 = vst [vmem:[#allocation3 + $0xa8] sm:$0xff] %v3512
      %3545 = vst [vmem:[#allocation3 + $0xb0] sm:$0xff] %v3513
      %3546 = vst [vmem:[#allocation3 + $0xb8] sm:$0xff] %v3514
      %3547 = vst [vmem:[#allocation3 + $0xc0] sm:$0xff] %v3515
      %3548 = vst [vmem:[#allocation3 + $0xc8] sm:$0xff] %v3516
      %3549 = vst [vmem:[#allocation3 + $0xd0] sm:$0xff] %v3517
      %3550 = vst [vmem:[#allocation3 + $0xd8] sm:$0xff] %v3518
      %3551 = vst [vmem:[#allocation3 + $0xe0] sm:$0xff] %v3519
      %3552 = vst [vmem:[#allocation3 + $0xe8] sm:$0xff] %v3520
      %3553 = vst [vmem:[#allocation3 + $0xf0] sm:$0xff] %v3521
      %3554 = vst [vmem:[#allocation3 + $0xf8] sm:$0xff] %v3522
      %v3555 = vld [vmem:[%s2814 + $0x2] sm:$0xff]
      %v3556 = vld [vmem:[%s2814 + $0xa] sm:$0xff]
      %v3557 = vld [vmem:[%s2814 + $0x1a] sm:$0xff]
      %v3558 = vld [vmem:[%s2814 + $0x22] sm:$0xff]
      %v3559 = vld [vmem:[%s2814 + $0x32] sm:$0xff]
      %v3560 = vld [vmem:[%s2814 + $0x3a] sm:$0xff]
      %v3561 = vld [vmem:[%s2814 + $0x4a] sm:$0xff]
      %v3562 = vld [vmem:[%s2814 + $0x52] sm:$0xff]
      %v3563 = vld [vmem:[%s2814 + $0x62] sm:$0xff]
      %v3564 = vld [vmem:[%s2814 + $0x6a] sm:$0xff]
      %v3565 = vld [vmem:[%s2814 + $0x7a] sm:$0xff]
      %v3566 = vld [vmem:[%s2814 + $0x82] sm:$0xff]
      %v3567 = vld [vmem:[%s2814 + $0x92] sm:$0xff]
      %v3568 = vld [vmem:[%s2814 + $0x9a] sm:$0xff]
      %v3569 = vld [vmem:[%s2814 + $0xaa] sm:$0xff]
      %v3570 = vld [vmem:[%s2814 + $0xb2] sm:$0xff]
      %v3571 = vld [vmem:[%s2814 + $0xc2] sm:$0xff]
      %v3572 = vld [vmem:[%s2814 + $0xca] sm:$0xff]
      %v3573 = vld [vmem:[%s2814 + $0xda] sm:$0xff]
      %v3574 = vld [vmem:[%s2814 + $0xe2] sm:$0xff]
      %v3575 = vld [vmem:[%s2814 + $0xf2] sm:$0xff]
      %v3576 = vld [vmem:[%s2814 + $0xfa] sm:$0xff]
      %v3577 = vld [vmem:[%s2814 + $0x10a] sm:$0xff]
      %v3578 = vld [vmem:[%s2814 + $0x112] sm:$0xff]
      %v3579 = vld [vmem:[%s2814 + $0x122] sm:$0xff]
      %v3580 = vld [vmem:[%s2814 + $0x12a] sm:$0xff]
      %v3581 = vld [vmem:[%s2814 + $0x13a] sm:$0xff]
      %v3582 = vld [vmem:[%s2814 + $0x142] sm:$0xff]
      %v3583 = vld [vmem:[%s2814 + $0x152] sm:$0xff]
      %v3584 = vld [vmem:[%s2814 + $0x15a] sm:$0xff]
      %v3585 = vld [vmem:[%s2814 + $0x16a] sm:$0xff]
      %v3586 = vld [vmem:[%s2814 + $0x172] sm:$0xff]
      %v3587 = vpack.c.bf16 %v3556, %v3555
      %v3588 = vpack.c.bf16 %v3558, %v3557
      %v3589 = vpack.c.bf16 %v3560, %v3559
      %v3590 = vpack.c.bf16 %v3562, %v3561
      %v3591 = vpack.c.bf16 %v3564, %v3563
      %v3592 = vpack.c.bf16 %v3566, %v3565
      %v3593 = vpack.c.bf16 %v3568, %v3567
      %v3594 = vpack.c.bf16 %v3570, %v3569
      %v3595 = vpack.c.bf16 %v3572, %v3571
      %v3596 = vpack.c.bf16 %v3574, %v3573
      %v3597 = vpack.c.bf16 %v3576, %v3575
      %v3598 = vpack.c.bf16 %v3578, %v3577
      %v3599 = vpack.c.bf16 %v3580, %v3579
      %v3600 = vpack.c.bf16 %v3582, %v3581
      %v3601 = vpack.c.bf16 %v3584, %v3583
      %v3602 = vpack.c.bf16 %v3586, %v3585
      %s3603 = scalar_lea.vmem %s265, 512
      %v3604 = vld [vmem:[%s3603] sm:$0xf]
      %v3605 = vld [vmem:[%s3603 + $0x4] sm:$0xf]
      %v3606 = vld [vmem:[%s3603 + $0x8] sm:$0xf]
      %v3607 = vld [vmem:[%s3603 + $0xc] sm:$0xf]
      %v3608 = vld [vmem:[%s3603 + $0x10] sm:$0xf]
      %v3609 = vld [vmem:[%s3603 + $0x14] sm:$0xf]
      %v3610 = vld [vmem:[%s3603 + $0x18] sm:$0xf]
      %v3611 = vld [vmem:[%s3603 + $0x1c] sm:$0xf]
      %v3612 = vld [vmem:[%s3603 + $0x20] sm:$0xf]
      %v3613 = vld [vmem:[%s3603 + $0x24] sm:$0xf]
      %v3614 = vld [vmem:[%s3603 + $0x28] sm:$0xf]
      %v3615 = vld [vmem:[%s3603 + $0x2c] sm:$0xf]
      %v3616 = vld [vmem:[%s3603 + $0x30] sm:$0xf]
      %v3617 = vld [vmem:[%s3603 + $0x34] sm:$0xf]
      %v3618 = vld [vmem:[%s3603 + $0x38] sm:$0xf]
      %v3619 = vld [vmem:[%s3603 + $0x3c] sm:$0xf]
      %v3636 = vunpack.c.l.b16 %v3604
      %v3637 = vunpack.c.l.b16 %v3605
      %v3638 = vunpack.c.l.b16 %v3606
      %v3639 = vunpack.c.l.b16 %v3607
      %v3640 = vunpack.c.l.b16 %v3608
      %v3641 = vunpack.c.l.b16 %v3609
      %v3642 = vunpack.c.l.b16 %v3610
      %v3643 = vunpack.c.l.b16 %v3611
      %v3644 = vunpack.c.l.b16 %v3612
      %v3645 = vunpack.c.l.b16 %v3613
      %v3646 = vunpack.c.l.b16 %v3614
      %v3647 = vunpack.c.l.b16 %v3615
      %v3648 = vunpack.c.l.b16 %v3616
      %v3649 = vunpack.c.l.b16 %v3617
      %v3650 = vunpack.c.l.b16 %v3618
      %v3651 = vunpack.c.l.b16 %v3619
      %v3652 = vpack.c.b16 %v3637, %v3636
      %v3653 = vpack.c.b16 %v3639, %v3638
      %v3654 = vpack.c.b16 %v3641, %v3640
      %v3655 = vpack.c.b16 %v3643, %v3642
      %v3656 = vpack.c.b16 %v3645, %v3644
      %v3657 = vpack.c.b16 %v3647, %v3646
      %v3658 = vpack.c.b16 %v3649, %v3648
      %v3659 = vpack.c.b16 %v3651, %v3650
      %3668 = vmatprep.subr.bf16.mxu0 0
      %3669 = vmatpush1.bf16.msra.mxu0 %v3659
      %3670 = vmatprep.subr.bf16.mxu0 0
      %3671 = vmatpush1.bf16.msra.mxu0 %v3658
      %3672 = vmatprep.subr.bf16.mxu0 0
      %3673 = vmatpush1.bf16.msra.mxu0 %v3657
      %3674 = vmatprep.subr.bf16.mxu0 0
      %3675 = vmatpush1.bf16.msra.mxu0 %v3656
      %3676 = vmatprep.subr.bf16.mxu0 0
      %3677 = vmatpush1.bf16.msra.mxu0 %v3655
      %3678 = vmatprep.subr.bf16.mxu0 0
      %3679 = vmatpush1.bf16.msra.mxu0 %v3654
      %3680 = vmatprep.subr.bf16.mxu0 0
      %3681 = vmatpush1.bf16.msra.mxu0 %v3653
      %3682 = vmatprep.subr.bf16.mxu0 0
      %3683 = vmatpush1.bf16.msra.mxu0 %v3652
      %3684 = vmatprep.subr.bf16.mxu0 0
      %3685 = vmatpush2.bf16.msra.mxu0 0
      %3686 = vmatprep.subr.bf16.mxu0 0
      %3687 = vmatpush2.bf16.msra.mxu0 0
      %3688 = vmatprep.subr.bf16.mxu0 0
      %3689 = vmatpush2.bf16.msra.mxu0 0
      %3690 = vmatprep.subr.bf16.mxu0 0
      %3691 = vmatpush2.bf16.msra.mxu0 0
      %3692 = vmatprep.subr.bf16.mxu0 0
      %3693 = vmatpush2.bf16.msra.mxu0 0
      %3694 = vmatprep.subr.bf16.mxu0 0
      %3695 = vmatpush2.bf16.msra.mxu0 0
      %3696 = vmatprep.subr.bf16.mxu0 0
      %3697 = vmatpush2.bf16.msra.mxu0 0
      %3698 = vmatprep.subr.bf16.mxu0 0
      %3699 = vmatpush2.bf16.msra.mxu0 0
      %3700 = vmatprep.mubr.bf16.mxu0 0
      %3701 = vmatmul.mubr.bf16.gmra.mxu0 %v3587
      %v3702 = vpop.f32.mrf.mxu0
      %v3703 = vadd.f32 0.0, %v3702
      %v3704 = vpop.f32.mrf.mxu0
      %v3705 = vpop.f32.mrf.mxu0
      %v3706 = vadd.f32 0.0, %v3705
      %v3707 = vpop.f32.mrf.mxu0
      %3708 = vmatprep.mubr.bf16.mxu0 0
      %3709 = vmatmul.mubr.bf16.gmra.mxu0 %v3588
      %v3710 = vpop.f32.mrf.mxu0
      %v3711 = vadd.f32 0.0, %v3710
      %v3712 = vpop.f32.mrf.mxu0
      %v3713 = vpop.f32.mrf.mxu0
      %v3714 = vadd.f32 0.0, %v3713
      %v3715 = vpop.f32.mrf.mxu0
      %3716 = vmatprep.mubr.bf16.mxu0 0
      %3717 = vmatmul.mubr.bf16.gmra.mxu0 %v3589
      %v3718 = vpop.f32.mrf.mxu0
      %v3719 = vadd.f32 0.0, %v3718
      %v3720 = vpop.f32.mrf.mxu0
      %v3721 = vpop.f32.mrf.mxu0
      %v3722 = vadd.f32 0.0, %v3721
      %v3723 = vpop.f32.mrf.mxu0
      %3724 = vmatprep.mubr.bf16.mxu0 0
      %3725 = vmatmul.mubr.bf16.gmra.mxu0 %v3590
      %v3726 = vpop.f32.mrf.mxu0
      %v3727 = vadd.f32 0.0, %v3726
      %v3728 = vpop.f32.mrf.mxu0
      %v3729 = vpop.f32.mrf.mxu0
      %v3730 = vadd.f32 0.0, %v3729
      %v3731 = vpop.f32.mrf.mxu0
      %3732 = vmatprep.mubr.bf16.mxu0 0
      %3733 = vmatmul.mubr.bf16.gmra.mxu0 %v3591
      %v3734 = vpop.f32.mrf.mxu0
      %v3735 = vadd.f32 0.0, %v3734
      %v3736 = vpop.f32.mrf.mxu0
      %v3737 = vpop.f32.mrf.mxu0
      %v3738 = vadd.f32 0.0, %v3737
      %v3739 = vpop.f32.mrf.mxu0
      %3740 = vmatprep.mubr.bf16.mxu0 0
      %3741 = vmatmul.mubr.bf16.gmra.mxu0 %v3592
      %v3742 = vpop.f32.mrf.mxu0
      %v3743 = vadd.f32 0.0, %v3742
      %v3744 = vpop.f32.mrf.mxu0
      %v3745 = vpop.f32.mrf.mxu0
      %v3746 = vadd.f32 0.0, %v3745
      %v3747 = vpop.f32.mrf.mxu0
      %3748 = vmatprep.mubr.bf16.mxu0 0
      %3749 = vmatmul.mubr.bf16.gmra.mxu0 %v3593
      %v3750 = vpop.f32.mrf.mxu0
      %v3751 = vadd.f32 0.0, %v3750
      %v3752 = vpop.f32.mrf.mxu0
      %v3753 = vpop.f32.mrf.mxu0
      %v3754 = vadd.f32 0.0, %v3753
      %v3755 = vpop.f32.mrf.mxu0
      %3756 = vmatprep.mubr.bf16.mxu0 0
      %3757 = vmatmul.mubr.bf16.gmra.mxu0 %v3594
      %v3758 = vpop.f32.mrf.mxu0
      %v3759 = vadd.f32 0.0, %v3758
      %v3760 = vpop.f32.mrf.mxu0
      %v3761 = vpop.f32.mrf.mxu0
      %v3762 = vadd.f32 0.0, %v3761
      %v3763 = vpop.f32.mrf.mxu0
      %3764 = vmatprep.mubr.bf16.mxu0 0
      %3765 = vmatmul.mubr.bf16.gmra.mxu0 %v3595
      %v3766 = vpop.f32.mrf.mxu0
      %v3767 = vadd.f32 0.0, %v3766
      %v3768 = vpop.f32.mrf.mxu0
      %v3769 = vpop.f32.mrf.mxu0
      %v3770 = vadd.f32 0.0, %v3769
      %v3771 = vpop.f32.mrf.mxu0
      %3772 = vmatprep.mubr.bf16.mxu0 0
      %3773 = vmatmul.mubr.bf16.gmra.mxu0 %v3596
      %v3774 = vpop.f32.mrf.mxu0
      %v3775 = vadd.f32 0.0, %v3774
      %v3776 = vpop.f32.mrf.mxu0
      %v3777 = vpop.f32.mrf.mxu0
      %v3778 = vadd.f32 0.0, %v3777
      %v3779 = vpop.f32.mrf.mxu0
      %3780 = vmatprep.mubr.bf16.mxu0 0
      %3781 = vmatmul.mubr.bf16.gmra.mxu0 %v3597
      %v3782 = vpop.f32.mrf.mxu0
      %v3783 = vadd.f32 0.0, %v3782
      %v3784 = vpop.f32.mrf.mxu0
      %v3785 = vpop.f32.mrf.mxu0
      %v3786 = vadd.f32 0.0, %v3785
      %v3787 = vpop.f32.mrf.mxu0
      %3788 = vmatprep.mubr.bf16.mxu0 0
      %3789 = vmatmul.mubr.bf16.gmra.mxu0 %v3598
      %v3790 = vpop.f32.mrf.mxu0
      %v3791 = vadd.f32 0.0, %v3790
      %v3792 = vpop.f32.mrf.mxu0
      %v3793 = vpop.f32.mrf.mxu0
      %v3794 = vadd.f32 0.0, %v3793
      %v3795 = vpop.f32.mrf.mxu0
      %3796 = vmatprep.mubr.bf16.mxu0 0
      %3797 = vmatmul.mubr.bf16.gmra.mxu0 %v3599
      %v3798 = vpop.f32.mrf.mxu0
      %v3799 = vadd.f32 0.0, %v3798
      %v3800 = vpop.f32.mrf.mxu0
      %v3801 = vpop.f32.mrf.mxu0
      %v3802 = vadd.f32 0.0, %v3801
      %v3803 = vpop.f32.mrf.mxu0
      %3804 = vmatprep.mubr.bf16.mxu0 0
      %3805 = vmatmul.mubr.bf16.gmra.mxu0 %v3600
      %v3806 = vpop.f32.mrf.mxu0
      %v3807 = vadd.f32 0.0, %v3806
      %v3808 = vpop.f32.mrf.mxu0
      %v3809 = vpop.f32.mrf.mxu0
      %v3810 = vadd.f32 0.0, %v3809
      %v3811 = vpop.f32.mrf.mxu0
      %3812 = vmatprep.mubr.bf16.mxu0 0
      %3813 = vmatmul.mubr.bf16.gmra.mxu0 %v3601
      %v3814 = vpop.f32.mrf.mxu0
      %v3815 = vadd.f32 0.0, %v3814
      %v3816 = vpop.f32.mrf.mxu0
      %v3817 = vpop.f32.mrf.mxu0
      %v3818 = vadd.f32 0.0, %v3817
      %v3819 = vpop.f32.mrf.mxu0
      %3820 = vmatprep.mubr.bf16.mxu0 0
      %3821 = vmatmul.mubr.bf16.gmra.mxu0 %v3602
      %v3822 = vpop.f32.mrf.mxu0
      %v3823 = vadd.f32 0.0, %v3822
      %v3824 = vpop.f32.mrf.mxu0
      %v3825 = vpop.f32.mrf.mxu0
      %v3826 = vadd.f32 0.0, %v3825
      %v3827 = vpop.f32.mrf.mxu0
      %3828 = vdwg.mxu0
      %v3829 = vld [vmem:[#allocation3] sm:$0xff]
      %v3830 = vld [vmem:[#allocation3 + $0x8] sm:$0xff]
      %v3831 = vld [vmem:[#allocation3 + $0x10] sm:$0xff]
      %v3832 = vld [vmem:[#allocation3 + $0x18] sm:$0xff]
      %v3833 = vld [vmem:[#allocation3 + $0x20] sm:$0xff]
      %v3834 = vld [vmem:[#allocation3 + $0x28] sm:$0xff]
      %v3835 = vld [vmem:[#allocation3 + $0x30] sm:$0xff]
      %v3836 = vld [vmem:[#allocation3 + $0x38] sm:$0xff]
      %v3837 = vld [vmem:[#allocation3 + $0x40] sm:$0xff]
      %v3838 = vld [vmem:[#allocation3 + $0x48] sm:$0xff]
      %v3839 = vld [vmem:[#allocation3 + $0x50] sm:$0xff]
      %v3840 = vld [vmem:[#allocation3 + $0x58] sm:$0xff]
      %v3841 = vld [vmem:[#allocation3 + $0x60] sm:$0xff]
      %v3842 = vld [vmem:[#allocation3 + $0x68] sm:$0xff]
      %v3843 = vld [vmem:[#allocation3 + $0x70] sm:$0xff]
      %v3844 = vld [vmem:[#allocation3 + $0x78] sm:$0xff]
      %v3845 = vld [vmem:[#allocation3 + $0x80] sm:$0xff]
      %v3846 = vld [vmem:[#allocation3 + $0x88] sm:$0xff]
      %v3847 = vld [vmem:[#allocation3 + $0x90] sm:$0xff]
      %v3848 = vld [vmem:[#allocation3 + $0x98] sm:$0xff]
      %v3849 = vld [vmem:[#allocation3 + $0xa0] sm:$0xff]
      %v3850 = vld [vmem:[#allocation3 + $0xa8] sm:$0xff]
      %v3851 = vld [vmem:[#allocation3 + $0xb0] sm:$0xff]
      %v3852 = vld [vmem:[#allocation3 + $0xb8] sm:$0xff]
      %v3853 = vld [vmem:[#allocation3 + $0xc0] sm:$0xff]
      %v3854 = vld [vmem:[#allocation3 + $0xc8] sm:$0xff]
      %v3855 = vld [vmem:[#allocation3 + $0xd0] sm:$0xff]
      %v3856 = vld [vmem:[#allocation3 + $0xd8] sm:$0xff]
      %v3857 = vld [vmem:[#allocation3 + $0xe0] sm:$0xff]
      %v3858 = vld [vmem:[#allocation3 + $0xe8] sm:$0xff]
      %v3859 = vld [vmem:[#allocation3 + $0xf0] sm:$0xff]
      %v3860 = vld [vmem:[#allocation3 + $0xf8] sm:$0xff]
      %v3861 = vadd.f32 %v3829, %v3703
      %v3862 = vadd.f32 %v3830, %v3706
      %v3863 = vadd.f32 %v3831, %v3711
      %v3864 = vadd.f32 %v3832, %v3714
      %v3865 = vadd.f32 %v3833, %v3719
      %v3866 = vadd.f32 %v3834, %v3722
      %v3867 = vadd.f32 %v3835, %v3727
      %v3868 = vadd.f32 %v3836, %v3730
      %v3869 = vadd.f32 %v3837, %v3735
      %v3870 = vadd.f32 %v3838, %v3738
      %v3871 = vadd.f32 %v3839, %v3743
      %v3872 = vadd.f32 %v3840, %v3746
      %v3873 = vadd.f32 %v3841, %v3751
      %v3874 = vadd.f32 %v3842, %v3754
      %v3875 = vadd.f32 %v3843, %v3759
      %v3876 = vadd.f32 %v3844, %v3762
      %v3877 = vadd.f32 %v3845, %v3767
      %v3878 = vadd.f32 %v3846, %v3770
      %v3879 = vadd.f32 %v3847, %v3775
      %v3880 = vadd.f32 %v3848, %v3778
      %v3881 = vadd.f32 %v3849, %v3783
      %v3882 = vadd.f32 %v3850, %v3786
      %v3883 = vadd.f32 %v3851, %v3791
      %v3884 = vadd.f32 %v3852, %v3794
      %v3885 = vadd.f32 %v3853, %v3799
      %v3886 = vadd.f32 %v3854, %v3802
      %v3887 = vadd.f32 %v3855, %v3807
      %v3888 = vadd.f32 %v3856, %v3810
      %v3889 = vadd.f32 %v3857, %v3815
      %v3890 = vadd.f32 %v3858, %v3818
      %v3891 = vadd.f32 %v3859, %v3823
      %v3892 = vadd.f32 %v3860, %v3826
      %3893 = vst [vmem:[#allocation3] sm:$0xff] %v3861
      %3894 = vst [vmem:[#allocation3 + $0x8] sm:$0xff] %v3862
      %3895 = vst [vmem:[#allocation3 + $0x10] sm:$0xff] %v3863
      %3896 = vst [vmem:[#allocation3 + $0x18] sm:$0xff] %v3864
      %3897 = vst [vmem:[#allocation3 + $0x20] sm:$0xff] %v3865
      %3898 = vst [vmem:[#allocation3 + $0x28] sm:$0xff] %v3866
      %3899 = vst [vmem:[#allocation3 + $0x30] sm:$0xff] %v3867
      %3900 = vst [vmem:[#allocation3 + $0x38] sm:$0xff] %v3868
      %3901 = vst [vmem:[#allocation3 + $0x40] sm:$0xff] %v3869
      %3902 = vst [vmem:[#allocation3 + $0x48] sm:$0xff] %v3870
      %3903 = vst [vmem:[#allocation3 + $0x50] sm:$0xff] %v3871
      %3904 = vst [vmem:[#allocation3 + $0x58] sm:$0xff] %v3872
      %3905 = vst [vmem:[#allocation3 + $0x60] sm:$0xff] %v3873
      %3906 = vst [vmem:[#allocation3 + $0x68] sm:$0xff] %v3874
      %3907 = vst [vmem:[#allocation3 + $0x70] sm:$0xff] %v3875
      %3908 = vst [vmem:[#allocation3 + $0x78] sm:$0xff] %v3876
      %3909 = vst [vmem:[#allocation3 + $0x80] sm:$0xff] %v3877
      %3910 = vst [vmem:[#allocation3 + $0x88] sm:$0xff] %v3878
      %3911 = vst [vmem:[#allocation3 + $0x90] sm:$0xff] %v3879
      %3912 = vst [vmem:[#allocation3 + $0x98] sm:$0xff] %v3880
      %3913 = vst [vmem:[#allocation3 + $0xa0] sm:$0xff] %v3881
      %3914 = vst [vmem:[#allocation3 + $0xa8] sm:$0xff] %v3882
      %3915 = vst [vmem:[#allocation3 + $0xb0] sm:$0xff] %v3883
      %3916 = vst [vmem:[#allocation3 + $0xb8] sm:$0xff] %v3884
      %3917 = vst [vmem:[#allocation3 + $0xc0] sm:$0xff] %v3885
      %3918 = vst [vmem:[#allocation3 + $0xc8] sm:$0xff] %v3886
      %3919 = vst [vmem:[#allocation3 + $0xd0] sm:$0xff] %v3887
      %3920 = vst [vmem:[#allocation3 + $0xd8] sm:$0xff] %v3888
      %3921 = vst [vmem:[#allocation3 + $0xe0] sm:$0xff] %v3889
      %3922 = vst [vmem:[#allocation3 + $0xe8] sm:$0xff] %v3890
      %3923 = vst [vmem:[#allocation3 + $0xf0] sm:$0xff] %v3891
      %3924 = vst [vmem:[#allocation3 + $0xf8] sm:$0xff] %v3892
      %v3925 = vld [vmem:[#allocation3] sm:$0xff]
      %v3926 = vld [vmem:[#allocation3 + $0x8] sm:$0xff]
      %v3927 = vld [vmem:[#allocation3 + $0x10] sm:$0xff]
      %v3928 = vld [vmem:[#allocation3 + $0x18] sm:$0xff]
      %v3929 = vld [vmem:[#allocation3 + $0x20] sm:$0xff]
      %v3930 = vld [vmem:[#allocation3 + $0x28] sm:$0xff]
      %v3931 = vld [vmem:[#allocation3 + $0x30] sm:$0xff]
      %v3932 = vld [vmem:[#allocation3 + $0x38] sm:$0xff]
      %v3933 = vld [vmem:[#allocation3 + $0x40] sm:$0xff]
      %v3934 = vld [vmem:[#allocation3 + $0x48] sm:$0xff]
      %v3935 = vld [vmem:[#allocation3 + $0x50] sm:$0xff]
      %v3936 = vld [vmem:[#allocation3 + $0x58] sm:$0xff]
      %v3937 = vld [vmem:[#allocation3 + $0x60] sm:$0xff]
      %v3938 = vld [vmem:[#allocation3 + $0x68] sm:$0xff]
      %v3939 = vld [vmem:[#allocation3 + $0x70] sm:$0xff]
      %v3940 = vld [vmem:[#allocation3 + $0x78] sm:$0xff]
      %v3941 = vld [vmem:[#allocation3 + $0x80] sm:$0xff]
      %v3942 = vld [vmem:[#allocation3 + $0x88] sm:$0xff]
      %v3943 = vld [vmem:[#allocation3 + $0x90] sm:$0xff]
      %v3944 = vld [vmem:[#allocation3 + $0x98] sm:$0xff]
      %v3945 = vld [vmem:[#allocation3 + $0xa0] sm:$0xff]
      %v3946 = vld [vmem:[#allocation3 + $0xa8] sm:$0xff]
      %v3947 = vld [vmem:[#allocation3 + $0xb0] sm:$0xff]
      %v3948 = vld [vmem:[#allocation3 + $0xb8] sm:$0xff]
      %v3949 = vld [vmem:[#allocation3 + $0xc0] sm:$0xff]
      %v3950 = vld [vmem:[#allocation3 + $0xc8] sm:$0xff]
      %v3951 = vld [vmem:[#allocation3 + $0xd0] sm:$0xff]
      %v3952 = vld [vmem:[#allocation3 + $0xd8] sm:$0xff]
      %v3953 = vld [vmem:[#allocation3 + $0xe0] sm:$0xff]
      %v3954 = vld [vmem:[#allocation3 + $0xe8] sm:$0xff]
      %v3955 = vld [vmem:[#allocation3 + $0xf0] sm:$0xff]
      %v3956 = vld [vmem:[#allocation3 + $0xf8] sm:$0xff]
      %v3957 = vadd.f32 %v3925, %v3926
      %v3958 = vadd.f32 %v3957, %v3927
      %v3959 = vadd.f32 %v3958, %v3928
      %v3960 = vadd.f32 %v3959, %v3929
      %v3961 = vadd.f32 %v3960, %v3930
      %v3962 = vadd.f32 %v3961, %v3931
      %v3963 = vadd.f32 %v3962, %v3932
      %v3964 = vadd.f32 %v3963, %v3933
      %v3965 = vadd.f32 %v3964, %v3934
      %v3966 = vadd.f32 %v3965, %v3935
      %v3967 = vadd.f32 %v3966, %v3936
      %v3968 = vadd.f32 %v3967, %v3937
      %v3969 = vadd.f32 %v3968, %v3938
      %v3970 = vadd.f32 %v3969, %v3939
      %v3971 = vadd.f32 %v3970, %v3940
      %v3972 = vadd.f32 %v3971, %v3941
      %v3973 = vadd.f32 %v3972, %v3942
      %v3974 = vadd.f32 %v3973, %v3943
      %v3975 = vadd.f32 %v3974, %v3944
      %v3976 = vadd.f32 %v3975, %v3945
      %v3977 = vadd.f32 %v3976, %v3946
      %v3978 = vadd.f32 %v3977, %v3947
      %v3979 = vadd.f32 %v3978, %v3948
      %v3980 = vadd.f32 %v3979, %v3949
      %v3981 = vadd.f32 %v3980, %v3950
      %v3982 = vadd.f32 %v3981, %v3951
      %v3983 = vadd.f32 %v3982, %v3952
      %v3984 = vadd.f32 %v3983, %v3953
      %v3985 = vadd.f32 %v3984, %v3954
      %v3986 = vadd.f32 %v3985, %v3955
      %v3987 = vadd.f32 %v3986, %v3956
      %v3988 = vrot.slane %v3987, 4
      %v3989 = vadd.f32 %v3987, %v3988
      %v3990 = vrot.slane %v3989, 2
      %v3991 = vadd.f32 %v3989, %v3990
      %v3992 = vrot.slane %v3991, 1
      %v3993 = vadd.f32 %v3991, %v3992
      %v3994 = vmul.f32 %v3925, %v3925
      %v3995 = vmul.f32 %v3926, %v3926
      %v3996 = vmul.f32 %v3927, %v3927
      %v3997 = vmul.f32 %v3928, %v3928
      %v3998 = vmul.f32 %v3929, %v3929
      %v3999 = vmul.f32 %v3930, %v3930
      %v4000 = vmul.f32 %v3931, %v3931
      %v4001 = vmul.f32 %v3932, %v3932
      %v4002 = vmul.f32 %v3933, %v3933
      %v4003 = vmul.f32 %v3934, %v3934
      %v4004 = vmul.f32 %v3935, %v3935
      %v4005 = vmul.f32 %v3936, %v3936
      %v4006 = vmul.f32 %v3937, %v3937
      %v4007 = vmul.f32 %v3938, %v3938
      %v4008 = vmul.f32 %v3939, %v3939
      %v4009 = vmul.f32 %v3940, %v3940
      %v4010 = vmul.f32 %v3941, %v3941
      %v4011 = vmul.f32 %v3942, %v3942
      %v4012 = vmul.f32 %v3943, %v3943
      %v4013 = vmul.f32 %v3944, %v3944
      %v4014 = vmul.f32 %v3945, %v3945
      %v4015 = vmul.f32 %v3946, %v3946
      %v4016 = vmul.f32 %v3947, %v3947
      %v4017 = vmul.f32 %v3948, %v3948
      %v4018 = vmul.f32 %v3949, %v3949
      %v4019 = vmul.f32 %v3950, %v3950
      %v4020 = vmul.f32 %v3951, %v3951
      %v4021 = vmul.f32 %v3952, %v3952
      %v4022 = vmul.f32 %v3953, %v3953
      %v4023 = vmul.f32 %v3954, %v3954
      %v4024 = vmul.f32 %v3955, %v3955
      %v4025 = vmul.f32 %v3956, %v3956
      %v4026 = vadd.f32 %v3994, %v3995
      %v4027 = vadd.f32 %v4026, %v3996
      %v4028 = vadd.f32 %v4027, %v3997
      %v4029 = vadd.f32 %v4028, %v3998
      %v4030 = vadd.f32 %v4029, %v3999
      %v4031 = vadd.f32 %v4030, %v4000
      %v4032 = vadd.f32 %v4031, %v4001
      %v4033 = vadd.f32 %v4032, %v4002
      %v4034 = vadd.f32 %v4033, %v4003
      %v4035 = vadd.f32 %v4034, %v4004
      %v4036 = vadd.f32 %v4035, %v4005
      %v4037 = vadd.f32 %v4036, %v4006
      %v4038 = vadd.f32 %v4037, %v4007
      %v4039 = vadd.f32 %v4038, %v4008
      %v4040 = vadd.f32 %v4039, %v4009
      %v4041 = vadd.f32 %v4040, %v4010
      %v4042 = vadd.f32 %v4041, %v4011
      %v4043 = vadd.f32 %v4042, %v4012
      %v4044 = vadd.f32 %v4043, %v4013
      %v4045 = vadd.f32 %v4044, %v4014
      %v4046 = vadd.f32 %v4045, %v4015
      %v4047 = vadd.f32 %v4046, %v4016
      %v4048 = vadd.f32 %v4047, %v4017
      %v4049 = vadd.f32 %v4048, %v4018
      %v4050 = vadd.f32 %v4049, %v4019
      %v4051 = vadd.f32 %v4050, %v4020
      %v4052 = vadd.f32 %v4051, %v4021
      %v4053 = vadd.f32 %v4052, %v4022
      %v4054 = vadd.f32 %v4053, %v4023
      %v4055 = vadd.f32 %v4054, %v4024
      %v4056 = vadd.f32 %v4055, %v4025
      %v4057 = vrot.slane %v4056, 4
      %v4058 = vadd.f32 %v4056, %v4057
      %v4059 = vrot.slane %v4058, 2
      %v4060 = vadd.f32 %v4058, %v4059
      %v4061 = vrot.slane %v4060, 1
      %v4062 = vadd.f32 %v4060, %v4061
      %v4063 = vlaneseq
      %v4064 = vshrl.u32 %v4063, 7
      %vm4065 = vcmp.eq.s32.totalorder %v4064, 0
      %v4066 = vsel %vm4065, %v3993, 0.0
      %vm4067 = vcmp.eq.s32.totalorder %v4064, 1
      %v4068 = vsel %vm4067, %v4062, 0.0
      %v4069 = vadd.f32 %v4066, %v4068
      %4070 = vst [vmem:[%s280] sm:$0xff] %v4069
      %4071 = vst [vmem:[%s273] sm:$0xff] %v3925
      %4072 = vst [vmem:[%s273 + $0x8] sm:$0xff] %v3926
      %4073 = vst [vmem:[%s273 + $0x10] sm:$0xff] %v3927
      %4074 = vst [vmem:[%s273 + $0x18] sm:$0xff] %v3928
      %4075 = vst [vmem:[%s273 + $0x20] sm:$0xff] %v3929
      %4076 = vst [vmem:[%s273 + $0x28] sm:$0xff] %v3930
      %4077 = vst [vmem:[%s273 + $0x30] sm:$0xff] %v3931
      %4078 = vst [vmem:[%s273 + $0x38] sm:$0xff] %v3932
      %4079 = vst [vmem:[%s273 + $0x40] sm:$0xff] %v3933
      %4080 = vst [vmem:[%s273 + $0x48] sm:$0xff] %v3934
      %4081 = vst [vmem:[%s273 + $0x50] sm:$0xff] %v3935
      %4082 = vst [vmem:[%s273 + $0x58] sm:$0xff] %v3936
      %4083 = vst [vmem:[%s273 + $0x60] sm:$0xff] %v3937
      %4084 = vst [vmem:[%s273 + $0x68] sm:$0xff] %v3938
      %4085 = vst [vmem:[%s273 + $0x70] sm:$0xff] %v3939
      %4086 = vst [vmem:[%s273 + $0x78] sm:$0xff] %v3940
      %4087 = vst [vmem:[%s273 + $0x80] sm:$0xff] %v3941
      %4088 = vst [vmem:[%s273 + $0x88] sm:$0xff] %v3942
      %4089 = vst [vmem:[%s273 + $0x90] sm:$0xff] %v3943
      %4090 = vst [vmem:[%s273 + $0x98] sm:$0xff] %v3944
      %4091 = vst [vmem:[%s273 + $0xa0] sm:$0xff] %v3945
      %4092 = vst [vmem:[%s273 + $0xa8] sm:$0xff] %v3946
      %4093 = vst [vmem:[%s273 + $0xb0] sm:$0xff] %v3947
      %4094 = vst [vmem:[%s273 + $0xb8] sm:$0xff] %v3948
      %4095 = vst [vmem:[%s273 + $0xc0] sm:$0xff] %v3949
      %4096 = vst [vmem:[%s273 + $0xc8] sm:$0xff] %v3950
      %4097 = vst [vmem:[%s273 + $0xd0] sm:$0xff] %v3951
      %4098 = vst [vmem:[%s273 + $0xd8] sm:$0xff] %v3952
      %4099 = vst [vmem:[%s273 + $0xe0] sm:$0xff] %v3953
      %4100 = vst [vmem:[%s273 + $0xe8] sm:$0xff] %v3954
      %4101 = vst [vmem:[%s273 + $0xf0] sm:$0xff] %v3955
      %4102 = vst [vmem:[%s273 + $0xf8] sm:$0xff] %v3956
      %p4103 = scmp.lt.s32.totalorder %s21, 1
      %s4104 = scalar_select %p4103, %s21, 1
      %p4105 = scmp.lt.s32.totalorder %s22, 0
      %s4106 = scalar_select %p4105, %s22, 0
      %s4107 = smul.addr %s4104, 32
      %s4108 = sadd.s32 %s4106, %s4107
      %s4109 = smul.addr %s4108, 8
      %s4110 = scalar_lea.vmem %s4, %s4109
      %p4111 = scmp.lt.s32.totalorder %s21, 1
      %s4112 = scalar_select %p4111, %s21, 1
      %p4113 = scmp.lt.s32.totalorder %s22, 0
      %s4114 = scalar_select %p4113, %s22, 0
      %s4115 = sadd.s32 %s4114, %s4112
      %s4116 = smul.addr %s4115, 8
      %s4117 = scalar_lea.vmem %s5, %s4116
      // Predicated region
      $region41: #{preact_block_forward.5} parent=35 // pred_check
        %p4118 = pneg %p143
      $region42: #{preact_block_forward.5} parent=35 // pred_check_branch
        %4120 = sbr.rel (%p4118) target = $region44
      $region43: #{preact_block_forward.5} parent=35 // pred_region
        _
      $region44: #{preact_block_forward.5} parent=35 // pred_fallthru
        _
      // Predicated region
      $region45: #{preact_block_forward.5} parent=35 // pred_check
        %p4121 = pneg %p171
      $region46: #{preact_block_forward.5} parent=35 // pred_check_branch
        %4123 = sbr.rel (%p4121) target = $region48
      $region47: #{preact_block_forward.5} parent=35 // pred_region
        _
      $region48: #{preact_block_forward.5} parent=35 // pred_fallthru
        _
    $region36: #{preact_block_forward.5} parent=5 // pred_fallthru
      _
    %p4124 = scmp.le.s32.totalorder 2, %s12
    // Predicated region
    $region49: #{preact_block_forward.5} parent=5 // pred_check
      %p4125 = pneg %p4124
    $region50: #{preact_block_forward.5} parent=5 // pred_check_branch
      %4127 = sbr.rel (%p4125) target = $region52
    $region51: #{preact_block_forward.5} parent=5 // pred_region
      %s4128 = ssub.s32 %s12, 2
      // Predicated region
      $region53: #{preact_block_forward.5} parent=51 // pred_check
        %p4129 = pneg %p149
      $region54: #{preact_block_forward.5} parent=51 // pred_check_branch
        %4131 = sbr.rel (%p4129) target = $region56
      $region55: #{preact_block_forward.5} parent=51 // pred_region
        %p4132 = scmp.lt.s32.totalorder %s23, 1
        %s4133 = scalar_select %p4132, %s23, 1
        %p4134 = scmp.lt.s32.totalorder %s24, 0
        %s4135 = scalar_select %p4134, %s24, 0
        %s4136 = smul.addr %s4133, 32
        %s4137 = sadd.s32 %s4135, %s4136
        %s4138 = smul.addr %s4137, 8
        %s4139 = scalar_lea.vmem %s4, %s4138
      $region56: #{preact_block_forward.5} parent=51 // pred_fallthru
        _
      // Predicated region
      $region57: #{preact_block_forward.5} parent=51 // pred_check
        %p4140 = pneg %p177
      $region58: #{preact_block_forward.5} parent=51 // pred_check_branch
        %4142 = sbr.rel (%p4140) target = $region60
      $region59: #{preact_block_forward.5} parent=51 // pred_region
        %p4143 = scmp.lt.s32.totalorder %s23, 1
        %s4144 = scalar_select %p4143, %s23, 1
        %p4145 = scmp.lt.s32.totalorder %s24, 0
        %s4146 = scalar_select %p4145, %s24, 0
        %s4147 = sadd.s32 %s4146, %s4144
        %s4148 = smul.addr %s4147, 8
        %s4149 = scalar_lea.vmem %s5, %s4148
      $region60: #{preact_block_forward.5} parent=51 // pred_fallthru
        _
    $region52: #{preact_block_forward.5} parent=5 // pred_fallthru
      _
  $region6: #{preact_block_forward.5} parent=0 // loop_footer
    %s16 = sadd.s32 1, %s12
  $region7: #{preact_block_forward.5} parent=0 // loop_footer_branch
    %11 = sbr.rel target = $region3
  $region8: #{preact_block_forward.5} parent=0 // loop_exit
    _

// kernel: preact_block_forward.7
$region0: #{preact_block_forward.7}
  #allocation0 [shape = 'u32[]', space=smem, size = 0x4, offset = 0x4, fixed_abs, tag = 'smem constant byte address 0x4 - core index']
  #allocation1 [shape = 'u32[144,128]{1,0:T(1,128)}', space=vmem, size = 0x12000, scoped, tag = 'internal scratch']
  #allocation2 [shape = 'f32[18,18,128]{2,1,0:T(8,128)}', space=vmem, size = 0x36000, scoped, tag = 'scratch operand']
  #allocation3 [shape = 'f32[256,128]{1,0:T(8,128)}', space=vmem, size = 0x20000, scoped, tag = 'scratch operand']
  %s0 = inlined_call_operand.vmem [shape: f32[2,18,18,128], index: 0, kind: input, shape index: {}]
  %s1 = inlined_call_operand.vmem [shape: f32[1,128], index: 1, kind: input, shape index: {}]
  %s2 = inlined_call_operand.vmem [shape: f32[1,128], index: 2, kind: input, shape index: {}]
  %s3 = inlined_call_operand.vmem [shape: bf16[3,3,128,128], index: 3, kind: input, shape index: {}]
  %s4 = inlined_call_operand.vmem [shape: f32[2,16,16,128], index: 4, kind: input, shape index: {}]
  %s5 = inlined_call_operand.vmem [shape: f32[2,16,16,128], index: 5, kind: output, shape index: {}]
  %s6 = sld [smem:[#allocation0]]
  $region57: #{preact_block_forward.7} parent=0
    _
  %s8 = ssub.s32 1, %s6
  %s9 = scalar_select 0, %s8, %s6
  loop: start=0, step=1, limit=4
  $region2: #{preact_block_forward.7} parent=0 // loop_pre_header
    _
  $region3: #{preact_block_forward.7} parent=0 // loop_header
    %s11 = sphi 0, %s15
    %p12 = scmp.ge.s32.totalorder %s11, 4
    %s18 = sphi 0, %s30
    %s19 = sphi 0, %s26
    %s20 = sphi 0, %s18
    %s21 = sphi 0, %s19
    %s22 = sphi 0, %s20
    %s23 = sphi 0, %s21
    %s33 = sphi 0, %s35
    %s36 = sphi 0, %s33
    %s37 = sphi 0, %s36
    %s53 = sphi 0, %s37
    %s57 = sphi 0, %s57
    %s59 = sphi 0, %s57
    %s60 = sphi 0, %s59
    %s74 = sphi 0, %s60
    %s78 = sphi 0, %s78
    %s80 = sphi 0, %s78
    %s81 = sphi 0, %s80
    %s95 = sphi 0, %s81
    %s101 = sphi 0, %s103
    %s104 = sphi 0, %s101
    %s105 = sphi 0, %s104
    %s121 = sphi 0, %s105
    %s129 = sphi 0, %s131
    %s132 = sphi 0, %s129
    %s133 = sphi 0, %s132
    %s149 = sphi 0, %s133
    %s157 = sphi 0, %s159
    %s160 = sphi 0, %s157
    %s161 = sphi 0, %s160
    %s177 = sphi 0, %s161
  $region4: #{preact_block_forward.7} parent=0 // loop_header_branch
    %14 = sbr.rel (%p12) target = $region8
  $region5: #{preact_block_forward.7} parent=0 // loop_body
    %s16 = ssub.s32 %s11, 1
    %s17 = ssub.s32 %s11, 2
    %s24 = sadd.s32 1, %s19
    %p25 = scmp.ge.s32.totalorder %s24, 1
    %s26 = scalar_select %p25, 0, %s24
    %s27 = sadd.s32 1, %s18
    %s28 = scalar_select %p25, %s27, %s18
    %p29 = scmp.ge.s32.totalorder %s28, 2
    %s30 = scalar_select %p29, 0, %s28
    %s31 = ssub.s32 %s18, %s30
    %p32 = scmp.eq.s32.totalorder %s31, 0
    %s34 = sadd.s32 %s33, 1
    %s35 = scalar_select %p32, %s33, %s34
    %p38 = pneg %p32
    %p39 = scmp.eq.s32.totalorder %s11, 1
    %p40 = por %p38, %p39
    %p41 = scmp.ne.s32.totalorder %s33, %s36
    %p42 = scmp.eq.s32.totalorder %s11, 0
    %p43 = por %p41, %p42
    %p44 = scmp.ne.s32.totalorder %s33, %s36
    %p45 = scmp.eq.s32.totalorder %s16, 1
    %p46 = por %p44, %p45
    %p47 = scmp.ne.s32.totalorder %s36, %s37
    %p48 = scmp.eq.s32.totalorder %s16, 0
    %p49 = por %p47, %p48
    %p50 = scmp.ne.s32.totalorder %s36, %s37
    %p51 = scmp.eq.s32.totalorder %s17, 1
    %p52 = por %p50, %p51
    %p54 = scmp.ne.s32.totalorder %s37, %s53
    %p55 = scmp.eq.s32.totalorder %s17, 0
    %p56 = por %p54, %p55
    %s58 = sadd.s32 %s57, 1
    %p61 = scmp.eq.s32.totalorder %s11, 1
    %p62 = scmp.ne.s32.totalorder %s57, %s59
    %p63 = scmp.eq.s32.totalorder %s11, 0
    %p64 = por %p62, %p63
    %p65 = scmp.ne.s32.totalorder %s57, %s59
    %p66 = scmp.eq.s32.totalorder %s16, 1
    %p67 = por %p65, %p66
    %p68 = scmp.ne.s32.totalorder %s59, %s60
    %p69 = scmp.eq.s32.totalorder %s16, 0
    %p70 = por %p68, %p69
    %p71 = scmp.ne.s32.totalorder %s59, %s60
    %p72 = scmp.eq.s32.totalorder %s17, 1
    %p73 = por %p71, %p72
    %p75 = scmp.ne.s32.totalorder %s60, %s74
    %p76 = scmp.eq.s32.totalorder %s17, 0
    %p77 = por %p75, %p76
    %s79 = sadd.s32 %s78, 1
    %p82 = scmp.eq.s32.totalorder %s11, 1
    %p83 = scmp.ne.s32.totalorder %s78, %s80
    %p84 = scmp.eq.s32.totalorder %s11, 0
    %p85 = por %p83, %p84
    %p86 = scmp.ne.s32.totalorder %s78, %s80
    %p87 = scmp.eq.s32.totalorder %s16, 1
    %p88 = por %p86, %p87
    %p89 = scmp.ne.s32.totalorder %s80, %s81
    %p90 = scmp.eq.s32.totalorder %s16, 0
    %p91 = por %p89, %p90
    %p92 = scmp.ne.s32.totalorder %s80, %s81
    %p93 = scmp.eq.s32.totalorder %s17, 1
    %p94 = por %p92, %p93
    %p96 = scmp.ne.s32.totalorder %s81, %s95
    %p97 = scmp.eq.s32.totalorder %s17, 0
    %p98 = por %p96, %p97
    %s99 = ssub.s32 %s19, %s26
    %p100 = scmp.eq.s32.totalorder %s99, 0
    %s102 = sadd.s32 %s101, 1
    %s103 = scalar_select %p100, %s101, %s102
    %p106 = pneg %p100
    %p107 = scmp.eq.s32.totalorder %s11, 1
    %p108 = por %p106, %p107
    %p109 = scmp.ne.s32.totalorder %s101, %s104
    %p110 = scmp.eq.s32.totalorder %s11, 0
    %p111 = por %p109, %p110
    %p112 = scmp.ne.s32.totalorder %s101, %s104
    %p113 = scmp.eq.s32.totalorder %s16, 1
    %p114 = por %p112, %p113
    %p115 = scmp.ne.s32.totalorder %s104, %s105
    %p116 = scmp.eq.s32.totalorder %s16, 0
    %p117 = por %p115, %p116
    %p118 = scmp.ne.s32.totalorder %s104, %s105
    %p119 = scmp.eq.s32.totalorder %s17, 1
    %p120 = por %p118, %p119
    %p122 = scmp.ne.s32.totalorder %s105, %s121
    %p123 = scmp.eq.s32.totalorder %s17, 0
    %p124 = por %p122, %p123
    %s125 = ssub.s32 %s18, %s30
    %s126 = ssub.s32 %s19, %s26
    %s127 = sor.u32 %s125, %s126
    %p128 = scmp.eq.s32.totalorder %s127, 0
    %s130 = sadd.s32 %s129, 1
    %s131 = scalar_select %p128, %s129, %s130
    %p134 = pneg %p128
    %p135 = scmp.eq.s32.totalorder %s11, 1
    %p136 = por %p134, %p135
    %p137 = scmp.ne.s32.totalorder %s129, %s132
    %p138 = scmp.eq.s32.totalorder %s11, 0
    %p139 = por %p137, %p138
    %p140 = scmp.ne.s32.totalorder %s129, %s132
    %p141 = scmp.eq.s32.totalorder %s16, 1
    %p142 = por %p140, %p141
    %p143 = scmp.ne.s32.totalorder %s132, %s133
    %p144 = scmp.eq.s32.totalorder %s16, 0
    %p145 = por %p143, %p144
    %p146 = scmp.ne.s32.totalorder %s132, %s133
    %p147 = scmp.eq.s32.totalorder %s17, 1
    %p148 = por %p146, %p147
    %p150 = scmp.ne.s32.totalorder %s133, %s149
    %p151 = scmp.eq.s32.totalorder %s17, 0
    %p152 = por %p150, %p151
    %s153 = ssub.s32 %s18, %s30
    %s154 = ssub.s32 %s19, %s26
    %s155 = sor.u32 %s153, %s154
    %p156 = scmp.eq.s32.totalorder %s155, 0
    %s158 = sadd.s32 %s157, 1
    %s159 = scalar_select %p156, %s157, %s158
    %p162 = pneg %p156
    %p163 = scmp.eq.s32.totalorder %s11, 1
    %p164 = por %p162, %p163
    %p165 = scmp.ne.s32.totalorder %s157, %s160
    %p166 = scmp.eq.s32.totalorder %s11, 0
    %p167 = por %p165, %p166
    %p168 = scmp.ne.s32.totalorder %s157, %s160
    %p169 = scmp.eq.s32.totalorder %s16, 1
    %p170 = por %p168, %p169
    %p171 = scmp.ne.s32.totalorder %s160, %s161
    %p172 = scmp.eq.s32.totalorder %s16, 0
    %p173 = por %p171, %p172
    %p174 = scmp.ne.s32.totalorder %s160, %s161
    %p175 = scmp.eq.s32.totalorder %s17, 1
    %p176 = por %p174, %p175
    %p178 = scmp.ne.s32.totalorder %s161, %s177
    %p179 = scmp.eq.s32.totalorder %s17, 0
    %p180 = por %p178, %p179
    %p181 = scmp.le.s32.totalorder 1, %s11
    %p182 = scmp.lt.s32.totalorder %s11, 3
    %p183 = pnand %p181, %p182
    %p184 = pneg %p183
    // Predicated region
    $region9: #{preact_block_forward.7} parent=5 // pred_check
      _
    $region10: #{preact_block_forward.7} parent=5 // pred_check_branch
      %186 = sbr.rel (%p183) target = $region12
    $region11: #{preact_block_forward.7} parent=5 // pred_region
      %s187 = ssub.s32 %s11, 1
      // Predicated region
      $region13: #{preact_block_forward.7} parent=11 // pred_check
        %p188 = pneg %p70
      $region14: #{preact_block_forward.7} parent=11 // pred_check_branch
        %190 = sbr.rel (%p188) target = $region16
      $region15: #{preact_block_forward.7} parent=11 // pred_region
        _
      $region16: #{preact_block_forward.7} parent=11 // pred_fallthru
        _
      // Predicated region
      $region17: #{preact_block_forward.7} parent=11 // pred_check
        %p191 = pneg %p91
      $region18: #{preact_block_forward.7} parent=11 // pred_check_branch
        %193 = sbr.rel (%p191) target = $region20
      $region19: #{preact_block_forward.7} parent=11 // pred_region
        _
      $region20: #{preact_block_forward.7} parent=11 // pred_fallthru
        _
      // Predicated region
      $region21: #{preact_block_forward.7} parent=11 // pred_check
        %p194 = pneg %p117
      $region22: #{preact_block_forward.7} parent=11 // pred_check_branch
        %196 = sbr.rel (%p194) target = $region24
      $region23: #{preact_block_forward.7} parent=11 // pred_region
        %p197 = scmp.lt.s32.totalorder %s21, 0
        %s198 = scalar_select %p197, %s21, 0
        %s199 = smul.addr %s198, 4
        %s200 = scalar_lea.vmem %s3, %s199
      $region24: #{preact_block_forward.7} parent=11 // pred_fallthru
        _
    $region12: #{preact_block_forward.7} parent=5 // pred_fallthru
      _
    %p201 = scmp.lt.s32.totalorder %s11, 2
    // Predicated region
    $region25: #{preact_block_forward.7} parent=5 // pred_check
      %p202 = pneg %p201
    $region26: #{preact_block_forward.7} parent=5 // pred_check_branch
      %204 = sbr.rel (%p202) target = $region28
    $region27: #{preact_block_forward.7} parent=5 // pred_region
      // Predicated region
      $region29: #{preact_block_forward.7} parent=27 // pred_check
        %p205 = pneg %p43
      $region30: #{preact_block_forward.7} parent=27 // pred_check_branch
        %207 = sbr.rel (%p205) target = $region32
      $region31: #{preact_block_forward.7} parent=27 // pred_region
        %p208 = scmp.lt.s32.totalorder %s18, 1
        %s209 = scalar_select %p208, %s18, 1
        %s210 = smul.addr %s209, 54
        %s211 = smul.addr %s210, 8
        %s212 = scalar_lea.vmem %s0, %s211
      $region32: #{preact_block_forward.7} parent=27 // pred_fallthru
        _
      // Predicated region
      $region33: #{preact_block_forward.7} parent=27 // pred_check
        %p213 = pneg %p139
      $region34: #{preact_block_forward.7} parent=27 // pred_check_branch
        %215 = sbr.rel (%p213) target = $region36
      $region35: #{preact_block_forward.7} parent=27 // pred_region
        %p216 = scmp.lt.s32.totalorder %s18, 1
        %s217 = scalar_select %p216, %s18, 1
        %p218 = scmp.lt.s32.totalorder %s19, 0
        %s219 = scalar_select %p218, %s19, 0
        %s220 = smul.addr %s217, 32
        %s221 = sadd.s32 %s219, %s220
        %s222 = smul.addr %s221, 8
        %s223 = scalar_lea.vmem %s4, %s222
      $region36: #{preact_block_forward.7} parent=27 // pred_fallthru
        _
    $region28: #{preact_block_forward.7} parent=5 // pred_fallthru
      _
    %p224 = scmp.le.s32.totalorder 1, %s11
    %p225 = scmp.lt.s32.totalorder %s11, 3
    %p226 = pnand %p224, %p225
    %p227 = pneg %p226
    // Predicated region
    $region37: #{preact_block_forward.7} parent=5 // pred_check
      _
    $region38: #{preact_block_forward.7} parent=5 // pred_check_branch
      %229 = sbr.rel (%p226) target = $region40
    $region39: #{preact_block_forward.7} parent=5 // pred_region
      %s230 = ssub.s32 %s11, 1
      %p231 = scmp.lt.s32.totalorder %s20, 1
      %s232 = scalar_select %p231, %s20, 1
      %s233 = smul.addr %s232, 54
      %s234 = smul.addr %s233, 8
      %s235 = scalar_lea.vmem %s0, %s234
      %p236 = pneg %p49
      %p237 = pneg %p46
      %p238 = pneg %p70
      %p239 = pneg %p67
      %p240 = pneg %p91
      %p241 = pneg %p88
      %p242 = scmp.lt.s32.totalorder %s21, 0
      %s243 = scalar_select %p242, %s21, 0
      %s244 = smul.addr %s243, 4
      %s245 = scalar_lea.vmem %s3, %s244
      %p246 = pneg %p117
      %p247 = pneg %p114
      %p248 = scmp.lt.s32.totalorder %s20, 1
      %s249 = scalar_select %p248, %s20, 1
      %p250 = scmp.lt.s32.totalorder %s21, 0
      %s251 = scalar_select %p250, %s21, 0
      %s252 = smul.addr %s249, 32
      %s253 = sadd.s32 %s251, %s252
      %s254 = smul.addr %s253, 8
      %s255 = scalar_lea.vmem %s4, %s254
      %p256 = pneg %p145
      %p257 = pneg %p142
      %p258 = pneg %p173
      %p259 = pneg %p170
      %p260 = scmp.lt.s32.totalorder %s20, 1
      %s261 = scalar_select %p260, %s20, 1
      %p262 = scmp.lt.s32.totalorder %s21, 0
      %s263 = scalar_select %p262, %s21, 0
      %s264 = smul.addr %s261, 32
      %s265 = sadd.s32 %s263, %s264
      %s266 = smul.addr %s265, 8
      %s267 = scalar_lea.vmem %s5, %s266
      %p268 = scmp.lt.s32.totalorder %s20, 1
      %s269 = scalar_select %p268, %s20, 1
      %s270 = smul.addr %s269, 54
      %s271 = smul.addr %s270, 8
      %s272 = scalar_lea.vmem %s0, %s271
      %p273 = scmp.lt.s32.totalorder %s21, 0
      %s274 = scalar_select %p273, %s21, 0
      %s275 = smul.addr %s274, 4
      %s276 = scalar_lea.vmem %s3, %s275
      %p277 = scmp.lt.s32.totalorder %s20, 1
      %s278 = scalar_select %p277, %s20, 1
      %p279 = scmp.lt.s32.totalorder %s21, 0
      %s280 = scalar_select %p279, %s21, 0
      %s281 = smul.addr %s278, 32
      %s282 = sadd.s32 %s280, %s281
      %s283 = smul.addr %s282, 8
      %s284 = scalar_lea.vmem %s4, %s283
      %p285 = scmp.lt.s32.totalorder %s20, 1
      %s286 = scalar_select %p285, %s20, 1
      %p287 = scmp.lt.s32.totalorder %s21, 0
      %s288 = scalar_select %p287, %s21, 0
      %s289 = smul.addr %s286, 32
      %s290 = sadd.s32 %s288, %s289
      %s291 = smul.addr %s290, 8
      %s292 = scalar_lea.vmem %s5, %s291
      %p294 = scmp.eq.s32.totalorder %s21, 0
      // Predicated region
      $region41: #{preact_block_forward.7} parent=39 // pred_check
        %p295 = pneg %p294
      $region42: #{preact_block_forward.7} parent=39 // pred_check_branch
        %297 = sbr.rel (%p295) target = $region44
      $region43: #{preact_block_forward.7} parent=39 // pred_region
        %v298 = vlaneseq
        %v299 = vshrl.u32 %v298, 7
        %v300 = vadd.s32 %v299, 8
        %v301 = vadd.s32 %v299, 16
        %vm302 = vcmp.ge.s32.totalorder %v299, 1
        %vm303 = vcmp.ge.s32.totalorder %v300, 1
        %vm304 = vcmp.ge.s32.totalorder %v301, 1
        %vm305 = vmand 0, %vm302
        %vm306 = vmand 0, %vm303
        %vm307 = vmand 0, %vm304
        %vm308 = vmand 1, %vm302
        %vm309 = vmand 1, %vm303
        %vm310 = vmand 1, %vm304
        %vm311 = vcmp.le.s32.totalorder %v299, 16
        %vm312 = vcmp.le.s32.totalorder %v300, 16
        %vm313 = vcmp.le.s32.totalorder %v301, 16
        %vm314 = vmand %vm305, %vm311
        %vm315 = vmand %vm306, %vm312
        %vm316 = vmand %vm307, %vm313
        %vm317 = vmand %vm308, %vm311
        %vm318 = vmand %vm309, %vm312
        %vm319 = vmand %vm310, %vm313
        %v320 = vld [vmem:[%s272] sm:$0xff]
        %v321 = vld [vmem:[%s272 + $0x8] sm:$0xff]
        %v322 = vld [vmem:[%s272 + $0x10] sm:$0x3]
        %v323 = vld [vmem:[%s272 + $0x18] sm:$0xff]
        %v324 = vld [vmem:[%s272 + $0x20] sm:$0xff]
        %v325 = vld [vmem:[%s272 + $0x28] sm:$0x3]
        %v326 = vld [vmem:[%s272 + $0x30] sm:$0xff]
        %v327 = vld [vmem:[%s272 + $0x38] sm:$0xff]
        %v328 = vld [vmem:[%s272 + $0x40] sm:$0x3]
        %v329 = vld [vmem:[%s272 + $0x48] sm:$0xff]
        %v330 = vld [vmem:[%s272 + $0x50] sm:$0xff]
        %v331 = vld [vmem:[%s272 + $0x58] sm:$0x3]
        %v332 = vld [vmem:[%s272 + $0x60] sm:$0xff]
        %v333 = vld [vmem:[%s272 + $0x68] sm:$0xff]
        %v334 = vld [vmem:[%s272 + $0x70] sm:$0x3]
        %v335 = vld [vmem:[%s272 + $0x78] sm:$0xff]
        %v336 = vld [vmem:[%s272 + $0x80] sm:$0xff]
        %v337 = vld [vmem:[%s272 + $0x88] sm:$0x3]
        %v338 = vld [vmem:[%s272 + $0x90] sm:$0xff]
        %v339 = vld [vmem:[%s272 + $0x98] sm:$0xff]
        %v340 = vld [vmem:[%s272 + $0xa0] sm:$0x3]
        %v341 = vld [vmem:[%s272 + $0xa8] sm:$0xff]
        %v342 = vld [vmem:[%s272 + $0xb0] sm:$0xff]
        %v343 = vld [vmem:[%s272 + $0xb8] sm:$0x3]
        %v344 = vld [vmem:[%s272 + $0xc0] sm:$0xff]
        %v345 = vld [vmem:[%s272 + $0xc8] sm:$0xff]
        %v346 = vld [vmem:[%s272 + $0xd0] sm:$0x3]
        %v347 = vld [vmem:[%s272 + $0xd8] sm:$0xff]
        %v348 = vld [vmem:[%s272 + $0xe0] sm:$0xff]
        %v349 = vld [vmem:[%s272 + $0xe8] sm:$0x3]
        %v350 = vld [vmem:[%s272 + $0xf0] sm:$0xff]
        %v351 = vld [vmem:[%s272 + $0xf8] sm:$0xff]
        %v352 = vld [vmem:[%s272 + $0x100] sm:$0x3]
        %v353 = vld [vmem:[%s272 + $0x108] sm:$0xff]
        %v354 = vld [vmem:[%s272 + $0x110] sm:$0xff]
        %v355 = vld [vmem:[%s272 + $0x118] sm:$0x3]
        %v356 = vld [vmem:[%s272 + $0x120] sm:$0xff]
        %v357 = vld [vmem:[%s272 + $0x128] sm:$0xff]
        %v358 = vld [vmem:[%s272 + $0x130] sm:$0x3]
        %v359 = vld [vmem:[%s272 + $0x138] sm:$0xff]
        %v360 = vld [vmem:[%s272 + $0x140] sm:$0xff]
        %v361 = vld [vmem:[%s272 + $0x148] sm:$0x3]
        %v362 = vld [vmem:[%s272 + $0x150] sm:$0xff]
        %v363 = vld [vmem:[%s272 + $0x158] sm:$0xff]
        %v364 = vld [vmem:[%s272 + $0x160] sm:$0x3]
        %v365 = vld [vmem:[%s272 + $0x168] sm:$0xff]
        %v366 = vld [vmem:[%s272 + $0x170] sm:$0xff]
        %v367 = vld [vmem:[%s272 + $0x178] sm:$0x3]
        %v368 = vld [vmem:[%s272 + $0x180] sm:$0xff]
        %v369 = vld [vmem:[%s272 + $0x188] sm:$0xff]
        %v370 = vld [vmem:[%s272 + $0x190] sm:$0x3]
        %v371 = vld [vmem:[%s272 + $0x198] sm:$0xff]
        %v372 = vld [vmem:[%s272 + $0x1a0] sm:$0xff]
        %v373 = vld [vmem:[%s272 + $0x1a8] sm:$0x3]
        %v374 = vld [vmem:[%s1] sm:$0x1]
        %v376 = vlaneseq
        %v377 = vshrl.u32 %v376, 7
        %v378 = vsub.s32 0, %v377
        %v379 = vrot.slane %v374, %v378
        %v381 = vmul.f32 %v320, %v379
        %v382 = vmul.f32 %v321, %v379
        %v383 = vmul.f32 %v322, %v379
        %v384 = vmul.f32 %v323, %v379
        %v385 = vmul.f32 %v324, %v379
        %v386 = vmul.f32 %v325, %v379
        %v387 = vmul.f32 %v326, %v379
        %v388 = vmul.f32 %v327, %v379
        %v389 = vmul.f32 %v328, %v379
        %v390 = vmul.f32 %v329, %v379
        %v391 = vmul.f32 %v330, %v379
        %v392 = vmul.f32 %v331, %v379
        %v393 = vmul.f32 %v332, %v379
        %v394 = vmul.f32 %v333, %v379
        %v395 = vmul.f32 %v334, %v379
        %v396 = vmul.f32 %v335, %v379
        %v397 = vmul.f32 %v336, %v379
        %v398 = vmul.f32 %v337, %v379
        %v399 = vmul.f32 %v338, %v379
        %v400 = vmul.f32 %v339, %v379
        %v401 = vmul.f32 %v340, %v379
        %v402 = vmul.f32 %v341, %v379
        %v403 = vmul.f32 %v342, %v379
        %v404 = vmul.f32 %v343, %v379
        %v405 = vmul.f32 %v344, %v379
        %v406 = vmul.f32 %v345, %v379
        %v407 = vmul.f32 %v346, %v379
        %v408 = vmul.f32 %v347, %v379
        %v409 = vmul.f32 %v348, %v379
        %v410 = vmul.f32 %v349, %v379
        %v411 = vmul.f32 %v350, %v379
        %v412 = vmul.f32 %v351, %v379
        %v413 = vmul.f32 %v352, %v379
        %v414 = vmul.f32 %v353, %v379
        %v415 = vmul.f32 %v354, %v379
        %v416 = vmul.f32 %v355, %v379
        %v417 = vmul.f32 %v356, %v379
        %v418 = vmul.f32 %v357, %v379
        %v419 = vmul.f32 %v358, %v379
        %v420 = vmul.f32 %v359, %v379
        %v421 = vmul.f32 %v360, %v379
        %v422 = vmul.f32 %v361, %v379
        %v423 = vmul.f32 %v362, %v379
        %v424 = vmul.f32 %v363, %v379
        %v425 = vmul.f32 %v364, %v379
        %v426 = vmul.f32 %v365, %v379
        %v427 = vmul.f32 %v366, %v379
        %v428 = vmul.f32 %v367, %v379
        %v429 = vmul.f32 %v368, %v379
        %v430 = vmul.f32 %v369, %v379
        %v431 = vmul.f32 %v370, %v379
        %v432 = vmul.f32 %v371, %v379
        %v433 = vmul.f32 %v372, %v379
        %v434 = vmul.f32 %v373, %v379
        %v435 = vld [vmem:[%s2] sm:$0x1]
        %v437 = vlaneseq
        %v438 = vshrl.u32 %v437, 7
        %v439 = vsub.s32 0, %v438
        %v440 = vrot.slane %v435, %v439
        %v442 = vadd.f32 %v381, %v440
        %v443 = vadd.f32 %v382, %v440
        %v444 = vadd.f32 %v383, %v440
        %v445 = vadd.f32 %v384, %v440
        %v446 = vadd.f32 %v385, %v440
        %v447 = vadd.f32 %v386, %v440
        %v448 = vadd.f32 %v387, %v440
        %v449 = vadd.f32 %v388, %v440
        %v450 = vadd.f32 %v389, %v440
        %v451 = vadd.f32 %v390, %v440
        %v452 = vadd.f32 %v391, %v440
        %v453 = vadd.f32 %v392, %v440
        %v454 = vadd.f32 %v393, %v440
        %v455 = vadd.f32 %v394, %v440
        %v456 = vadd.f32 %v395, %v440
        %v457 = vadd.f32 %v396, %v440
        %v458 = vadd.f32 %v397, %v440
        %v459 = vadd.f32 %v398, %v440
        %v460 = vadd.f32 %v399, %v440
        %v461 = vadd.f32 %v400, %v440
        %v462 = vadd.f32 %v401, %v440
        %v463 = vadd.f32 %v402, %v440
        %v464 = vadd.f32 %v403, %v440
        %v465 = vadd.f32 %v404, %v440
        %v466 = vadd.f32 %v405, %v440
        %v467 = vadd.f32 %v406, %v440
        %v468 = vadd.f32 %v407, %v440
        %v469 = vadd.f32 %v408, %v440
        %v470 = vadd.f32 %v409, %v440
        %v471 = vadd.f32 %v410, %v440
        %v472 = vadd.f32 %v411, %v440
        %v473 = vadd.f32 %v412, %v440
        %v474 = vadd.f32 %v413, %v440
        %v475 = vadd.f32 %v414, %v440
        %v476 = vadd.f32 %v415, %v440
        %v477 = vadd.f32 %v416, %v440
        %v478 = vadd.f32 %v417, %v440
        %v479 = vadd.f32 %v418, %v440
        %v480 = vadd.f32 %v419, %v440
        %v481 = vadd.f32 %v420, %v440
        %v482 = vadd.f32 %v421, %v440
        %v483 = vadd.f32 %v422, %v440
        %v484 = vadd.f32 %v423, %v440
        %v485 = vadd.f32 %v424, %v440
        %v486 = vadd.f32 %v425, %v440
        %v487 = vadd.f32 %v426, %v440
        %v488 = vadd.f32 %v427, %v440
        %v489 = vadd.f32 %v428, %v440
        %v490 = vadd.f32 %v429, %v440
        %v491 = vadd.f32 %v430, %v440
        %v492 = vadd.f32 %v431, %v440
        %v493 = vadd.f32 %v432, %v440
        %v494 = vadd.f32 %v433, %v440
        %v495 = vadd.f32 %v434, %v440
        %v496 = vmax.f32 %v442, 0.0
        %v497 = vmax.f32 %v443, 0.0
        %v498 = vmax.f32 %v444, 0.0
        %v499 = vmax.f32 %v445, 0.0
        %v500 = vmax.f32 %v446, 0.0
        %v501 = vmax.f32 %v447, 0.0
        %v502 = vmax.f32 %v448, 0.0
        %v503 = vmax.f32 %v449, 0.0
        %v504 = vmax.f32 %v450, 0.0
        %v505 = vmax.f32 %v451, 0.0
        %v506 = vmax.f32 %v452, 0.0
        %v507 = vmax.f32 %v453, 0.0
        %v508 = vmax.f32 %v454, 0.0
        %v509 = vmax.f32 %v455, 0.0
        %v510 = vmax.f32 %v456, 0.0
        %v511 = vmax.f32 %v457, 0.0
        %v512 = vmax.f32 %v458, 0.0
        %v513 = vmax.f32 %v459, 0.0
        %v514 = vmax.f32 %v460, 0.0
        %v515 = vmax.f32 %v461, 0.0
        %v516 = vmax.f32 %v462, 0.0
        %v517 = vmax.f32 %v463, 0.0
        %v518 = vmax.f32 %v464, 0.0
        %v519 = vmax.f32 %v465, 0.0
        %v520 = vmax.f32 %v466, 0.0
        %v521 = vmax.f32 %v467, 0.0
        %v522 = vmax.f32 %v468, 0.0
        %v523 = vmax.f32 %v469, 0.0
        %v524 = vmax.f32 %v470, 0.0
        %v525 = vmax.f32 %v471, 0.0
        %v526 = vmax.f32 %v472, 0.0
        %v527 = vmax.f32 %v473, 0.0
        %v528 = vmax.f32 %v474, 0.0
        %v529 = vmax.f32 %v475, 0.0
        %v530 = vmax.f32 %v476, 0.0
        %v531 = vmax.f32 %v477, 0.0
        %v532 = vmax.f32 %v478, 0.0
        %v533 = vmax.f32 %v479, 0.0
        %v534 = vmax.f32 %v480, 0.0
        %v535 = vmax.f32 %v481, 0.0
        %v536 = vmax.f32 %v482, 0.0
        %v537 = vmax.f32 %v483, 0.0
        %v538 = vmax.f32 %v484, 0.0
        %v539 = vmax.f32 %v485, 0.0
        %v540 = vmax.f32 %v486, 0.0
        %v541 = vmax.f32 %v487, 0.0
        %v542 = vmax.f32 %v488, 0.0
        %v543 = vmax.f32 %v489, 0.0
        %v544 = vmax.f32 %v490, 0.0
        %v545 = vmax.f32 %v491, 0.0
        %v546 = vmax.f32 %v492, 0.0
        %v547 = vmax.f32 %v493, 0.0
        %v548 = vmax.f32 %v494, 0.0
        %v549 = vmax.f32 %v495, 0.0
        %v550 = vsel %vm314, 1, 0
        %v551 = vsel %vm315, 1, 0
        %v552 = vsel %vm316, 1, 0
        %v553 = vsel %vm317, 1, 0
        %v554 = vsel %vm318, 1, 0
        %v555 = vsel %vm319, 1, 0
        %vm556 = vcmp.eq.s32.totalorder %v550, 1
        %vm557 = vcmp.eq.s32.totalorder %v551, 1
        %vm558 = vcmp.eq.s32.totalorder %v552, 1
        %vm559 = vcmp.eq.s32.totalorder %v553, 1
        %vm560 = vcmp.eq.s32.totalorder %v554, 1
        %vm561 = vcmp.eq.s32.totalorder %v555, 1
        %v562 = vsel %vm556, %v496, 0.0
        %v563 = vsel %vm557, %v497, 0.0
        %v564 = vsel %vm558, %v498, 0.0
        %v565 = vsel %vm559, %v499, 0.0
        %v566 = vsel %vm560, %v500, 0.0
        %v567 = vsel %vm561, %v501, 0.0
        %v568 = vsel %vm559, %v502, 0.0
        %v569 = vsel %vm560, %v503, 0.0
        %v570 = vsel %vm561, %v504, 0.0
        %v571 = vsel %vm559, %v505, 0.0
        %v572 = vsel %vm560, %v506, 0.0
        %v573 = vsel %vm561, %v507, 0.0
        %v574 = vsel %vm559, %v508, 0.0
        %v575 = vsel %vm560, %v509, 0.0
        %v576 = vsel %vm561, %v510, 0.0
        %v577 = vsel %vm559, %v511, 0.0
        %v578 = vsel %vm560, %v512, 0.0
        %v579 = vsel %vm561, %v513, 0.0
        %v580 = vsel %vm559, %v514, 0.0
        %v581 = vsel %vm560, %v515, 0.0
        %v582 = vsel %vm561, %v516, 0.0
        %v583 = vsel %vm559, %v517, 0.0
        %v584 = vsel %vm560, %v518, 0.0
        %v585 = vsel %vm561, %v519, 0.0
        %v586 = vsel %vm559, %v520, 0.0
        %v587 = vsel %vm560, %v521, 0.0
        %v588 = vsel %vm561, %v522, 0.0
        %v589 = vsel %vm559, %v523, 0.0
        %v590 = vsel %vm560, %v524, 0.0
        %v591 = vsel %vm561, %v525, 0.0
        %v592 = vsel %vm559, %v526, 0.0
        %v593 = vsel %vm560, %v527, 0.0
        %v594 = vsel %vm561, %v528, 0.0
        %v595 = vsel %vm559, %v529, 0.0
        %v596 = vsel %vm560, %v530, 0.0
        %v597 = vsel %vm561, %v531, 0.0
        %v598 = vsel %vm559, %v532, 0.0
        %v599 = vsel %vm560, %v533, 0.0
        %v600 = vsel %vm561, %v534, 0.0
        %v601 = vsel %vm559, %v535, 0.0
        %v602 = vsel %vm560, %v536, 0.0
        %v603 = vsel %vm561, %v537, 0.0
        %v604 = vsel %vm559, %v538, 0.0
        %v605 = vsel %vm560, %v539, 0.0
        %v606 = vsel %vm561, %v540, 0.0
        %v607 = vsel %vm559, %v541, 0.0
        %v608 = vsel %vm560, %v542, 0.0
        %v609 = vsel %vm561, %v543, 0.0
        %v610 = vsel %vm559, %v544, 0.0
        %v611 = vsel %vm560, %v545, 0.0
        %v612 = vsel %vm561, %v546, 0.0
        %v613 = vsel %vm556, %v547, 0.0
        %v614 = vsel %vm557, %v548, 0.0
        %v615 = vsel %vm558, %v549, 0.0
        %616 = vst [vmem:[#allocation2] sm:$0xff] %v562
        %617 = vst [vmem:[#allocation2 + $0x8] sm:$0xff] %v563
        %618 = vst [vmem:[#allocation2 + $0x10] sm:$0x3] %v564
        %619 = vst [vmem:[#allocation2 + $0x18] sm:$0xff] %v565
        %620 = vst [vmem:[#allocation2 + $0x20] sm:$0xff] %v566
        %621 = vst [vmem:[#allocation2 + $0x28] sm:$0x3] %v567
        %622 = vst [vmem:[#allocation2 + $0x30] sm:$0xff] %v568
        %623 = vst [vmem:[#allocation2 + $0x38] sm:$0xff] %v569
        %624 = vst [vmem:[#allocation2 + $0x40] sm:$0x3] %v570
        %625 = vst [vmem:[#allocation2 + $0x48] sm:$0xff] %v571
        %626 = vst [vmem:[#allocation2 + $0x50] sm:$0xff] %v572
        %627 = vst [vmem:[#allocation2 + $0x58] sm:$0x3] %v573
        %628 = vst [vmem:[#allocation2 + $0x60] sm:$0xff] %v574
        %629 = vst [vmem:[#allocation2 + $0x68] sm:$0xff] %v575
        %630 = vst [vmem:[#allocation2 + $0x70] sm:$0x3] %v576
        %631 = vst [vmem:[#allocation2 + $0x78] sm:$0xff] %v577
        %632 = vst [vmem:[#allocation2 + $0x80] sm:$0xff] %v578
        %633 = vst [vmem:[#allocation2 + $0x88] sm:$0x3] %v579
        %634 = vst [vmem:[#allocation2 + $0x90] sm:$0xff] %v580
        %635 = vst [vmem:[#allocation2 + $0x98] sm:$0xff] %v581
        %636 = vst [vmem:[#allocation2 + $0xa0] sm:$0x3] %v582
        %637 = vst [vmem:[#allocation2 + $0xa8] sm:$0xff] %v583
        %638 = vst [vmem:[#allocation2 + $0xb0] sm:$0xff] %v584
        %639 = vst [vmem:[#allocation2 + $0xb8] sm:$0x3] %v585
        %640 = vst [vmem:[#allocation2 + $0xc0] sm:$0xff] %v586
        %641 = vst [vmem:[#allocation2 + $0xc8] sm:$0xff] %v587
        %642 = vst [vmem:[#allocation2 + $0xd0] sm:$0x3] %v588
        %643 = vst [vmem:[#allocation2 + $0xd8] sm:$0xff] %v589
        %644 = vst [vmem:[#allocation2 + $0xe0] sm:$0xff] %v590
        %645 = vst [vmem:[#allocation2 + $0xe8] sm:$0x3] %v591
        %646 = vst [vmem:[#allocation2 + $0xf0] sm:$0xff] %v592
        %647 = vst [vmem:[#allocation2 + $0xf8] sm:$0xff] %v593
        %648 = vst [vmem:[#allocation2 + $0x100] sm:$0x3] %v594
        %649 = vst [vmem:[#allocation2 + $0x108] sm:$0xff] %v595
        %650 = vst [vmem:[#allocation2 + $0x110] sm:$0xff] %v596
        %651 = vst [vmem:[#allocation2 + $0x118] sm:$0x3] %v597
        %652 = vst [vmem:[#allocation2 + $0x120] sm:$0xff] %v598
        %653 = vst [vmem:[#allocation2 + $0x128] sm:$0xff] %v599
        %654 = vst [vmem:[#allocation2 + $0x130] sm:$0x3] %v600
        %655 = vst [vmem:[#allocation2 + $0x138] sm:$0xff] %v601
        %656 = vst [vmem:[#allocation2 + $0x140] sm:$0xff] %v602
        %657 = vst [vmem:[#allocation2 + $0x148] sm:$0x3] %v603
        %658 = vst [vmem:[#allocation2 + $0x150] sm:$0xff] %v604
        %659 = vst [vmem:[#allocation2 + $0x158] sm:$0xff] %v605
        %660 = vst [vmem:[#allocation2 + $0x160] sm:$0x3] %v606
        %661 = vst [vmem:[#allocation2 + $0x168] sm:$0xff] %v607
        %662 = vst [vmem:[#allocation2 + $0x170] sm:$0xff] %v608
        %663 = vst [vmem:[#allocation2 + $0x178] sm:$0x3] %v609
        %664 = vst [vmem:[#allocation2 + $0x180] sm:$0xff] %v610
        %665 = vst [vmem:[#allocation2 + $0x188] sm:$0xff] %v611
        %666 = vst [vmem:[#allocation2 + $0x190] sm:$0x3] %v612
        %667 = vst [vmem:[#allocation2 + $0x198] sm:$0xff] %v613
        %668 = vst [vmem:[#allocation2 + $0x1a0] sm:$0xff] %v614
        %669 = vst [vmem:[#allocation2 + $0x1a8] sm:$0x3] %v615
      $region44: #{preact_block_forward.7} parent=39 // pred_fallthru
        _
      %v670 = vld [vmem:[#allocation2] sm:$0xff]
      %v671 = vld [vmem:[#allocation2 + $0x8] sm:$0xff]
      %v672 = vld [vmem:[#allocation2 + $0x18] sm:$0xff]
      %v673 = vld [vmem:[#allocation2 + $0x20] sm:$0xff]
      %v674 = vld [vmem:[#allocation2 + $0x30] sm:$0xff]
      %v675 = vld [vmem:[#allocation2 + $0x38] sm:$0xff]
      %v676 = vld [vmem:[#allocation2 + $0x48] sm:$0xff]
      %v677 = vld [vmem:[#allocation2 + $0x50] sm:$0xff]
      %v678 = vld [vmem:[#allocation2 + $0x60] sm:$0xff]
      %v679 = vld [vmem:[#allocation2 + $0x68] sm:$0xff]
      %v680 = vld [vmem:[#allocation2 + $0x78] sm:$0xff]
      %v681 = vld [vmem:[#allocation2 + $0x80] sm:$0xff]
      %v682 = vld [vmem:[#allocation2 + $0x90] sm:$0xff]
      %v683 = vld [vmem:[#allocation2 + $0x98] sm:$0xff]
      %v684 = vld [vmem:[#allocation2 + $0xa8] sm:$0xff]
      %v685 = vld [vmem:[#allocation2 + $0xb0] sm:$0xff]
      %v686 = vld [vmem:[#allocation2 + $0xc0] sm:$0xff]
      %v687 = vld [vmem:[#allocation2 + $0xc8] sm:$0xff]
      %v688 = vld [vmem:[#allocation2 + $0xd8] sm:$0xff]
      %v689 = vld [vmem:[#allocation2 + $0xe0] sm:$0xff]
      %v690 = vld [vmem:[#allocation2 + $0xf0] sm:$0xff]
      %v691 = vld [vmem:[#allocation2 + $0xf8] sm:$0xff]
      %v692 = vld [vmem:[#allocation2 + $0x108] sm:$0xff]
      %v693 = vld [vmem:[#allocation2 + $0x110] sm:$0xff]
      %v694 = vld [vmem:[#allocation2 + $0x120] sm:$0xff]
      %v695 = vld [vmem:[#allocation2 + $0x128] sm:$0xff]
      %v696 = vld [vmem:[#allocation2 + $0x138] sm:$0xff]
      %v697 = vld [vmem:[#allocation2 + $0x140] sm:$0xff]
      %v698 = vld [vmem:[#allocation2 + $0x150] sm:$0xff]
      %v699 = vld [vmem:[#allocation2 + $0x158] sm:$0xff]
      %v700 = vld [vmem:[#allocation2 + $0x168] sm:$0xff]
      %v701 = vld [vmem:[#allocation2 + $0x170] sm:$0xff]
      %v702 = vpack.c.bf16 %v671, %v670
      %v703 = vpack.c.bf16 %v673, %v672
      %v704 = vpack.c.bf16 %v675, %v674
      %v705 = vpack.c.bf16 %v677, %v676
      %v706 = vpack.c.bf16 %v679, %v678
      %v707 = vpack.c.bf16 %v681, %v680
      %v708 = vpack.c.bf16 %v683, %v682
      %v709 = vpack.c.bf16 %v685, %v684
      %v710 = vpack.c.bf16 %v687, %v686
      %v711 = vpack.c.bf16 %v689, %v688
      %v712 = vpack.c.bf16 %v691, %v690
      %v713 = vpack.c.bf16 %v693, %v692
      %v714 = vpack.c.bf16 %v695, %v694
      %v715 = vpack.c.bf16 %v697, %v696
      %v716 = vpack.c.bf16 %v699, %v698
      %v717 = vpack.c.bf16 %v701, %v700
      %v718 = vld [vmem:[%s276] sm:$0xf]
      %v719 = vld [vmem:[%s276 + $0x4] sm:$0xf]
      %v720 = vld [vmem:[%s276 + $0x8] sm:$0xf]
      %v721 = vld [vmem:[%s276 + $0xc] sm:$0xf]
      %v722 = vld [vmem:[%s276 + $0x10] sm:$0xf]
      %v723 = vld [vmem:[%s276 + $0x14] sm:$0xf]
      %v724 = vld [vmem:[%s276 + $0x18] sm:$0xf]
      %v725 = vld [vmem:[%s276 + $0x1c] sm:$0xf]
      %v726 = vld [vmem:[%s276 + $0x20] sm:$0xf]
      %v727 = vld [vmem:[%s276 + $0x24] sm:$0xf]
      %v728 = vld [vmem:[%s276 + $0x28] sm:$0xf]
      %v729 = vld [vmem:[%s276 + $0x2c] sm:$0xf]
      %v730 = vld [vmem:[%s276 + $0x30] sm:$0xf]
      %v731 = vld [vmem:[%s276 + $0x34] sm:$0xf]
      %v732 = vld [vmem:[%s276 + $0x38] sm:$0xf]
      %v733 = vld [vmem:[%s276 + $0x3c] sm:$0xf]
      %v750 = vunpack.c.l.b16 %v718
      %v751 = vunpack.c.l.b16 %v719
      %v752 = vunpack.c.l.b16 %v720
      %v753 = vunpack.c.l.b16 %v721
      %v754 = vunpack.c.l.b16 %v722
      %v755 = vunpack.c.l.b16 %v723
      %v756 = vunpack.c.l.b16 %v724
      %v757 = vunpack.c.l.b16 %v725
      %v758 = vunpack.c.l.b16 %v726
      %v759 = vunpack.c.l.b16 %v727
      %v760 = vunpack.c.l.b16 %v728
      %v761 = vunpack.c.l.b16 %v729
      %v762 = vunpack.c.l.b16 %v730
      %v763 = vunpack.c.l.b16 %v731
      %v764 = vunpack.c.l.b16 %v732
      %v765 = vunpack.c.l.b16 %v733
      %v766 = vpack.c.b16 %v751, %v750
      %v767 = vpack.c.b16 %v753, %v752
      %v768 = vpack.c.b16 %v755, %v754
      %v769 = vpack.c.b16 %v757, %v756
      %v770 = vpack.c.b16 %v759, %v758
      %v771 = vpack.c.b16 %v761, %v760
      %v772 = vpack.c.b16 %v763, %v762
      %v773 = vpack.c.b16 %v765, %v764
      %782 = vmatprep.subr.bf16.mxu0 0
      %783 = vmatpush1.bf16.msra.mxu0 %v773
      %784 = vmatprep.subr.bf16.mxu0 0
      %785 = vmatpush1.bf16.msra.mxu0 %v772
      %786 = vmatprep.subr.bf16.mxu0 0
      %787 = vmatpush1.bf16.msra.mxu0 %v771
      %788 = vmatprep.subr.bf16.mxu0 0
      %789 = vmatpush1.bf16.msra.mxu0 %v770
      %790 = vmatprep.subr.bf16.mxu0 0
      %791 = vmatpush1.bf16.msra.mxu0 %v769
      %792 = vmatprep.subr.bf16.mxu0 0
      %793 = vmatpush1.bf16.msra.mxu0 %v768
      %794 = vmatprep.subr.bf16.mxu0 0
      %795 = vmatpush1.bf16.msra.mxu0 %v767
      %796 = vmatprep.subr.bf16.mxu0 0
      %797 = vmatpush1.bf16.msra.mxu0 %v766
      %798 = vmatprep.subr.bf16.mxu0 0
      %799 = vmatpush2.bf16.msra.mxu0 0
      %800 = vmatprep.subr.bf16.mxu0 0
      %801 = vmatpush2.bf16.msra.mxu0 0
      %802 = vmatprep.subr.bf16.mxu0 0
      %803 = vmatpush2.bf16.msra.mxu0 0
      %804 = vmatprep.subr.bf16.mxu0 0
      %805 = vmatpush2.bf16.msra.mxu0 0
      %806 = vmatprep.subr.bf16.mxu0 0
      %807 = vmatpush2.bf16.msra.mxu0 0
      %808 = vmatprep.subr.bf16.mxu0 0
      %809 = vmatpush2.bf16.msra.mxu0 0
      %810 = vmatprep.subr.bf16.mxu0 0
      %811 = vmatpush2.bf16.msra.mxu0 0
      %812 = vmatprep.subr.bf16.mxu0 0
      %813 = vmatpush2.bf16.msra.mxu0 0
      %814 = vmatprep.mubr.bf16.mxu0 0
      %815 = vmatmul.mubr.bf16.gmra.mxu0 %v702
      %v816 = vpop.f32.mrf.mxu0
      %v817 = vadd.f32 0.0, %v816
      %v818 = vpop.f32.mrf.mxu0
      %v819 = vpop.f32.mrf.mxu0
      %v820 = vadd.f32 0.0, %v819
      %v821 = vpop.f32.mrf.mxu0
      %822 = vmatprep.mubr.bf16.mxu0 0
      %823 = vmatmul.mubr.bf16.gmra.mxu0 %v703
      %v824 = vpop.f32.mrf.mxu0
      %v825 = vadd.f32 0.0, %v824
      %v826 = vpop.f32.mrf.mxu0
      %v827 = vpop.f32.mrf.mxu0
      %v828 = vadd.f32 0.0, %v827
      %v829 = vpop.f32.mrf.mxu0
      %830 = vmatprep.mubr.bf16.mxu0 0
      %831 = vmatmul.mubr.bf16.gmra.mxu0 %v704
      %v832 = vpop.f32.mrf.mxu0
      %v833 = vadd.f32 0.0, %v832
      %v834 = vpop.f32.mrf.mxu0
      %v835 = vpop.f32.mrf.mxu0
      %v836 = vadd.f32 0.0, %v835
      %v837 = vpop.f32.mrf.mxu0
      %838 = vmatprep.mubr.bf16.mxu0 0
      %839 = vmatmul.mubr.bf16.gmra.mxu0 %v705
      %v840 = vpop.f32.mrf.mxu0
      %v841 = vadd.f32 0.0, %v840
      %v842 = vpop.f32.mrf.mxu0
      %v843 = vpop.f32.mrf.mxu0
      %v844 = vadd.f32 0.0, %v843
      %v845 = vpop.f32.mrf.mxu0
      %846 = vmatprep.mubr.bf16.mxu0 0
      %847 = vmatmul.mubr.bf16.gmra.mxu0 %v706
      %v848 = vpop.f32.mrf.mxu0
      %v849 = vadd.f32 0.0, %v848
      %v850 = vpop.f32.mrf.mxu0
      %v851 = vpop.f32.mrf.mxu0
      %v852 = vadd.f32 0.0, %v851
      %v853 = vpop.f32.mrf.mxu0
      %854 = vmatprep.mubr.bf16.mxu0 0
      %855 = vmatmul.mubr.bf16.gmra.mxu0 %v707
      %v856 = vpop.f32.mrf.mxu0
      %v857 = vadd.f32 0.0, %v856
      %v858 = vpop.f32.mrf.mxu0
      %v859 = vpop.f32.mrf.mxu0
      %v860 = vadd.f32 0.0, %v859
      %v861 = vpop.f32.mrf.mxu0
      %862 = vmatprep.mubr.bf16.mxu0 0
      %863 = vmatmul.mubr.bf16.gmra.mxu0 %v708
      %v864 = vpop.f32.mrf.mxu0
      %v865 = vadd.f32 0.0, %v864
      %v866 = vpop.f32.mrf.mxu0
      %v867 = vpop.f32.mrf.mxu0
      %v868 = vadd.f32 0.0, %v867
      %v869 = vpop.f32.mrf.mxu0
      %870 = vmatprep.mubr.bf16.mxu0 0
      %871 = vmatmul.mubr.bf16.gmra.mxu0 %v709
      %v872 = vpop.f32.mrf.mxu0
      %v873 = vadd.f32 0.0, %v872
      %v874 = vpop.f32.mrf.mxu0
      %v875 = vpop.f32.mrf.mxu0
      %v876 = vadd.f32 0.0, %v875
      %v877 = vpop.f32.mrf.mxu0
      %878 = vmatprep.mubr.bf16.mxu0 0
      %879 = vmatmul.mubr.bf16.gmra.mxu0 %v710
      %v880 = vpop.f32.mrf.mxu0
      %v881 = vadd.f32 0.0, %v880
      %v882 = vpop.f32.mrf.mxu0
      %v883 = vpop.f32.mrf.mxu0
      %v884 = vadd.f32 0.0, %v883
      %v885 = vpop.f32.mrf.mxu0
      %886 = vmatprep.mubr.bf16.mxu0 0
      %887 = vmatmul.mubr.bf16.gmra.mxu0 %v711
      %v888 = vpop.f32.mrf.mxu0
      %v889 = vadd.f32 0.0, %v888
      %v890 = vpop.f32.mrf.mxu0
      %v891 = vpop.f32.mrf.mxu0
      %v892 = vadd.f32 0.0, %v891
      %v893 = vpop.f32.mrf.mxu0
      %894 = vmatprep.mubr.bf16.mxu0 0
      %895 = vmatmul.mubr.bf16.gmra.mxu0 %v712
      %v896 = vpop.f32.mrf.mxu0
      %v897 = vadd.f32 0.0, %v896
      %v898 = vpop.f32.mrf.mxu0
      %v899 = vpop.f32.mrf.mxu0
      %v900 = vadd.f32 0.0, %v899
      %v901 = vpop.f32.mrf.mxu0
      %902 = vmatprep.mubr.bf16.mxu0 0
      %903 = vmatmul.mubr.bf16.gmra.mxu0 %v713
      %v904 = vpop.f32.mrf.mxu0
      %v905 = vadd.f32 0.0, %v904
      %v906 = vpop.f32.mrf.mxu0
      %v907 = vpop.f32.mrf.mxu0
      %v908 = vadd.f32 0.0, %v907
      %v909 = vpop.f32.mrf.mxu0
      %910 = vmatprep.mubr.bf16.mxu0 0
      %911 = vmatmul.mubr.bf16.gmra.mxu0 %v714
      %v912 = vpop.f32.mrf.mxu0
      %v913 = vadd.f32 0.0, %v912
      %v914 = vpop.f32.mrf.mxu0
      %v915 = vpop.f32.mrf.mxu0
      %v916 = vadd.f32 0.0, %v915
      %v917 = vpop.f32.mrf.mxu0
      %918 = vmatprep.mubr.bf16.mxu0 0
      %919 = vmatmul.mubr.bf16.gmra.mxu0 %v715
      %v920 = vpop.f32.mrf.mxu0
      %v921 = vadd.f32 0.0, %v920
      %v922 = vpop.f32.mrf.mxu0
      %v923 = vpop.f32.mrf.mxu0
      %v924 = vadd.f32 0.0, %v923
      %v925 = vpop.f32.mrf.mxu0
      %926 = vmatprep.mubr.bf16.mxu0 0
      %927 = vmatmul.mubr.bf16.gmra.mxu0 %v716
      %v928 = vpop.f32.mrf.mxu0
      %v929 = vadd.f32 0.0, %v928
      %v930 = vpop.f32.mrf.mxu0
      %v931 = vpop.f32.mrf.mxu0
      %v932 = vadd.f32 0.0, %v931
      %v933 = vpop.f32.mrf.mxu0
      %934 = vmatprep.mubr.bf16.mxu0 0
      %935 = vmatmul.mubr.bf16.gmra.mxu0 %v717
      %v936 = vpop.f32.mrf.mxu0
      %v937 = vadd.f32 0.0, %v936
      %v938 = vpop.f32.mrf.mxu0
      %v939 = vpop.f32.mrf.mxu0
      %v940 = vadd.f32 0.0, %v939
      %v941 = vpop.f32.mrf.mxu0
      %942 = vdwg.mxu0
      %943 = vst [vmem:[#allocation3] sm:$0xff] %v817
      %944 = vst [vmem:[#allocation3 + $0x8] sm:$0xff] %v820
      %945 = vst [vmem:[#allocation3 + $0x10] sm:$0xff] %v825
      %946 = vst [vmem:[#allocation3 + $0x18] sm:$0xff] %v828
      %947 = vst [vmem:[#allocation3 + $0x20] sm:$0xff] %v833
      %948 = vst [vmem:[#allocation3 + $0x28] sm:$0xff] %v836
      %949 = vst [vmem:[#allocation3 + $0x30] sm:$0xff] %v841
      %950 = vst [vmem:[#allocation3 + $0x38] sm:$0xff] %v844
      %951 = vst [vmem:[#allocation3 + $0x40] sm:$0xff] %v849
      %952 = vst [vmem:[#allocation3 + $0x48] sm:$0xff] %v852
      %953 = vst [vmem:[#allocation3 + $0x50] sm:$0xff] %v857
      %954 = vst [vmem:[#allocation3 + $0x58] sm:$0xff] %v860
      %955 = vst [vmem:[#allocation3 + $0x60] sm:$0xff] %v865
      %956 = vst [vmem:[#allocation3 + $0x68] sm:$0xff] %v868
      %957 = vst [vmem:[#allocation3 + $0x70] sm:$0xff] %v873
      %958 = vst [vmem:[#allocation3 + $0x78] sm:$0xff] %v876
      %959 = vst [vmem:[#allocation3 + $0x80] sm:$0xff] %v881
      %960 = vst [vmem:[#allocation3 + $0x88] sm:$0xff] %v884
      %961 = vst [vmem:[#allocation3 + $0x90] sm:$0xff] %v889
      %962 = vst [vmem:[#allocation3 + $0x98] sm:$0xff] %v892
      %963 = vst [vmem:[#allocation3 + $0xa0] sm:$0xff] %v897
      %964 = vst [vmem:[#allocation3 + $0xa8] sm:$0xff] %v900
      %965 = vst [vmem:[#allocation3 + $0xb0] sm:$0xff] %v905
      %966 = vst [vmem:[#allocation3 + $0xb8] sm:$0xff] %v908
      %967 = vst [vmem:[#allocation3 + $0xc0] sm:$0xff] %v913
      %968 = vst [vmem:[#allocation3 + $0xc8] sm:$0xff] %v916
      %969 = vst [vmem:[#allocation3 + $0xd0] sm:$0xff] %v921
      %970 = vst [vmem:[#allocation3 + $0xd8] sm:$0xff] %v924
      %971 = vst [vmem:[#allocation3 + $0xe0] sm:$0xff] %v929
      %972 = vst [vmem:[#allocation3 + $0xe8] sm:$0xff] %v932
      %973 = vst [vmem:[#allocation3 + $0xf0] sm:$0xff] %v937
      %974 = vst [vmem:[#allocation3 + $0xf8] sm:$0xff] %v940
      %v975 = vld [vmem:[#allocation2 + $0x1] sm:$0xff]
      %v976 = vld [vmem:[#allocation2 + $0x9] sm:$0xff]
      %v977 = vld [vmem:[#allocation2 + $0x19] sm:$0xff]
      %v978 = vld [vmem:[#allocation2 + $0x21] sm:$0xff]
      %v979 = vld [vmem:[#allocation2 + $0x31] sm:$0xff]
      %v980 = vld [vmem:[#allocation2 + $0x39] sm:$0xff]
      %v981 = vld [vmem:[#allocation2 + $0x49] sm:$0xff]
      %v982 = vld [vmem:[#allocation2 + $0x51] sm:$0xff]
      %v983 = vld [vmem:[#allocation2 + $0x61] sm:$0xff]
      %v984 = vld [vmem:[#allocation2 + $0x69] sm:$0xff]
      %v985 = vld [vmem:[#allocation2 + $0x79] sm:$0xff]
      %v986 = vld [vmem:[#allocation2 + $0x81] sm:$0xff]
      %v987 = vld [vmem:[#allocation2 + $0x91] sm:$0xff]
      %v988 = vld [vmem:[#allocation2 + $0x99] sm:$0xff]
      %v989 = vld [vmem:[#allocation2 + $0xa9] sm:$0xff]
      %v990 = vld [vmem:[#allocation2 + $0xb1] sm:$0xff]
      %v991 = vld [vmem:[#allocation2 + $0xc1] sm:$0xff]
      %v992 = vld [vmem:[#allocation2 + $0xc9] sm:$0xff]
      %v993 = vld [vmem:[#allocation2 + $0xd9] sm:$0xff]
      %v994 = vld [vmem:[#allocation2 + $0xe1] sm:$0xff]
      %v995 = vld [vmem:[#allocation2 + $0xf1] sm:$0xff]
      %v996 = vld [vmem:[#allocation2 + $0xf9] sm:$0xff]
      %v997 = vld [vmem:[#allocation2 + $0x109] sm:$0xff]
      %v998 = vld [vmem:[#allocation2 + $0x111] sm:$0xff]
      %v999 = vld [vmem:[#allocation2 + $0x121] sm:$0xff]
      %v1000 = vld [vmem:[#allocation2 + $0x129] sm:$0xff]
      %v1001 = vld [vmem:[#allocation2 + $0x139] sm:$0xff]
      %v1002 = vld [vmem:[#allocation2 + $0x141] sm:$0xff]
      %v1003 = vld [vmem:[#allocation2 + $0x151] sm:$0xff]
      %v1004 = vld [vmem:[#allocation2 + $0x159] sm:$0xff]
      %v1005 = vld [vmem:[#allocation2 + $0x169] sm:$0xff]
      %v1006 = vld [vmem:[#allocation2 + $0x171] sm:$0xff]
      %v1007 = vpack.c.bf16 %v976, %v975
      %v1008 = vpack.c.bf16 %v978, %v977
      %v1009 = vpack.c.bf16 %v980, %v979
      %v1010 = vpack.c.bf16 %v982, %v981
      %v1011 = vpack.c.bf16 %v984, %v983
      %v1012 = vpack.c.bf16 %v986, %v985
      %v1013 = vpack.c.bf16 %v988, %v987
      %v1014 = vpack.c.bf16 %v990, %v989
      %v1015 = vpack.c.bf16 %v992, %v991
      %v1016 = vpack.c.bf16 %v994, %v993
      %v1017 = vpack.c.bf16 %v996, %v995
      %v1018 = vpack.c.bf16 %v998, %v997
      %v1019 = vpack.c.bf16 %v1000, %v999
      %v1020 = vpack.c.bf16 %v1002, %v1001
      %v1021 = vpack.c.bf16 %v1004, %v1003
      %v1022 = vpack.c.bf16 %v1006, %v1005
      %s1023 = scalar_lea.vmem %s276, 64
      %v1024 = vld [vmem:[%s1023] sm:$0xf]
      %v1025 = vld [vmem:[%s1023 + $0x4] sm:$0xf]
      %v1026 = vld [vmem:[%s1023 + $0x8] sm:$0xf]
      %v1027 = vld [vmem:[%s1023 + $0xc] sm:$0xf]
      %v1028 = vld [vmem:[%s1023 + $0x10] sm:$0xf]
      %v1029 = vld [vmem:[%s1023 + $0x14] sm:$0xf]
      %v1030 = vld [vmem:[%s1023 + $0x18] sm:$0xf]
      %v1031 = vld [vmem:[%s1023 + $0x1c] sm:$0xf]
      %v1032 = vld [vmem:[%s1023 + $0x20] sm:$0xf]
      %v1033 = vld [vmem:[%s1023 + $0x24] sm:$0xf]
      %v1034 = vld [vmem:[%s1023 + $0x28] sm:$0xf]
      %v1035 = vld [vmem:[%s1023 + $0x2c] sm:$0xf]
      %v1036 = vld [vmem:[%s1023 + $0x30] sm:$0xf]
      %v1037 = vld [vmem:[%s1023 + $0x34] sm:$0xf]
      %v1038 = vld [vmem:[%s1023 + $0x38] sm:$0xf]
      %v1039 = vld [vmem:[%s1023 + $0x3c] sm:$0xf]
      %v1056 = vunpack.c.l.b16 %v1024
      %v1057 = vunpack.c.l.b16 %v1025
      %v1058 = vunpack.c.l.b16 %v1026
      %v1059 = vunpack.c.l.b16 %v1027
      %v1060 = vunpack.c.l.b16 %v1028
      %v1061 = vunpack.c.l.b16 %v1029
      %v1062 = vunpack.c.l.b16 %v1030
      %v1063 = vunpack.c.l.b16 %v1031
      %v1064 = vunpack.c.l.b16 %v1032
      %v1065 = vunpack.c.l.b16 %v1033
      %v1066 = vunpack.c.l.b16 %v1034
      %v1067 = vunpack.c.l.b16 %v1035
      %v1068 = vunpack.c.l.b16 %v1036
      %v1069 = vunpack.c.l.b16 %v1037
      %v1070 = vunpack.c.l.b16 %v1038
      %v1071 = vunpack.c.l.b16 %v1039
      %v1072 = vpack.c.b16 %v1057, %v1056
      %v1073 = vpack.c.b16 %v1059, %v1058
      %v1074 = vpack.c.b16 %v1061, %v1060
      %v1075 = vpack.c.b16 %v1063, %v1062
      %v1076 = vpack.c.b16 %v1065, %v1064
      %v1077 = vpack.c.b16 %v1067, %v1066
      %v1078 = vpack.c.b16 %v1069, %v1068
      %v1079 = vpack.c.b16 %v1071, %v1070
      %1088 = vmatprep.subr.bf16.mxu0 0
      %1089 = vmatpush1.bf16.msra.mxu0 %v1079
      %1090 = vmatprep.subr.bf16.mxu0 0
      %1091 = vmatpush1.bf16.msra.mxu0 %v1078
      %1092 = vmatprep.subr.bf16.mxu0 0
      %1093 = vmatpush1.bf16.msra.mxu0 %v1077
      %1094 = vmatprep.subr.bf16.mxu0 0
      %1095 = vmatpush1.bf16.msra.mxu0 %v1076
      %1096 = vmatprep.subr.bf16.mxu0 0
      %1097 = vmatpush1.bf16.msra.mxu0 %v1075
      %1098 = vmatprep.subr.bf16.mxu0 0
      %1099 = vmatpush1.bf16.msra.mxu0 %v1074
      %1100 = vmatprep.subr.bf16.mxu0 0
      %1101 = vmatpush1.bf16.msra.mxu0 %v1073
      %1102 = vmatprep.subr.bf16.mxu0 0
      %1103 = vmatpush1.bf16.msra.mxu0 %v1072
      %1104 = vmatprep.subr.bf16.mxu0 0
      %1105 = vmatpush2.bf16.msra.mxu0 0
      %1106 = vmatprep.subr.bf16.mxu0 0
      %1107 = vmatpush2.bf16.msra.mxu0 0
      %1108 = vmatprep.subr.bf16.mxu0 0
      %1109 = vmatpush2.bf16.msra.mxu0 0
      %1110 = vmatprep.subr.bf16.mxu0 0
      %1111 = vmatpush2.bf16.msra.mxu0 0
      %1112 = vmatprep.subr.bf16.mxu0 0
      %1113 = vmatpush2.bf16.msra.mxu0 0
      %1114 = vmatprep.subr.bf16.mxu0 0
      %1115 = vmatpush2.bf16.msra.mxu0 0
      %1116 = vmatprep.subr.bf16.mxu0 0
      %1117 = vmatpush2.bf16.msra.mxu0 0
      %1118 = vmatprep.subr.bf16.mxu0 0
      %1119 = vmatpush2.bf16.msra.mxu0 0
      %1120 = vmatprep.mubr.bf16.mxu0 0
      %1121 = vmatmul.mubr.bf16.gmra.mxu0 %v1007
      %v1122 = vpop.f32.mrf.mxu0
      %v1123 = vadd.f32 0.0, %v1122
      %v1124 = vpop.f32.mrf.mxu0
      %v1125 = vpop.f32.mrf.mxu0
      %v1126 = vadd.f32 0.0, %v1125
      %v1127 = vpop.f32.mrf.mxu0
      %1128 = vmatprep.mubr.bf16.mxu0 0
      %1129 = vmatmul.mubr.bf16.gmra.mxu0 %v1008
      %v1130 = vpop.f32.mrf.mxu0
      %v1131 = vadd.f32 0.0, %v1130
      %v1132 = vpop.f32.mrf.mxu0
      %v1133 = vpop.f32.mrf.mxu0
      %v1134 = vadd.f32 0.0, %v1133
      %v1135 = vpop.f32.mrf.mxu0
      %1136 = vmatprep.mubr.bf16.mxu0 0
      %1137 = vmatmul.mubr.bf16.gmra.mxu0 %v1009
      %v1138 = vpop.f32.mrf.mxu0
      %v1139 = vadd.f32 0.0, %v1138
      %v1140 = vpop.f32.mrf.mxu0
      %v1141 = vpop.f32.mrf.mxu0
      %v1142 = vadd.f32 0.0, %v1141
      %v1143 = vpop.f32.mrf.mxu0
      %1144 = vmatprep.mubr.bf16.mxu0 0
      %1145 = vmatmul.mubr.bf16.gmra.mxu0 %v1010
      %v1146 = vpop.f32.mrf.mxu0
      %v1147 = vadd.f32 0.0, %v1146
      %v1148 = vpop.f32.mrf.mxu0
      %v1149 = vpop.f32.mrf.mxu0
      %v1150 = vadd.f32 0.0, %v1149
      %v1151 = vpop.f32.mrf.mxu0
      %1152 = vmatprep.mubr.bf16.mxu0 0
      %1153 = vmatmul.mubr.bf16.gmra.mxu0 %v1011
      %v1154 = vpop.f32.mrf.mxu0
      %v1155 = vadd.f32 0.0, %v1154
      %v1156 = vpop.f32.mrf.mxu0
      %v1157 = vpop.f32.mrf.mxu0
      %v1158 = vadd.f32 0.0, %v1157
      %v1159 = vpop.f32.mrf.mxu0
      %1160 = vmatprep.mubr.bf16.mxu0 0
      %1161 = vmatmul.mubr.bf16.gmra.mxu0 %v1012
      %v1162 = vpop.f32.mrf.mxu0
      %v1163 = vadd.f32 0.0, %v1162
      %v1164 = vpop.f32.mrf.mxu0
      %v1165 = vpop.f32.mrf.mxu0
      %v1166 = vadd.f32 0.0, %v1165
      %v1167 = vpop.f32.mrf.mxu0
      %1168 = vmatprep.mubr.bf16.mxu0 0
      %1169 = vmatmul.mubr.bf16.gmra.mxu0 %v1013
      %v1170 = vpop.f32.mrf.mxu0
      %v1171 = vadd.f32 0.0, %v1170
      %v1172 = vpop.f32.mrf.mxu0
      %v1173 = vpop.f32.mrf.mxu0
      %v1174 = vadd.f32 0.0, %v1173
      %v1175 = vpop.f32.mrf.mxu0
      %1176 = vmatprep.mubr.bf16.mxu0 0
      %1177 = vmatmul.mubr.bf16.gmra.mxu0 %v1014
      %v1178 = vpop.f32.mrf.mxu0
      %v1179 = vadd.f32 0.0, %v1178
      %v1180 = vpop.f32.mrf.mxu0
      %v1181 = vpop.f32.mrf.mxu0
      %v1182 = vadd.f32 0.0, %v1181
      %v1183 = vpop.f32.mrf.mxu0
      %1184 = vmatprep.mubr.bf16.mxu0 0
      %1185 = vmatmul.mubr.bf16.gmra.mxu0 %v1015
      %v1186 = vpop.f32.mrf.mxu0
      %v1187 = vadd.f32 0.0, %v1186
      %v1188 = vpop.f32.mrf.mxu0
      %v1189 = vpop.f32.mrf.mxu0
      %v1190 = vadd.f32 0.0, %v1189
      %v1191 = vpop.f32.mrf.mxu0
      %1192 = vmatprep.mubr.bf16.mxu0 0
      %1193 = vmatmul.mubr.bf16.gmra.mxu0 %v1016
      %v1194 = vpop.f32.mrf.mxu0
      %v1195 = vadd.f32 0.0, %v1194
      %v1196 = vpop.f32.mrf.mxu0
      %v1197 = vpop.f32.mrf.mxu0
      %v1198 = vadd.f32 0.0, %v1197
      %v1199 = vpop.f32.mrf.mxu0
      %1200 = vmatprep.mubr.bf16.mxu0 0
      %1201 = vmatmul.mubr.bf16.gmra.mxu0 %v1017
      %v1202 = vpop.f32.mrf.mxu0
      %v1203 = vadd.f32 0.0, %v1202
      %v1204 = vpop.f32.mrf.mxu0
      %v1205 = vpop.f32.mrf.mxu0
      %v1206 = vadd.f32 0.0, %v1205
      %v1207 = vpop.f32.mrf.mxu0
      %1208 = vmatprep.mubr.bf16.mxu0 0
      %1209 = vmatmul.mubr.bf16.gmra.mxu0 %v1018
      %v1210 = vpop.f32.mrf.mxu0
      %v1211 = vadd.f32 0.0, %v1210
      %v1212 = vpop.f32.mrf.mxu0
      %v1213 = vpop.f32.mrf.mxu0
      %v1214 = vadd.f32 0.0, %v1213
      %v1215 = vpop.f32.mrf.mxu0
      %1216 = vmatprep.mubr.bf16.mxu0 0
      %1217 = vmatmul.mubr.bf16.gmra.mxu0 %v1019
      %v1218 = vpop.f32.mrf.mxu0
      %v1219 = vadd.f32 0.0, %v1218
      %v1220 = vpop.f32.mrf.mxu0
      %v1221 = vpop.f32.mrf.mxu0
      %v1222 = vadd.f32 0.0, %v1221
      %v1223 = vpop.f32.mrf.mxu0
      %1224 = vmatprep.mubr.bf16.mxu0 0
      %1225 = vmatmul.mubr.bf16.gmra.mxu0 %v1020
      %v1226 = vpop.f32.mrf.mxu0
      %v1227 = vadd.f32 0.0, %v1226
      %v1228 = vpop.f32.mrf.mxu0
      %v1229 = vpop.f32.mrf.mxu0
      %v1230 = vadd.f32 0.0, %v1229
      %v1231 = vpop.f32.mrf.mxu0
      %1232 = vmatprep.mubr.bf16.mxu0 0
      %1233 = vmatmul.mubr.bf16.gmra.mxu0 %v1021
      %v1234 = vpop.f32.mrf.mxu0
      %v1235 = vadd.f32 0.0, %v1234
      %v1236 = vpop.f32.mrf.mxu0
      %v1237 = vpop.f32.mrf.mxu0
      %v1238 = vadd.f32 0.0, %v1237
      %v1239 = vpop.f32.mrf.mxu0
      %1240 = vmatprep.mubr.bf16.mxu0 0
      %1241 = vmatmul.mubr.bf16.gmra.mxu0 %v1022
      %v1242 = vpop.f32.mrf.mxu0
      %v1243 = vadd.f32 0.0, %v1242
      %v1244 = vpop.f32.mrf.mxu0
      %v1245 = vpop.f32.mrf.mxu0
      %v1246 = vadd.f32 0.0, %v1245
      %v1247 = vpop.f32.mrf.mxu0
      %1248 = vdwg.mxu0
      %v1249 = vld [vmem:[#allocation3] sm:$0xff]
      %v1250 = vld [vmem:[#allocation3 + $0x8] sm:$0xff]
      %v1251 = vld [vmem:[#allocation3 + $0x10] sm:$0xff]
      %v1252 = vld [vmem:[#allocation3 + $0x18] sm:$0xff]
      %v1253 = vld [vmem:[#allocation3 + $0x20] sm:$0xff]
      %v1254 = vld [vmem:[#allocation3 + $0x28] sm:$0xff]
      %v1255 = vld [vmem:[#allocation3 + $0x30] sm:$0xff]
      %v1256 = vld [vmem:[#allocation3 + $0x38] sm:$0xff]
      %v1257 = vld [vmem:[#allocation3 + $0x40] sm:$0xff]
      %v1258 = vld [vmem:[#allocation3 + $0x48] sm:$0xff]
      %v1259 = vld [vmem:[#allocation3 + $0x50] sm:$0xff]
      %v1260 = vld [vmem:[#allocation3 + $0x58] sm:$0xff]
      %v1261 = vld [vmem:[#allocation3 + $0x60] sm:$0xff]
      %v1262 = vld [vmem:[#allocation3 + $0x68] sm:$0xff]
      %v1263 = vld [vmem:[#allocation3 + $0x70] sm:$0xff]
      %v1264 = vld [vmem:[#allocation3 + $0x78] sm:$0xff]
      %v1265 = vld [vmem:[#allocation3 + $0x80] sm:$0xff]
      %v1266 = vld [vmem:[#allocation3 + $0x88] sm:$0xff]
      %v1267 = vld [vmem:[#allocation3 + $0x90] sm:$0xff]
      %v1268 = vld [vmem:[#allocation3 + $0x98] sm:$0xff]
      %v1269 = vld [vmem:[#allocation3 + $0xa0] sm:$0xff]
      %v1270 = vld [vmem:[#allocation3 + $0xa8] sm:$0xff]
      %v1271 = vld [vmem:[#allocation3 + $0xb0] sm:$0xff]
      %v1272 = vld [vmem:[#allocation3 + $0xb8] sm:$0xff]
      %v1273 = vld [vmem:[#allocation3 + $0xc0] sm:$0xff]
      %v1274 = vld [vmem:[#allocation3 + $0xc8] sm:$0xff]
      %v1275 = vld [vmem:[#allocation3 + $0xd0] sm:$0xff]
      %v1276 = vld [vmem:[#allocation3 + $0xd8] sm:$0xff]
      %v1277 = vld [vmem:[#allocation3 + $0xe0] sm:$0xff]
      %v1278 = vld [vmem:[#allocation3 + $0xe8] sm:$0xff]
      %v1279 = vld [vmem:[#allocation3 + $0xf0] sm:$0xff]
      %v1280 = vld [vmem:[#allocation3 + $0xf8] sm:$0xff]
      %v1281 = vadd.f32 %v1249, %v1123
      %v1282 = vadd.f32 %v1250, %v1126
      %v1283 = vadd.f32 %v1251, %v1131
      %v1284 = vadd.f32 %v1252, %v1134
      %v1285 = vadd.f32 %v1253, %v1139
      %v1286 = vadd.f32 %v1254, %v1142
      %v1287 = vadd.f32 %v1255, %v1147
      %v1288 = vadd.f32 %v1256, %v1150
      %v1289 = vadd.f32 %v1257, %v1155
      %v1290 = vadd.f32 %v1258, %v1158
      %v1291 = vadd.f32 %v1259, %v1163
      %v1292 = vadd.f32 %v1260, %v1166
      %v1293 = vadd.f32 %v1261, %v1171
      %v1294 = vadd.f32 %v1262, %v1174
      %v1295 = vadd.f32 %v1263, %v1179
      %v1296 = vadd.f32 %v1264, %v1182
      %v1297 = vadd.f32 %v1265, %v1187
      %v1298 = vadd.f32 %v1266, %v1190
      %v1299 = vadd.f32 %v1267, %v1195
      %v1300 = vadd.f32 %v1268, %v1198
      %v1301 = vadd.f32 %v1269, %v1203
      %v1302 = vadd.f32 %v1270, %v1206
      %v1303 = vadd.f32 %v1271, %v1211
      %v1304 = vadd.f32 %v1272, %v1214
      %v1305 = vadd.f32 %v1273, %v1219
      %v1306 = vadd.f32 %v1274, %v1222
      %v1307 = vadd.f32 %v1275, %v1227
      %v1308 = vadd.f32 %v1276, %v1230
      %v1309 = vadd.f32 %v1277, %v1235
      %v1310 = vadd.f32 %v1278, %v1238
      %v1311 = vadd.f32 %v1279, %v1243
      %v1312 = vadd.f32 %v1280, %v1246
      %1313 = vst [vmem:[#allocation3] sm:$0xff] %v1281
      %1314 = vst [vmem:[#allocation3 + $0x8] sm:$0xff] %v1282
      %1315 = vst [vmem:[#allocation3 + $0x10] sm:$0xff] %v1283
      %1316 = vst [vmem:[#allocation3 + $0x18] sm:$0xff] %v1284
      %1317 = vst [vmem:[#allocation3 + $0x20] sm:$0xff] %v1285
      %1318 = vst [vmem:[#allocation3 + $0x28] sm:$0xff] %v1286
      %1319 = vst [vmem:[#allocation3 + $0x30] sm:$0xff] %v1287
      %1320 = vst [vmem:[#allocation3 + $0x38] sm:$0xff] %v1288
      %1321 = vst [vmem:[#allocation3 + $0x40] sm:$0xff] %v1289
      %1322 = vst [vmem:[#allocation3 + $0x48] sm:$0xff] %v1290
      %1323 = vst [vmem:[#allocation3 + $0x50] sm:$0xff] %v1291
      %1324 = vst [vmem:[#allocation3 + $0x58] sm:$0xff] %v1292
      %1325 = vst [vmem:[#allocation3 + $0x60] sm:$0xff] %v1293
      %1326 = vst [vmem:[#allocation3 + $0x68] sm:$0xff] %v1294
      %1327 = vst [vmem:[#allocation3 + $0x70] sm:$0xff] %v1295
      %1328 = vst [vmem:[#allocation3 + $0x78] sm:$0xff] %v1296
      %1329 = vst [vmem:[#allocation3 + $0x80] sm:$0xff] %v1297
      %1330 = vst [vmem:[#allocation3 + $0x88] sm:$0xff] %v1298
      %1331 = vst [vmem:[#allocation3 + $0x90] sm:$0xff] %v1299
      %1332 = vst [vmem:[#allocation3 + $0x98] sm:$0xff] %v1300
      %1333 = vst [vmem:[#allocation3 + $0xa0] sm:$0xff] %v1301
      %1334 = vst [vmem:[#allocation3 + $0xa8] sm:$0xff] %v1302
      %1335 = vst [vmem:[#allocation3 + $0xb0] sm:$0xff] %v1303
      %1336 = vst [vmem:[#allocation3 + $0xb8] sm:$0xff] %v1304
      %1337 = vst [vmem:[#allocation3 + $0xc0] sm:$0xff] %v1305
      %1338 = vst [vmem:[#allocation3 + $0xc8] sm:$0xff] %v1306
      %1339 = vst [vmem:[#allocation3 + $0xd0] sm:$0xff] %v1307
      %1340 = vst [vmem:[#allocation3 + $0xd8] sm:$0xff] %v1308
      %1341 = vst [vmem:[#allocation3 + $0xe0] sm:$0xff] %v1309
      %1342 = vst [vmem:[#allocation3 + $0xe8] sm:$0xff] %v1310
      %1343 = vst [vmem:[#allocation3 + $0xf0] sm:$0xff] %v1311
      %1344 = vst [vmem:[#allocation3 + $0xf8] sm:$0xff] %v1312
      %v1345 = vld [vmem:[#allocation2 + $0x2] sm:$0xff]
      %v1346 = vld [vmem:[#allocation2 + $0xa] sm:$0xff]
      %v1347 = vld [vmem:[#allocation2 + $0x1a] sm:$0xff]
      %v1348 = vld [vmem:[#allocation2 + $0x22] sm:$0xff]
      %v1349 = vld [vmem:[#allocation2 + $0x32] sm:$0xff]
      %v1350 = vld [vmem:[#allocation2 + $0x3a] sm:$0xff]
      %v1351 = vld [vmem:[#allocation2 + $0x4a] sm:$0xff]
      %v1352 = vld [vmem:[#allocation2 + $0x52] sm:$0xff]
      %v1353 = vld [vmem:[#allocation2 + $0x62] sm:$0xff]
      %v1354 = vld [vmem:[#allocation2 + $0x6a] sm:$0xff]
      %v1355 = vld [vmem:[#allocation2 + $0x7a] sm:$0xff]
      %v1356 = vld [vmem:[#allocation2 + $0x82] sm:$0xff]
      %v1357 = vld [vmem:[#allocation2 + $0x92] sm:$0xff]
      %v1358 = vld [vmem:[#allocation2 + $0x9a] sm:$0xff]
      %v1359 = vld [vmem:[#allocation2 + $0xaa] sm:$0xff]
      %v1360 = vld [vmem:[#allocation2 + $0xb2] sm:$0xff]
      %v1361 = vld [vmem:[#allocation2 + $0xc2] sm:$0xff]
      %v1362 = vld [vmem:[#allocation2 + $0xca] sm:$0xff]
      %v1363 = vld [vmem:[#allocation2 + $0xda] sm:$0xff]
      %v1364 = vld [vmem:[#allocation2 + $0xe2] sm:$0xff]
      %v1365 = vld [vmem:[#allocation2 + $0xf2] sm:$0xff]
      %v1366 = vld [vmem:[#allocation2 + $0xfa] sm:$0xff]
      %v1367 = vld [vmem:[#allocation2 + $0x10a] sm:$0xff]
      %v1368 = vld [vmem:[#allocation2 + $0x112] sm:$0xff]
      %v1369 = vld [vmem:[#allocation2 + $0x122] sm:$0xff]
      %v1370 = vld [vmem:[#allocation2 + $0x12a] sm:$0xff]
      %v1371 = vld [vmem:[#allocation2 + $0x13a] sm:$0xff]
      %v1372 = vld [vmem:[#allocation2 + $0x142] sm:$0xff]
      %v1373 = vld [vmem:[#allocation2 + $0x152] sm:$0xff]
      %v1374 = vld [vmem:[#allocation2 + $0x15a] sm:$0xff]
      %v1375 = vld [vmem:[#allocation2 + $0x16a] sm:$0xff]
      %v1376 = vld [vmem:[#allocation2 + $0x172] sm:$0xff]
      %v1377 = vpack.c.bf16 %v1346, %v1345
      %v1378 = vpack.c.bf16 %v1348, %v1347
      %v1379 = vpack.c.bf16 %v1350, %v1349
      %v1380 = vpack.c.bf16 %v1352, %v1351
      %v1381 = vpack.c.bf16 %v1354, %v1353
      %v1382 = vpack.c.bf16 %v1356, %v1355
      %v1383 = vpack.c.bf16 %v1358, %v1357
      %v1384 = vpack.c.bf16 %v1360, %v1359
      %v1385 = vpack.c.bf16 %v1362, %v1361
      %v1386 = vpack.c.bf16 %v1364, %v1363
      %v1387 = vpack.c.bf16 %v1366, %v1365
      %v1388 = vpack.c.bf16 %v1368, %v1367
      %v1389 = vpack.c.bf16 %v1370, %v1369
      %v1390 = vpack.c.bf16 %v1372, %v1371
      %v1391 = vpack.c.bf16 %v1374, %v1373
      %v1392 = vpack.c.bf16 %v1376, %v1375
      %s1393 = scalar_lea.vmem %s276, 128
      %v1394 = vld [vmem:[%s1393] sm:$0xf]
      %v1395 = vld [vmem:[%s1393 + $0x4] sm:$0xf]
      %v1396 = vld [vmem:[%s1393 + $0x8] sm:$0xf]
      %v1397 = vld [vmem:[%s1393 + $0xc] sm:$0xf]
      %v1398 = vld [vmem:[%s1393 + $0x10] sm:$0xf]
      %v1399 = vld [vmem:[%s1393 + $0x14] sm:$0xf]
      %v1400 = vld [vmem:[%s1393 + $0x18] sm:$0xf]
      %v1401 = vld [vmem:[%s1393 + $0x1c] sm:$0xf]
      %v1402 = vld [vmem:[%s1393 + $0x20] sm:$0xf]
      %v1403 = vld [vmem:[%s1393 + $0x24] sm:$0xf]
      %v1404 = vld [vmem:[%s1393 + $0x28] sm:$0xf]
      %v1405 = vld [vmem:[%s1393 + $0x2c] sm:$0xf]
      %v1406 = vld [vmem:[%s1393 + $0x30] sm:$0xf]
      %v1407 = vld [vmem:[%s1393 + $0x34] sm:$0xf]
      %v1408 = vld [vmem:[%s1393 + $0x38] sm:$0xf]
      %v1409 = vld [vmem:[%s1393 + $0x3c] sm:$0xf]
      %v1426 = vunpack.c.l.b16 %v1394
      %v1427 = vunpack.c.l.b16 %v1395
      %v1428 = vunpack.c.l.b16 %v1396
      %v1429 = vunpack.c.l.b16 %v1397
      %v1430 = vunpack.c.l.b16 %v1398
      %v1431 = vunpack.c.l.b16 %v1399
      %v1432 = vunpack.c.l.b16 %v1400
      %v1433 = vunpack.c.l.b16 %v1401
      %v1434 = vunpack.c.l.b16 %v1402
      %v1435 = vunpack.c.l.b16 %v1403
      %v1436 = vunpack.c.l.b16 %v1404
      %v1437 = vunpack.c.l.b16 %v1405
      %v1438 = vunpack.c.l.b16 %v1406
      %v1439 = vunpack.c.l.b16 %v1407
      %v1440 = vunpack.c.l.b16 %v1408
      %v1441 = vunpack.c.l.b16 %v1409
      %v1442 = vpack.c.b16 %v1427, %v1426
      %v1443 = vpack.c.b16 %v1429, %v1428
      %v1444 = vpack.c.b16 %v1431, %v1430
      %v1445 = vpack.c.b16 %v1433, %v1432
      %v1446 = vpack.c.b16 %v1435, %v1434
      %v1447 = vpack.c.b16 %v1437, %v1436
      %v1448 = vpack.c.b16 %v1439, %v1438
      %v1449 = vpack.c.b16 %v1441, %v1440
      %1458 = vmatprep.subr.bf16.mxu0 0
      %1459 = vmatpush1.bf16.msra.mxu0 %v1449
      %1460 = vmatprep.subr.bf16.mxu0 0
      %1461 = vmatpush1.bf16.msra.mxu0 %v1448
      %1462 = vmatprep.subr.bf16.mxu0 0
      %1463 = vmatpush1.bf16.msra.mxu0 %v1447
      %1464 = vmatprep.subr.bf16.mxu0 0
      %1465 = vmatpush1.bf16.msra.mxu0 %v1446
      %1466 = vmatprep.subr.bf16.mxu0 0
      %1467 = vmatpush1.bf16.msra.mxu0 %v1445
      %1468 = vmatprep.subr.bf16.mxu0 0
      %1469 = vmatpush1.bf16.msra.mxu0 %v1444
      %1470 = vmatprep.subr.bf16.mxu0 0
      %1471 = vmatpush1.bf16.msra.mxu0 %v1443
      %1472 = vmatprep.subr.bf16.mxu0 0
      %1473 = vmatpush1.bf16.msra.mxu0 %v1442
      %1474 = vmatprep.subr.bf16.mxu0 0
      %1475 = vmatpush2.bf16.msra.mxu0 0
      %1476 = vmatprep.subr.bf16.mxu0 0
      %1477 = vmatpush2.bf16.msra.mxu0 0
      %1478 = vmatprep.subr.bf16.mxu0 0
      %1479 = vmatpush2.bf16.msra.mxu0 0
      %1480 = vmatprep.subr.bf16.mxu0 0
      %1481 = vmatpush2.bf16.msra.mxu0 0
      %1482 = vmatprep.subr.bf16.mxu0 0
      %1483 = vmatpush2.bf16.msra.mxu0 0
      %1484 = vmatprep.subr.bf16.mxu0 0
      %1485 = vmatpush2.bf16.msra.mxu0 0
      %1486 = vmatprep.subr.bf16.mxu0 0
      %1487 = vmatpush2.bf16.msra.mxu0 0
      %1488 = vmatprep.subr.bf16.mxu0 0
      %1489 = vmatpush2.bf16.msra.mxu0 0
      %1490 = vmatprep.mubr.bf16.mxu0 0
      %1491 = vmatmul.mubr.bf16.gmra.mxu0 %v1377
      %v1492 = vpop.f32.mrf.mxu0
      %v1493 = vadd.f32 0.0, %v1492
      %v1494 = vpop.f32.mrf.mxu0
      %v1495 = vpop.f32.mrf.mxu0
      %v1496 = vadd.f32 0.0, %v1495
      %v1497 = vpop.f32.mrf.mxu0
      %1498 = vmatprep.mubr.bf16.mxu0 0
      %1499 = vmatmul.mubr.bf16.gmra.mxu0 %v1378
      %v1500 = vpop.f32.mrf.mxu0
      %v1501 = vadd.f32 0.0, %v1500
      %v1502 = vpop.f32.mrf.mxu0
      %v1503 = vpop.f32.mrf.mxu0
      %v1504 = vadd.f32 0.0, %v1503
      %v1505 = vpop.f32.mrf.mxu0
      %1506 = vmatprep.mubr.bf16.mxu0 0
      %1507 = vmatmul.mubr.bf16.gmra.mxu0 %v1379
      %v1508 = vpop.f32.mrf.mxu0
      %v1509 = vadd.f32 0.0, %v1508
      %v1510 = vpop.f32.mrf.mxu0
      %v1511 = vpop.f32.mrf.mxu0
      %v1512 = vadd.f32 0.0, %v1511
      %v1513 = vpop.f32.mrf.mxu0
      %1514 = vmatprep.mubr.bf16.mxu0 0
      %1515 = vmatmul.mubr.bf16.gmra.mxu0 %v1380
      %v1516 = vpop.f32.mrf.mxu0
      %v1517 = vadd.f32 0.0, %v1516
      %v1518 = vpop.f32.mrf.mxu0
      %v1519 = vpop.f32.mrf.mxu0
      %v1520 = vadd.f32 0.0, %v1519
      %v1521 = vpop.f32.mrf.mxu0
      %1522 = vmatprep.mubr.bf16.mxu0 0
      %1523 = vmatmul.mubr.bf16.gmra.mxu0 %v1381
      %v1524 = vpop.f32.mrf.mxu0
      %v1525 = vadd.f32 0.0, %v1524
      %v1526 = vpop.f32.mrf.mxu0
      %v1527 = vpop.f32.mrf.mxu0
      %v1528 = vadd.f32 0.0, %v1527
      %v1529 = vpop.f32.mrf.mxu0
      %1530 = vmatprep.mubr.bf16.mxu0 0
      %1531 = vmatmul.mubr.bf16.gmra.mxu0 %v1382
      %v1532 = vpop.f32.mrf.mxu0
      %v1533 = vadd.f32 0.0, %v1532
      %v1534 = vpop.f32.mrf.mxu0
      %v1535 = vpop.f32.mrf.mxu0
      %v1536 = vadd.f32 0.0, %v1535
      %v1537 = vpop.f32.mrf.mxu0
      %1538 = vmatprep.mubr.bf16.mxu0 0
      %1539 = vmatmul.mubr.bf16.gmra.mxu0 %v1383
      %v1540 = vpop.f32.mrf.mxu0
      %v1541 = vadd.f32 0.0, %v1540
      %v1542 = vpop.f32.mrf.mxu0
      %v1543 = vpop.f32.mrf.mxu0
      %v1544 = vadd.f32 0.0, %v1543
      %v1545 = vpop.f32.mrf.mxu0
      %1546 = vmatprep.mubr.bf16.mxu0 0
      %1547 = vmatmul.mubr.bf16.gmra.mxu0 %v1384
      %v1548 = vpop.f32.mrf.mxu0
      %v1549 = vadd.f32 0.0, %v1548
      %v1550 = vpop.f32.mrf.mxu0
      %v1551 = vpop.f32.mrf.mxu0
      %v1552 = vadd.f32 0.0, %v1551
      %v1553 = vpop.f32.mrf.mxu0
      %1554 = vmatprep.mubr.bf16.mxu0 0
      %1555 = vmatmul.mubr.bf16.gmra.mxu0 %v1385
      %v1556 = vpop.f32.mrf.mxu0
      %v1557 = vadd.f32 0.0, %v1556
      %v1558 = vpop.f32.mrf.mxu0
      %v1559 = vpop.f32.mrf.mxu0
      %v1560 = vadd.f32 0.0, %v1559
      %v1561 = vpop.f32.mrf.mxu0
      %1562 = vmatprep.mubr.bf16.mxu0 0
      %1563 = vmatmul.mubr.bf16.gmra.mxu0 %v1386
      %v1564 = vpop.f32.mrf.mxu0
      %v1565 = vadd.f32 0.0, %v1564
      %v1566 = vpop.f32.mrf.mxu0
      %v1567 = vpop.f32.mrf.mxu0
      %v1568 = vadd.f32 0.0, %v1567
      %v1569 = vpop.f32.mrf.mxu0
      %1570 = vmatprep.mubr.bf16.mxu0 0
      %1571 = vmatmul.mubr.bf16.gmra.mxu0 %v1387
      %v1572 = vpop.f32.mrf.mxu0
      %v1573 = vadd.f32 0.0, %v1572
      %v1574 = vpop.f32.mrf.mxu0
      %v1575 = vpop.f32.mrf.mxu0
      %v1576 = vadd.f32 0.0, %v1575
      %v1577 = vpop.f32.mrf.mxu0
      %1578 = vmatprep.mubr.bf16.mxu0 0
      %1579 = vmatmul.mubr.bf16.gmra.mxu0 %v1388
      %v1580 = vpop.f32.mrf.mxu0
      %v1581 = vadd.f32 0.0, %v1580
      %v1582 = vpop.f32.mrf.mxu0
      %v1583 = vpop.f32.mrf.mxu0
      %v1584 = vadd.f32 0.0, %v1583
      %v1585 = vpop.f32.mrf.mxu0
      %1586 = vmatprep.mubr.bf16.mxu0 0
      %1587 = vmatmul.mubr.bf16.gmra.mxu0 %v1389
      %v1588 = vpop.f32.mrf.mxu0
      %v1589 = vadd.f32 0.0, %v1588
      %v1590 = vpop.f32.mrf.mxu0
      %v1591 = vpop.f32.mrf.mxu0
      %v1592 = vadd.f32 0.0, %v1591
      %v1593 = vpop.f32.mrf.mxu0
      %1594 = vmatprep.mubr.bf16.mxu0 0
      %1595 = vmatmul.mubr.bf16.gmra.mxu0 %v1390
      %v1596 = vpop.f32.mrf.mxu0
      %v1597 = vadd.f32 0.0, %v1596
      %v1598 = vpop.f32.mrf.mxu0
      %v1599 = vpop.f32.mrf.mxu0
      %v1600 = vadd.f32 0.0, %v1599
      %v1601 = vpop.f32.mrf.mxu0
      %1602 = vmatprep.mubr.bf16.mxu0 0
      %1603 = vmatmul.mubr.bf16.gmra.mxu0 %v1391
      %v1604 = vpop.f32.mrf.mxu0
      %v1605 = vadd.f32 0.0, %v1604
      %v1606 = vpop.f32.mrf.mxu0
      %v1607 = vpop.f32.mrf.mxu0
      %v1608 = vadd.f32 0.0, %v1607
      %v1609 = vpop.f32.mrf.mxu0
      %1610 = vmatprep.mubr.bf16.mxu0 0
      %1611 = vmatmul.mubr.bf16.gmra.mxu0 %v1392
      %v1612 = vpop.f32.mrf.mxu0
      %v1613 = vadd.f32 0.0, %v1612
      %v1614 = vpop.f32.mrf.mxu0
      %v1615 = vpop.f32.mrf.mxu0
      %v1616 = vadd.f32 0.0, %v1615
      %v1617 = vpop.f32.mrf.mxu0
      %1618 = vdwg.mxu0
      %v1619 = vld [vmem:[#allocation3] sm:$0xff]
      %v1620 = vld [vmem:[#allocation3 + $0x8] sm:$0xff]
      %v1621 = vld [vmem:[#allocation3 + $0x10] sm:$0xff]
      %v1622 = vld [vmem:[#allocation3 + $0x18] sm:$0xff]
      %v1623 = vld [vmem:[#allocation3 + $0x20] sm:$0xff]
      %v1624 = vld [vmem:[#allocation3 + $0x28] sm:$0xff]
      %v1625 = vld [vmem:[#allocation3 + $0x30] sm:$0xff]
      %v1626 = vld [vmem:[#allocation3 + $0x38] sm:$0xff]
      %v1627 = vld [vmem:[#allocation3 + $0x40] sm:$0xff]
      %v1628 = vld [vmem:[#allocation3 + $0x48] sm:$0xff]
      %v1629 = vld [vmem:[#allocation3 + $0x50] sm:$0xff]
      %v1630 = vld [vmem:[#allocation3 + $0x58] sm:$0xff]
      %v1631 = vld [vmem:[#allocation3 + $0x60] sm:$0xff]
      %v1632 = vld [vmem:[#allocation3 + $0x68] sm:$0xff]
      %v1633 = vld [vmem:[#allocation3 + $0x70] sm:$0xff]
      %v1634 = vld [vmem:[#allocation3 + $0x78] sm:$0xff]
      %v1635 = vld [vmem:[#allocation3 + $0x80] sm:$0xff]
      %v1636 = vld [vmem:[#allocation3 + $0x88] sm:$0xff]
      %v1637 = vld [vmem:[#allocation3 + $0x90] sm:$0xff]
      %v1638 = vld [vmem:[#allocation3 + $0x98] sm:$0xff]
      %v1639 = vld [vmem:[#allocation3 + $0xa0] sm:$0xff]
      %v1640 = vld [vmem:[#allocation3 + $0xa8] sm:$0xff]
      %v1641 = vld [vmem:[#allocation3 + $0xb0] sm:$0xff]
      %v1642 = vld [vmem:[#allocation3 + $0xb8] sm:$0xff]
      %v1643 = vld [vmem:[#allocation3 + $0xc0] sm:$0xff]
      %v1644 = vld [vmem:[#allocation3 + $0xc8] sm:$0xff]
      %v1645 = vld [vmem:[#allocation3 + $0xd0] sm:$0xff]
      %v1646 = vld [vmem:[#allocation3 + $0xd8] sm:$0xff]
      %v1647 = vld [vmem:[#allocation3 + $0xe0] sm:$0xff]
      %v1648 = vld [vmem:[#allocation3 + $0xe8] sm:$0xff]
      %v1649 = vld [vmem:[#allocation3 + $0xf0] sm:$0xff]
      %v1650 = vld [vmem:[#allocation3 + $0xf8] sm:$0xff]
      %v1651 = vadd.f32 %v1619, %v1493
      %v1652 = vadd.f32 %v1620, %v1496
      %v1653 = vadd.f32 %v1621, %v1501
      %v1654 = vadd.f32 %v1622, %v1504
      %v1655 = vadd.f32 %v1623, %v1509
      %v1656 = vadd.f32 %v1624, %v1512
      %v1657 = vadd.f32 %v1625, %v1517
      %v1658 = vadd.f32 %v1626, %v1520
      %v1659 = vadd.f32 %v1627, %v1525
      %v1660 = vadd.f32 %v1628, %v1528
      %v1661 = vadd.f32 %v1629, %v1533
      %v1662 = vadd.f32 %v1630, %v1536
      %v1663 = vadd.f32 %v1631, %v1541
      %v1664 = vadd.f32 %v1632, %v1544
      %v1665 = vadd.f32 %v1633, %v1549
      %v1666 = vadd.f32 %v1634, %v1552
      %v1667 = vadd.f32 %v1635, %v1557
      %v1668 = vadd.f32 %v1636, %v1560
      %v1669 = vadd.f32 %v1637, %v1565
      %v1670 = vadd.f32 %v1638, %v1568
      %v1671 = vadd.f32 %v1639, %v1573
      %v1672 = vadd.f32 %v1640, %v1576
      %v1673 = vadd.f32 %v1641, %v1581
      %v1674 = vadd.f32 %v1642, %v1584
      %v1675 = vadd.f32 %v1643, %v1589
      %v1676 = vadd.f32 %v1644, %v1592
      %v1677 = vadd.f32 %v1645, %v1597
      %v1678 = vadd.f32 %v1646, %v1600
      %v1679 = vadd.f32 %v1647, %v1605
      %v1680 = vadd.f32 %v1648, %v1608
      %v1681 = vadd.f32 %v1649, %v1613
      %v1682 = vadd.f32 %v1650, %v1616
      %1683 = vst [vmem:[#allocation3] sm:$0xff] %v1651
      %1684 = vst [vmem:[#allocation3 + $0x8] sm:$0xff] %v1652
      %1685 = vst [vmem:[#allocation3 + $0x10] sm:$0xff] %v1653
      %1686 = vst [vmem:[#allocation3 + $0x18] sm:$0xff] %v1654
      %1687 = vst [vmem:[#allocation3 + $0x20] sm:$0xff] %v1655
      %1688 = vst [vmem:[#allocation3 + $0x28] sm:$0xff] %v1656
      %1689 = vst [vmem:[#allocation3 + $0x30] sm:$0xff] %v1657
      %1690 = vst [vmem:[#allocation3 + $0x38] sm:$0xff] %v1658
      %1691 = vst [vmem:[#allocation3 + $0x40] sm:$0xff] %v1659
      %1692 = vst [vmem:[#allocation3 + $0x48] sm:$0xff] %v1660
      %1693 = vst [vmem:[#allocation3 + $0x50] sm:$0xff] %v1661
      %1694 = vst [vmem:[#allocation3 + $0x58] sm:$0xff] %v1662
      %1695 = vst [vmem:[#allocation3 + $0x60] sm:$0xff] %v1663
      %1696 = vst [vmem:[#allocation3 + $0x68] sm:$0xff] %v1664
      %1697 = vst [vmem:[#allocation3 + $0x70] sm:$0xff] %v1665
      %1698 = vst [vmem:[#allocation3 + $0x78] sm:$0xff] %v1666
      %1699 = vst [vmem:[#allocation3 + $0x80] sm:$0xff] %v1667
      %1700 = vst [vmem:[#allocation3 + $0x88] sm:$0xff] %v1668
      %1701 = vst [vmem:[#allocation3 + $0x90] sm:$0xff] %v1669
      %1702 = vst [vmem:[#allocation3 + $0x98] sm:$0xff] %v1670
      %1703 = vst [vmem:[#allocation3 + $0xa0] sm:$0xff] %v1671
      %1704 = vst [vmem:[#allocation3 + $0xa8] sm:$0xff] %v1672
      %1705 = vst [vmem:[#allocation3 + $0xb0] sm:$0xff] %v1673
      %1706 = vst [vmem:[#allocation3 + $0xb8] sm:$0xff] %v1674
      %1707 = vst [vmem:[#allocation3 + $0xc0] sm:$0xff] %v1675
      %1708 = vst [vmem:[#allocation3 + $0xc8] sm:$0xff] %v1676
      %1709 = vst [vmem:[#allocation3 + $0xd0] sm:$0xff] %v1677
      %1710 = vst [vmem:[#allocation3 + $0xd8] sm:$0xff] %v1678
      %1711 = vst [vmem:[#allocation3 + $0xe0] sm:$0xff] %v1679
      %1712 = vst [vmem:[#allocation3 + $0xe8] sm:$0xff] %v1680
      %1713 = vst [vmem:[#allocation3 + $0xf0] sm:$0xff] %v1681
      %1714 = vst [vmem:[#allocation3 + $0xf8] sm:$0xff] %v1682
      %s1715 = scalar_lea.vmem [#allocation2], 24
      %v1716 = vld [vmem:[%s1715] sm:$0xff]
      %v1717 = vld [vmem:[%s1715 + $0x8] sm:$0xff]
      %v1718 = vld [vmem:[%s1715 + $0x18] sm:$0xff]
      %v1719 = vld [vmem:[%s1715 + $0x20] sm:$0xff]
      %v1720 = vld [vmem:[%s1715 + $0x30] sm:$0xff]
      %v1721 = vld [vmem:[%s1715 + $0x38] sm:$0xff]
      %v1722 = vld [vmem:[%s1715 + $0x48] sm:$0xff]
      %v1723 = vld [vmem:[%s1715 + $0x50] sm:$0xff]
      %v1724 = vld [vmem:[%s1715 + $0x60] sm:$0xff]
      %v1725 = vld [vmem:[%s1715 + $0x68] sm:$0xff]
      %v1726 = vld [vmem:[%s1715 + $0x78] sm:$0xff]
      %v1727 = vld [vmem:[%s1715 + $0x80] sm:$0xff]
      %v1728 = vld [vmem:[%s1715 + $0x90] sm:$0xff]
      %v1729 = vld [vmem:[%s1715 + $0x98] sm:$0xff]
      %v1730 = vld [vmem:[%s1715 + $0xa8] sm:$0xff]
      %v1731 = vld [vmem:[%s1715 + $0xb0] sm:$0xff]
      %v1732 = vld [vmem:[%s1715 + $0xc0] sm:$0xff]
      %v1733 = vld [vmem:[%s1715 + $0xc8] sm:$0xff]
      %v1734 = vld [vmem:[%s1715 + $0xd8] sm:$0xff]
      %v1735 = vld [vmem:[%s1715 + $0xe0] sm:$0xff]
      %v1736 = vld [vmem:[%s1715 + $0xf0] sm:$0xff]
      %v1737 = vld [vmem:[%s1715 + $0xf8] sm:$0xff]
      %v1738 = vld [vmem:[%s1715 + $0x108] sm:$0xff]
      %v1739 = vld [vmem:[%s1715 + $0x110] sm:$0xff]
      %v1740 = vld [vmem:[%s1715 + $0x120] sm:$0xff]
      %v1741 = vld [vmem:[%s1715 + $0x128] sm:$0xff]
      %v1742 = vld [vmem:[%s1715 + $0x138] sm:$0xff]
      %v1743 = vld [vmem:[%s1715 + $0x140] sm:$0xff]
      %v1744 = vld [vmem:[%s1715 + $0x150] sm:$0xff]
      %v1745 = vld [vmem:[%s1715 + $0x158] sm:$0xff]
      %v1746 = vld [vmem:[%s1715 + $0x168] sm:$0xff]
      %v1747 = vld [vmem:[%s1715 + $0x170] sm:$0xff]
      %v1748 = vpack.c.bf16 %v1717, %v1716
      %v1749 = vpack.c.bf16 %v1719, %v1718
      %v1750 = vpack.c.bf16 %v1721, %v1720
      %v1751 = vpack.c.bf16 %v1723, %v1722
      %v1752 = vpack.c.bf16 %v1725, %v1724
      %v1753 = vpack.c.bf16 %v1727, %v1726
      %v1754 = vpack.c.bf16 %v1729, %v1728
      %v1755 = vpack.c.bf16 %v1731, %v1730
      %v1756 = vpack.c.bf16 %v1733, %v1732
      %v1757 = vpack.c.bf16 %v1735, %v1734
      %v1758 = vpack.c.bf16 %v1737, %v1736
      %v1759 = vpack.c.bf16 %v1739, %v1738
      %v1760 = vpack.c.bf16 %v1741, %v1740
      %v1761 = vpack.c.bf16 %v1743, %v1742
      %v1762 = vpack.c.bf16 %v1745, %v1744
      %v1763 = vpack.c.bf16 %v1747, %v1746
      %s1764 = scalar_lea.vmem %s276, 192
      %v1765 = vld [vmem:[%s1764] sm:$0xf]
      %v1766 = vld [vmem:[%s1764 + $0x4] sm:$0xf]
      %v1767 = vld [vmem:[%s1764 + $0x8] sm:$0xf]
      %v1768 = vld [vmem:[%s1764 + $0xc] sm:$0xf]
      %v1769 = vld [vmem:[%s1764 + $0x10] sm:$0xf]
      %v1770 = vld [vmem:[%s1764 + $0x14] sm:$0xf]
      %v1771 = vld [vmem:[%s1764 + $0x18] sm:$0xf]
      %v1772 = vld [vmem:[%s1764 + $0x1c] sm:$0xf]
      %v1773 = vld [vmem:[%s1764 + $0x20] sm:$0xf]
      %v1774 = vld [vmem:[%s1764 + $0x24] sm:$0xf]
      %v1775 = vld [vmem:[%s1764 + $0x28] sm:$0xf]
      %v1776 = vld [vmem:[%s1764 + $0x2c] sm:$0xf]
      %v1777 = vld [vmem:[%s1764 + $0x30] sm:$0xf]
      %v1778 = vld [vmem:[%s1764 + $0x34] sm:$0xf]
      %v1779 = vld [vmem:[%s1764 + $0x38] sm:$0xf]
      %v1780 = vld [vmem:[%s1764 + $0x3c] sm:$0xf]
      %v1797 = vunpack.c.l.b16 %v1765
      %v1798 = vunpack.c.l.b16 %v1766
      %v1799 = vunpack.c.l.b16 %v1767
      %v1800 = vunpack.c.l.b16 %v1768
      %v1801 = vunpack.c.l.b16 %v1769
      %v1802 = vunpack.c.l.b16 %v1770
      %v1803 = vunpack.c.l.b16 %v1771
      %v1804 = vunpack.c.l.b16 %v1772
      %v1805 = vunpack.c.l.b16 %v1773
      %v1806 = vunpack.c.l.b16 %v1774
      %v1807 = vunpack.c.l.b16 %v1775
      %v1808 = vunpack.c.l.b16 %v1776
      %v1809 = vunpack.c.l.b16 %v1777
      %v1810 = vunpack.c.l.b16 %v1778
      %v1811 = vunpack.c.l.b16 %v1779
      %v1812 = vunpack.c.l.b16 %v1780
      %v1813 = vpack.c.b16 %v1798, %v1797
      %v1814 = vpack.c.b16 %v1800, %v1799
      %v1815 = vpack.c.b16 %v1802, %v1801
      %v1816 = vpack.c.b16 %v1804, %v1803
      %v1817 = vpack.c.b16 %v1806, %v1805
      %v1818 = vpack.c.b16 %v1808, %v1807
      %v1819 = vpack.c.b16 %v1810, %v1809
      %v1820 = vpack.c.b16 %v1812, %v1811
      %1829 = vmatprep.subr.bf16.mxu0 0
      %1830 = vmatpush1.bf16.msra.mxu0 %v1820
      %1831 = vmatprep.subr.bf16.mxu0 0
      %1832 = vmatpush1.bf16.msra.mxu0 %v1819
      %1833 = vmatprep.subr.bf16.mxu0 0
      %1834 = vmatpush1.bf16.msra.mxu0 %v1818
      %1835 = vmatprep.subr.bf16.mxu0 0
      %1836 = vmatpush1.bf16.msra.mxu0 %v1817
      %1837 = vmatprep.subr.bf16.mxu0 0
      %1838 = vmatpush1.bf16.msra.mxu0 %v1816
      %1839 = vmatprep.subr.bf16.mxu0 0
      %1840 = vmatpush1.bf16.msra.mxu0 %v1815
      %1841 = vmatprep.subr.bf16.mxu0 0
      %1842 = vmatpush1.bf16.msra.mxu0 %v1814
      %1843 = vmatprep.subr.bf16.mxu0 0
      %1844 = vmatpush1.bf16.msra.mxu0 %v1813
      %1845 = vmatprep.subr.bf16.mxu0 0
      %1846 = vmatpush2.bf16.msra.mxu0 0
      %1847 = vmatprep.subr.bf16.mxu0 0
      %1848 = vmatpush2.bf16.msra.mxu0 0
      %1849 = vmatprep.subr.bf16.mxu0 0
      %1850 = vmatpush2.bf16.msra.mxu0 0
      %1851 = vmatprep.subr.bf16.mxu0 0
      %1852 = vmatpush2.bf16.msra.mxu0 0
      %1853 = vmatprep.subr.bf16.mxu0 0
      %1854 = vmatpush2.bf16.msra.mxu0 0
      %1855 = vmatprep.subr.bf16.mxu0 0
      %1856 = vmatpush2.bf16.msra.mxu0 0
      %1857 = vmatprep.subr.bf16.mxu0 0
      %1858 = vmatpush2.bf16.msra.mxu0 0
      %1859 = vmatprep.subr.bf16.mxu0 0
      %1860 = vmatpush2.bf16.msra.mxu0 0
      %1861 = vmatprep.mubr.bf16.mxu0 0
      %1862 = vmatmul.mubr.bf16.gmra.mxu0 %v1748
      %v1863 = vpop.f32.mrf.mxu0
      %v1864 = vadd.f32 0.0, %v1863
      %v1865 = vpop.f32.mrf.mxu0
      %v1866 = vpop.f32.mrf.mxu0
      %v1867 = vadd.f32 0.0, %v1866
      %v1868 = vpop.f32.mrf.mxu0
      %1869 = vmatprep.mubr.bf16.mxu0 0
      %1870 = vmatmul.mubr.bf16.gmra.mxu0 %v1749
      %v1871 = vpop.f32.mrf.mxu0
      %v1872 = vadd.f32 0.0, %v1871
      %v1873 = vpop.f32.mrf.mxu0
      %v1874 = vpop.f32.mrf.mxu0
      %v1875 = vadd.f32 0.0, %v1874
      %v1876 = vpop.f32.mrf.mxu0
      %1877 = vmatprep.mubr.bf16.mxu0 0
      %1878 = vmatmul.mubr.bf16.gmra.mxu0 %v1750
      %v1879 = vpop.f32.mrf.mxu0
      %v1880 = vadd.f32 0.0, %v1879
      %v1881 = vpop.f32.mrf.mxu0
      %v1882 = vpop.f32.mrf.mxu0
      %v1883 = vadd.f32 0.0, %v1882
      %v1884 = vpop.f32.mrf.mxu0
      %1885 = vmatprep.mubr.bf16.mxu0 0
      %1886 = vmatmul.mubr.bf16.gmra.mxu0 %v1751
      %v1887 = vpop.f32.mrf.mxu0
      %v1888 = vadd.f32 0.0, %v1887
      %v1889 = vpop.f32.mrf.mxu0
      %v1890 = vpop.f32.mrf.mxu0
      %v1891 = vadd.f32 0.0, %v1890
      %v1892 = vpop.f32.mrf.mxu0
      %1893 = vmatprep.mubr.bf16.mxu0 0
      %1894 = vmatmul.mubr.bf16.gmra.mxu0 %v1752
      %v1895 = vpop.f32.mrf.mxu0
      %v1896 = vadd.f32 0.0, %v1895
      %v1897 = vpop.f32.mrf.mxu0
      %v1898 = vpop.f32.mrf.mxu0
      %v1899 = vadd.f32 0.0, %v1898
      %v1900 = vpop.f32.mrf.mxu0
      %1901 = vmatprep.mubr.bf16.mxu0 0
      %1902 = vmatmul.mubr.bf16.gmra.mxu0 %v1753
      %v1903 = vpop.f32.mrf.mxu0
      %v1904 = vadd.f32 0.0, %v1903
      %v1905 = vpop.f32.mrf.mxu0
      %v1906 = vpop.f32.mrf.mxu0
      %v1907 = vadd.f32 0.0, %v1906
      %v1908 = vpop.f32.mrf.mxu0
      %1909 = vmatprep.mubr.bf16.mxu0 0
      %1910 = vmatmul.mubr.bf16.gmra.mxu0 %v1754
      %v1911 = vpop.f32.mrf.mxu0
      %v1912 = vadd.f32 0.0, %v1911
      %v1913 = vpop.f32.mrf.mxu0
      %v1914 = vpop.f32.mrf.mxu0
      %v1915 = vadd.f32 0.0, %v1914
      %v1916 = vpop.f32.mrf.mxu0
      %1917 = vmatprep.mubr.bf16.mxu0 0
      %1918 = vmatmul.mubr.bf16.gmra.mxu0 %v1755
      %v1919 = vpop.f32.mrf.mxu0
      %v1920 = vadd.f32 0.0, %v1919
      %v1921 = vpop.f32.mrf.mxu0
      %v1922 = vpop.f32.mrf.mxu0
      %v1923 = vadd.f32 0.0, %v1922
      %v1924 = vpop.f32.mrf.mxu0
      %1925 = vmatprep.mubr.bf16.mxu0 0
      %1926 = vmatmul.mubr.bf16.gmra.mxu0 %v1756
      %v1927 = vpop.f32.mrf.mxu0
      %v1928 = vadd.f32 0.0, %v1927
      %v1929 = vpop.f32.mrf.mxu0
      %v1930 = vpop.f32.mrf.mxu0
      %v1931 = vadd.f32 0.0, %v1930
      %v1932 = vpop.f32.mrf.mxu0
      %1933 = vmatprep.mubr.bf16.mxu0 0
      %1934 = vmatmul.mubr.bf16.gmra.mxu0 %v1757
      %v1935 = vpop.f32.mrf.mxu0
      %v1936 = vadd.f32 0.0, %v1935
      %v1937 = vpop.f32.mrf.mxu0
      %v1938 = vpop.f32.mrf.mxu0
      %v1939 = vadd.f32 0.0, %v1938
      %v1940 = vpop.f32.mrf.mxu0
      %1941 = vmatprep.mubr.bf16.mxu0 0
      %1942 = vmatmul.mubr.bf16.gmra.mxu0 %v1758
      %v1943 = vpop.f32.mrf.mxu0
      %v1944 = vadd.f32 0.0, %v1943
      %v1945 = vpop.f32.mrf.mxu0
      %v1946 = vpop.f32.mrf.mxu0
      %v1947 = vadd.f32 0.0, %v1946
      %v1948 = vpop.f32.mrf.mxu0
      %1949 = vmatprep.mubr.bf16.mxu0 0
      %1950 = vmatmul.mubr.bf16.gmra.mxu0 %v1759
      %v1951 = vpop.f32.mrf.mxu0
      %v1952 = vadd.f32 0.0, %v1951
      %v1953 = vpop.f32.mrf.mxu0
      %v1954 = vpop.f32.mrf.mxu0
      %v1955 = vadd.f32 0.0, %v1954
      %v1956 = vpop.f32.mrf.mxu0
      %1957 = vmatprep.mubr.bf16.mxu0 0
      %1958 = vmatmul.mubr.bf16.gmra.mxu0 %v1760
      %v1959 = vpop.f32.mrf.mxu0
      %v1960 = vadd.f32 0.0, %v1959
      %v1961 = vpop.f32.mrf.mxu0
      %v1962 = vpop.f32.mrf.mxu0
      %v1963 = vadd.f32 0.0, %v1962
      %v1964 = vpop.f32.mrf.mxu0
      %1965 = vmatprep.mubr.bf16.mxu0 0
      %1966 = vmatmul.mubr.bf16.gmra.mxu0 %v1761
      %v1967 = vpop.f32.mrf.mxu0
      %v1968 = vadd.f32 0.0, %v1967
      %v1969 = vpop.f32.mrf.mxu0
      %v1970 = vpop.f32.mrf.mxu0
      %v1971 = vadd.f32 0.0, %v1970
      %v1972 = vpop.f32.mrf.mxu0
      %1973 = vmatprep.mubr.bf16.mxu0 0
      %1974 = vmatmul.mubr.bf16.gmra.mxu0 %v1762
      %v1975 = vpop.f32.mrf.mxu0
      %v1976 = vadd.f32 0.0, %v1975
      %v1977 = vpop.f32.mrf.mxu0
      %v1978 = vpop.f32.mrf.mxu0
      %v1979 = vadd.f32 0.0, %v1978
      %v1980 = vpop.f32.mrf.mxu0
      %1981 = vmatprep.mubr.bf16.mxu0 0
      %1982 = vmatmul.mubr.bf16.gmra.mxu0 %v1763
      %v1983 = vpop.f32.mrf.mxu0
      %v1984 = vadd.f32 0.0, %v1983
      %v1985 = vpop.f32.mrf.mxu0
      %v1986 = vpop.f32.mrf.mxu0
      %v1987 = vadd.f32 0.0, %v1986
      %v1988 = vpop.f32.mrf.mxu0
      %1989 = vdwg.mxu0
      %v1990 = vld [vmem:[#allocation3] sm:$0xff]
      %v1991 = vld [vmem:[#allocation3 + $0x8] sm:$0xff]
      %v1992 = vld [vmem:[#allocation3 + $0x10] sm:$0xff]
      %v1993 = vld [vmem:[#allocation3 + $0x18] sm:$0xff]
      %v1994 = vld [vmem:[#allocation3 + $0x20] sm:$0xff]
      %v1995 = vld [vmem:[#allocation3 + $0x28] sm:$0xff]
      %v1996 = vld [vmem:[#allocation3 + $0x30] sm:$0xff]
      %v1997 = vld [vmem:[#allocation3 + $0x38] sm:$0xff]
      %v1998 = vld [vmem:[#allocation3 + $0x40] sm:$0xff]
      %v1999 = vld [vmem:[#allocation3 + $0x48] sm:$0xff]
      %v2000 = vld [vmem:[#allocation3 + $0x50] sm:$0xff]
      %v2001 = vld [vmem:[#allocation3 + $0x58] sm:$0xff]
      %v2002 = vld [vmem:[#allocation3 + $0x60] sm:$0xff]
      %v2003 = vld [vmem:[#allocation3 + $0x68] sm:$0xff]
      %v2004 = vld [vmem:[#allocation3 + $0x70] sm:$0xff]
      %v2005 = vld [vmem:[#allocation3 + $0x78] sm:$0xff]
      %v2006 = vld [vmem:[#allocation3 + $0x80] sm:$0xff]
      %v2007 = vld [vmem:[#allocation3 + $0x88] sm:$0xff]
      %v2008 = vld [vmem:[#allocation3 + $0x90] sm:$0xff]
      %v2009 = vld [vmem:[#allocation3 + $0x98] sm:$0xff]
      %v2010 = vld [vmem:[#allocation3 + $0xa0] sm:$0xff]
      %v2011 = vld [vmem:[#allocation3 + $0xa8] sm:$0xff]
      %v2012 = vld [vmem:[#allocation3 + $0xb0] sm:$0xff]
      %v2013 = vld [vmem:[#allocation3 + $0xb8] sm:$0xff]
      %v2014 = vld [vmem:[#allocation3 + $0xc0] sm:$0xff]
      %v2015 = vld [vmem:[#allocation3 + $0xc8] sm:$0xff]
      %v2016 = vld [vmem:[#allocation3 + $0xd0] sm:$0xff]
      %v2017 = vld [vmem:[#allocation3 + $0xd8] sm:$0xff]
      %v2018 = vld [vmem:[#allocation3 + $0xe0] sm:$0xff]
      %v2019 = vld [vmem:[#allocation3 + $0xe8] sm:$0xff]
      %v2020 = vld [vmem:[#allocation3 + $0xf0] sm:$0xff]
      %v2021 = vld [vmem:[#allocation3 + $0xf8] sm:$0xff]
      %v2022 = vadd.f32 %v1990, %v1864
      %v2023 = vadd.f32 %v1991, %v1867
      %v2024 = vadd.f32 %v1992, %v1872
      %v2025 = vadd.f32 %v1993, %v1875
      %v2026 = vadd.f32 %v1994, %v1880
      %v2027 = vadd.f32 %v1995, %v1883
      %v2028 = vadd.f32 %v1996, %v1888
      %v2029 = vadd.f32 %v1997, %v1891
      %v2030 = vadd.f32 %v1998, %v1896
      %v2031 = vadd.f32 %v1999, %v1899
      %v2032 = vadd.f32 %v2000, %v1904
      %v2033 = vadd.f32 %v2001, %v1907
      %v2034 = vadd.f32 %v2002, %v1912
      %v2035 = vadd.f32 %v2003, %v1915
      %v2036 = vadd.f32 %v2004, %v1920
      %v2037 = vadd.f32 %v2005, %v1923
      %v2038 = vadd.f32 %v2006, %v1928
      %v2039 = vadd.f32 %v2007, %v1931
      %v2040 = vadd.f32 %v2008, %v1936
      %v2041 = vadd.f32 %v2009, %v1939
      %v2042 = vadd.f32 %v2010, %v1944
      %v2043 = vadd.f32 %v2011, %v1947
      %v2044 = vadd.f32 %v2012, %v1952
      %v2045 = vadd.f32 %v2013, %v1955
      %v2046 = vadd.f32 %v2014, %v1960
      %v2047 = vadd.f32 %v2015, %v1963
      %v2048 = vadd.f32 %v2016, %v1968
      %v2049 = vadd.f32 %v2017, %v1971
      %v2050 = vadd.f32 %v2018, %v1976
      %v2051 = vadd.f32 %v2019, %v1979
      %v2052 = vadd.f32 %v2020, %v1984
      %v2053 = vadd.f32 %v2021, %v1987
      %2054 = vst [vmem:[#allocation3] sm:$0xff] %v2022
      %2055 = vst [vmem:[#allocation3 + $0x8] sm:$0xff] %v2023
      %2056 = vst [vmem:[#allocation3 + $0x10] sm:$0xff] %v2024
      %2057 = vst [vmem:[#allocation3 + $0x18] sm:$0xff] %v2025
      %2058 = vst [vmem:[#allocation3 + $0x20] sm:$0xff] %v2026
      %2059 = vst [vmem:[#allocation3 + $0x28] sm:$0xff] %v2027
      %2060 = vst [vmem:[#allocation3 + $0x30] sm:$0xff] %v2028
      %2061 = vst [vmem:[#allocation3 + $0x38] sm:$0xff] %v2029
      %2062 = vst [vmem:[#allocation3 + $0x40] sm:$0xff] %v2030
      %2063 = vst [vmem:[#allocation3 + $0x48] sm:$0xff] %v2031
      %2064 = vst [vmem:[#allocation3 + $0x50] sm:$0xff] %v2032
      %2065 = vst [vmem:[#allocation3 + $0x58] sm:$0xff] %v2033
      %2066 = vst [vmem:[#allocation3 + $0x60] sm:$0xff] %v2034
      %2067 = vst [vmem:[#allocation3 + $0x68] sm:$0xff] %v2035
      %2068 = vst [vmem:[#allocation3 + $0x70] sm:$0xff] %v2036
      %2069 = vst [vmem:[#allocation3 + $0x78] sm:$0xff] %v2037
      %2070 = vst [vmem:[#allocation3 + $0x80] sm:$0xff] %v2038
      %2071 = vst [vmem:[#allocation3 + $0x88] sm:$0xff] %v2039
      %2072 = vst [vmem:[#allocation3 + $0x90] sm:$0xff] %v2040
      %2073 = vst [vmem:[#allocation3 + $0x98] sm:$0xff] %v2041
      %2074 = vst [vmem:[#allocation3 + $0xa0] sm:$0xff] %v2042
      %2075 = vst [vmem:[#allocation3 + $0xa8] sm:$0xff] %v2043
      %2076 = vst [vmem:[#allocation3 + $0xb0] sm:$0xff] %v2044
      %2077 = vst [vmem:[#allocation3 + $0xb8] sm:$0xff] %v2045
      %2078 = vst [vmem:[#allocation3 + $0xc0] sm:$0xff] %v2046
      %2079 = vst [vmem:[#allocation3 + $0xc8] sm:$0xff] %v2047
      %2080 = vst [vmem:[#allocation3 + $0xd0] sm:$0xff] %v2048
      %2081 = vst [vmem:[#allocation3 + $0xd8] sm:$0xff] %v2049
      %2082 = vst [vmem:[#allocation3 + $0xe0] sm:$0xff] %v2050
      %2083 = vst [vmem:[#allocation3 + $0xe8] sm:$0xff] %v2051
      %2084 = vst [vmem:[#allocation3 + $0xf0] sm:$0xff] %v2052
      %2085 = vst [vmem:[#allocation3 + $0xf8] sm:$0xff] %v2053
      %v2086 = vld [vmem:[%s1715 + $0x1] sm:$0xff]
      %v2087 = vld [vmem:[%s1715 + $0x9] sm:$0xff]
      %v2088 = vld [vmem:[%s1715 + $0x19] sm:$0xff]
      %v2089 = vld [vmem:[%s1715 + $0x21] sm:$0xff]
      %v2090 = vld [vmem:[%s1715 + $0x31] sm:$0xff]
      %v2091 = vld [vmem:[%s1715 + $0x39] sm:$0xff]
      %v2092 = vld [vmem:[%s1715 + $0x49] sm:$0xff]
      %v2093 = vld [vmem:[%s1715 + $0x51] sm:$0xff]
      %v2094 = vld [vmem:[%s1715 + $0x61] sm:$0xff]
      %v2095 = vld [vmem:[%s1715 + $0x69] sm:$0xff]
      %v2096 = vld [vmem:[%s1715 + $0x79] sm:$0xff]
      %v2097 = vld [vmem:[%s1715 + $0x81] sm:$0xff]
      %v2098 = vld [vmem:[%s1715 + $0x91] sm:$0xff]
      %v2099 = vld [vmem:[%s1715 + $0x99] sm:$0xff]
      %v2100 = vld [vmem:[%s1715 + $0xa9] sm:$0xff]
      %v2101 = vld [vmem:[%s1715 + $0xb1] sm:$0xff]
      %v2102 = vld [vmem:[%s1715 + $0xc1] sm:$0xff]
      %v2103 = vld [vmem:[%s1715 + $0xc9] sm:$0xff]
      %v2104 = vld [vmem:[%s1715 + $0xd9] sm:$0xff]
      %v2105 = vld [vmem:[%s1715 + $0xe1] sm:$0xff]
      %v2106 = vld [vmem:[%s1715 + $0xf1] sm:$0xff]
      %v2107 = vld [vmem:[%s1715 + $0xf9] sm:$0xff]
      %v2108 = vld [vmem:[%s1715 + $0x109] sm:$0xff]
      %v2109 = vld [vmem:[%s1715 + $0x111] sm:$0xff]
      %v2110 = vld [vmem:[%s1715 + $0x121] sm:$0xff]
      %v2111 = vld [vmem:[%s1715 + $0x129] sm:$0xff]
      %v2112 = vld [vmem:[%s1715 + $0x139] sm:$0xff]
      %v2113 = vld [vmem:[%s1715 + $0x141] sm:$0xff]
      %v2114 = vld [vmem:[%s1715 + $0x151] sm:$0xff]
      %v2115 = vld [vmem:[%s1715 + $0x159] sm:$0xff]
      %v2116 = vld [vmem:[%s1715 + $0x169] sm:$0xff]
      %v2117 = vld [vmem:[%s1715 + $0x171] sm:$0xff]
      %v2118 = vpack.c.bf16 %v2087, %v2086
      %v2119 = vpack.c.bf16 %v2089, %v2088
      %v2120 = vpack.c.bf16 %v2091, %v2090
      %v2121 = vpack.c.bf16 %v2093, %v2092
      %v2122 = vpack.c.bf16 %v2095, %v2094
      %v2123 = vpack.c.bf16 %v2097, %v2096
      %v2124 = vpack.c.bf16 %v2099, %v2098
      %v2125 = vpack.c.bf16 %v2101, %v2100
      %v2126 = vpack.c.bf16 %v2103, %v2102
      %v2127 = vpack.c.bf16 %v2105, %v2104
      %v2128 = vpack.c.bf16 %v2107, %v2106
      %v2129 = vpack.c.bf16 %v2109, %v2108
      %v2130 = vpack.c.bf16 %v2111, %v2110
      %v2131 = vpack.c.bf16 %v2113, %v2112
      %v2132 = vpack.c.bf16 %v2115, %v2114
      %v2133 = vpack.c.bf16 %v2117, %v2116
      %s2134 = scalar_lea.vmem %s276, 256
      %v2135 = vld [vmem:[%s2134] sm:$0xf]
      %v2136 = vld [vmem:[%s2134 + $0x4] sm:$0xf]
      %v2137 = vld [vmem:[%s2134 + $0x8] sm:$0xf]
      %v2138 = vld [vmem:[%s2134 + $0xc] sm:$0xf]
      %v2139 = vld [vmem:[%s2134 + $0x10] sm:$0xf]
      %v2140 = vld [vmem:[%s2134 + $0x14] sm:$0xf]
      %v2141 = vld [vmem:[%s2134 + $0x18] sm:$0xf]
      %v2142 = vld [vmem:[%s2134 + $0x1c] sm:$0xf]
      %v2143 = vld [vmem:[%s2134 + $0x20] sm:$0xf]
      %v2144 = vld [vmem:[%s2134 + $0x24] sm:$0xf]
      %v2145 = vld [vmem:[%s2134 + $0x28] sm:$0xf]
      %v2146 = vld [vmem:[%s2134 + $0x2c] sm:$0xf]
      %v2147 = vld [vmem:[%s2134 + $0x30] sm:$0xf]
      %v2148 = vld [vmem:[%s2134 + $0x34] sm:$0xf]
      %v2149 = vld [vmem:[%s2134 + $0x38] sm:$0xf]
      %v2150 = vld [vmem:[%s2134 + $0x3c] sm:$0xf]
      %v2167 = vunpack.c.l.b16 %v2135
      %v2168 = vunpack.c.l.b16 %v2136
      %v2169 = vunpack.c.l.b16 %v2137
      %v2170 = vunpack.c.l.b16 %v2138
      %v2171 = vunpack.c.l.b16 %v2139
      %v2172 = vunpack.c.l.b16 %v2140
      %v2173 = vunpack.c.l.b16 %v2141
      %v2174 = vunpack.c.l.b16 %v2142
      %v2175 = vunpack.c.l.b16 %v2143
      %v2176 = vunpack.c.l.b16 %v2144
      %v2177 = vunpack.c.l.b16 %v2145
      %v2178 = vunpack.c.l.b16 %v2146
      %v2179 = vunpack.c.l.b16 %v2147
      %v2180 = vunpack.c.l.b16 %v2148
      %v2181 = vunpack.c.l.b16 %v2149
      %v2182 = vunpack.c.l.b16 %v2150
      %v2183 = vpack.c.b16 %v2168, %v2167
      %v2184 = vpack.c.b16 %v2170, %v2169
      %v2185 = vpack.c.b16 %v2172, %v2171
      %v2186 = vpack.c.b16 %v2174, %v2173
      %v2187 = vpack.c.b16 %v2176, %v2175
      %v2188 = vpack.c.b16 %v2178, %v2177
      %v2189 = vpack.c.b16 %v2180, %v2179
      %v2190 = vpack.c.b16 %v2182, %v2181
      %2199 = vmatprep.subr.bf16.mxu0 0
      %2200 = vmatpush1.bf16.msra.mxu0 %v2190
      %2201 = vmatprep.subr.bf16.mxu0 0
      %2202 = vmatpush1.bf16.msra.mxu0 %v2189
      %2203 = vmatprep.subr.bf16.mxu0 0
      %2204 = vmatpush1.bf16.msra.mxu0 %v2188
      %2205 = vmatprep.subr.bf16.mxu0 0
      %2206 = vmatpush1.bf16.msra.mxu0 %v2187
      %2207 = vmatprep.subr.bf16.mxu0 0
      %2208 = vmatpush1.bf16.msra.mxu0 %v2186
      %2209 = vmatprep.subr.bf16.mxu0 0
      %2210 = vmatpush1.bf16.msra.mxu0 %v2185
      %2211 = vmatprep.subr.bf16.mxu0 0
      %2212 = vmatpush1.bf16.msra.mxu0 %v2184
      %2213 = vmatprep.subr.bf16.mxu0 0
      %2214 = vmatpush1.bf16.msra.mxu0 %v2183
      %2215 = vmatprep.subr.bf16.mxu0 0
      %2216 = vmatpush2.bf16.msra.mxu0 0
      %2217 = vmatprep.subr.bf16.mxu0 0
      %2218 = vmatpush2.bf16.msra.mxu0 0
      %2219 = vmatprep.subr.bf16.mxu0 0
      %2220 = vmatpush2.bf16.msra.mxu0 0
      %2221 = vmatprep.subr.bf16.mxu0 0
      %2222 = vmatpush2.bf16.msra.mxu0 0
      %2223 = vmatprep.subr.bf16.mxu0 0
      %2224 = vmatpush2.bf16.msra.mxu0 0
      %2225 = vmatprep.subr.bf16.mxu0 0
      %2226 = vmatpush2.bf16.msra.mxu0 0
      %2227 = vmatprep.subr.bf16.mxu0 0
      %2228 = vmatpush2.bf16.msra.mxu0 0
      %2229 = vmatprep.subr.bf16.mxu0 0
      %2230 = vmatpush2.bf16.msra.mxu0 0
      %2231 = vmatprep.mubr.bf16.mxu0 0
      %2232 = vmatmul.mubr.bf16.gmra.mxu0 %v2118
      %v2233 = vpop.f32.mrf.mxu0
      %v2234 = vadd.f32 0.0, %v2233
      %v2235 = vpop.f32.mrf.mxu0
      %v2236 = vpop.f32.mrf.mxu0
      %v2237 = vadd.f32 0.0, %v2236
      %v2238 = vpop.f32.mrf.mxu0
      %2239 = vmatprep.mubr.bf16.mxu0 0
      %2240 = vmatmul.mubr.bf16.gmra.mxu0 %v2119
      %v2241 = vpop.f32.mrf.mxu0
      %v2242 = vadd.f32 0.0, %v2241
      %v2243 = vpop.f32.mrf.mxu0
      %v2244 = vpop.f32.mrf.mxu0
      %v2245 = vadd.f32 0.0, %v2244
      %v2246 = vpop.f32.mrf.mxu0
      %2247 = vmatprep.mubr.bf16.mxu0 0
      %2248 = vmatmul.mubr.bf16.gmra.mxu0 %v2120
      %v2249 = vpop.f32.mrf.mxu0
      %v2250 = vadd.f32 0.0, %v2249
      %v2251 = vpop.f32.mrf.mxu0
      %v2252 = vpop.f32.mrf.mxu0
      %v2253 = vadd.f32 0.0, %v2252
      %v2254 = vpop.f32.mrf.mxu0
      %2255 = vmatprep.mubr.bf16.mxu0 0
      %2256 = vmatmul.mubr.bf16.gmra.mxu0 %v2121
      %v2257 = vpop.f32.mrf.mxu0
      %v2258 = vadd.f32 0.0, %v2257
      %v2259 = vpop.f32.mrf.mxu0
      %v2260 = vpop.f32.mrf.mxu0
      %v2261 = vadd.f32 0.0, %v2260
      %v2262 = vpop.f32.mrf.mxu0
      %2263 = vmatprep.mubr.bf16.mxu0 0
      %2264 = vmatmul.mubr.bf16.gmra.mxu0 %v2122
      %v2265 = vpop.f32.mrf.mxu0
      %v2266 = vadd.f32 0.0, %v2265
      %v2267 = vpop.f32.mrf.mxu0
      %v2268 = vpop.f32.mrf.mxu0
      %v2269 = vadd.f32 0.0, %v2268
      %v2270 = vpop.f32.mrf.mxu0
      %2271 = vmatprep.mubr.bf16.mxu0 0
      %2272 = vmatmul.mubr.bf16.gmra.mxu0 %v2123
      %v2273 = vpop.f32.mrf.mxu0
      %v2274 = vadd.f32 0.0, %v2273
      %v2275 = vpop.f32.mrf.mxu0
      %v2276 = vpop.f32.mrf.mxu0
      %v2277 = vadd.f32 0.0, %v2276
      %v2278 = vpop.f32.mrf.mxu0
      %2279 = vmatprep.mubr.bf16.mxu0 0
      %2280 = vmatmul.mubr.bf16.gmra.mxu0 %v2124
      %v2281 = vpop.f32.mrf.mxu0
      %v2282 = vadd.f32 0.0, %v2281
      %v2283 = vpop.f32.mrf.mxu0
      %v2284 = vpop.f32.mrf.mxu0
      %v2285 = vadd.f32 0.0, %v2284
      %v2286 = vpop.f32.mrf.mxu0
      %2287 = vmatprep.mubr.bf16.mxu0 0
      %2288 = vmatmul.mubr.bf16.gmra.mxu0 %v2125
      %v2289 = vpop.f32.mrf.mxu0
      %v2290 = vadd.f32 0.0, %v2289
      %v2291 = vpop.f32.mrf.mxu0
      %v2292 = vpop.f32.mrf.mxu0
      %v2293 = vadd.f32 0.0, %v2292
      %v2294 = vpop.f32.mrf.mxu0
      %2295 = vmatprep.mubr.bf16.mxu0 0
      %2296 = vmatmul.mubr.bf16.gmra.mxu0 %v2126
      %v2297 = vpop.f32.mrf.mxu0
      %v2298 = vadd.f32 0.0, %v2297
      %v2299 = vpop.f32.mrf.mxu0
      %v2300 = vpop.f32.mrf.mxu0
      %v2301 = vadd.f32 0.0, %v2300
      %v2302 = vpop.f32.mrf.mxu0
      %2303 = vmatprep.mubr.bf16.mxu0 0
      %2304 = vmatmul.mubr.bf16.gmra.mxu0 %v2127
      %v2305 = vpop.f32.mrf.mxu0
      %v2306 = vadd.f32 0.0, %v2305
      %v2307 = vpop.f32.mrf.mxu0
      %v2308 = vpop.f32.mrf.mxu0
      %v2309 = vadd.f32 0.0, %v2308
      %v2310 = vpop.f32.mrf.mxu0
      %2311 = vmatprep.mubr.bf16.mxu0 0
      %2312 = vmatmul.mubr.bf16.gmra.mxu0 %v2128
      %v2313 = vpop.f32.mrf.mxu0
      %v2314 = vadd.f32 0.0, %v2313
      %v2315 = vpop.f32.mrf.mxu0
      %v2316 = vpop.f32.mrf.mxu0
      %v2317 = vadd.f32 0.0, %v2316
      %v2318 = vpop.f32.mrf.mxu0
      %2319 = vmatprep.mubr.bf16.mxu0 0
      %2320 = vmatmul.mubr.bf16.gmra.mxu0 %v2129
      %v2321 = vpop.f32.mrf.mxu0
      %v2322 = vadd.f32 0.0, %v2321
      %v2323 = vpop.f32.mrf.mxu0
      %v2324 = vpop.f32.mrf.mxu0
      %v2325 = vadd.f32 0.0, %v2324
      %v2326 = vpop.f32.mrf.mxu0
      %2327 = vmatprep.mubr.bf16.mxu0 0
      %2328 = vmatmul.mubr.bf16.gmra.mxu0 %v2130
      %v2329 = vpop.f32.mrf.mxu0
      %v2330 = vadd.f32 0.0, %v2329
      %v2331 = vpop.f32.mrf.mxu0
      %v2332 = vpop.f32.mrf.mxu0
      %v2333 = vadd.f32 0.0, %v2332
      %v2334 = vpop.f32.mrf.mxu0
      %2335 = vmatprep.mubr.bf16.mxu0 0
      %2336 = vmatmul.mubr.bf16.gmra.mxu0 %v2131
      %v2337 = vpop.f32.mrf.mxu0
      %v2338 = vadd.f32 0.0, %v2337
      %v2339 = vpop.f32.mrf.mxu0
      %v2340 = vpop.f32.mrf.mxu0
      %v2341 = vadd.f32 0.0, %v2340
      %v2342 = vpop.f32.mrf.mxu0
      %2343 = vmatprep.mubr.bf16.mxu0 0
      %2344 = vmatmul.mubr.bf16.gmra.mxu0 %v2132
      %v2345 = vpop.f32.mrf.mxu0
      %v2346 = vadd.f32 0.0, %v2345
      %v2347 = vpop.f32.mrf.mxu0
      %v2348 = vpop.f32.mrf.mxu0
      %v2349 = vadd.f32 0.0, %v2348
      %v2350 = vpop.f32.mrf.mxu0
      %2351 = vmatprep.mubr.bf16.mxu0 0
      %2352 = vmatmul.mubr.bf16.gmra.mxu0 %v2133
      %v2353 = vpop.f32.mrf.mxu0
      %v2354 = vadd.f32 0.0, %v2353
      %v2355 = vpop.f32.mrf.mxu0
      %v2356 = vpop.f32.mrf.mxu0
      %v2357 = vadd.f32 0.0, %v2356
      %v2358 = vpop.f32.mrf.mxu0
      %2359 = vdwg.mxu0
      %v2360 = vld [vmem:[#allocation3] sm:$0xff]
      %v2361 = vld [vmem:[#allocation3 + $0x8] sm:$0xff]
      %v2362 = vld [vmem:[#allocation3 + $0x10] sm:$0xff]
      %v2363 = vld [vmem:[#allocation3 + $0x18] sm:$0xff]
      %v2364 = vld [vmem:[#allocation3 + $0x20] sm:$0xff]
      %v2365 = vld [vmem:[#allocation3 + $0x28] sm:$0xff]
      %v2366 = vld [vmem:[#allocation3 + $0x30] sm:$0xff]
      %v2367 = vld [vmem:[#allocation3 + $0x38] sm:$0xff]
      %v2368 = vld [vmem:[#allocation3 + $0x40] sm:$0xff]
      %v2369 = vld [vmem:[#allocation3 + $0x48] sm:$0xff]
      %v2370 = vld [vmem:[#allocation3 + $0x50] sm:$0xff]
      %v2371 = vld [vmem:[#allocation3 + $0x58] sm:$0xff]
      %v2372 = vld [vmem:[#allocation3 + $0x60] sm:$0xff]
      %v2373 = vld [vmem:[#allocation3 + $0x68] sm:$0xff]
      %v2374 = vld [vmem:[#allocation3 + $0x70] sm:$0xff]
      %v2375 = vld [vmem:[#allocation3 + $0x78] sm:$0xff]
      %v2376 = vld [vmem:[#allocation3 + $0x80] sm:$0xff]
      %v2377 = vld [vmem:[#allocation3 + $0x88] sm:$0xff]
      %v2378 = vld [vmem:[#allocation3 + $0x90] sm:$0xff]
      %v2379 = vld [vmem:[#allocation3 + $0x98] sm:$0xff]
      %v2380 = vld [vmem:[#allocation3 + $0xa0] sm:$0xff]
      %v2381 = vld [vmem:[#allocation3 + $0xa8] sm:$0xff]
      %v2382 = vld [vmem:[#allocation3 + $0xb0] sm:$0xff]
      %v2383 = vld [vmem:[#allocation3 + $0xb8] sm:$0xff]
      %v2384 = vld [vmem:[#allocation3 + $0xc0] sm:$0xff]
      %v2385 = vld [vmem:[#allocation3 + $0xc8] sm:$0xff]
      %v2386 = vld [vmem:[#allocation3 + $0xd0] sm:$0xff]
      %v2387 = vld [vmem:[#allocation3 + $0xd8] sm:$0xff]
      %v2388 = vld [vmem:[#allocation3 + $0xe0] sm:$0xff]
      %v2389 = vld [vmem:[#allocation3 + $0xe8] sm:$0xff]
      %v2390 = vld [vmem:[#allocation3 + $0xf0] sm:$0xff]
      %v2391 = vld [vmem:[#allocation3 + $0xf8] sm:$0xff]
      %v2392 = vadd.f32 %v2360, %v2234
      %v2393 = vadd.f32 %v2361, %v2237
      %v2394 = vadd.f32 %v2362, %v2242
      %v2395 = vadd.f32 %v2363, %v2245
      %v2396 = vadd.f32 %v2364, %v2250
      %v2397 = vadd.f32 %v2365, %v2253
      %v2398 = vadd.f32 %v2366, %v2258
      %v2399 = vadd.f32 %v2367, %v2261
      %v2400 = vadd.f32 %v2368, %v2266
      %v2401 = vadd.f32 %v2369, %v2269
      %v2402 = vadd.f32 %v2370, %v2274
      %v2403 = vadd.f32 %v2371, %v2277
      %v2404 = vadd.f32 %v2372, %v2282
      %v2405 = vadd.f32 %v2373, %v2285
      %v2406 = vadd.f32 %v2374, %v2290
      %v2407 = vadd.f32 %v2375, %v2293
      %v2408 = vadd.f32 %v2376, %v2298
      %v2409 = vadd.f32 %v2377, %v2301
      %v2410 = vadd.f32 %v2378, %v2306
      %v2411 = vadd.f32 %v2379, %v2309
      %v2412 = vadd.f32 %v2380, %v2314
      %v2413 = vadd.f32 %v2381, %v2317
      %v2414 = vadd.f32 %v2382, %v2322
      %v2415 = vadd.f32 %v2383, %v2325
      %v2416 = vadd.f32 %v2384, %v2330
      %v2417 = vadd.f32 %v2385, %v2333
      %v2418 = vadd.f32 %v2386, %v2338
      %v2419 = vadd.f32 %v2387, %v2341
      %v2420 = vadd.f32 %v2388, %v2346
      %v2421 = vadd.f32 %v2389, %v2349
      %v2422 = vadd.f32 %v2390, %v2354
      %v2423 = vadd.f32 %v2391, %v2357
      %2424 = vst [vmem:[#allocation3] sm:$0xff] %v2392
      %2425 = vst [vmem:[#allocation3 + $0x8] sm:$0xff] %v2393
      %2426 = vst [vmem:[#allocation3 + $0x10] sm:$0xff] %v2394
      %2427 = vst [vmem:[#allocation3 + $0x18] sm:$0xff] %v2395
      %2428 = vst [vmem:[#allocation3 + $0x20] sm:$0xff] %v2396
      %2429 = vst [vmem:[#allocation3 + $0x28] sm:$0xff] %v2397
      %2430 = vst [vmem:[#allocation3 + $0x30] sm:$0xff] %v2398
      %2431 = vst [vmem:[#allocation3 + $0x38] sm:$0xff] %v2399
      %2432 = vst [vmem:[#allocation3 + $0x40] sm:$0xff] %v2400
      %2433 = vst [vmem:[#allocation3 + $0x48] sm:$0xff] %v2401
      %2434 = vst [vmem:[#allocation3 + $0x50] sm:$0xff] %v2402
      %2435 = vst [vmem:[#allocation3 + $0x58] sm:$0xff] %v2403
      %2436 = vst [vmem:[#allocation3 + $0x60] sm:$0xff] %v2404
      %2437 = vst [vmem:[#allocation3 + $0x68] sm:$0xff] %v2405
      %2438 = vst [vmem:[#allocation3 + $0x70] sm:$0xff] %v2406
      %2439 = vst [vmem:[#allocation3 + $0x78] sm:$0xff] %v2407
      %2440 = vst [vmem:[#allocation3 + $0x80] sm:$0xff] %v2408
      %2441 = vst [vmem:[#allocation3 + $0x88] sm:$0xff] %v2409
      %2442 = vst [vmem:[#allocation3 + $0x90] sm:$0xff] %v2410
      %2443 = vst [vmem:[#allocation3 + $0x98] sm:$0xff] %v2411
      %2444 = vst [vmem:[#allocation3 + $0xa0] sm:$0xff] %v2412
      %2445 = vst [vmem:[#allocation3 + $0xa8] sm:$0xff] %v2413
      %2446 = vst [vmem:[#allocation3 + $0xb0] sm:$0xff] %v2414
      %2447 = vst [vmem:[#allocation3 + $0xb8] sm:$0xff] %v2415
      %2448 = vst [vmem:[#allocation3 + $0xc0] sm:$0xff] %v2416
      %2449 = vst [vmem:[#allocation3 + $0xc8] sm:$0xff] %v2417
      %2450 = vst [vmem:[#allocation3 + $0xd0] sm:$0xff] %v2418
      %2451 = vst [vmem:[#allocation3 + $0xd8] sm:$0xff] %v2419
      %2452 = vst [vmem:[#allocation3 + $0xe0] sm:$0xff] %v2420
      %2453 = vst [vmem:[#allocation3 + $0xe8] sm:$0xff] %v2421
      %2454 = vst [vmem:[#allocation3 + $0xf0] sm:$0xff] %v2422
      %2455 = vst [vmem:[#allocation3 + $0xf8] sm:$0xff] %v2423
      %v2456 = vld [vmem:[%s1715 + $0x2] sm:$0xff]
      %v2457 = vld [vmem:[%s1715 + $0xa] sm:$0xff]
      %v2458 = vld [vmem:[%s1715 + $0x1a] sm:$0xff]
      %v2459 = vld [vmem:[%s1715 + $0x22] sm:$0xff]
      %v2460 = vld [vmem:[%s1715 + $0x32] sm:$0xff]
      %v2461 = vld [vmem:[%s1715 + $0x3a] sm:$0xff]
      %v2462 = vld [vmem:[%s1715 + $0x4a] sm:$0xff]
      %v2463 = vld [vmem:[%s1715 + $0x52] sm:$0xff]
      %v2464 = vld [vmem:[%s1715 + $0x62] sm:$0xff]
      %v2465 = vld [vmem:[%s1715 + $0x6a] sm:$0xff]
      %v2466 = vld [vmem:[%s1715 + $0x7a] sm:$0xff]
      %v2467 = vld [vmem:[%s1715 + $0x82] sm:$0xff]
      %v2468 = vld [vmem:[%s1715 + $0x92] sm:$0xff]
      %v2469 = vld [vmem:[%s1715 + $0x9a] sm:$0xff]
      %v2470 = vld [vmem:[%s1715 + $0xaa] sm:$0xff]
      %v2471 = vld [vmem:[%s1715 + $0xb2] sm:$0xff]
      %v2472 = vld [vmem:[%s1715 + $0xc2] sm:$0xff]
      %v2473 = vld [vmem:[%s1715 + $0xca] sm:$0xff]
      %v2474 = vld [vmem:[%s1715 + $0xda] sm:$0xff]
      %v2475 = vld [vmem:[%s1715 + $0xe2] sm:$0xff]
      %v2476 = vld [vmem:[%s1715 + $0xf2] sm:$0xff]
      %v2477 = vld [vmem:[%s1715 + $0xfa] sm:$0xff]
      %v2478 = vld [vmem:[%s1715 + $0x10a] sm:$0xff]
      %v2479 = vld [vmem:[%s1715 + $0x112] sm:$0xff]
      %v2480 = vld [vmem:[%s1715 + $0x122] sm:$0xff]
      %v2481 = vld [vmem:[%s1715 + $0x12a] sm:$0xff]
      %v2482 = vld [vmem:[%s1715 + $0x13a] sm:$0xff]
      %v2483 = vld [vmem:[%s1715 + $0x142] sm:$0xff]
      %v2484 = vld [vmem:[%s1715 + $0x152] sm:$0xff]
      %v2485 = vld [vmem:[%s1715 + $0x15a] sm:$0xff]
      %v2486 = vld [vmem:[%s1715 + $0x16a] sm:$0xff]
      %v2487 = vld [vmem:[%s1715 + $0x172] sm:$0xff]
      %v2488 = vpack.c.bf16 %v2457, %v2456
      %v2489 = vpack.c.bf16 %v2459, %v2458
      %v2490 = vpack.c.bf16 %v2461, %v2460
      %v2491 = vpack.c.bf16 %v2463, %v2462
      %v2492 = vpack.c.bf16 %v2465, %v2464
      %v2493 = vpack.c.bf16 %v2467, %v2466
      %v2494 = vpack.c.bf16 %v2469, %v2468
      %v2495 = vpack.c.bf16 %v2471, %v2470
      %v2496 = vpack.c.bf16 %v2473, %v2472
      %v2497 = vpack.c.bf16 %v2475, %v2474
      %v2498 = vpack.c.bf16 %v2477, %v2476
      %v2499 = vpack.c.bf16 %v2479, %v2478
      %v2500 = vpack.c.bf16 %v2481, %v2480
      %v2501 = vpack.c.bf16 %v2483, %v2482
      %v2502 = vpack.c.bf16 %v2485, %v2484
      %v2503 = vpack.c.bf16 %v2487, %v2486
      %s2504 = scalar_lea.vmem %s276, 320
      %v2505 = vld [vmem:[%s2504] sm:$0xf]
      %v2506 = vld [vmem:[%s2504 + $0x4] sm:$0xf]
      %v2507 = vld [vmem:[%s2504 + $0x8] sm:$0xf]
      %v2508 = vld [vmem:[%s2504 + $0xc] sm:$0xf]
      %v2509 = vld [vmem:[%s2504 + $0x10] sm:$0xf]
      %v2510 = vld [vmem:[%s2504 + $0x14] sm:$0xf]
      %v2511 = vld [vmem:[%s2504 + $0x18] sm:$0xf]
      %v2512 = vld [vmem:[%s2504 + $0x1c] sm:$0xf]
      %v2513 = vld [vmem:[%s2504 + $0x20] sm:$0xf]
      %v2514 = vld [vmem:[%s2504 + $0x24] sm:$0xf]
      %v2515 = vld [vmem:[%s2504 + $0x28] sm:$0xf]
      %v2516 = vld [vmem:[%s2504 + $0x2c] sm:$0xf]
      %v2517 = vld [vmem:[%s2504 + $0x30] sm:$0xf]
      %v2518 = vld [vmem:[%s2504 + $0x34] sm:$0xf]
      %v2519 = vld [vmem:[%s2504 + $0x38] sm:$0xf]
      %v2520 = vld [vmem:[%s2504 + $0x3c] sm:$0xf]
      %v2537 = vunpack.c.l.b16 %v2505
      %v2538 = vunpack.c.l.b16 %v2506
      %v2539 = vunpack.c.l.b16 %v2507
      %v2540 = vunpack.c.l.b16 %v2508
      %v2541 = vunpack.c.l.b16 %v2509
      %v2542 = vunpack.c.l.b16 %v2510
      %v2543 = vunpack.c.l.b16 %v2511
      %v2544 = vunpack.c.l.b16 %v2512
      %v2545 = vunpack.c.l.b16 %v2513
      %v2546 = vunpack.c.l.b16 %v2514
      %v2547 = vunpack.c.l.b16 %v2515
      %v2548 = vunpack.c.l.b16 %v2516
      %v2549 = vunpack.c.l.b16 %v2517
      %v2550 = vunpack.c.l.b16 %v2518
      %v2551 = vunpack.c.l.b16 %v2519
      %v2552 = vunpack.c.l.b16 %v2520
      %v2553 = vpack.c.b16 %v2538, %v2537
      %v2554 = vpack.c.b16 %v2540, %v2539
      %v2555 = vpack.c.b16 %v2542, %v2541
      %v2556 = vpack.c.b16 %v2544, %v2543
      %v2557 = vpack.c.b16 %v2546, %v2545
      %v2558 = vpack.c.b16 %v2548, %v2547
      %v2559 = vpack.c.b16 %v2550, %v2549
      %v2560 = vpack.c.b16 %v2552, %v2551
      %2569 = vmatprep.subr.bf16.mxu0 0
      %2570 = vmatpush1.bf16.msra.mxu0 %v2560
      %2571 = vmatprep.subr.bf16.mxu0 0
      %2572 = vmatpush1.bf16.msra.mxu0 %v2559
      %2573 = vmatprep.subr.bf16.mxu0 0
      %2574 = vmatpush1.bf16.msra.mxu0 %v2558
      %2575 = vmatprep.subr.bf16.mxu0 0
      %2576 = vmatpush1.bf16.msra.mxu0 %v2557
      %2577 = vmatprep.subr.bf16.mxu0 0
      %2578 = vmatpush1.bf16.msra.mxu0 %v2556
      %2579 = vmatprep.subr.bf16.mxu0 0
      %2580 = vmatpush1.bf16.msra.mxu0 %v2555
      %2581 = vmatprep.subr.bf16.mxu0 0
      %2582 = vmatpush1.bf16.msra.mxu0 %v2554
      %2583 = vmatprep.subr.bf16.mxu0 0
      %2584 = vmatpush1.bf16.msra.mxu0 %v2553
      %2585 = vmatprep.subr.bf16.mxu0 0
      %2586 = vmatpush2.bf16.msra.mxu0 0
      %2587 = vmatprep.subr.bf16.mxu0 0
      %2588 = vmatpush2.bf16.msra.mxu0 0
      %2589 = vmatprep.subr.bf16.mxu0 0
      %2590 = vmatpush2.bf16.msra.mxu0 0
      %2591 = vmatprep.subr.bf16.mxu0 0
      %2592 = vmatpush2.bf16.msra.mxu0 0
      %2593 = vmatprep.subr.bf16.mxu0 0
      %2594 = vmatpush2.bf16.msra.mxu0 0
      %2595 = vmatprep.subr.bf16.mxu0 0
      %2596 = vmatpush2.bf16.msra.mxu0 0
      %2597 = vmatprep.subr.bf16.mxu0 0
      %2598 = vmatpush2.bf16.msra.mxu0 0
      %2599 = vmatprep.subr.bf16.mxu0 0
      %2600 = vmatpush2.bf16.msra.mxu0 0
      %2601 = vmatprep.mubr.bf16.mxu0 0
      %2602 = vmatmul.mubr.bf16.gmra.mxu0 %v2488
      %v2603 = vpop.f32.mrf.mxu0
      %v2604 = vadd.f32 0.0, %v2603
      %v2605 = vpop.f32.mrf.mxu0
      %v2606 = vpop.f32.mrf.mxu0
      %v2607 = vadd.f32 0.0, %v2606
      %v2608 = vpop.f32.mrf.mxu0
      %2609 = vmatprep.mubr.bf16.mxu0 0
      %2610 = vmatmul.mubr.bf16.gmra.mxu0 %v2489
      %v2611 = vpop.f32.mrf.mxu0
      %v2612 = vadd.f32 0.0, %v2611
      %v2613 = vpop.f32.mrf.mxu0
      %v2614 = vpop.f32.mrf.mxu0
      %v2615 = vadd.f32 0.0, %v2614
      %v2616 = vpop.f32.mrf.mxu0
      %2617 = vmatprep.mubr.bf16.mxu0 0
      %2618 = vmatmul.mubr.bf16.gmra.mxu0 %v2490
      %v2619 = vpop.f32.mrf.mxu0
      %v2620 = vadd.f32 0.0, %v2619
      %v2621 = vpop.f32.mrf.mxu0
      %v2622 = vpop.f32.mrf.mxu0
      %v2623 = vadd.f32 0.0, %v2622
      %v2624 = vpop.f32.mrf.mxu0
      %2625 = vmatprep.mubr.bf16.mxu0 0
      %2626 = vmatmul.mubr.bf16.gmra.mxu0 %v2491
      %v2627 = vpop.f32.mrf.mxu0
      %v2628 = vadd.f32 0.0, %v2627
      %v2629 = vpop.f32.mrf.mxu0
      %v2630 = vpop.f32.mrf.mxu0
      %v2631 = vadd.f32 0.0, %v2630
      %v2632 = vpop.f32.mrf.mxu0
      %2633 = vmatprep.mubr.bf16.mxu0 0
      %2634 = vmatmul.mubr.bf16.gmra.mxu0 %v2492
      %v2635 = vpop.f32.mrf.mxu0
      %v2636 = vadd.f32 0.0, %v2635
      %v2637 = vpop.f32.mrf.mxu0
      %v2638 = vpop.f32.mrf.mxu0
      %v2639 = vadd.f32 0.0, %v2638
      %v2640 = vpop.f32.mrf.mxu0
      %2641 = vmatprep.mubr.bf16.mxu0 0
      %2642 = vmatmul.mubr.bf16.gmra.mxu0 %v2493
      %v2643 = vpop.f32.mrf.mxu0
      %v2644 = vadd.f32 0.0, %v2643
      %v2645 = vpop.f32.mrf.mxu0
      %v2646 = vpop.f32.mrf.mxu0
      %v2647 = vadd.f32 0.0, %v2646
      %v2648 = vpop.f32.mrf.mxu0
      %2649 = vmatprep.mubr.bf16.mxu0 0
      %2650 = vmatmul.mubr.bf16.gmra.mxu0 %v2494
      %v2651 = vpop.f32.mrf.mxu0
      %v2652 = vadd.f32 0.0, %v2651
      %v2653 = vpop.f32.mrf.mxu0
      %v2654 = vpop.f32.mrf.mxu0
      %v2655 = vadd.f32 0.0, %v2654
      %v2656 = vpop.f32.mrf.mxu0
      %2657 = vmatprep.mubr.bf16.mxu0 0
      %2658 = vmatmul.mubr.bf16.gmra.mxu0 %v2495
      %v2659 = vpop.f32.mrf.mxu0
      %v2660 = vadd.f32 0.0, %v2659
      %v2661 = vpop.f32.mrf.mxu0
      %v2662 = vpop.f32.mrf.mxu0
      %v2663 = vadd.f32 0.0, %v2662
      %v2664 = vpop.f32.mrf.mxu0
      %2665 = vmatprep.mubr.bf16.mxu0 0
      %2666 = vmatmul.mubr.bf16.gmra.mxu0 %v2496
      %v2667 = vpop.f32.mrf.mxu0
      %v2668 = vadd.f32 0.0, %v2667
      %v2669 = vpop.f32.mrf.mxu0
      %v2670 = vpop.f32.mrf.mxu0
      %v2671 = vadd.f32 0.0, %v2670
      %v2672 = vpop.f32.mrf.mxu0
      %2673 = vmatprep.mubr.bf16.mxu0 0
      %2674 = vmatmul.mubr.bf16.gmra.mxu0 %v2497
      %v2675 = vpop.f32.mrf.mxu0
      %v2676 = vadd.f32 0.0, %v2675
      %v2677 = vpop.f32.mrf.mxu0
      %v2678 = vpop.f32.mrf.mxu0
      %v2679 = vadd.f32 0.0, %v2678
      %v2680 = vpop.f32.mrf.mxu0
      %2681 = vmatprep.mubr.bf16.mxu0 0
      %2682 = vmatmul.mubr.bf16.gmra.mxu0 %v2498
      %v2683 = vpop.f32.mrf.mxu0
      %v2684 = vadd.f32 0.0, %v2683
      %v2685 = vpop.f32.mrf.mxu0
      %v2686 = vpop.f32.mrf.mxu0
      %v2687 = vadd.f32 0.0, %v2686
      %v2688 = vpop.f32.mrf.mxu0
      %2689 = vmatprep.mubr.bf16.mxu0 0
      %2690 = vmatmul.mubr.bf16.gmra.mxu0 %v2499
      %v2691 = vpop.f32.mrf.mxu0
      %v2692 = vadd.f32 0.0, %v2691
      %v2693 = vpop.f32.mrf.mxu0
      %v2694 = vpop.f32.mrf.mxu0
      %v2695 = vadd.f32 0.0, %v2694
      %v2696 = vpop.f32.mrf.mxu0
      %2697 = vmatprep.mubr.bf16.mxu0 0
      %2698 = vmatmul.mubr.bf16.gmra.mxu0 %v2500
      %v2699 = vpop.f32.mrf.mxu0
      %v2700 = vadd.f32 0.0, %v2699
      %v2701 = vpop.f32.mrf.mxu0
      %v2702 = vpop.f32.mrf.mxu0
      %v2703 = vadd.f32 0.0, %v2702
      %v2704 = vpop.f32.mrf.mxu0
      %2705 = vmatprep.mubr.bf16.mxu0 0
      %2706 = vmatmul.mubr.bf16.gmra.mxu0 %v2501
      %v2707 = vpop.f32.mrf.mxu0
      %v2708 = vadd.f32 0.0, %v2707
      %v2709 = vpop.f32.mrf.mxu0
      %v2710 = vpop.f32.mrf.mxu0
      %v2711 = vadd.f32 0.0, %v2710
      %v2712 = vpop.f32.mrf.mxu0
      %2713 = vmatprep.mubr.bf16.mxu0 0
      %2714 = vmatmul.mubr.bf16.gmra.mxu0 %v2502
      %v2715 = vpop.f32.mrf.mxu0
      %v2716 = vadd.f32 0.0, %v2715
      %v2717 = vpop.f32.mrf.mxu0
      %v2718 = vpop.f32.mrf.mxu0
      %v2719 = vadd.f32 0.0, %v2718
      %v2720 = vpop.f32.mrf.mxu0
      %2721 = vmatprep.mubr.bf16.mxu0 0
      %2722 = vmatmul.mubr.bf16.gmra.mxu0 %v2503
      %v2723 = vpop.f32.mrf.mxu0
      %v2724 = vadd.f32 0.0, %v2723
      %v2725 = vpop.f32.mrf.mxu0
      %v2726 = vpop.f32.mrf.mxu0
      %v2727 = vadd.f32 0.0, %v2726
      %v2728 = vpop.f32.mrf.mxu0
      %2729 = vdwg.mxu0
      %v2730 = vld [vmem:[#allocation3] sm:$0xff]
      %v2731 = vld [vmem:[#allocation3 + $0x8] sm:$0xff]
      %v2732 = vld [vmem:[#allocation3 + $0x10] sm:$0xff]
      %v2733 = vld [vmem:[#allocation3 + $0x18] sm:$0xff]
      %v2734 = vld [vmem:[#allocation3 + $0x20] sm:$0xff]
      %v2735 = vld [vmem:[#allocation3 + $0x28] sm:$0xff]
      %v2736 = vld [vmem:[#allocation3 + $0x30] sm:$0xff]
      %v2737 = vld [vmem:[#allocation3 + $0x38] sm:$0xff]
      %v2738 = vld [vmem:[#allocation3 + $0x40] sm:$0xff]
      %v2739 = vld [vmem:[#allocation3 + $0x48] sm:$0xff]
      %v2740 = vld [vmem:[#allocation3 + $0x50] sm:$0xff]
      %v2741 = vld [vmem:[#allocation3 + $0x58] sm:$0xff]
      %v2742 = vld [vmem:[#allocation3 + $0x60] sm:$0xff]
      %v2743 = vld [vmem:[#allocation3 + $0x68] sm:$0xff]
      %v2744 = vld [vmem:[#allocation3 + $0x70] sm:$0xff]
      %v2745 = vld [vmem:[#allocation3 + $0x78] sm:$0xff]
      %v2746 = vld [vmem:[#allocation3 + $0x80] sm:$0xff]
      %v2747 = vld [vmem:[#allocation3 + $0x88] sm:$0xff]
      %v2748 = vld [vmem:[#allocation3 + $0x90] sm:$0xff]
      %v2749 = vld [vmem:[#allocation3 + $0x98] sm:$0xff]
      %v2750 = vld [vmem:[#allocation3 + $0xa0] sm:$0xff]
      %v2751 = vld [vmem:[#allocation3 + $0xa8] sm:$0xff]
      %v2752 = vld [vmem:[#allocation3 + $0xb0] sm:$0xff]
      %v2753 = vld [vmem:[#allocation3 + $0xb8] sm:$0xff]
      %v2754 = vld [vmem:[#allocation3 + $0xc0] sm:$0xff]
      %v2755 = vld [vmem:[#allocation3 + $0xc8] sm:$0xff]
      %v2756 = vld [vmem:[#allocation3 + $0xd0] sm:$0xff]
      %v2757 = vld [vmem:[#allocation3 + $0xd8] sm:$0xff]
      %v2758 = vld [vmem:[#allocation3 + $0xe0] sm:$0xff]
      %v2759 = vld [vmem:[#allocation3 + $0xe8] sm:$0xff]
      %v2760 = vld [vmem:[#allocation3 + $0xf0] sm:$0xff]
      %v2761 = vld [vmem:[#allocation3 + $0xf8] sm:$0xff]
      %v2762 = vadd.f32 %v2730, %v2604
      %v2763 = vadd.f32 %v2731, %v2607
      %v2764 = vadd.f32 %v2732, %v2612
      %v2765 = vadd.f32 %v2733, %v2615
      %v2766 = vadd.f32 %v2734, %v2620
      %v2767 = vadd.f32 %v2735, %v2623
      %v2768 = vadd.f32 %v2736, %v2628
      %v2769 = vadd.f32 %v2737, %v2631
      %v2770 = vadd.f32 %v2738, %v2636
      %v2771 = vadd.f32 %v2739, %v2639
      %v2772 = vadd.f32 %v2740, %v2644
      %v2773 = vadd.f32 %v2741, %v2647
      %v2774 = vadd.f32 %v2742, %v2652
      %v2775 = vadd.f32 %v2743, %v2655
      %v2776 = vadd.f32 %v2744, %v2660
      %v2777 = vadd.f32 %v2745, %v2663
      %v2778 = vadd.f32 %v2746, %v2668
      %v2779 = vadd.f32 %v2747, %v2671
      %v2780 = vadd.f32 %v2748, %v2676
      %v2781 = vadd.f32 %v2749, %v2679
      %v2782 = vadd.f32 %v2750, %v2684
      %v2783 = vadd.f32 %v2751, %v2687
      %v2784 = vadd.f32 %v2752, %v2692
      %v2785 = vadd.f32 %v2753, %v2695
      %v2786 = vadd.f32 %v2754, %v2700
      %v2787 = vadd.f32 %v2755, %v2703
      %v2788 = vadd.f32 %v2756, %v2708
      %v2789 = vadd.f32 %v2757, %v2711
      %v2790 = vadd.f32 %v2758, %v2716
      %v2791 = vadd.f32 %v2759, %v2719
      %v2792 = vadd.f32 %v2760, %v2724
      %v2793 = vadd.f32 %v2761, %v2727
      %2794 = vst [vmem:[#allocation3] sm:$0xff] %v2762
      %2795 = vst [vmem:[#allocation3 + $0x8] sm:$0xff] %v2763
      %2796 = vst [vmem:[#allocation3 + $0x10] sm:$0xff] %v2764
      %2797 = vst [vmem:[#allocation3 + $0x18] sm:$0xff] %v2765
      %2798 = vst [vmem:[#allocation3 + $0x20] sm:$0xff] %v2766
      %2799 = vst [vmem:[#allocation3 + $0x28] sm:$0xff] %v2767
      %2800 = vst [vmem:[#allocation3 + $0x30] sm:$0xff] %v2768
      %2801 = vst [vmem:[#allocation3 + $0x38] sm:$0xff] %v2769
      %2802 = vst [vmem:[#allocation3 + $0x40] sm:$0xff] %v2770
      %2803 = vst [vmem:[#allocation3 + $0x48] sm:$0xff] %v2771
      %2804 = vst [vmem:[#allocation3 + $0x50] sm:$0xff] %v2772
      %2805 = vst [vmem:[#allocation3 + $0x58] sm:$0xff] %v2773
      %2806 = vst [vmem:[#allocation3 + $0x60] sm:$0xff] %v2774
      %2807 = vst [vmem:[#allocation3 + $0x68] sm:$0xff] %v2775
      %2808 = vst [vmem:[#allocation3 + $0x70] sm:$0xff] %v2776
      %2809 = vst [vmem:[#allocation3 + $0x78] sm:$0xff] %v2777
      %2810 = vst [vmem:[#allocation3 + $0x80] sm:$0xff] %v2778
      %2811 = vst [vmem:[#allocation3 + $0x88] sm:$0xff] %v2779
      %2812 = vst [vmem:[#allocation3 + $0x90] sm:$0xff] %v2780
      %2813 = vst [vmem:[#allocation3 + $0x98] sm:$0xff] %v2781
      %2814 = vst [vmem:[#allocation3 + $0xa0] sm:$0xff] %v2782
      %2815 = vst [vmem:[#allocation3 + $0xa8] sm:$0xff] %v2783
      %2816 = vst [vmem:[#allocation3 + $0xb0] sm:$0xff] %v2784
      %2817 = vst [vmem:[#allocation3 + $0xb8] sm:$0xff] %v2785
      %2818 = vst [vmem:[#allocation3 + $0xc0] sm:$0xff] %v2786
      %2819 = vst [vmem:[#allocation3 + $0xc8] sm:$0xff] %v2787
      %2820 = vst [vmem:[#allocation3 + $0xd0] sm:$0xff] %v2788
      %2821 = vst [vmem:[#allocation3 + $0xd8] sm:$0xff] %v2789
      %2822 = vst [vmem:[#allocation3 + $0xe0] sm:$0xff] %v2790
      %2823 = vst [vmem:[#allocation3 + $0xe8] sm:$0xff] %v2791
      %2824 = vst [vmem:[#allocation3 + $0xf0] sm:$0xff] %v2792
      %2825 = vst [vmem:[#allocation3 + $0xf8] sm:$0xff] %v2793
      %s2826 = scalar_lea.vmem [#allocation2], 48
      %v2827 = vld [vmem:[%s2826] sm:$0xff]
      %v2828 = vld [vmem:[%s2826 + $0x8] sm:$0xff]
      %v2829 = vld [vmem:[%s2826 + $0x18] sm:$0xff]
      %v2830 = vld [vmem:[%s2826 + $0x20] sm:$0xff]
      %v2831 = vld [vmem:[%s2826 + $0x30] sm:$0xff]
      %v2832 = vld [vmem:[%s2826 + $0x38] sm:$0xff]
      %v2833 = vld [vmem:[%s2826 + $0x48] sm:$0xff]
      %v2834 = vld [vmem:[%s2826 + $0x50] sm:$0xff]
      %v2835 = vld [vmem:[%s2826 + $0x60] sm:$0xff]
      %v2836 = vld [vmem:[%s2826 + $0x68] sm:$0xff]
      %v2837 = vld [vmem:[%s2826 + $0x78] sm:$0xff]
      %v2838 = vld [vmem:[%s2826 + $0x80] sm:$0xff]
      %v2839 = vld [vmem:[%s2826 + $0x90] sm:$0xff]
      %v2840 = vld [vmem:[%s2826 + $0x98] sm:$0xff]
      %v2841 = vld [vmem:[%s2826 + $0xa8] sm:$0xff]
      %v2842 = vld [vmem:[%s2826 + $0xb0] sm:$0xff]
      %v2843 = vld [vmem:[%s2826 + $0xc0] sm:$0xff]
      %v2844 = vld [vmem:[%s2826 + $0xc8] sm:$0xff]
      %v2845 = vld [vmem:[%s2826 + $0xd8] sm:$0xff]
      %v2846 = vld [vmem:[%s2826 + $0xe0] sm:$0xff]
      %v2847 = vld [vmem:[%s2826 + $0xf0] sm:$0xff]
      %v2848 = vld [vmem:[%s2826 + $0xf8] sm:$0xff]
      %v2849 = vld [vmem:[%s2826 + $0x108] sm:$0xff]
      %v2850 = vld [vmem:[%s2826 + $0x110] sm:$0xff]
      %v2851 = vld [vmem:[%s2826 + $0x120] sm:$0xff]
      %v2852 = vld [vmem:[%s2826 + $0x128] sm:$0xff]
      %v2853 = vld [vmem:[%s2826 + $0x138] sm:$0xff]
      %v2854 = vld [vmem:[%s2826 + $0x140] sm:$0xff]
      %v2855 = vld [vmem:[%s2826 + $0x150] sm:$0xff]
      %v2856 = vld [vmem:[%s2826 + $0x158] sm:$0xff]
      %v2857 = vld [vmem:[%s2826 + $0x168] sm:$0xff]
      %v2858 = vld [vmem:[%s2826 + $0x170] sm:$0xff]
      %v2859 = vpack.c.bf16 %v2828, %v2827
      %v2860 = vpack.c.bf16 %v2830, %v2829
      %v2861 = vpack.c.bf16 %v2832, %v2831
      %v2862 = vpack.c.bf16 %v2834, %v2833
      %v2863 = vpack.c.bf16 %v2836, %v2835
      %v2864 = vpack.c.bf16 %v2838, %v2837
      %v2865 = vpack.c.bf16 %v2840, %v2839
      %v2866 = vpack.c.bf16 %v2842, %v2841
      %v2867 = vpack.c.bf16 %v2844, %v2843
      %v2868 = vpack.c.bf16 %v2846, %v2845
      %v2869 = vpack.c.bf16 %v2848, %v2847
      %v2870 = vpack.c.bf16 %v2850, %v2849
      %v2871 = vpack.c.bf16 %v2852, %v2851
      %v2872 = vpack.c.bf16 %v2854, %v2853
      %v2873 = vpack.c.bf16 %v2856, %v2855
      %v2874 = vpack.c.bf16 %v2858, %v2857
      %s2875 = scalar_lea.vmem %s276, 384
      %v2876 = vld [vmem:[%s2875] sm:$0xf]
      %v2877 = vld [vmem:[%s2875 + $0x4] sm:$0xf]
      %v2878 = vld [vmem:[%s2875 + $0x8] sm:$0xf]
      %v2879 = vld [vmem:[%s2875 + $0xc] sm:$0xf]
      %v2880 = vld [vmem:[%s2875 + $0x10] sm:$0xf]
      %v2881 = vld [vmem:[%s2875 + $0x14] sm:$0xf]
      %v2882 = vld [vmem:[%s2875 + $0x18] sm:$0xf]
      %v2883 = vld [vmem:[%s2875 + $0x1c] sm:$0xf]
      %v2884 = vld [vmem:[%s2875 + $0x20] sm:$0xf]
      %v2885 = vld [vmem:[%s2875 + $0x24] sm:$0xf]
      %v2886 = vld [vmem:[%s2875 + $0x28] sm:$0xf]
      %v2887 = vld [vmem:[%s2875 + $0x2c] sm:$0xf]
      %v2888 = vld [vmem:[%s2875 + $0x30] sm:$0xf]
      %v2889 = vld [vmem:[%s2875 + $0x34] sm:$0xf]
      %v2890 = vld [vmem:[%s2875 + $0x38] sm:$0xf]
      %v2891 = vld [vmem:[%s2875 + $0x3c] sm:$0xf]
      %v2908 = vunpack.c.l.b16 %v2876
      %v2909 = vunpack.c.l.b16 %v2877
      %v2910 = vunpack.c.l.b16 %v2878
      %v2911 = vunpack.c.l.b16 %v2879
      %v2912 = vunpack.c.l.b16 %v2880
      %v2913 = vunpack.c.l.b16 %v2881
      %v2914 = vunpack.c.l.b16 %v2882
      %v2915 = vunpack.c.l.b16 %v2883
      %v2916 = vunpack.c.l.b16 %v2884
      %v2917 = vunpack.c.l.b16 %v2885
      %v2918 = vunpack.c.l.b16 %v2886
      %v2919 = vunpack.c.l.b16 %v2887
      %v2920 = vunpack.c.l.b16 %v2888
      %v2921 = vunpack.c.l.b16 %v2889
      %v2922 = vunpack.c.l.b16 %v2890
      %v2923 = vunpack.c.l.b16 %v2891
      %v2924 = vpack.c.b16 %v2909, %v2908
      %v2925 = vpack.c.b16 %v2911, %v2910
      %v2926 = vpack.c.b16 %v2913, %v2912
      %v2927 = vpack.c.b16 %v2915, %v2914
      %v2928 = vpack.c.b16 %v2917, %v2916
      %v2929 = vpack.c.b16 %v2919, %v2918
      %v2930 = vpack.c.b16 %v2921, %v2920
      %v2931 = vpack.c.b16 %v2923, %v2922
      %2940 = vmatprep.subr.bf16.mxu0 0
      %2941 = vmatpush1.bf16.msra.mxu0 %v2931
      %2942 = vmatprep.subr.bf16.mxu0 0
      %2943 = vmatpush1.bf16.msra.mxu0 %v2930
      %2944 = vmatprep.subr.bf16.mxu0 0
      %2945 = vmatpush1.bf16.msra.mxu0 %v2929
      %2946 = vmatprep.subr.bf16.mxu0 0
      %2947 = vmatpush1.bf16.msra.mxu0 %v2928
      %2948 = vmatprep.subr.bf16.mxu0 0
      %2949 = vmatpush1.bf16.msra.mxu0 %v2927
      %2950 = vmatprep.subr.bf16.mxu0 0
      %2951 = vmatpush1.bf16.msra.mxu0 %v2926
      %2952 = vmatprep.subr.bf16.mxu0 0
      %2953 = vmatpush1.bf16.msra.mxu0 %v2925
      %2954 = vmatprep.subr.bf16.mxu0 0
      %2955 = vmatpush1.bf16.msra.mxu0 %v2924
      %2956 = vmatprep.subr.bf16.mxu0 0
      %2957 = vmatpush2.bf16.msra.mxu0 0
      %2958 = vmatprep.subr.bf16.mxu0 0
      %2959 = vmatpush2.bf16.msra.mxu0 0
      %2960 = vmatprep.subr.bf16.mxu0 0
      %2961 = vmatpush2.bf16.msra.mxu0 0
      %2962 = vmatprep.subr.bf16.mxu0 0
      %2963 = vmatpush2.bf16.msra.mxu0 0
      %2964 = vmatprep.subr.bf16.mxu0 0
      %2965 = vmatpush2.bf16.msra.mxu0 0
      %2966 = vmatprep.subr.bf16.mxu0 0
      %2967 = vmatpush2.bf16.msra.mxu0 0
      %2968 = vmatprep.subr.bf16.mxu0 0
      %2969 = vmatpush2.bf16.msra.mxu0 0
      %2970 = vmatprep.subr.bf16.mxu0 0
      %2971 = vmatpush2.bf16.msra.mxu0 0
      %2972 = vmatprep.mubr.bf16.mxu0 0
      %2973 = vmatmul.mubr.bf16.gmra.mxu0 %v2859
      %v2974 = vpop.f32.mrf.mxu0
      %v2975 = vadd.f32 0.0, %v2974
      %v2976 = vpop.f32.mrf.mxu0
      %v2977 = vpop.f32.mrf.mxu0
      %v2978 = vadd.f32 0.0, %v2977
      %v2979 = vpop.f32.mrf.mxu0
      %2980 = vmatprep.mubr.bf16.mxu0 0
      %2981 = vmatmul.mubr.bf16.gmra.mxu0 %v2860
      %v2982 = vpop.f32.mrf.mxu0
      %v2983 = vadd.f32 0.0, %v2982
      %v2984 = vpop.f32.mrf.mxu0
      %v2985 = vpop.f32.mrf.mxu0
      %v2986 = vadd.f32 0.0, %v2985
      %v2987 = vpop.f32.mrf.mxu0
      %2988 = vmatprep.mubr.bf16.mxu0 0
      %2989 = vmatmul.mubr.bf16.gmra.mxu0 %v2861
      %v2990 = vpop.f32.mrf.mxu0
      %v2991 = vadd.f32 0.0, %v2990
      %v2992 = vpop.f32.mrf.mxu0
      %v2993 = vpop.f32.mrf.mxu0
      %v2994 = vadd.f32 0.0, %v2993
      %v2995 = vpop.f32.mrf.mxu0
      %2996 = vmatprep.mubr.bf16.mxu0 0
      %2997 = vmatmul.mubr.bf16.gmra.mxu0 %v2862
      %v2998 = vpop.f32.mrf.mxu0
      %v2999 = vadd.f32 0.0, %v2998
      %v3000 = vpop.f32.mrf.mxu0
      %v3001 = vpop.f32.mrf.mxu0
      %v3002 = vadd.f32 0.0, %v3001
      %v3003 = vpop.f32.mrf.mxu0
      %3004 = vmatprep.mubr.bf16.mxu0 0
      %3005 = vmatmul.mubr.bf16.gmra.mxu0 %v2863
      %v3006 = vpop.f32.mrf.mxu0
      %v3007 = vadd.f32 0.0, %v3006
      %v3008 = vpop.f32.mrf.mxu0
      %v3009 = vpop.f32.mrf.mxu0
      %v3010 = vadd.f32 0.0, %v3009
      %v3011 = vpop.f32.mrf.mxu0
      %3012 = vmatprep.mubr.bf16.mxu0 0
      %3013 = vmatmul.mubr.bf16.gmra.mxu0 %v2864
      %v3014 = vpop.f32.mrf.mxu0
      %v3015 = vadd.f32 0.0, %v3014
      %v3016 = vpop.f32.mrf.mxu0
      %v3017 = vpop.f32.mrf.mxu0
      %v3018 = vadd.f32 0.0, %v3017
      %v3019 = vpop.f32.mrf.mxu0
      %3020 = vmatprep.mubr.bf16.mxu0 0
      %3021 = vmatmul.mubr.bf16.gmra.mxu0 %v2865
      %v3022 = vpop.f32.mrf.mxu0
      %v3023 = vadd.f32 0.0, %v3022
      %v3024 = vpop.f32.mrf.mxu0
      %v3025 = vpop.f32.mrf.mxu0
      %v3026 = vadd.f32 0.0, %v3025
      %v3027 = vpop.f32.mrf.mxu0
      %3028 = vmatprep.mubr.bf16.mxu0 0
      %3029 = vmatmul.mubr.bf16.gmra.mxu0 %v2866
      %v3030 = vpop.f32.mrf.mxu0
      %v3031 = vadd.f32 0.0, %v3030
      %v3032 = vpop.f32.mrf.mxu0
      %v3033 = vpop.f32.mrf.mxu0
      %v3034 = vadd.f32 0.0, %v3033
      %v3035 = vpop.f32.mrf.mxu0
      %3036 = vmatprep.mubr.bf16.mxu0 0
      %3037 = vmatmul.mubr.bf16.gmra.mxu0 %v2867
      %v3038 = vpop.f32.mrf.mxu0
      %v3039 = vadd.f32 0.0, %v3038
      %v3040 = vpop.f32.mrf.mxu0
      %v3041 = vpop.f32.mrf.mxu0
      %v3042 = vadd.f32 0.0, %v3041
      %v3043 = vpop.f32.mrf.mxu0
      %3044 = vmatprep.mubr.bf16.mxu0 0
      %3045 = vmatmul.mubr.bf16.gmra.mxu0 %v2868
      %v3046 = vpop.f32.mrf.mxu0
      %v3047 = vadd.f32 0.0, %v3046
      %v3048 = vpop.f32.mrf.mxu0
      %v3049 = vpop.f32.mrf.mxu0
      %v3050 = vadd.f32 0.0, %v3049
      %v3051 = vpop.f32.mrf.mxu0
      %3052 = vmatprep.mubr.bf16.mxu0 0
      %3053 = vmatmul.mubr.bf16.gmra.mxu0 %v2869
      %v3054 = vpop.f32.mrf.mxu0
      %v3055 = vadd.f32 0.0, %v3054
      %v3056 = vpop.f32.mrf.mxu0
      %v3057 = vpop.f32.mrf.mxu0
      %v3058 = vadd.f32 0.0, %v3057
      %v3059 = vpop.f32.mrf.mxu0
      %3060 = vmatprep.mubr.bf16.mxu0 0
      %3061 = vmatmul.mubr.bf16.gmra.mxu0 %v2870
      %v3062 = vpop.f32.mrf.mxu0
      %v3063 = vadd.f32 0.0, %v3062
      %v3064 = vpop.f32.mrf.mxu0
      %v3065 = vpop.f32.mrf.mxu0
      %v3066 = vadd.f32 0.0, %v3065
      %v3067 = vpop.f32.mrf.mxu0
      %3068 = vmatprep.mubr.bf16.mxu0 0
      %3069 = vmatmul.mubr.bf16.gmra.mxu0 %v2871
      %v3070 = vpop.f32.mrf.mxu0
      %v3071 = vadd.f32 0.0, %v3070
      %v3072 = vpop.f32.mrf.mxu0
      %v3073 = vpop.f32.mrf.mxu0
      %v3074 = vadd.f32 0.0, %v3073
      %v3075 = vpop.f32.mrf.mxu0
      %3076 = vmatprep.mubr.bf16.mxu0 0
      %3077 = vmatmul.mubr.bf16.gmra.mxu0 %v2872
      %v3078 = vpop.f32.mrf.mxu0
      %v3079 = vadd.f32 0.0, %v3078
      %v3080 = vpop.f32.mrf.mxu0
      %v3081 = vpop.f32.mrf.mxu0
      %v3082 = vadd.f32 0.0, %v3081
      %v3083 = vpop.f32.mrf.mxu0
      %3084 = vmatprep.mubr.bf16.mxu0 0
      %3085 = vmatmul.mubr.bf16.gmra.mxu0 %v2873
      %v3086 = vpop.f32.mrf.mxu0
      %v3087 = vadd.f32 0.0, %v3086
      %v3088 = vpop.f32.mrf.mxu0
      %v3089 = vpop.f32.mrf.mxu0
      %v3090 = vadd.f32 0.0, %v3089
      %v3091 = vpop.f32.mrf.mxu0
      %3092 = vmatprep.mubr.bf16.mxu0 0
      %3093 = vmatmul.mubr.bf16.gmra.mxu0 %v2874
      %v3094 = vpop.f32.mrf.mxu0
      %v3095 = vadd.f32 0.0, %v3094
      %v3096 = vpop.f32.mrf.mxu0
      %v3097 = vpop.f32.mrf.mxu0
      %v3098 = vadd.f32 0.0, %v3097
      %v3099 = vpop.f32.mrf.mxu0
      %3100 = vdwg.mxu0
      %v3101 = vld [vmem:[#allocation3] sm:$0xff]
      %v3102 = vld [vmem:[#allocation3 + $0x8] sm:$0xff]
      %v3103 = vld [vmem:[#allocation3 + $0x10] sm:$0xff]
      %v3104 = vld [vmem:[#allocation3 + $0x18] sm:$0xff]
      %v3105 = vld [vmem:[#allocation3 + $0x20] sm:$0xff]
      %v3106 = vld [vmem:[#allocation3 + $0x28] sm:$0xff]
      %v3107 = vld [vmem:[#allocation3 + $0x30] sm:$0xff]
      %v3108 = vld [vmem:[#allocation3 + $0x38] sm:$0xff]
      %v3109 = vld [vmem:[#allocation3 + $0x40] sm:$0xff]
      %v3110 = vld [vmem:[#allocation3 + $0x48] sm:$0xff]
      %v3111 = vld [vmem:[#allocation3 + $0x50] sm:$0xff]
      %v3112 = vld [vmem:[#allocation3 + $0x58] sm:$0xff]
      %v3113 = vld [vmem:[#allocation3 + $0x60] sm:$0xff]
      %v3114 = vld [vmem:[#allocation3 + $0x68] sm:$0xff]
      %v3115 = vld [vmem:[#allocation3 + $0x70] sm:$0xff]
      %v3116 = vld [vmem:[#allocation3 + $0x78] sm:$0xff]
      %v3117 = vld [vmem:[#allocation3 + $0x80] sm:$0xff]
      %v3118 = vld [vmem:[#allocation3 + $0x88] sm:$0xff]
      %v3119 = vld [vmem:[#allocation3 + $0x90] sm:$0xff]
      %v3120 = vld [vmem:[#allocation3 + $0x98] sm:$0xff]
      %v3121 = vld [vmem:[#allocation3 + $0xa0] sm:$0xff]
      %v3122 = vld [vmem:[#allocation3 + $0xa8] sm:$0xff]
      %v3123 = vld [vmem:[#allocation3 + $0xb0] sm:$0xff]
      %v3124 = vld [vmem:[#allocation3 + $0xb8] sm:$0xff]
      %v3125 = vld [vmem:[#allocation3 + $0xc0] sm:$0xff]
      %v3126 = vld [vmem:[#allocation3 + $0xc8] sm:$0xff]
      %v3127 = vld [vmem:[#allocation3 + $0xd0] sm:$0xff]
      %v3128 = vld [vmem:[#allocation3 + $0xd8] sm:$0xff]
      %v3129 = vld [vmem:[#allocation3 + $0xe0] sm:$0xff]
      %v3130 = vld [vmem:[#allocation3 + $0xe8] sm:$0xff]
      %v3131 = vld [vmem:[#allocation3 + $0xf0] sm:$0xff]
      %v3132 = vld [vmem:[#allocation3 + $0xf8] sm:$0xff]
      %v3133 = vadd.f32 %v3101, %v2975
      %v3134 = vadd.f32 %v3102, %v2978
      %v3135 = vadd.f32 %v3103, %v2983
      %v3136 = vadd.f32 %v3104, %v2986
      %v3137 = vadd.f32 %v3105, %v2991
      %v3138 = vadd.f32 %v3106, %v2994
      %v3139 = vadd.f32 %v3107, %v2999
      %v3140 = vadd.f32 %v3108, %v3002
      %v3141 = vadd.f32 %v3109, %v3007
      %v3142 = vadd.f32 %v3110, %v3010
      %v3143 = vadd.f32 %v3111, %v3015
      %v3144 = vadd.f32 %v3112, %v3018
      %v3145 = vadd.f32 %v3113, %v3023
      %v3146 = vadd.f32 %v3114, %v3026
      %v3147 = vadd.f32 %v3115, %v3031
      %v3148 = vadd.f32 %v3116, %v3034
      %v3149 = vadd.f32 %v3117, %v3039
      %v3150 = vadd.f32 %v3118, %v3042
      %v3151 = vadd.f32 %v3119, %v3047
      %v3152 = vadd.f32 %v3120, %v3050
      %v3153 = vadd.f32 %v3121, %v3055
      %v3154 = vadd.f32 %v3122, %v3058
      %v3155 = vadd.f32 %v3123, %v3063
      %v3156 = vadd.f32 %v3124, %v3066
      %v3157 = vadd.f32 %v3125, %v3071
      %v3158 = vadd.f32 %v3126, %v3074
      %v3159 = vadd.f32 %v3127, %v3079
      %v3160 = vadd.f32 %v3128, %v3082
      %v3161 = vadd.f32 %v3129, %v3087
      %v3162 = vadd.f32 %v3130, %v3090
      %v3163 = vadd.f32 %v3131, %v3095
      %v3164 = vadd.f32 %v3132, %v3098
      %3165 = vst [vmem:[#allocation3] sm:$0xff] %v3133
      %3166 = vst [vmem:[#allocation3 + $0x8] sm:$0xff] %v3134
      %3167 = vst [vmem:[#allocation3 + $0x10] sm:$0xff] %v3135
      %3168 = vst [vmem:[#allocation3 + $0x18] sm:$0xff] %v3136
      %3169 = vst [vmem:[#allocation3 + $0x20] sm:$0xff] %v3137
      %3170 = vst [vmem:[#allocation3 + $0x28] sm:$0xff] %v3138
      %3171 = vst [vmem:[#allocation3 + $0x30] sm:$0xff] %v3139
      %3172 = vst [vmem:[#allocation3 + $0x38] sm:$0xff] %v3140
      %3173 = vst [vmem:[#allocation3 + $0x40] sm:$0xff] %v3141
      %3174 = vst [vmem:[#allocation3 + $0x48] sm:$0xff] %v3142
      %3175 = vst [vmem:[#allocation3 + $0x50] sm:$0xff] %v3143
      %3176 = vst [vmem:[#allocation3 + $0x58] sm:$0xff] %v3144
      %3177 = vst [vmem:[#allocation3 + $0x60] sm:$0xff] %v3145
      %3178 = vst [vmem:[#allocation3 + $0x68] sm:$0xff] %v3146
      %3179 = vst [vmem:[#allocation3 + $0x70] sm:$0xff] %v3147
      %3180 = vst [vmem:[#allocation3 + $0x78] sm:$0xff] %v3148
      %3181 = vst [vmem:[#allocation3 + $0x80] sm:$0xff] %v3149
      %3182 = vst [vmem:[#allocation3 + $0x88] sm:$0xff] %v3150
      %3183 = vst [vmem:[#allocation3 + $0x90] sm:$0xff] %v3151
      %3184 = vst [vmem:[#allocation3 + $0x98] sm:$0xff] %v3152
      %3185 = vst [vmem:[#allocation3 + $0xa0] sm:$0xff] %v3153
      %3186 = vst [vmem:[#allocation3 + $0xa8] sm:$0xff] %v3154
      %3187 = vst [vmem:[#allocation3 + $0xb0] sm:$0xff] %v3155
      %3188 = vst [vmem:[#allocation3 + $0xb8] sm:$0xff] %v3156
      %3189 = vst [vmem:[#allocation3 + $0xc0] sm:$0xff] %v3157
      %3190 = vst [vmem:[#allocation3 + $0xc8] sm:$0xff] %v3158
      %3191 = vst [vmem:[#allocation3 + $0xd0] sm:$0xff] %v3159
      %3192 = vst [vmem:[#allocation3 + $0xd8] sm:$0xff] %v3160
      %3193 = vst [vmem:[#allocation3 + $0xe0] sm:$0xff] %v3161
      %3194 = vst [vmem:[#allocation3 + $0xe8] sm:$0xff] %v3162
      %3195 = vst [vmem:[#allocation3 + $0xf0] sm:$0xff] %v3163
      %3196 = vst [vmem:[#allocation3 + $0xf8] sm:$0xff] %v3164
      %v3197 = vld [vmem:[%s2826 + $0x1] sm:$0xff]
      %v3198 = vld [vmem:[%s2826 + $0x9] sm:$0xff]
      %v3199 = vld [vmem:[%s2826 + $0x19] sm:$0xff]
      %v3200 = vld [vmem:[%s2826 + $0x21] sm:$0xff]
      %v3201 = vld [vmem:[%s2826 + $0x31] sm:$0xff]
      %v3202 = vld [vmem:[%s2826 + $0x39] sm:$0xff]
      %v3203 = vld [vmem:[%s2826 + $0x49] sm:$0xff]
      %v3204 = vld [vmem:[%s2826 + $0x51] sm:$0xff]
      %v3205 = vld [vmem:[%s2826 + $0x61] sm:$0xff]
      %v3206 = vld [vmem:[%s2826 + $0x69] sm:$0xff]
      %v3207 = vld [vmem:[%s2826 + $0x79] sm:$0xff]
      %v3208 = vld [vmem:[%s2826 + $0x81] sm:$0xff]
      %v3209 = vld [vmem:[%s2826 + $0x91] sm:$0xff]
      %v3210 = vld [vmem:[%s2826 + $0x99] sm:$0xff]
      %v3211 = vld [vmem:[%s2826 + $0xa9] sm:$0xff]
      %v3212 = vld [vmem:[%s2826 + $0xb1] sm:$0xff]
      %v3213 = vld [vmem:[%s2826 + $0xc1] sm:$0xff]
      %v3214 = vld [vmem:[%s2826 + $0xc9] sm:$0xff]
      %v3215 = vld [vmem:[%s2826 + $0xd9] sm:$0xff]
      %v3216 = vld [vmem:[%s2826 + $0xe1] sm:$0xff]
      %v3217 = vld [vmem:[%s2826 + $0xf1] sm:$0xff]
      %v3218 = vld [vmem:[%s2826 + $0xf9] sm:$0xff]
      %v3219 = vld [vmem:[%s2826 + $0x109] sm:$0xff]
      %v3220 = vld [vmem:[%s2826 + $0x111] sm:$0xff]
      %v3221 = vld [vmem:[%s2826 + $0x121] sm:$0xff]
      %v3222 = vld [vmem:[%s2826 + $0x129] sm:$0xff]
      %v3223 = vld [vmem:[%s2826 + $0x139] sm:$0xff]
      %v3224 = vld [vmem:[%s2826 + $0x141] sm:$0xff]
      %v3225 = vld [vmem:[%s2826 + $0x151] sm:$0xff]
      %v3226 = vld [vmem:[%s2826 + $0x159] sm:$0xff]
      %v3227 = vld [vmem:[%s2826 + $0x169] sm:$0xff]
      %v3228 = vld [vmem:[%s2826 + $0x171] sm:$0xff]
      %v3229 = vpack.c.bf16 %v3198, %v3197
      %v3230 = vpack.c.bf16 %v3200, %v3199
      %v3231 = vpack.c.bf16 %v3202, %v3201
      %v3232 = vpack.c.bf16 %v3204, %v3203
      %v3233 = vpack.c.bf16 %v3206, %v3205
      %v3234 = vpack.c.bf16 %v3208, %v3207
      %v3235 = vpack.c.bf16 %v3210, %v3209
      %v3236 = vpack.c.bf16 %v3212, %v3211
      %v3237 = vpack.c.bf16 %v3214, %v3213
      %v3238 = vpack.c.bf16 %v3216, %v3215
      %v3239 = vpack.c.bf16 %v3218, %v3217
      %v3240 = vpack.c.bf16 %v3220, %v3219
      %v3241 = vpack.c.bf16 %v3222, %v3221
      %v3242 = vpack.c.bf16 %v3224, %v3223
      %v3243 = vpack.c.bf16 %v3226, %v3225
      %v3244 = vpack.c.bf16 %v3228, %v3227
      %s3245 = scalar_lea.vmem %s276, 448
      %v3246 = vld [vmem:[%s3245] sm:$0xf]
      %v3247 = vld [vmem:[%s3245 + $0x4] sm:$0xf]
      %v3248 = vld [vmem:[%s3245 + $0x8] sm:$0xf]
      %v3249 = vld [vmem:[%s3245 + $0xc] sm:$0xf]
      %v3250 = vld [vmem:[%s3245 + $0x10] sm:$0xf]
      %v3251 = vld [vmem:[%s3245 + $0x14] sm:$0xf]
      %v3252 = vld [vmem:[%s3245 + $0x18] sm:$0xf]
      %v3253 = vld [vmem:[%s3245 + $0x1c] sm:$0xf]
      %v3254 = vld [vmem:[%s3245 + $0x20] sm:$0xf]
      %v3255 = vld [vmem:[%s3245 + $0x24] sm:$0xf]
      %v3256 = vld [vmem:[%s3245 + $0x28] sm:$0xf]
      %v3257 = vld [vmem:[%s3245 + $0x2c] sm:$0xf]
      %v3258 = vld [vmem:[%s3245 + $0x30] sm:$0xf]
      %v3259 = vld [vmem:[%s3245 + $0x34] sm:$0xf]
      %v3260 = vld [vmem:[%s3245 + $0x38] sm:$0xf]
      %v3261 = vld [vmem:[%s3245 + $0x3c] sm:$0xf]
      %v3278 = vunpack.c.l.b16 %v3246
      %v3279 = vunpack.c.l.b16 %v3247
      %v3280 = vunpack.c.l.b16 %v3248
      %v3281 = vunpack.c.l.b16 %v3249
      %v3282 = vunpack.c.l.b16 %v3250
      %v3283 = vunpack.c.l.b16 %v3251
      %v3284 = vunpack.c.l.b16 %v3252
      %v3285 = vunpack.c.l.b16 %v3253
      %v3286 = vunpack.c.l.b16 %v3254
      %v3287 = vunpack.c.l.b16 %v3255
      %v3288 = vunpack.c.l.b16 %v3256
      %v3289 = vunpack.c.l.b16 %v3257
      %v3290 = vunpack.c.l.b16 %v3258
      %v3291 = vunpack.c.l.b16 %v3259
      %v3292 = vunpack.c.l.b16 %v3260
      %v3293 = vunpack.c.l.b16 %v3261
      %v3294 = vpack.c.b16 %v3279, %v3278
      %v3295 = vpack.c.b16 %v3281, %v3280
      %v3296 = vpack.c.b16 %v3283, %v3282
      %v3297 = vpack.c.b16 %v3285, %v3284
      %v3298 = vpack.c.b16 %v3287, %v3286
      %v3299 = vpack.c.b16 %v3289, %v3288
      %v3300 = vpack.c.b16 %v3291, %v3290
      %v3301 = vpack.c.b16 %v3293, %v3292
      %3310 = vmatprep.subr.bf16.mxu0 0
      %3311 = vmatpush1.bf16.msra.mxu0 %v3301
      %3312 = vmatprep.subr.bf16.mxu0 0
      %3313 = vmatpush1.bf16.msra.mxu0 %v3300
      %3314 = vmatprep.subr.bf16.mxu0 0
      %3315 = vmatpush1.bf16.msra.mxu0 %v3299
      %3316 = vmatprep.subr.bf16.mxu0 0
      %3317 = vmatpush1.bf16.msra.mxu0 %v3298
      %3318 = vmatprep.subr.bf16.mxu0 0
      %3319 = vmatpush1.bf16.msra.mxu0 %v3297
      %3320 = vmatprep.subr.bf16.mxu0 0
      %3321 = vmatpush1.bf16.msra.mxu0 %v3296
      %3322 = vmatprep.subr.bf16.mxu0 0
      %3323 = vmatpush1.bf16.msra.mxu0 %v3295
      %3324 = vmatprep.subr.bf16.mxu0 0
      %3325 = vmatpush1.bf16.msra.mxu0 %v3294
      %3326 = vmatprep.subr.bf16.mxu0 0
      %3327 = vmatpush2.bf16.msra.mxu0 0
      %3328 = vmatprep.subr.bf16.mxu0 0
      %3329 = vmatpush2.bf16.msra.mxu0 0
      %3330 = vmatprep.subr.bf16.mxu0 0
      %3331 = vmatpush2.bf16.msra.mxu0 0
      %3332 = vmatprep.subr.bf16.mxu0 0
      %3333 = vmatpush2.bf16.msra.mxu0 0
      %3334 = vmatprep.subr.bf16.mxu0 0
      %3335 = vmatpush2.bf16.msra.mxu0 0
      %3336 = vmatprep.subr.bf16.mxu0 0
      %3337 = vmatpush2.bf16.msra.mxu0 0
      %3338 = vmatprep.subr.bf16.mxu0 0
      %3339 = vmatpush2.bf16.msra.mxu0 0
      %3340 = vmatprep.subr.bf16.mxu0 0
      %3341 = vmatpush2.bf16.msra.mxu0 0
      %3342 = vmatprep.mubr.bf16.mxu0 0
      %3343 = vmatmul.mubr.bf16.gmra.mxu0 %v3229
      %v3344 = vpop.f32.mrf.mxu0
      %v3345 = vadd.f32 0.0, %v3344
      %v3346 = vpop.f32.mrf.mxu0
      %v3347 = vpop.f32.mrf.mxu0
      %v3348 = vadd.f32 0.0, %v3347
      %v3349 = vpop.f32.mrf.mxu0
      %3350 = vmatprep.mubr.bf16.mxu0 0
      %3351 = vmatmul.mubr.bf16.gmra.mxu0 %v3230
      %v3352 = vpop.f32.mrf.mxu0
      %v3353 = vadd.f32 0.0, %v3352
      %v3354 = vpop.f32.mrf.mxu0
      %v3355 = vpop.f32.mrf.mxu0
      %v3356 = vadd.f32 0.0, %v3355
      %v3357 = vpop.f32.mrf.mxu0
      %3358 = vmatprep.mubr.bf16.mxu0 0
      %3359 = vmatmul.mubr.bf16.gmra.mxu0 %v3231
      %v3360 = vpop.f32.mrf.mxu0
      %v3361 = vadd.f32 0.0, %v3360
      %v3362 = vpop.f32.mrf.mxu0
      %v3363 = vpop.f32.mrf.mxu0
      %v3364 = vadd.f32 0.0, %v3363
      %v3365 = vpop.f32.mrf.mxu0
      %3366 = vmatprep.mubr.bf16.mxu0 0
      %3367 = vmatmul.mubr.bf16.gmra.mxu0 %v3232
      %v3368 = vpop.f32.mrf.mxu0
      %v3369 = vadd.f32 0.0, %v3368
      %v3370 = vpop.f32.mrf.mxu0
      %v3371 = vpop.f32.mrf.mxu0
      %v3372 = vadd.f32 0.0, %v3371
      %v3373 = vpop.f32.mrf.mxu0
      %3374 = vmatprep.mubr.bf16.mxu0 0
      %3375 = vmatmul.mubr.bf16.gmra.mxu0 %v3233
      %v3376 = vpop.f32.mrf.mxu0
      %v3377 = vadd.f32 0.0, %v3376
      %v3378 = vpop.f32.mrf.mxu0
      %v3379 = vpop.f32.mrf.mxu0
      %v3380 = vadd.f32 0.0, %v3379
      %v3381 = vpop.f32.mrf.mxu0
      %3382 = vmatprep.mubr.bf16.mxu0 0
      %3383 = vmatmul.mubr.bf16.gmra.mxu0 %v3234
      %v3384 = vpop.f32.mrf.mxu0
      %v3385 = vadd.f32 0.0, %v3384
      %v3386 = vpop.f32.mrf.mxu0
      %v3387 = vpop.f32.mrf.mxu0
      %v3388 = vadd.f32 0.0, %v3387
      %v3389 = vpop.f32.mrf.mxu0
      %3390 = vmatprep.mubr.bf16.mxu0 0
      %3391 = vmatmul.mubr.bf16.gmra.mxu0 %v3235
      %v3392 = vpop.f32.mrf.mxu0
      %v3393 = vadd.f32 0.0, %v3392
      %v3394 = vpop.f32.mrf.mxu0
      %v3395 = vpop.f32.mrf.mxu0
      %v3396 = vadd.f32 0.0, %v3395
      %v3397 = vpop.f32.mrf.mxu0
      %3398 = vmatprep.mubr.bf16.mxu0 0
      %3399 = vmatmul.mubr.bf16.gmra.mxu0 %v3236
      %v3400 = vpop.f32.mrf.mxu0
      %v3401 = vadd.f32 0.0, %v3400
      %v3402 = vpop.f32.mrf.mxu0
      %v3403 = vpop.f32.mrf.mxu0
      %v3404 = vadd.f32 0.0, %v3403
      %v3405 = vpop.f32.mrf.mxu0
      %3406 = vmatprep.mubr.bf16.mxu0 0
      %3407 = vmatmul.mubr.bf16.gmra.mxu0 %v3237
      %v3408 = vpop.f32.mrf.mxu0
      %v3409 = vadd.f32 0.0, %v3408
      %v3410 = vpop.f32.mrf.mxu0
      %v3411 = vpop.f32.mrf.mxu0
      %v3412 = vadd.f32 0.0, %v3411
      %v3413 = vpop.f32.mrf.mxu0
      %3414 = vmatprep.mubr.bf16.mxu0 0
      %3415 = vmatmul.mubr.bf16.gmra.mxu0 %v3238
      %v3416 = vpop.f32.mrf.mxu0
      %v3417 = vadd.f32 0.0, %v3416
      %v3418 = vpop.f32.mrf.mxu0
      %v3419 = vpop.f32.mrf.mxu0
      %v3420 = vadd.f32 0.0, %v3419
      %v3421 = vpop.f32.mrf.mxu0
      %3422 = vmatprep.mubr.bf16.mxu0 0
      %3423 = vmatmul.mubr.bf16.gmra.mxu0 %v3239
      %v3424 = vpop.f32.mrf.mxu0
      %v3425 = vadd.f32 0.0, %v3424
      %v3426 = vpop.f32.mrf.mxu0
      %v3427 = vpop.f32.mrf.mxu0
      %v3428 = vadd.f32 0.0, %v3427
      %v3429 = vpop.f32.mrf.mxu0
      %3430 = vmatprep.mubr.bf16.mxu0 0
      %3431 = vmatmul.mubr.bf16.gmra.mxu0 %v3240
      %v3432 = vpop.f32.mrf.mxu0
      %v3433 = vadd.f32 0.0, %v3432
      %v3434 = vpop.f32.mrf.mxu0
      %v3435 = vpop.f32.mrf.mxu0
      %v3436 = vadd.f32 0.0, %v3435
      %v3437 = vpop.f32.mrf.mxu0
      %3438 = vmatprep.mubr.bf16.mxu0 0
      %3439 = vmatmul.mubr.bf16.gmra.mxu0 %v3241
      %v3440 = vpop.f32.mrf.mxu0
      %v3441 = vadd.f32 0.0, %v3440
      %v3442 = vpop.f32.mrf.mxu0
      %v3443 = vpop.f32.mrf.mxu0
      %v3444 = vadd.f32 0.0, %v3443
      %v3445 = vpop.f32.mrf.mxu0
      %3446 = vmatprep.mubr.bf16.mxu0 0
      %3447 = vmatmul.mubr.bf16.gmra.mxu0 %v3242
      %v3448 = vpop.f32.mrf.mxu0
      %v3449 = vadd.f32 0.0, %v3448
      %v3450 = vpop.f32.mrf.mxu0
      %v3451 = vpop.f32.mrf.mxu0
      %v3452 = vadd.f32 0.0, %v3451
      %v3453 = vpop.f32.mrf.mxu0
      %3454 = vmatprep.mubr.bf16.mxu0 0
      %3455 = vmatmul.mubr.bf16.gmra.mxu0 %v3243
      %v3456 = vpop.f32.mrf.mxu0
      %v3457 = vadd.f32 0.0, %v3456
      %v3458 = vpop.f32.mrf.mxu0
      %v3459 = vpop.f32.mrf.mxu0
      %v3460 = vadd.f32 0.0, %v3459
      %v3461 = vpop.f32.mrf.mxu0
      %3462 = vmatprep.mubr.bf16.mxu0 0
      %3463 = vmatmul.mubr.bf16.gmra.mxu0 %v3244
      %v3464 = vpop.f32.mrf.mxu0
      %v3465 = vadd.f32 0.0, %v3464
      %v3466 = vpop.f32.mrf.mxu0
      %v3467 = vpop.f32.mrf.mxu0
      %v3468 = vadd.f32 0.0, %v3467
      %v3469 = vpop.f32.mrf.mxu0
      %3470 = vdwg.mxu0
      %v3471 = vld [vmem:[#allocation3] sm:$0xff]
      %v3472 = vld [vmem:[#allocation3 + $0x8] sm:$0xff]
      %v3473 = vld [vmem:[#allocation3 + $0x10] sm:$0xff]
      %v3474 = vld [vmem:[#allocation3 + $0x18] sm:$0xff]
      %v3475 = vld [vmem:[#allocation3 + $0x20] sm:$0xff]
      %v3476 = vld [vmem:[#allocation3 + $0x28] sm:$0xff]
      %v3477 = vld [vmem:[#allocation3 + $0x30] sm:$0xff]
      %v3478 = vld [vmem:[#allocation3 + $0x38] sm:$0xff]
      %v3479 = vld [vmem:[#allocation3 + $0x40] sm:$0xff]
      %v3480 = vld [vmem:[#allocation3 + $0x48] sm:$0xff]
      %v3481 = vld [vmem:[#allocation3 + $0x50] sm:$0xff]
      %v3482 = vld [vmem:[#allocation3 + $0x58] sm:$0xff]
      %v3483 = vld [vmem:[#allocation3 + $0x60] sm:$0xff]
      %v3484 = vld [vmem:[#allocation3 + $0x68] sm:$0xff]
      %v3485 = vld [vmem:[#allocation3 + $0x70] sm:$0xff]
      %v3486 = vld [vmem:[#allocation3 + $0x78] sm:$0xff]
      %v3487 = vld [vmem:[#allocation3 + $0x80] sm:$0xff]
      %v3488 = vld [vmem:[#allocation3 + $0x88] sm:$0xff]
      %v3489 = vld [vmem:[#allocation3 + $0x90] sm:$0xff]
      %v3490 = vld [vmem:[#allocation3 + $0x98] sm:$0xff]
      %v3491 = vld [vmem:[#allocation3 + $0xa0] sm:$0xff]
      %v3492 = vld [vmem:[#allocation3 + $0xa8] sm:$0xff]
      %v3493 = vld [vmem:[#allocation3 + $0xb0] sm:$0xff]
      %v3494 = vld [vmem:[#allocation3 + $0xb8] sm:$0xff]
      %v3495 = vld [vmem:[#allocation3 + $0xc0] sm:$0xff]
      %v3496 = vld [vmem:[#allocation3 + $0xc8] sm:$0xff]
      %v3497 = vld [vmem:[#allocation3 + $0xd0] sm:$0xff]
      %v3498 = vld [vmem:[#allocation3 + $0xd8] sm:$0xff]
      %v3499 = vld [vmem:[#allocation3 + $0xe0] sm:$0xff]
      %v3500 = vld [vmem:[#allocation3 + $0xe8] sm:$0xff]
      %v3501 = vld [vmem:[#allocation3 + $0xf0] sm:$0xff]
      %v3502 = vld [vmem:[#allocation3 + $0xf8] sm:$0xff]
      %v3503 = vadd.f32 %v3471, %v3345
      %v3504 = vadd.f32 %v3472, %v3348
      %v3505 = vadd.f32 %v3473, %v3353
      %v3506 = vadd.f32 %v3474, %v3356
      %v3507 = vadd.f32 %v3475, %v3361
      %v3508 = vadd.f32 %v3476, %v3364
      %v3509 = vadd.f32 %v3477, %v3369
      %v3510 = vadd.f32 %v3478, %v3372
      %v3511 = vadd.f32 %v3479, %v3377
      %v3512 = vadd.f32 %v3480, %v3380
      %v3513 = vadd.f32 %v3481, %v3385
      %v3514 = vadd.f32 %v3482, %v3388
      %v3515 = vadd.f32 %v3483, %v3393
      %v3516 = vadd.f32 %v3484, %v3396
      %v3517 = vadd.f32 %v3485, %v3401
      %v3518 = vadd.f32 %v3486, %v3404
      %v3519 = vadd.f32 %v3487, %v3409
      %v3520 = vadd.f32 %v3488, %v3412
      %v3521 = vadd.f32 %v3489, %v3417
      %v3522 = vadd.f32 %v3490, %v3420
      %v3523 = vadd.f32 %v3491, %v3425
      %v3524 = vadd.f32 %v3492, %v3428
      %v3525 = vadd.f32 %v3493, %v3433
      %v3526 = vadd.f32 %v3494, %v3436
      %v3527 = vadd.f32 %v3495, %v3441
      %v3528 = vadd.f32 %v3496, %v3444
      %v3529 = vadd.f32 %v3497, %v3449
      %v3530 = vadd.f32 %v3498, %v3452
      %v3531 = vadd.f32 %v3499, %v3457
      %v3532 = vadd.f32 %v3500, %v3460
      %v3533 = vadd.f32 %v3501, %v3465
      %v3534 = vadd.f32 %v3502, %v3468
      %3535 = vst [vmem:[#allocation3] sm:$0xff] %v3503
      %3536 = vst [vmem:[#allocation3 + $0x8] sm:$0xff] %v3504
      %3537 = vst [vmem:[#allocation3 + $0x10] sm:$0xff] %v3505
      %3538 = vst [vmem:[#allocation3 + $0x18] sm:$0xff] %v3506
      %3539 = vst [vmem:[#allocation3 + $0x20] sm:$0xff] %v3507
      %3540 = vst [vmem:[#allocation3 + $0x28] sm:$0xff] %v3508
      %3541 = vst [vmem:[#allocation3 + $0x30] sm:$0xff] %v3509
      %3542 = vst [vmem:[#allocation3 + $0x38] sm:$0xff] %v3510
      %3543 = vst [vmem:[#allocation3 + $0x40] sm:$0xff] %v3511
      %3544 = vst [vmem:[#allocation3 + $0x48] sm:$0xff] %v3512
      %3545 = vst [vmem:[#allocation3 + $0x50] sm:$0xff] %v3513
      %3546 = vst [vmem:[#allocation3 + $0x58] sm:$0xff] %v3514
      %3547 = vst [vmem:[#allocation3 + $0x60] sm:$0xff] %v3515
      %3548 = vst [vmem:[#allocation3 + $0x68] sm:$0xff] %v3516
      %3549 = vst [vmem:[#allocation3 + $0x70] sm:$0xff] %v3517
      %3550 = vst [vmem:[#allocation3 + $0x78] sm:$0xff] %v3518
      %3551 = vst [vmem:[#allocation3 + $0x80] sm:$0xff] %v3519
      %3552 = vst [vmem:[#allocation3 + $0x88] sm:$0xff] %v3520
      %3553 = vst [vmem:[#allocation3 + $0x90] sm:$0xff] %v3521
      %3554 = vst [vmem:[#allocation3 + $0x98] sm:$0xff] %v3522
      %3555 = vst [vmem:[#allocation3 + $0xa0] sm:$0xff] %v3523
      %3556 = vst [vmem:[#allocation3 + $0xa8] sm:$0xff] %v3524
      %3557 = vst [vmem:[#allocation3 + $0xb0] sm:$0xff] %v3525
      %3558 = vst [vmem:[#allocation3 + $0xb8] sm:$0xff] %v3526
      %3559 = vst [vmem:[#allocation3 + $0xc0] sm:$0xff] %v3527
      %3560 = vst [vmem:[#allocation3 + $0xc8] sm:$0xff] %v3528
      %3561 = vst [vmem:[#allocation3 + $0xd0] sm:$0xff] %v3529
      %3562 = vst [vmem:[#allocation3 + $0xd8] sm:$0xff] %v3530
      %3563 = vst [vmem:[#allocation3 + $0xe0] sm:$0xff] %v3531
      %3564 = vst [vmem:[#allocation3 + $0xe8] sm:$0xff] %v3532
      %3565 = vst [vmem:[#allocation3 + $0xf0] sm:$0xff] %v3533
      %3566 = vst [vmem:[#allocation3 + $0xf8] sm:$0xff] %v3534
      %v3567 = vld [vmem:[%s2826 + $0x2] sm:$0xff]
      %v3568 = vld [vmem:[%s2826 + $0xa] sm:$0xff]
      %v3569 = vld [vmem:[%s2826 + $0x1a] sm:$0xff]
      %v3570 = vld [vmem:[%s2826 + $0x22] sm:$0xff]
      %v3571 = vld [vmem:[%s2826 + $0x32] sm:$0xff]
      %v3572 = vld [vmem:[%s2826 + $0x3a] sm:$0xff]
      %v3573 = vld [vmem:[%s2826 + $0x4a] sm:$0xff]
      %v3574 = vld [vmem:[%s2826 + $0x52] sm:$0xff]
      %v3575 = vld [vmem:[%s2826 + $0x62] sm:$0xff]
      %v3576 = vld [vmem:[%s2826 + $0x6a] sm:$0xff]
      %v3577 = vld [vmem:[%s2826 + $0x7a] sm:$0xff]
      %v3578 = vld [vmem:[%s2826 + $0x82] sm:$0xff]
      %v3579 = vld [vmem:[%s2826 + $0x92] sm:$0xff]
      %v3580 = vld [vmem:[%s2826 + $0x9a] sm:$0xff]
      %v3581 = vld [vmem:[%s2826 + $0xaa] sm:$0xff]
      %v3582 = vld [vmem:[%s2826 + $0xb2] sm:$0xff]
      %v3583 = vld [vmem:[%s2826 + $0xc2] sm:$0xff]
      %v3584 = vld [vmem:[%s2826 + $0xca] sm:$0xff]
      %v3585 = vld [vmem:[%s2826 + $0xda] sm:$0xff]
      %v3586 = vld [vmem:[%s2826 + $0xe2] sm:$0xff]
      %v3587 = vld [vmem:[%s2826 + $0xf2] sm:$0xff]
      %v3588 = vld [vmem:[%s2826 + $0xfa] sm:$0xff]
      %v3589 = vld [vmem:[%s2826 + $0x10a] sm:$0xff]
      %v3590 = vld [vmem:[%s2826 + $0x112] sm:$0xff]
      %v3591 = vld [vmem:[%s2826 + $0x122] sm:$0xff]
      %v3592 = vld [vmem:[%s2826 + $0x12a] sm:$0xff]
      %v3593 = vld [vmem:[%s2826 + $0x13a] sm:$0xff]
      %v3594 = vld [vmem:[%s2826 + $0x142] sm:$0xff]
      %v3595 = vld [vmem:[%s2826 + $0x152] sm:$0xff]
      %v3596 = vld [vmem:[%s2826 + $0x15a] sm:$0xff]
      %v3597 = vld [vmem:[%s2826 + $0x16a] sm:$0xff]
      %v3598 = vld [vmem:[%s2826 + $0x172] sm:$0xff]
      %v3599 = vpack.c.bf16 %v3568, %v3567
      %v3600 = vpack.c.bf16 %v3570, %v3569
      %v3601 = vpack.c.bf16 %v3572, %v3571
      %v3602 = vpack.c.bf16 %v3574, %v3573
      %v3603 = vpack.c.bf16 %v3576, %v3575
      %v3604 = vpack.c.bf16 %v3578, %v3577
      %v3605 = vpack.c.bf16 %v3580, %v3579
      %v3606 = vpack.c.bf16 %v3582, %v3581
      %v3607 = vpack.c.bf16 %v3584, %v3583
      %v3608 = vpack.c.bf16 %v3586, %v3585
      %v3609 = vpack.c.bf16 %v3588, %v3587
      %v3610 = vpack.c.bf16 %v3590, %v3589
      %v3611 = vpack.c.bf16 %v3592, %v3591
      %v3612 = vpack.c.bf16 %v3594, %v3593
      %v3613 = vpack.c.bf16 %v3596, %v3595
      %v3614 = vpack.c.bf16 %v3598, %v3597
      %s3615 = scalar_lea.vmem %s276, 512
      %v3616 = vld [vmem:[%s3615] sm:$0xf]
      %v3617 = vld [vmem:[%s3615 + $0x4] sm:$0xf]
      %v3618 = vld [vmem:[%s3615 + $0x8] sm:$0xf]
      %v3619 = vld [vmem:[%s3615 + $0xc] sm:$0xf]
      %v3620 = vld [vmem:[%s3615 + $0x10] sm:$0xf]
      %v3621 = vld [vmem:[%s3615 + $0x14] sm:$0xf]
      %v3622 = vld [vmem:[%s3615 + $0x18] sm:$0xf]
      %v3623 = vld [vmem:[%s3615 + $0x1c] sm:$0xf]
      %v3624 = vld [vmem:[%s3615 + $0x20] sm:$0xf]
      %v3625 = vld [vmem:[%s3615 + $0x24] sm:$0xf]
      %v3626 = vld [vmem:[%s3615 + $0x28] sm:$0xf]
      %v3627 = vld [vmem:[%s3615 + $0x2c] sm:$0xf]
      %v3628 = vld [vmem:[%s3615 + $0x30] sm:$0xf]
      %v3629 = vld [vmem:[%s3615 + $0x34] sm:$0xf]
      %v3630 = vld [vmem:[%s3615 + $0x38] sm:$0xf]
      %v3631 = vld [vmem:[%s3615 + $0x3c] sm:$0xf]
      %v3648 = vunpack.c.l.b16 %v3616
      %v3649 = vunpack.c.l.b16 %v3617
      %v3650 = vunpack.c.l.b16 %v3618
      %v3651 = vunpack.c.l.b16 %v3619
      %v3652 = vunpack.c.l.b16 %v3620
      %v3653 = vunpack.c.l.b16 %v3621
      %v3654 = vunpack.c.l.b16 %v3622
      %v3655 = vunpack.c.l.b16 %v3623
      %v3656 = vunpack.c.l.b16 %v3624
      %v3657 = vunpack.c.l.b16 %v3625
      %v3658 = vunpack.c.l.b16 %v3626
      %v3659 = vunpack.c.l.b16 %v3627
      %v3660 = vunpack.c.l.b16 %v3628
      %v3661 = vunpack.c.l.b16 %v3629
      %v3662 = vunpack.c.l.b16 %v3630
      %v3663 = vunpack.c.l.b16 %v3631
      %v3664 = vpack.c.b16 %v3649, %v3648
      %v3665 = vpack.c.b16 %v3651, %v3650
      %v3666 = vpack.c.b16 %v3653, %v3652
      %v3667 = vpack.c.b16 %v3655, %v3654
      %v3668 = vpack.c.b16 %v3657, %v3656
      %v3669 = vpack.c.b16 %v3659, %v3658
      %v3670 = vpack.c.b16 %v3661, %v3660
      %v3671 = vpack.c.b16 %v3663, %v3662
      %3680 = vmatprep.subr.bf16.mxu0 0
      %3681 = vmatpush1.bf16.msra.mxu0 %v3671
      %3682 = vmatprep.subr.bf16.mxu0 0
      %3683 = vmatpush1.bf16.msra.mxu0 %v3670
      %3684 = vmatprep.subr.bf16.mxu0 0
      %3685 = vmatpush1.bf16.msra.mxu0 %v3669
      %3686 = vmatprep.subr.bf16.mxu0 0
      %3687 = vmatpush1.bf16.msra.mxu0 %v3668
      %3688 = vmatprep.subr.bf16.mxu0 0
      %3689 = vmatpush1.bf16.msra.mxu0 %v3667
      %3690 = vmatprep.subr.bf16.mxu0 0
      %3691 = vmatpush1.bf16.msra.mxu0 %v3666
      %3692 = vmatprep.subr.bf16.mxu0 0
      %3693 = vmatpush1.bf16.msra.mxu0 %v3665
      %3694 = vmatprep.subr.bf16.mxu0 0
      %3695 = vmatpush1.bf16.msra.mxu0 %v3664
      %3696 = vmatprep.subr.bf16.mxu0 0
      %3697 = vmatpush2.bf16.msra.mxu0 0
      %3698 = vmatprep.subr.bf16.mxu0 0
      %3699 = vmatpush2.bf16.msra.mxu0 0
      %3700 = vmatprep.subr.bf16.mxu0 0
      %3701 = vmatpush2.bf16.msra.mxu0 0
      %3702 = vmatprep.subr.bf16.mxu0 0
      %3703 = vmatpush2.bf16.msra.mxu0 0
      %3704 = vmatprep.subr.bf16.mxu0 0
      %3705 = vmatpush2.bf16.msra.mxu0 0
      %3706 = vmatprep.subr.bf16.mxu0 0
      %3707 = vmatpush2.bf16.msra.mxu0 0
      %3708 = vmatprep.subr.bf16.mxu0 0
      %3709 = vmatpush2.bf16.msra.mxu0 0
      %3710 = vmatprep.subr.bf16.mxu0 0
      %3711 = vmatpush2.bf16.msra.mxu0 0
      %3712 = vmatprep.mubr.bf16.mxu0 0
      %3713 = vmatmul.mubr.bf16.gmra.mxu0 %v3599
      %v3714 = vpop.f32.mrf.mxu0
      %v3715 = vadd.f32 0.0, %v3714
      %v3716 = vpop.f32.mrf.mxu0
      %v3717 = vpop.f32.mrf.mxu0
      %v3718 = vadd.f32 0.0, %v3717
      %v3719 = vpop.f32.mrf.mxu0
      %3720 = vmatprep.mubr.bf16.mxu0 0
      %3721 = vmatmul.mubr.bf16.gmra.mxu0 %v3600
      %v3722 = vpop.f32.mrf.mxu0
      %v3723 = vadd.f32 0.0, %v3722
      %v3724 = vpop.f32.mrf.mxu0
      %v3725 = vpop.f32.mrf.mxu0
      %v3726 = vadd.f32 0.0, %v3725
      %v3727 = vpop.f32.mrf.mxu0
      %3728 = vmatprep.mubr.bf16.mxu0 0
      %3729 = vmatmul.mubr.bf16.gmra.mxu0 %v3601
      %v3730 = vpop.f32.mrf.mxu0
      %v3731 = vadd.f32 0.0, %v3730
      %v3732 = vpop.f32.mrf.mxu0
      %v3733 = vpop.f32.mrf.mxu0
      %v3734 = vadd.f32 0.0, %v3733
      %v3735 = vpop.f32.mrf.mxu0
      %3736 = vmatprep.mubr.bf16.mxu0 0
      %3737 = vmatmul.mubr.bf16.gmra.mxu0 %v3602
      %v3738 = vpop.f32.mrf.mxu0
      %v3739 = vadd.f32 0.0, %v3738
      %v3740 = vpop.f32.mrf.mxu0
      %v3741 = vpop.f32.mrf.mxu0
      %v3742 = vadd.f32 0.0, %v3741
      %v3743 = vpop.f32.mrf.mxu0
      %3744 = vmatprep.mubr.bf16.mxu0 0
      %3745 = vmatmul.mubr.bf16.gmra.mxu0 %v3603
      %v3746 = vpop.f32.mrf.mxu0
      %v3747 = vadd.f32 0.0, %v3746
      %v3748 = vpop.f32.mrf.mxu0
      %v3749 = vpop.f32.mrf.mxu0
      %v3750 = vadd.f32 0.0, %v3749
      %v3751 = vpop.f32.mrf.mxu0
      %3752 = vmatprep.mubr.bf16.mxu0 0
      %3753 = vmatmul.mubr.bf16.gmra.mxu0 %v3604
      %v3754 = vpop.f32.mrf.mxu0
      %v3755 = vadd.f32 0.0, %v3754
      %v3756 = vpop.f32.mrf.mxu0
      %v3757 = vpop.f32.mrf.mxu0
      %v3758 = vadd.f32 0.0, %v3757
      %v3759 = vpop.f32.mrf.mxu0
      %3760 = vmatprep.mubr.bf16.mxu0 0
      %3761 = vmatmul.mubr.bf16.gmra.mxu0 %v3605
      %v3762 = vpop.f32.mrf.mxu0
      %v3763 = vadd.f32 0.0, %v3762
      %v3764 = vpop.f32.mrf.mxu0
      %v3765 = vpop.f32.mrf.mxu0
      %v3766 = vadd.f32 0.0, %v3765
      %v3767 = vpop.f32.mrf.mxu0
      %3768 = vmatprep.mubr.bf16.mxu0 0
      %3769 = vmatmul.mubr.bf16.gmra.mxu0 %v3606
      %v3770 = vpop.f32.mrf.mxu0
      %v3771 = vadd.f32 0.0, %v3770
      %v3772 = vpop.f32.mrf.mxu0
      %v3773 = vpop.f32.mrf.mxu0
      %v3774 = vadd.f32 0.0, %v3773
      %v3775 = vpop.f32.mrf.mxu0
      %3776 = vmatprep.mubr.bf16.mxu0 0
      %3777 = vmatmul.mubr.bf16.gmra.mxu0 %v3607
      %v3778 = vpop.f32.mrf.mxu0
      %v3779 = vadd.f32 0.0, %v3778
      %v3780 = vpop.f32.mrf.mxu0
      %v3781 = vpop.f32.mrf.mxu0
      %v3782 = vadd.f32 0.0, %v3781
      %v3783 = vpop.f32.mrf.mxu0
      %3784 = vmatprep.mubr.bf16.mxu0 0
      %3785 = vmatmul.mubr.bf16.gmra.mxu0 %v3608
      %v3786 = vpop.f32.mrf.mxu0
      %v3787 = vadd.f32 0.0, %v3786
      %v3788 = vpop.f32.mrf.mxu0
      %v3789 = vpop.f32.mrf.mxu0
      %v3790 = vadd.f32 0.0, %v3789
      %v3791 = vpop.f32.mrf.mxu0
      %3792 = vmatprep.mubr.bf16.mxu0 0
      %3793 = vmatmul.mubr.bf16.gmra.mxu0 %v3609
      %v3794 = vpop.f32.mrf.mxu0
      %v3795 = vadd.f32 0.0, %v3794
      %v3796 = vpop.f32.mrf.mxu0
      %v3797 = vpop.f32.mrf.mxu0
      %v3798 = vadd.f32 0.0, %v3797
      %v3799 = vpop.f32.mrf.mxu0
      %3800 = vmatprep.mubr.bf16.mxu0 0
      %3801 = vmatmul.mubr.bf16.gmra.mxu0 %v3610
      %v3802 = vpop.f32.mrf.mxu0
      %v3803 = vadd.f32 0.0, %v3802
      %v3804 = vpop.f32.mrf.mxu0
      %v3805 = vpop.f32.mrf.mxu0
      %v3806 = vadd.f32 0.0, %v3805
      %v3807 = vpop.f32.mrf.mxu0
      %3808 = vmatprep.mubr.bf16.mxu0 0
      %3809 = vmatmul.mubr.bf16.gmra.mxu0 %v3611
      %v3810 = vpop.f32.mrf.mxu0
      %v3811 = vadd.f32 0.0, %v3810
      %v3812 = vpop.f32.mrf.mxu0
      %v3813 = vpop.f32.mrf.mxu0
      %v3814 = vadd.f32 0.0, %v3813
      %v3815 = vpop.f32.mrf.mxu0
      %3816 = vmatprep.mubr.bf16.mxu0 0
      %3817 = vmatmul.mubr.bf16.gmra.mxu0 %v3612
      %v3818 = vpop.f32.mrf.mxu0
      %v3819 = vadd.f32 0.0, %v3818
      %v3820 = vpop.f32.mrf.mxu0
      %v3821 = vpop.f32.mrf.mxu0
      %v3822 = vadd.f32 0.0, %v3821
      %v3823 = vpop.f32.mrf.mxu0
      %3824 = vmatprep.mubr.bf16.mxu0 0
      %3825 = vmatmul.mubr.bf16.gmra.mxu0 %v3613
      %v3826 = vpop.f32.mrf.mxu0
      %v3827 = vadd.f32 0.0, %v3826
      %v3828 = vpop.f32.mrf.mxu0
      %v3829 = vpop.f32.mrf.mxu0
      %v3830 = vadd.f32 0.0, %v3829
      %v3831 = vpop.f32.mrf.mxu0
      %3832 = vmatprep.mubr.bf16.mxu0 0
      %3833 = vmatmul.mubr.bf16.gmra.mxu0 %v3614
      %v3834 = vpop.f32.mrf.mxu0
      %v3835 = vadd.f32 0.0, %v3834
      %v3836 = vpop.f32.mrf.mxu0
      %v3837 = vpop.f32.mrf.mxu0
      %v3838 = vadd.f32 0.0, %v3837
      %v3839 = vpop.f32.mrf.mxu0
      %3840 = vdwg.mxu0
      %v3841 = vld [vmem:[#allocation3] sm:$0xff]
      %v3842 = vld [vmem:[#allocation3 + $0x8] sm:$0xff]
      %v3843 = vld [vmem:[#allocation3 + $0x10] sm:$0xff]
      %v3844 = vld [vmem:[#allocation3 + $0x18] sm:$0xff]
      %v3845 = vld [vmem:[#allocation3 + $0x20] sm:$0xff]
      %v3846 = vld [vmem:[#allocation3 + $0x28] sm:$0xff]
      %v3847 = vld [vmem:[#allocation3 + $0x30] sm:$0xff]
      %v3848 = vld [vmem:[#allocation3 + $0x38] sm:$0xff]
      %v3849 = vld [vmem:[#allocation3 + $0x40] sm:$0xff]
      %v3850 = vld [vmem:[#allocation3 + $0x48] sm:$0xff]
      %v3851 = vld [vmem:[#allocation3 + $0x50] sm:$0xff]
      %v3852 = vld [vmem:[#allocation3 + $0x58] sm:$0xff]
      %v3853 = vld [vmem:[#allocation3 + $0x60] sm:$0xff]
      %v3854 = vld [vmem:[#allocation3 + $0x68] sm:$0xff]
      %v3855 = vld [vmem:[#allocation3 + $0x70] sm:$0xff]
      %v3856 = vld [vmem:[#allocation3 + $0x78] sm:$0xff]
      %v3857 = vld [vmem:[#allocation3 + $0x80] sm:$0xff]
      %v3858 = vld [vmem:[#allocation3 + $0x88] sm:$0xff]
      %v3859 = vld [vmem:[#allocation3 + $0x90] sm:$0xff]
      %v3860 = vld [vmem:[#allocation3 + $0x98] sm:$0xff]
      %v3861 = vld [vmem:[#allocation3 + $0xa0] sm:$0xff]
      %v3862 = vld [vmem:[#allocation3 + $0xa8] sm:$0xff]
      %v3863 = vld [vmem:[#allocation3 + $0xb0] sm:$0xff]
      %v3864 = vld [vmem:[#allocation3 + $0xb8] sm:$0xff]
      %v3865 = vld [vmem:[#allocation3 + $0xc0] sm:$0xff]
      %v3866 = vld [vmem:[#allocation3 + $0xc8] sm:$0xff]
      %v3867 = vld [vmem:[#allocation3 + $0xd0] sm:$0xff]
      %v3868 = vld [vmem:[#allocation3 + $0xd8] sm:$0xff]
      %v3869 = vld [vmem:[#allocation3 + $0xe0] sm:$0xff]
      %v3870 = vld [vmem:[#allocation3 + $0xe8] sm:$0xff]
      %v3871 = vld [vmem:[#allocation3 + $0xf0] sm:$0xff]
      %v3872 = vld [vmem:[#allocation3 + $0xf8] sm:$0xff]
      %v3873 = vadd.f32 %v3841, %v3715
      %v3874 = vadd.f32 %v3842, %v3718
      %v3875 = vadd.f32 %v3843, %v3723
      %v3876 = vadd.f32 %v3844, %v3726
      %v3877 = vadd.f32 %v3845, %v3731
      %v3878 = vadd.f32 %v3846, %v3734
      %v3879 = vadd.f32 %v3847, %v3739
      %v3880 = vadd.f32 %v3848, %v3742
      %v3881 = vadd.f32 %v3849, %v3747
      %v3882 = vadd.f32 %v3850, %v3750
      %v3883 = vadd.f32 %v3851, %v3755
      %v3884 = vadd.f32 %v3852, %v3758
      %v3885 = vadd.f32 %v3853, %v3763
      %v3886 = vadd.f32 %v3854, %v3766
      %v3887 = vadd.f32 %v3855, %v3771
      %v3888 = vadd.f32 %v3856, %v3774
      %v3889 = vadd.f32 %v3857, %v3779
      %v3890 = vadd.f32 %v3858, %v3782
      %v3891 = vadd.f32 %v3859, %v3787
      %v3892 = vadd.f32 %v3860, %v3790
      %v3893 = vadd.f32 %v3861, %v3795
      %v3894 = vadd.f32 %v3862, %v3798
      %v3895 = vadd.f32 %v3863, %v3803
      %v3896 = vadd.f32 %v3864, %v3806
      %v3897 = vadd.f32 %v3865, %v3811
      %v3898 = vadd.f32 %v3866, %v3814
      %v3899 = vadd.f32 %v3867, %v3819
      %v3900 = vadd.f32 %v3868, %v3822
      %v3901 = vadd.f32 %v3869, %v3827
      %v3902 = vadd.f32 %v3870, %v3830
      %v3903 = vadd.f32 %v3871, %v3835
      %v3904 = vadd.f32 %v3872, %v3838
      %3905 = vst [vmem:[#allocation3] sm:$0xff] %v3873
      %3906 = vst [vmem:[#allocation3 + $0x8] sm:$0xff] %v3874
      %3907 = vst [vmem:[#allocation3 + $0x10] sm:$0xff] %v3875
      %3908 = vst [vmem:[#allocation3 + $0x18] sm:$0xff] %v3876
      %3909 = vst [vmem:[#allocation3 + $0x20] sm:$0xff] %v3877
      %3910 = vst [vmem:[#allocation3 + $0x28] sm:$0xff] %v3878
      %3911 = vst [vmem:[#allocation3 + $0x30] sm:$0xff] %v3879
      %3912 = vst [vmem:[#allocation3 + $0x38] sm:$0xff] %v3880
      %3913 = vst [vmem:[#allocation3 + $0x40] sm:$0xff] %v3881
      %3914 = vst [vmem:[#allocation3 + $0x48] sm:$0xff] %v3882
      %3915 = vst [vmem:[#allocation3 + $0x50] sm:$0xff] %v3883
      %3916 = vst [vmem:[#allocation3 + $0x58] sm:$0xff] %v3884
      %3917 = vst [vmem:[#allocation3 + $0x60] sm:$0xff] %v3885
      %3918 = vst [vmem:[#allocation3 + $0x68] sm:$0xff] %v3886
      %3919 = vst [vmem:[#allocation3 + $0x70] sm:$0xff] %v3887
      %3920 = vst [vmem:[#allocation3 + $0x78] sm:$0xff] %v3888
      %3921 = vst [vmem:[#allocation3 + $0x80] sm:$0xff] %v3889
      %3922 = vst [vmem:[#allocation3 + $0x88] sm:$0xff] %v3890
      %3923 = vst [vmem:[#allocation3 + $0x90] sm:$0xff] %v3891
      %3924 = vst [vmem:[#allocation3 + $0x98] sm:$0xff] %v3892
      %3925 = vst [vmem:[#allocation3 + $0xa0] sm:$0xff] %v3893
      %3926 = vst [vmem:[#allocation3 + $0xa8] sm:$0xff] %v3894
      %3927 = vst [vmem:[#allocation3 + $0xb0] sm:$0xff] %v3895
      %3928 = vst [vmem:[#allocation3 + $0xb8] sm:$0xff] %v3896
      %3929 = vst [vmem:[#allocation3 + $0xc0] sm:$0xff] %v3897
      %3930 = vst [vmem:[#allocation3 + $0xc8] sm:$0xff] %v3898
      %3931 = vst [vmem:[#allocation3 + $0xd0] sm:$0xff] %v3899
      %3932 = vst [vmem:[#allocation3 + $0xd8] sm:$0xff] %v3900
      %3933 = vst [vmem:[#allocation3 + $0xe0] sm:$0xff] %v3901
      %3934 = vst [vmem:[#allocation3 + $0xe8] sm:$0xff] %v3902
      %3935 = vst [vmem:[#allocation3 + $0xf0] sm:$0xff] %v3903
      %3936 = vst [vmem:[#allocation3 + $0xf8] sm:$0xff] %v3904
      %v3937 = vld [vmem:[#allocation3] sm:$0xff]
      %v3938 = vld [vmem:[#allocation3 + $0x8] sm:$0xff]
      %v3939 = vld [vmem:[#allocation3 + $0x10] sm:$0xff]
      %v3940 = vld [vmem:[#allocation3 + $0x18] sm:$0xff]
      %v3941 = vld [vmem:[#allocation3 + $0x20] sm:$0xff]
      %v3942 = vld [vmem:[#allocation3 + $0x28] sm:$0xff]
      %v3943 = vld [vmem:[#allocation3 + $0x30] sm:$0xff]
      %v3944 = vld [vmem:[#allocation3 + $0x38] sm:$0xff]
      %v3945 = vld [vmem:[#allocation3 + $0x40] sm:$0xff]
      %v3946 = vld [vmem:[#allocation3 + $0x48] sm:$0xff]
      %v3947 = vld [vmem:[#allocation3 + $0x50] sm:$0xff]
      %v3948 = vld [vmem:[#allocation3 + $0x58] sm:$0xff]
      %v3949 = vld [vmem:[#allocation3 + $0x60] sm:$0xff]
      %v3950 = vld [vmem:[#allocation3 + $0x68] sm:$0xff]
      %v3951 = vld [vmem:[#allocation3 + $0x70] sm:$0xff]
      %v3952 = vld [vmem:[#allocation3 + $0x78] sm:$0xff]
      %v3953 = vld [vmem:[#allocation3 + $0x80] sm:$0xff]
      %v3954 = vld [vmem:[#allocation3 + $0x88] sm:$0xff]
      %v3955 = vld [vmem:[#allocation3 + $0x90] sm:$0xff]
      %v3956 = vld [vmem:[#allocation3 + $0x98] sm:$0xff]
      %v3957 = vld [vmem:[#allocation3 + $0xa0] sm:$0xff]
      %v3958 = vld [vmem:[#allocation3 + $0xa8] sm:$0xff]
      %v3959 = vld [vmem:[#allocation3 + $0xb0] sm:$0xff]
      %v3960 = vld [vmem:[#allocation3 + $0xb8] sm:$0xff]
      %v3961 = vld [vmem:[#allocation3 + $0xc0] sm:$0xff]
      %v3962 = vld [vmem:[#allocation3 + $0xc8] sm:$0xff]
      %v3963 = vld [vmem:[#allocation3 + $0xd0] sm:$0xff]
      %v3964 = vld [vmem:[#allocation3 + $0xd8] sm:$0xff]
      %v3965 = vld [vmem:[#allocation3 + $0xe0] sm:$0xff]
      %v3966 = vld [vmem:[#allocation3 + $0xe8] sm:$0xff]
      %v3967 = vld [vmem:[#allocation3 + $0xf0] sm:$0xff]
      %v3968 = vld [vmem:[#allocation3 + $0xf8] sm:$0xff]
      %v3969 = vld [vmem:[%s284] sm:$0xff]
      %v3970 = vld [vmem:[%s284 + $0x8] sm:$0xff]
      %v3971 = vld [vmem:[%s284 + $0x10] sm:$0xff]
      %v3972 = vld [vmem:[%s284 + $0x18] sm:$0xff]
      %v3973 = vld [vmem:[%s284 + $0x20] sm:$0xff]
      %v3974 = vld [vmem:[%s284 + $0x28] sm:$0xff]
      %v3975 = vld [vmem:[%s284 + $0x30] sm:$0xff]
      %v3976 = vld [vmem:[%s284 + $0x38] sm:$0xff]
      %v3977 = vld [vmem:[%s284 + $0x40] sm:$0xff]
      %v3978 = vld [vmem:[%s284 + $0x48] sm:$0xff]
      %v3979 = vld [vmem:[%s284 + $0x50] sm:$0xff]
      %v3980 = vld [vmem:[%s284 + $0x58] sm:$0xff]
      %v3981 = vld [vmem:[%s284 + $0x60] sm:$0xff]
      %v3982 = vld [vmem:[%s284 + $0x68] sm:$0xff]
      %v3983 = vld [vmem:[%s284 + $0x70] sm:$0xff]
      %v3984 = vld [vmem:[%s284 + $0x78] sm:$0xff]
      %v3985 = vld [vmem:[%s284 + $0x80] sm:$0xff]
      %v3986 = vld [vmem:[%s284 + $0x88] sm:$0xff]
      %v3987 = vld [vmem:[%s284 + $0x90] sm:$0xff]
      %v3988 = vld [vmem:[%s284 + $0x98] sm:$0xff]
      %v3989 = vld [vmem:[%s284 + $0xa0] sm:$0xff]
      %v3990 = vld [vmem:[%s284 + $0xa8] sm:$0xff]
      %v3991 = vld [vmem:[%s284 + $0xb0] sm:$0xff]
      %v3992 = vld [vmem:[%s284 + $0xb8] sm:$0xff]
      %v3993 = vld [vmem:[%s284 + $0xc0] sm:$0xff]
      %v3994 = vld [vmem:[%s284 + $0xc8] sm:$0xff]
      %v3995 = vld [vmem:[%s284 + $0xd0] sm:$0xff]
      %v3996 = vld [vmem:[%s284 + $0xd8] sm:$0xff]
      %v3997 = vld [vmem:[%s284 + $0xe0] sm:$0xff]
      %v3998 = vld [vmem:[%s284 + $0xe8] sm:$0xff]
      %v3999 = vld [vmem:[%s284 + $0xf0] sm:$0xff]
      %v4000 = vld [vmem:[%s284 + $0xf8] sm:$0xff]
      %v4001 = vadd.f32 %v3937, %v3969
      %v4002 = vadd.f32 %v3938, %v3970
      %v4003 = vadd.f32 %v3939, %v3971
      %v4004 = vadd.f32 %v3940, %v3972
      %v4005 = vadd.f32 %v3941, %v3973
      %v4006 = vadd.f32 %v3942, %v3974
      %v4007 = vadd.f32 %v3943, %v3975
      %v4008 = vadd.f32 %v3944, %v3976
      %v4009 = vadd.f32 %v3945, %v3977
      %v4010 = vadd.f32 %v3946, %v3978
      %v4011 = vadd.f32 %v3947, %v3979
      %v4012 = vadd.f32 %v3948, %v3980
      %v4013 = vadd.f32 %v3949, %v3981
      %v4014 = vadd.f32 %v3950, %v3982
      %v4015 = vadd.f32 %v3951, %v3983
      %v4016 = vadd.f32 %v3952, %v3984
      %v4017 = vadd.f32 %v3953, %v3985
      %v4018 = vadd.f32 %v3954, %v3986
      %v4019 = vadd.f32 %v3955, %v3987
      %v4020 = vadd.f32 %v3956, %v3988
      %v4021 = vadd.f32 %v3957, %v3989
      %v4022 = vadd.f32 %v3958, %v3990
      %v4023 = vadd.f32 %v3959, %v3991
      %v4024 = vadd.f32 %v3960, %v3992
      %v4025 = vadd.f32 %v3961, %v3993
      %v4026 = vadd.f32 %v3962, %v3994
      %v4027 = vadd.f32 %v3963, %v3995
      %v4028 = vadd.f32 %v3964, %v3996
      %v4029 = vadd.f32 %v3965, %v3997
      %v4030 = vadd.f32 %v3966, %v3998
      %v4031 = vadd.f32 %v3967, %v3999
      %v4032 = vadd.f32 %v3968, %v4000
      %4033 = vst [vmem:[%s292] sm:$0xff] %v4001
      %4034 = vst [vmem:[%s292 + $0x8] sm:$0xff] %v4002
      %4035 = vst [vmem:[%s292 + $0x10] sm:$0xff] %v4003
      %4036 = vst [vmem:[%s292 + $0x18] sm:$0xff] %v4004
      %4037 = vst [vmem:[%s292 + $0x20] sm:$0xff] %v4005
      %4038 = vst [vmem:[%s292 + $0x28] sm:$0xff] %v4006
      %4039 = vst [vmem:[%s292 + $0x30] sm:$0xff] %v4007
      %4040 = vst [vmem:[%s292 + $0x38] sm:$0xff] %v4008
      %4041 = vst [vmem:[%s292 + $0x40] sm:$0xff] %v4009
      %4042 = vst [vmem:[%s292 + $0x48] sm:$0xff] %v4010
      %4043 = vst [vmem:[%s292 + $0x50] sm:$0xff] %v4011
      %4044 = vst [vmem:[%s292 + $0x58] sm:$0xff] %v4012
      %4045 = vst [vmem:[%s292 + $0x60] sm:$0xff] %v4013
      %4046 = vst [vmem:[%s292 + $0x68] sm:$0xff] %v4014
      %4047 = vst [vmem:[%s292 + $0x70] sm:$0xff] %v4015
      %4048 = vst [vmem:[%s292 + $0x78] sm:$0xff] %v4016
      %4049 = vst [vmem:[%s292 + $0x80] sm:$0xff] %v4017
      %4050 = vst [vmem:[%s292 + $0x88] sm:$0xff] %v4018
      %4051 = vst [vmem:[%s292 + $0x90] sm:$0xff] %v4019
      %4052 = vst [vmem:[%s292 + $0x98] sm:$0xff] %v4020
      %4053 = vst [vmem:[%s292 + $0xa0] sm:$0xff] %v4021
      %4054 = vst [vmem:[%s292 + $0xa8] sm:$0xff] %v4022
      %4055 = vst [vmem:[%s292 + $0xb0] sm:$0xff] %v4023
      %4056 = vst [vmem:[%s292 + $0xb8] sm:$0xff] %v4024
      %4057 = vst [vmem:[%s292 + $0xc0] sm:$0xff] %v4025
      %4058 = vst [vmem:[%s292 + $0xc8] sm:$0xff] %v4026
      %4059 = vst [vmem:[%s292 + $0xd0] sm:$0xff] %v4027
      %4060 = vst [vmem:[%s292 + $0xd8] sm:$0xff] %v4028
      %4061 = vst [vmem:[%s292 + $0xe0] sm:$0xff] %v4029
      %4062 = vst [vmem:[%s292 + $0xe8] sm:$0xff] %v4030
      %4063 = vst [vmem:[%s292 + $0xf0] sm:$0xff] %v4031
      %4064 = vst [vmem:[%s292 + $0xf8] sm:$0xff] %v4032
      %p4065 = scmp.lt.s32.totalorder %s20, 1
      %s4066 = scalar_select %p4065, %s20, 1
      %p4067 = scmp.lt.s32.totalorder %s21, 0
      %s4068 = scalar_select %p4067, %s21, 0
      %s4069 = smul.addr %s4066, 32
      %s4070 = sadd.s32 %s4068, %s4069
      %s4071 = smul.addr %s4070, 8
      %s4072 = scalar_lea.vmem %s5, %s4071
      // Predicated region
      $region45: #{preact_block_forward.7} parent=39 // pred_check
        %p4073 = pneg %p170
      $region46: #{preact_block_forward.7} parent=39 // pred_check_branch
        %4075 = sbr.rel (%p4073) target = $region48
      $region47: #{preact_block_forward.7} parent=39 // pred_region
        _
      $region48: #{preact_block_forward.7} parent=39 // pred_fallthru
        _
    $region40: #{preact_block_forward.7} parent=5 // pred_fallthru
      _
    %p4076 = scmp.le.s32.totalorder 2, %s11
    // Predicated region
    $region49: #{preact_block_forward.7} parent=5 // pred_check
      %p4077 = pneg %p4076
    $region50: #{preact_block_forward.7} parent=5 // pred_check_branch
      %4079 = sbr.rel (%p4077) target = $region52
    $region51: #{preact_block_forward.7} parent=5 // pred_region
      %s4080 = ssub.s32 %s11, 2
      // Predicated region
      $region53: #{preact_block_forward.7} parent=51 // pred_check
        %p4081 = pneg %p176
      $region54: #{preact_block_forward.7} parent=51 // pred_check_branch
        %4083 = sbr.rel (%p4081) target = $region56
      $region55: #{preact_block_forward.7} parent=51 // pred_region
        %p4084 = scmp.lt.s32.totalorder %s22, 1
        %s4085 = scalar_select %p4084, %s22, 1
        %p4086 = scmp.lt.s32.totalorder %s23, 0
        %s4087 = scalar_select %p4086, %s23, 0
        %s4088 = smul.addr %s4085, 32
        %s4089 = sadd.s32 %s4087, %s4088
        %s4090 = smul.addr %s4089, 8
        %s4091 = scalar_lea.vmem %s5, %s4090
      $region56: #{preact_block_forward.7} parent=51 // pred_fallthru
        _
    $region52: #{preact_block_forward.7} parent=5 // pred_fallthru
      _
  $region6: #{preact_block_forward.7} parent=0 // loop_footer
    %s15 = sadd.s32 1, %s11
  $region7: #{preact_block_forward.7} parent=0 // loop_footer_branch
    %10 = sbr.rel target = $region3
  $region8: #{preact_block_forward.7} parent=0 // loop_exit
    _

</llo_original>
